<compile_context>
chip_gen: v5e
topology: v5e:2x2
jax: 0.10.0
libtpu: 0.0.40
codegen_flags: <defaults>
</compile_context>

<pallas_src>
import math
import functools

import jax
import jax.numpy as jnp
from jax.experimental import pallas as pl
from jax.experimental.pallas import tpu as pltpu


# ----------------------------------------------------------------------------
# Fused SingleTransformerEncoder kernel (pos-enc + N post-norm encoder layers +
# masked average pooling) for a block of S_BLK sequences per grid step.
# ----------------------------------------------------------------------------
def tf_encoder_kernel(feat_ref, mask_ref, pos_ref,
                      inproj_w_ref, inproj_b_ref, out_w_ref, out_b_ref,
                      ln1_w_ref, ln1_b_ref, ln2_w_ref, ln2_b_ref,
                      ff1_w_ref, ff1_b_ref, ff2_w_ref, ff2_b_ref,
                      o_ref, *, n_layers, n_heads, hidden, seq_len, s_blk):
    f32 = jnp.float32
    bf16 = jnp.bfloat16
    H = hidden
    L = seq_len
    hd = H // n_heads
    eps = f32(1e-5)

    # learned positional encoding + flatten rows for the dense matmuls
    x = feat_ref[...] + pos_ref[...]                       # (s_blk, L, H) f32
    x = x.reshape(s_blk * L, H)                            # (s_blk*L, H)

    valid = mask_ref[...]                                  # (s_blk, 1, L) 1.0 = valid key
    # hoisted additive key-padding bias, shared by all layers and heads
    key_bias = jnp.broadcast_to((1.0 - valid) * f32(-1e30), (s_blk, L, L))

    def layer_norm(y, w, b):
        mu = jnp.mean(y, axis=-1, keepdims=True)
        var = jnp.mean((y - mu) ** 2, axis=-1, keepdims=True)
        return (y - mu) * jax.lax.rsqrt(var + eps) * w + b

    for l in range(n_layers):
        # --- multi-head self attention (post-norm TransformerEncoderLayer) ---
        # NOTE: the 1/sqrt(hd) scale is pre-folded into the Q columns of inproj_w.
        qkv = jnp.dot(x.astype(bf16), inproj_w_ref[l],
                      preferred_element_type=f32) + inproj_b_ref[l]      # (s_blk*L, 3H)
        q3 = qkv[:, :H].reshape(s_blk, L, H).astype(bf16)
        k3 = qkv[:, H:2 * H].reshape(s_blk, L, H).astype(bf16)
        v3 = qkv[:, 2 * H:].reshape(s_blk, L, H).astype(bf16)

        ow = out_w_ref[l]                                   # (n_heads, hd, H) bf16
        attn = jnp.zeros((s_blk * L, H), f32) + out_b_ref[l]
        for h in range(n_heads):
            sl = slice(h * hd, (h + 1) * hd)
            s = jnp.einsum('bqd,bkd->bqk', q3[:, :, sl], k3[:, :, sl],
                           preferred_element_type=f32)      # (s_blk, L, L)
            s = s + key_bias
            s = s - jnp.max(s, axis=-1, keepdims=True)
            p = jnp.exp(s)
            p = p * pl.reciprocal(jnp.sum(p, axis=-1, keepdims=True), approx=True)
            ctx = jnp.einsum('bqk,bkd->bqd', p.astype(bf16), v3[:, :, sl],
                             preferred_element_type=f32)    # (s_blk, L, hd)
            # per-head output projection accumulation (== concat(heads) @ out_w)
            attn = attn + jnp.dot(ctx.reshape(s_blk * L, hd).astype(bf16), ow[h],
                                  preferred_element_type=f32)

        x = layer_norm(x + attn, ln1_w_ref[l], ln1_b_ref[l])

        # --- feed-forward (relu) ---
        hmid = jnp.maximum(
            jnp.dot(x.astype(bf16), ff1_w_ref[l], preferred_element_type=f32)
            + ff1_b_ref[l], 0.0)                                          # (s_blk*L, FF)
        ffo = jnp.dot(hmid.astype(bf16), ff2_w_ref[l],
                      preferred_element_type=f32) + ff2_b_ref[l]          # (s_blk*L, H)

        x = layer_norm(x + ffo, ln2_w_ref[l], ln2_b_ref[l])

    # --- AvgPoolSequence: masked mean over the sequence axis ---
    length = jnp.sum(valid, axis=-1, keepdims=True)                       # (s_blk, 1, 1)
    w = valid * pl.reciprocal(length + f32(1e-12), approx=True)           # (s_blk, 1, L)
    pooled = jnp.einsum('bol,blh->boh', w, x.reshape(s_blk, L, H),
                        preferred_element_type=f32)                       # (s_blk, 1, H)
    o_ref[...] = pooled.reshape(s_blk, H)                                 # dense (s_blk, H) slab


def _pick_s_blk(S, L, target_rows=256, max_blk=64):
    """Block of sequences per grid step: multiple of 8, aim for >=target_rows matmul
    rows, but keep >=2 grid steps when S allows (v7x shards 'parallel' over 2 TCs)."""
    blk = max(1, target_rows // max(L, 1))
    blk = min(max_blk, max(8, (blk // 8) * 8))
    while blk > 8 and S < 2 * blk:
        blk -= 8
    return blk


def single_transformer_encoder(feat, valid, enc, n_heads):
    """feat: (S, L, H) float32, valid: (S, L) {0,1}; returns (S, H) float32."""
    S, L, H = feat.shape
    nl = enc['inproj_w'].shape[0]
    ff = enc['ff1_w'].shape[-1]
    hd = H // n_heads

    s_blk = _pick_s_blk(S, L)
    s_pad = pl.cdiv(S, s_blk) * s_blk
    pad = s_pad - S

    feat = feat.astype(jnp.float32)
    valid = valid.astype(jnp.float32)
    if pad:
        feat = jnp.pad(feat, ((0, pad), (0, 0), (0, 0)))
        valid = jnp.pad(valid, ((0, pad), (0, 0)))      # padded seqs: all keys masked, pooled to 0
    valid3 = valid.reshape(s_pad, 1, L)

    pos = enc['pos'][:L, :].astype(jnp.float32)

    # fold the 1/sqrt(hd) attention scale into the Q slice of the in-projection
    scale = jnp.float32(1.0 / math.sqrt(hd))
    inproj_w = jnp.concatenate(
        [enc['inproj_w'][:, :, :H] * scale, enc['inproj_w'][:, :, H:]], axis=-1
    ).astype(jnp.bfloat16)
    inproj_b = jnp.concatenate(
        [enc['inproj_b'][:, :, :H] * scale, enc['inproj_b'][:, :, H:]], axis=-1
    ).astype(jnp.float32)

    # per-head split of the output projection: (nl, H, H) -> (nl, n_heads, hd, H)
    out_w = enc['out_w'].reshape(nl, n_heads, hd, H).astype(jnp.bfloat16)
    ff1_w = enc['ff1_w'].astype(jnp.bfloat16)
    ff2_w = enc['ff2_w'].astype(jnp.bfloat16)

    kernel = functools.partial(tf_encoder_kernel, n_layers=nl, n_heads=n_heads,
                               hidden=H, seq_len=L, s_blk=s_blk)

    def whole(shape):
        return pl.BlockSpec(shape, lambda *_: (0,) * len(shape))

    operands = (feat, valid3, pos,
                inproj_w, inproj_b, out_w, enc['out_b'],
                enc['ln1_w'], enc['ln1_b'], enc['ln2_w'], enc['ln2_b'],
                ff1_w, enc['ff1_b'], ff2_w, enc['ff2_b'])

    # size the scoped VMEM limit from the resident weights + pipelined I/O blocks
    # (kept <= 64 MiB so the same setting is valid on v5e/v6e/v7x)
    resident_bytes = sum(int(a.size) * a.dtype.itemsize for a in operands[2:])
    block_bytes = 2 * (s_blk * L * H * 4 + s_blk * L * 4 + s_blk * H * 4)
    vmem_limit = int(min(64 * 2**20, max(32 * 2**20, 4 * (resident_bytes + block_bytes))))

    # TODO(synk): at production sizes (H>=512, ff=2048, nl>2) bound weight residency for
    # v7x's 64 MiB VMEM (pl.Buffered(1) weight specs or a per-layer 'arbitrary' grid axis).
    out = pl.pallas_call(
        kernel,
        out_shape=jax.ShapeDtypeStruct((s_pad, H), jnp.float32),
        grid=(s_pad // s_blk,),
        in_specs=[
            pl.BlockSpec((s_blk, L, H), lambda i: (i, 0, 0)),   # feat block
            pl.BlockSpec((s_blk, 1, L), lambda i: (i, 0, 0)),   # valid mask block
            whole((L, H)),                                      # pos encoding
            whole((nl, H, 3 * H)), whole((nl, 1, 3 * H)),       # in_proj (bf16 / f32 bias)
            whole((nl, n_heads, hd, H)), whole((nl, 1, H)),     # out_proj (per-head) / bias
            whole((nl, 1, H)), whole((nl, 1, H)),               # ln1
            whole((nl, 1, H)), whole((nl, 1, H)),               # ln2
            whole((nl, H, ff)), whole((nl, 1, ff)),             # linear1
            whole((nl, ff, H)), whole((nl, 1, H)),              # linear2
        ],
        out_specs=pl.BlockSpec((s_blk, H), lambda i: (i, 0)),
        compiler_params=pltpu.CompilerParams(
            dimension_semantics=("parallel",),
            vmem_limit_bytes=vmem_limit),
    )(*operands)
    return out[:S]


# ----------------------------------------------------------------------------
# RecipeEncoder forward (glue in plain JAX, transformer hot path in Pallas)
# ----------------------------------------------------------------------------
def recipe_encoder_forward(input_ids, params, n_heads):
    B, N, L = input_ids.shape
    input_rs = input_ids.reshape(B * N, L)

    ignore_mask = (input_rs == 0)
    ignore_mask = ignore_mask.at[:, 0].set(False)      # first token always attended
    valid_tf = jnp.logical_not(ignore_mask)

    # word embedding lookup (gather) - kept in plain JAX glue
    feat = jnp.take(params['emb'], input_rs, axis=0)   # (B*N, L, H)

    out = single_transformer_encoder(feat, valid_tf, params['tf'], n_heads)   # (B*N, H)
    out = out.reshape(B, N, -1)

    attn_mask = input_ids > 0
    mask_list = (jnp.sum(attn_mask, axis=-1) > 0)      # (B, N) valid instructions

    out = single_transformer_encoder(out, mask_list, params['merger'], n_heads)  # (B, H)
    return out


# ----------------------------------------------------------------------------
# Deterministic synthetic parameter init
# ----------------------------------------------------------------------------
def init_encoder_params(key, hidden, n_layers, ff=2048, num_pos=50):
    ks = jax.random.split(key, 8)

    def nrm(k, shape, scale):
        return (scale * jax.random.normal(k, shape)).astype(jnp.float32)

    zeros = lambda shape: jnp.zeros(shape, jnp.float32)
    ones = lambda shape: jnp.ones(shape, jnp.float32)

    xavier_pos = math.sqrt(2.0 / (num_pos + hidden))
    p = {
        'pos':       nrm(ks[0], (num_pos, hidden), xavier_pos),
        # weights are stored pre-transposed: y = x @ W
        'inproj_w':  nrm(ks[1], (n_layers, hidden, 3 * hidden), 1.0 / math.sqrt(hidden)),
        'inproj_b':  zeros((n_layers, 1, 3 * hidden)),
        'out_w':     nrm(ks[2], (n_layers, hidden, hidden), 1.0 / math.sqrt(hidden)),
        'out_b':     zeros((n_layers, 1, hidden)),
        'ln1_w':     ones((n_layers, 1, hidden)),
        'ln1_b':     zeros((n_layers, 1, hidden)),
        'ln2_w':     ones((n_layers, 1, hidden)),
        'ln2_b':     zeros((n_layers, 1, hidden)),
        'ff1_w':     nrm(ks[3], (n_layers, hidden, ff), 1.0 / math.sqrt(hidden)),
        'ff1_b':     zeros((n_layers, 1, ff)),
        'ff2_w':     nrm(ks[4], (n_layers, ff, hidden), 1.0 / math.sqrt(ff)),
        'ff2_b':     zeros((n_layers, 1, hidden)),
    }
    return p


if __name__ == "__main__":
    # small shapes consistent with RecipeEncoder(vocab_size, hidden_size, n_heads, n_layers)
    B, N, L = 2, 4, 8        # batch, instructions per recipe, tokens per instruction
    VOCAB, H, HEADS, LAYERS = 30, 32, 4, 2

    key = jax.random.PRNGKey(0)
    k_in, k_emb, k_tf, k_mrg = jax.random.split(key, 4)

    input_ids = jax.random.randint(k_in, (B, N, L), 0, VOCAB, dtype=jnp.int32)
    # guarantee each recipe has at least one non-empty instruction (matches the
    # module's implicit assumption; otherwise PyTorch would produce NaNs too)
    input_ids = input_ids.at[:, 0, 1].set(5)

    params = {
        'emb':    jax.random.normal(k_emb, (VOCAB, H), jnp.float32),
        'tf':     init_encoder_params(k_tf, H, LAYERS),
        'merger': init_encoder_params(k_mrg, H, LAYERS),
    }

    # TODO(synk): dropout (p=0.1) in pos-encoding / encoder layers is identity (eval mode).
    out = recipe_encoder_forward(input_ids, params, n_heads=HEADS)
    out = jax.block_until_ready(out)
    assert out.shape == (B, H) and out.dtype == jnp.float32
    print("KERNEL_OK")
</pallas_src>

<mosaic_0001>
module attributes {stable_mosaic.version = 11 : i64} {
  func.func @tf_encoder_kernel(%arg0: i32, %arg1: memref<8x8x32xf32, #tpu.memory_space<vmem>>, %arg2: memref<8x1x8xf32, #tpu.memory_space<vmem>>, %arg3: memref<8x32xf32, #tpu.memory_space<vmem>>, %arg4: memref<2x32x96xbf16, #tpu.memory_space<vmem>>, %arg5: memref<2x1x96xf32, #tpu.memory_space<vmem>>, %arg6: memref<2x4x8x32xbf16, #tpu.memory_space<vmem>>, %arg7: memref<2x1x32xf32, #tpu.memory_space<vmem>>, %arg8: memref<2x1x32xf32, #tpu.memory_space<vmem>>, %arg9: memref<2x1x32xf32, #tpu.memory_space<vmem>>, %arg10: memref<2x1x32xf32, #tpu.memory_space<vmem>>, %arg11: memref<2x1x32xf32, #tpu.memory_space<vmem>>, %arg12: memref<2x32x2048xbf16, #tpu.memory_space<vmem>>, %arg13: memref<2x1x2048xf32, #tpu.memory_space<vmem>>, %arg14: memref<2x2048x32xbf16, #tpu.memory_space<vmem>>, %arg15: memref<2x1x32xf32, #tpu.memory_space<vmem>>, %arg16: memref<8x32xf32, #tpu.memory_space<vmem>>) attributes {dimension_semantics = [#tpu.dimension_semantics<parallel>], iteration_bounds = array<i64: 1>, scalar_prefetch = 0 : i64, scratch_operands = 0 : i64, tpu.core_type = #tpu.core_type<tc>, window_params = [{transform_indices = @transform_0, window_bounds = array<i64: 8, 8, 32>}, {transform_indices = @transform_1, window_bounds = array<i64: 8, 1, 8>}, {pipeline_mode = #tpu.pipeline_mode<synchronous>, transform_indices = @transform_2, window_bounds = array<i64: 8, 32>}, {pipeline_mode = #tpu.pipeline_mode<synchronous>, transform_indices = @transform_3, window_bounds = array<i64: 2, 32, 96>}, {pipeline_mode = #tpu.pipeline_mode<synchronous>, transform_indices = @transform_4, window_bounds = array<i64: 2, 1, 96>}, {pipeline_mode = #tpu.pipeline_mode<synchronous>, transform_indices = @transform_5, window_bounds = array<i64: 2, 4, 8, 32>}, {pipeline_mode = #tpu.pipeline_mode<synchronous>, transform_indices = @transform_6, window_bounds = array<i64: 2, 1, 32>}, {pipeline_mode = #tpu.pipeline_mode<synchronous>, transform_indices = @transform_7, window_bounds = array<i64: 2, 1, 32>}, {pipeline_mode = #tpu.pipeline_mode<synchronous>, transform_indices = @transform_8, window_bounds = array<i64: 2, 1, 32>}, {pipeline_mode = #tpu.pipeline_mode<synchronous>, transform_indices = @transform_9, window_bounds = array<i64: 2, 1, 32>}, {pipeline_mode = #tpu.pipeline_mode<synchronous>, transform_indices = @transform_10, window_bounds = array<i64: 2, 1, 32>}, {pipeline_mode = #tpu.pipeline_mode<synchronous>, transform_indices = @transform_11, window_bounds = array<i64: 2, 32, 2048>}, {pipeline_mode = #tpu.pipeline_mode<synchronous>, transform_indices = @transform_12, window_bounds = array<i64: 2, 1, 2048>}, {pipeline_mode = #tpu.pipeline_mode<synchronous>, transform_indices = @transform_13, window_bounds = array<i64: 2, 2048, 32>}, {pipeline_mode = #tpu.pipeline_mode<synchronous>, transform_indices = @transform_14, window_bounds = array<i64: 2, 1, 32>}, {transform_indices = @transform_15, window_bounds = array<i64: 8, 32>}]} {
    %c0 = arith.constant 0 : index
    %c0_0 = arith.constant 0 : index
    %c0_1 = arith.constant 0 : index
    %0 = vector.load %arg1[%c0, %c0_0, %c0_1] : memref<8x8x32xf32, #tpu.memory_space<vmem>>, vector<8x8x32xf32>
    %c0_2 = arith.constant 0 : index
    %c0_3 = arith.constant 0 : index
    %1 = vector.load %arg3[%c0_2, %c0_3] : memref<8x32xf32, #tpu.memory_space<vmem>>, vector<8x32xf32>
    %2 = vector.shape_cast %1 : vector<8x32xf32> to vector<1x8x32xf32>
    %3 = vector.broadcast %2 : vector<1x8x32xf32> to vector<8x8x32xf32>
    %4 = arith.addf %0, %3 : vector<8x8x32xf32>
    %5 = vector.shape_cast %4 : vector<8x8x32xf32> to vector<64x32xf32>
    %c0_4 = arith.constant 0 : index
    %c0_5 = arith.constant 0 : index
    %c0_6 = arith.constant 0 : index
    %6 = vector.load %arg2[%c0_4, %c0_5, %c0_6] : memref<8x1x8xf32, #tpu.memory_space<vmem>>, vector<8x1x8xf32>
    %cst = arith.constant 1.000000e+00 : f32
    %7 = vector.broadcast %cst : f32 to vector<8x1x8xf32>
    %8 = arith.subf %7, %6 : vector<8x1x8xf32>
    %cst_7 = arith.constant -1.000000e+30 : f32
    %9 = vector.broadcast %cst_7 : f32 to vector<8x1x8xf32>
    %10 = arith.mulf %8, %9 : vector<8x1x8xf32>
    %11 = vector.shape_cast %10 : vector<8x1x8xf32> to vector<8x1x8xf32>
    %12 = vector.broadcast %11 : vector<8x1x8xf32> to vector<8x8x8xf32>
    %13 = arith.truncf %5 : vector<64x32xf32> to vector<64x32xbf16>
    %c0_8 = arith.constant 0 : index
    %c0_9 = arith.constant 0 : index
    %c0_10 = arith.constant 0 : index
    %14 = vector.load %arg4[%c0_8, %c0_9, %c0_10] : memref<2x32x96xbf16, #tpu.memory_space<vmem>>, vector<1x32x96xbf16>
    %15 = vector.shape_cast %14 : vector<1x32x96xbf16> to vector<32x96xbf16>
    %cst_11 = arith.constant dense<0.000000e+00> : vector<64x96xf32>
    %16 = tpu.matmul %13, %15, %cst_11 {dimension_numbers = #tpu.dot_dimension_numbers<[1], [0], [0], [1], [0, 0, 1, 1], [], []>} : vector<64x32xbf16>, vector<32x96xbf16>, vector<64x96xf32> -> vector<64x96xf32>
    %c0_12 = arith.constant 0 : index
    %c0_13 = arith.constant 0 : index
    %c0_14 = arith.constant 0 : index
    %17 = vector.load %arg5[%c0_12, %c0_13, %c0_14] : memref<2x1x96xf32, #tpu.memory_space<vmem>>, vector<1x1x96xf32>
    %18 = vector.shape_cast %17 : vector<1x1x96xf32> to vector<1x96xf32>
    %19 = vector.broadcast %18 : vector<1x96xf32> to vector<64x96xf32>
    %20 = arith.addf %16, %19 : vector<64x96xf32>
    %21 = vector.extract_strided_slice %20 {offsets = [0, 0], sizes = [64, 32], strides = [1, 1]} : vector<64x96xf32> to vector<64x32xf32>
    %22 = vector.shape_cast %21 : vector<64x32xf32> to vector<8x8x32xf32>
    %23 = arith.truncf %22 : vector<8x8x32xf32> to vector<8x8x32xbf16>
    %24 = vector.extract_strided_slice %20 {offsets = [0, 32], sizes = [64, 32], strides = [1, 1]} : vector<64x96xf32> to vector<64x32xf32>
    %25 = vector.shape_cast %24 : vector<64x32xf32> to vector<8x8x32xf32>
    %26 = arith.truncf %25 : vector<8x8x32xf32> to vector<8x8x32xbf16>
    %27 = vector.extract_strided_slice %20 {offsets = [0, 64], sizes = [64, 32], strides = [1, 1]} : vector<64x96xf32> to vector<64x32xf32>
    %28 = vector.shape_cast %27 : vector<64x32xf32> to vector<8x8x32xf32>
    %29 = arith.truncf %28 : vector<8x8x32xf32> to vector<8x8x32xbf16>
    %c0_15 = arith.constant 0 : index
    %c0_16 = arith.constant 0 : index
    %c0_17 = arith.constant 0 : index
    %c0_18 = arith.constant 0 : index
    %30 = vector.load %arg6[%c0_15, %c0_16, %c0_17, %c0_18] : memref<2x4x8x32xbf16, #tpu.memory_space<vmem>>, vector<1x4x8x32xbf16>
    %31 = vector.shape_cast %30 : vector<1x4x8x32xbf16> to vector<4x8x32xbf16>
    %cst_19 = arith.constant 0.000000e+00 : f32
    %32 = vector.broadcast %cst_19 : f32 to vector<64x32xf32>
    %c0_20 = arith.constant 0 : index
    %c0_21 = arith.constant 0 : index
    %c0_22 = arith.constant 0 : index
    %33 = vector.load %arg7[%c0_20, %c0_21, %c0_22] : memref<2x1x32xf32, #tpu.memory_space<vmem>>, vector<1x1x32xf32>
    %34 = vector.shape_cast %33 : vector<1x1x32xf32> to vector<1x32xf32>
    %35 = vector.broadcast %34 : vector<1x32xf32> to vector<64x32xf32>
    %36 = arith.addf %32, %35 : vector<64x32xf32>
    %37 = vector.extract_strided_slice %23 {offsets = [0, 0, 0], sizes = [8, 8, 8], strides = [1, 1, 1]} : vector<8x8x32xbf16> to vector<8x8x8xbf16>
    %38 = vector.extract_strided_slice %26 {offsets = [0, 0, 0], sizes = [8, 8, 8], strides = [1, 1, 1]} : vector<8x8x32xbf16> to vector<8x8x8xbf16>
    "tpu.trace_start"() <{level = 10 : i32, message = "bqd,bkd->bqk"}> : () -> ()
    %cst_23 = arith.constant dense<0.000000e+00> : vector<8x8x8xf32>
    %39 = tpu.matmul %37, %38, %cst_23 {dimension_numbers = #tpu.dot_dimension_numbers<[2], [2], [1], [1], [0, 0, 0, 1, 1, 1], [0], [0]>} : vector<8x8x8xbf16>, vector<8x8x8xbf16>, vector<8x8x8xf32> -> vector<8x8x8xf32>
    "tpu.trace_stop"() : () -> ()
    %40 = arith.addf %39, %12 : vector<8x8x8xf32>
    %cst_24 = arith.constant dense<0xFF800000> : vector<8x8xf32>
    %41 = vector.multi_reduction <maximumf>, %40, %cst_24 [2] : vector<8x8x8xf32> to vector<8x8xf32>
    %42 = vector.shape_cast %41 : vector<8x8xf32> to vector<8x8x1xf32>
    %43 = vector.broadcast %42 : vector<8x8x1xf32> to vector<8x8x8xf32>
    %44 = arith.subf %40, %43 : vector<8x8x8xf32>
    %45 = math.exp %44 : vector<8x8x8xf32>
    %cst_25 = arith.constant dense<0.000000e+00> : vector<8x8xf32>
    %46 = vector.multi_reduction <add>, %45, %cst_25 [2] : vector<8x8x8xf32> to vector<8x8xf32>
    %47 = vector.shape_cast %46 : vector<8x8xf32> to vector<8x8x1xf32>
    %48 = tpu.reciprocal %47 {approx = true} : vector<8x8x1xf32> -> vector<8x8x1xf32>
    %49 = vector.broadcast %48 : vector<8x8x1xf32> to vector<8x8x8xf32>
    %50 = arith.mulf %45, %49 : vector<8x8x8xf32>
    %51 = arith.truncf %50 : vector<8x8x8xf32> to vector<8x8x8xbf16>
    %52 = vector.extract_strided_slice %29 {offsets = [0, 0, 0], sizes = [8, 8, 8], strides = [1, 1, 1]} : vector<8x8x32xbf16> to vector<8x8x8xbf16>
    "tpu.trace_start"() <{level = 10 : i32, message = "bqk,bkd->bqd"}> : () -> ()
    %cst_26 = arith.constant dense<0.000000e+00> : vector<8x8x8xf32>
    %53 = tpu.matmul %51, %52, %cst_26 {dimension_numbers = #tpu.dot_dimension_numbers<[2], [1], [1], [2], [0, 0, 0, 1, 1, 2], [0], [0]>} : vector<8x8x8xbf16>, vector<8x8x8xbf16>, vector<8x8x8xf32> -> vector<8x8x8xf32>
    "tpu.trace_stop"() : () -> ()
    %54 = vector.shape_cast %53 : vector<8x8x8xf32> to vector<64x8xf32>
    %55 = arith.truncf %54 : vector<64x8xf32> to vector<64x8xbf16>
    %56 = vector.extract_strided_slice %31 {offsets = [0, 0, 0], sizes = [1, 8, 32], strides = [1, 1, 1]} : vector<4x8x32xbf16> to vector<1x8x32xbf16>
    %57 = vector.shape_cast %56 : vector<1x8x32xbf16> to vector<8x32xbf16>
    %cst_27 = arith.constant dense<0.000000e+00> : vector<64x32xf32>
    %58 = tpu.matmul %55, %57, %cst_27 {dimension_numbers = #tpu.dot_dimension_numbers<[1], [0], [0], [1], [0, 0, 1, 1], [], []>} : vector<64x8xbf16>, vector<8x32xbf16>, vector<64x32xf32> -> vector<64x32xf32>
    %59 = arith.addf %36, %58 : vector<64x32xf32>
    %60 = vector.extract_strided_slice %23 {offsets = [0, 0, 8], sizes = [8, 8, 8], strides = [1, 1, 1]} : vector<8x8x32xbf16> to vector<8x8x8xbf16>
    %61 = vector.extract_strided_slice %26 {offsets = [0, 0, 8], sizes = [8, 8, 8], strides = [1, 1, 1]} : vector<8x8x32xbf16> to vector<8x8x8xbf16>
    "tpu.trace_start"() <{level = 10 : i32, message = "bqd,bkd->bqk"}> : () -> ()
    %cst_28 = arith.constant dense<0.000000e+00> : vector<8x8x8xf32>
    %62 = tpu.matmul %60, %61, %cst_28 {dimension_numbers = #tpu.dot_dimension_numbers<[2], [2], [1], [1], [0, 0, 0, 1, 1, 1], [0], [0]>} : vector<8x8x8xbf16>, vector<8x8x8xbf16>, vector<8x8x8xf32> -> vector<8x8x8xf32>
    "tpu.trace_stop"() : () -> ()
    %63 = arith.addf %62, %12 : vector<8x8x8xf32>
    %cst_29 = arith.constant dense<0xFF800000> : vector<8x8xf32>
    %64 = vector.multi_reduction <maximumf>, %63, %cst_29 [2] : vector<8x8x8xf32> to vector<8x8xf32>
    %65 = vector.shape_cast %64 : vector<8x8xf32> to vector<8x8x1xf32>
    %66 = vector.broadcast %65 : vector<8x8x1xf32> to vector<8x8x8xf32>
    %67 = arith.subf %63, %66 : vector<8x8x8xf32>
    %68 = math.exp %67 : vector<8x8x8xf32>
    %cst_30 = arith.constant dense<0.000000e+00> : vector<8x8xf32>
    %69 = vector.multi_reduction <add>, %68, %cst_30 [2] : vector<8x8x8xf32> to vector<8x8xf32>
    %70 = vector.shape_cast %69 : vector<8x8xf32> to vector<8x8x1xf32>
    %71 = tpu.reciprocal %70 {approx = true} : vector<8x8x1xf32> -> vector<8x8x1xf32>
    %72 = vector.broadcast %71 : vector<8x8x1xf32> to vector<8x8x8xf32>
    %73 = arith.mulf %68, %72 : vector<8x8x8xf32>
    %74 = arith.truncf %73 : vector<8x8x8xf32> to vector<8x8x8xbf16>
    %75 = vector.extract_strided_slice %29 {offsets = [0, 0, 8], sizes = [8, 8, 8], strides = [1, 1, 1]} : vector<8x8x32xbf16> to vector<8x8x8xbf16>
    "tpu.trace_start"() <{level = 10 : i32, message = "bqk,bkd->bqd"}> : () -> ()
    %cst_31 = arith.constant dense<0.000000e+00> : vector<8x8x8xf32>
    %76 = tpu.matmul %74, %75, %cst_31 {dimension_numbers = #tpu.dot_dimension_numbers<[2], [1], [1], [2], [0, 0, 0, 1, 1, 2], [0], [0]>} : vector<8x8x8xbf16>, vector<8x8x8xbf16>, vector<8x8x8xf32> -> vector<8x8x8xf32>
    "tpu.trace_stop"() : () -> ()
    %77 = vector.shape_cast %76 : vector<8x8x8xf32> to vector<64x8xf32>
    %78 = arith.truncf %77 : vector<64x8xf32> to vector<64x8xbf16>
    %79 = vector.extract_strided_slice %31 {offsets = [1, 0, 0], sizes = [1, 8, 32], strides = [1, 1, 1]} : vector<4x8x32xbf16> to vector<1x8x32xbf16>
    %80 = vector.shape_cast %79 : vector<1x8x32xbf16> to vector<8x32xbf16>
    %cst_32 = arith.constant dense<0.000000e+00> : vector<64x32xf32>
    %81 = tpu.matmul %78, %80, %cst_32 {dimension_numbers = #tpu.dot_dimension_numbers<[1], [0], [0], [1], [0, 0, 1, 1], [], []>} : vector<64x8xbf16>, vector<8x32xbf16>, vector<64x32xf32> -> vector<64x32xf32>
    %82 = arith.addf %59, %81 : vector<64x32xf32>
    %83 = vector.extract_strided_slice %23 {offsets = [0, 0, 16], sizes = [8, 8, 8], strides = [1, 1, 1]} : vector<8x8x32xbf16> to vector<8x8x8xbf16>
    %84 = vector.extract_strided_slice %26 {offsets = [0, 0, 16], sizes = [8, 8, 8], strides = [1, 1, 1]} : vector<8x8x32xbf16> to vector<8x8x8xbf16>
    "tpu.trace_start"() <{level = 10 : i32, message = "bqd,bkd->bqk"}> : () -> ()
    %cst_33 = arith.constant dense<0.000000e+00> : vector<8x8x8xf32>
    %85 = tpu.matmul %83, %84, %cst_33 {dimension_numbers = #tpu.dot_dimension_numbers<[2], [2], [1], [1], [0, 0, 0, 1, 1, 1], [0], [0]>} : vector<8x8x8xbf16>, vector<8x8x8xbf16>, vector<8x8x8xf32> -> vector<8x8x8xf32>
    "tpu.trace_stop"() : () -> ()
    %86 = arith.addf %85, %12 : vector<8x8x8xf32>
    %cst_34 = arith.constant dense<0xFF800000> : vector<8x8xf32>
    %87 = vector.multi_reduction <maximumf>, %86, %cst_34 [2] : vector<8x8x8xf32> to vector<8x8xf32>
    %88 = vector.shape_cast %87 : vector<8x8xf32> to vector<8x8x1xf32>
    %89 = vector.broadcast %88 : vector<8x8x1xf32> to vector<8x8x8xf32>
    %90 = arith.subf %86, %89 : vector<8x8x8xf32>
    %91 = math.exp %90 : vector<8x8x8xf32>
    %cst_35 = arith.constant dense<0.000000e+00> : vector<8x8xf32>
    %92 = vector.multi_reduction <add>, %91, %cst_35 [2] : vector<8x8x8xf32> to vector<8x8xf32>
    %93 = vector.shape_cast %92 : vector<8x8xf32> to vector<8x8x1xf32>
    %94 = tpu.reciprocal %93 {approx = true} : vector<8x8x1xf32> -> vector<8x8x1xf32>
    %95 = vector.broadcast %94 : vector<8x8x1xf32> to vector<8x8x8xf32>
    %96 = arith.mulf %91, %95 : vector<8x8x8xf32>
    %97 = arith.truncf %96 : vector<8x8x8xf32> to vector<8x8x8xbf16>
    %98 = vector.extract_strided_slice %29 {offsets = [0, 0, 16], sizes = [8, 8, 8], strides = [1, 1, 1]} : vector<8x8x32xbf16> to vector<8x8x8xbf16>
    "tpu.trace_start"() <{level = 10 : i32, message = "bqk,bkd->bqd"}> : () -> ()
    %cst_36 = arith.constant dense<0.000000e+00> : vector<8x8x8xf32>
    %99 = tpu.matmul %97, %98, %cst_36 {dimension_numbers = #tpu.dot_dimension_numbers<[2], [1], [1], [2], [0, 0, 0, 1, 1, 2], [0], [0]>} : vector<8x8x8xbf16>, vector<8x8x8xbf16>, vector<8x8x8xf32> -> vector<8x8x8xf32>
    "tpu.trace_stop"() : () -> ()
    %100 = vector.shape_cast %99 : vector<8x8x8xf32> to vector<64x8xf32>
    %101 = arith.truncf %100 : vector<64x8xf32> to vector<64x8xbf16>
    %102 = vector.extract_strided_slice %31 {offsets = [2, 0, 0], sizes = [1, 8, 32], strides = [1, 1, 1]} : vector<4x8x32xbf16> to vector<1x8x32xbf16>
    %103 = vector.shape_cast %102 : vector<1x8x32xbf16> to vector<8x32xbf16>
    %cst_37 = arith.constant dense<0.000000e+00> : vector<64x32xf32>
    %104 = tpu.matmul %101, %103, %cst_37 {dimension_numbers = #tpu.dot_dimension_numbers<[1], [0], [0], [1], [0, 0, 1, 1], [], []>} : vector<64x8xbf16>, vector<8x32xbf16>, vector<64x32xf32> -> vector<64x32xf32>
    %105 = arith.addf %82, %104 : vector<64x32xf32>
    %106 = vector.extract_strided_slice %23 {offsets = [0, 0, 24], sizes = [8, 8, 8], strides = [1, 1, 1]} : vector<8x8x32xbf16> to vector<8x8x8xbf16>
    %107 = vector.extract_strided_slice %26 {offsets = [0, 0, 24], sizes = [8, 8, 8], strides = [1, 1, 1]} : vector<8x8x32xbf16> to vector<8x8x8xbf16>
    "tpu.trace_start"() <{level = 10 : i32, message = "bqd,bkd->bqk"}> : () -> ()
    %cst_38 = arith.constant dense<0.000000e+00> : vector<8x8x8xf32>
    %108 = tpu.matmul %106, %107, %cst_38 {dimension_numbers = #tpu.dot_dimension_numbers<[2], [2], [1], [1], [0, 0, 0, 1, 1, 1], [0], [0]>} : vector<8x8x8xbf16>, vector<8x8x8xbf16>, vector<8x8x8xf32> -> vector<8x8x8xf32>
    "tpu.trace_stop"() : () -> ()
    %109 = arith.addf %108, %12 : vector<8x8x8xf32>
    %cst_39 = arith.constant dense<0xFF800000> : vector<8x8xf32>
    %110 = vector.multi_reduction <maximumf>, %109, %cst_39 [2] : vector<8x8x8xf32> to vector<8x8xf32>
    %111 = vector.shape_cast %110 : vector<8x8xf32> to vector<8x8x1xf32>
    %112 = vector.broadcast %111 : vector<8x8x1xf32> to vector<8x8x8xf32>
    %113 = arith.subf %109, %112 : vector<8x8x8xf32>
    %114 = math.exp %113 : vector<8x8x8xf32>
    %cst_40 = arith.constant dense<0.000000e+00> : vector<8x8xf32>
    %115 = vector.multi_reduction <add>, %114, %cst_40 [2] : vector<8x8x8xf32> to vector<8x8xf32>
    %116 = vector.shape_cast %115 : vector<8x8xf32> to vector<8x8x1xf32>
    %117 = tpu.reciprocal %116 {approx = true} : vector<8x8x1xf32> -> vector<8x8x1xf32>
    %118 = vector.broadcast %117 : vector<8x8x1xf32> to vector<8x8x8xf32>
    %119 = arith.mulf %114, %118 : vector<8x8x8xf32>
    %120 = arith.truncf %119 : vector<8x8x8xf32> to vector<8x8x8xbf16>
    %121 = vector.extract_strided_slice %29 {offsets = [0, 0, 24], sizes = [8, 8, 8], strides = [1, 1, 1]} : vector<8x8x32xbf16> to vector<8x8x8xbf16>
    "tpu.trace_start"() <{level = 10 : i32, message = "bqk,bkd->bqd"}> : () -> ()
    %cst_41 = arith.constant dense<0.000000e+00> : vector<8x8x8xf32>
    %122 = tpu.matmul %120, %121, %cst_41 {dimension_numbers = #tpu.dot_dimension_numbers<[2], [1], [1], [2], [0, 0, 0, 1, 1, 2], [0], [0]>} : vector<8x8x8xbf16>, vector<8x8x8xbf16>, vector<8x8x8xf32> -> vector<8x8x8xf32>
    "tpu.trace_stop"() : () -> ()
    %123 = vector.shape_cast %122 : vector<8x8x8xf32> to vector<64x8xf32>
    %124 = arith.truncf %123 : vector<64x8xf32> to vector<64x8xbf16>
    %125 = vector.extract_strided_slice %31 {offsets = [3, 0, 0], sizes = [1, 8, 32], strides = [1, 1, 1]} : vector<4x8x32xbf16> to vector<1x8x32xbf16>
    %126 = vector.shape_cast %125 : vector<1x8x32xbf16> to vector<8x32xbf16>
    %cst_42 = arith.constant dense<0.000000e+00> : vector<64x32xf32>
    %127 = tpu.matmul %124, %126, %cst_42 {dimension_numbers = #tpu.dot_dimension_numbers<[1], [0], [0], [1], [0, 0, 1, 1], [], []>} : vector<64x8xbf16>, vector<8x32xbf16>, vector<64x32xf32> -> vector<64x32xf32>
    %128 = arith.addf %105, %127 : vector<64x32xf32>
    %129 = arith.addf %5, %128 : vector<64x32xf32>
    %c0_43 = arith.constant 0 : index
    %c0_44 = arith.constant 0 : index
    %c0_45 = arith.constant 0 : index
    %130 = vector.load %arg8[%c0_43, %c0_44, %c0_45] : memref<2x1x32xf32, #tpu.memory_space<vmem>>, vector<1x1x32xf32>
    %131 = vector.shape_cast %130 : vector<1x1x32xf32> to vector<1x32xf32>
    %c0_46 = arith.constant 0 : index
    %c0_47 = arith.constant 0 : index
    %c0_48 = arith.constant 0 : index
    %132 = vector.load %arg9[%c0_46, %c0_47, %c0_48] : memref<2x1x32xf32, #tpu.memory_space<vmem>>, vector<1x1x32xf32>
    %133 = vector.shape_cast %132 : vector<1x1x32xf32> to vector<1x32xf32>
    %cst_49 = arith.constant dense<0.000000e+00> : vector<64xf32>
    %134 = vector.multi_reduction <add>, %129, %cst_49 [1] : vector<64x32xf32> to vector<64xf32>
    %135 = vector.shape_cast %134 : vector<64xf32> to vector<64x1xf32>
    %cst_50 = arith.constant 3.200000e+01 : f32
    %136 = vector.broadcast %cst_50 : f32 to vector<64x1xf32>
    %137 = arith.divf %135, %136 : vector<64x1xf32>
    %138 = vector.broadcast %137 : vector<64x1xf32> to vector<64x32xf32>
    %139 = arith.subf %129, %138 : vector<64x32xf32>
    %140 = arith.mulf %139, %139 : vector<64x32xf32>
    %cst_51 = arith.constant dense<0.000000e+00> : vector<64xf32>
    %141 = vector.multi_reduction <add>, %140, %cst_51 [1] : vector<64x32xf32> to vector<64xf32>
    %142 = vector.shape_cast %141 : vector<64xf32> to vector<64x1xf32>
    %cst_52 = arith.constant 3.200000e+01 : f32
    %143 = vector.broadcast %cst_52 : f32 to vector<64x1xf32>
    %144 = arith.divf %142, %143 : vector<64x1xf32>
    %145 = vector.broadcast %137 : vector<64x1xf32> to vector<64x32xf32>
    %146 = arith.subf %129, %145 : vector<64x32xf32>
    %cst_53 = arith.constant 9.99999974E-6 : f32
    %147 = vector.broadcast %cst_53 : f32 to vector<64x1xf32>
    %148 = arith.addf %144, %147 : vector<64x1xf32>
    %149 = math.rsqrt %148 : vector<64x1xf32>
    %150 = vector.broadcast %149 : vector<64x1xf32> to vector<64x32xf32>
    %151 = arith.mulf %146, %150 : vector<64x32xf32>
    %152 = vector.broadcast %131 : vector<1x32xf32> to vector<64x32xf32>
    %153 = arith.mulf %151, %152 : vector<64x32xf32>
    %154 = vector.broadcast %133 : vector<1x32xf32> to vector<64x32xf32>
    %155 = arith.addf %153, %154 : vector<64x32xf32>
    %156 = arith.truncf %155 : vector<64x32xf32> to vector<64x32xbf16>
    %c0_54 = arith.constant 0 : index
    %c0_55 = arith.constant 0 : index
    %c0_56 = arith.constant 0 : index
    %157 = vector.load %arg12[%c0_54, %c0_55, %c0_56] : memref<2x32x2048xbf16, #tpu.memory_space<vmem>>, vector<1x32x2048xbf16>
    %158 = vector.shape_cast %157 : vector<1x32x2048xbf16> to vector<32x2048xbf16>
    %cst_57 = arith.constant dense<0.000000e+00> : vector<64x2048xf32>
    %159 = tpu.matmul %156, %158, %cst_57 {dimension_numbers = #tpu.dot_dimension_numbers<[1], [0], [0], [1], [0, 0, 1, 1], [], []>} : vector<64x32xbf16>, vector<32x2048xbf16>, vector<64x2048xf32> -> vector<64x2048xf32>
    %c0_58 = arith.constant 0 : index
    %c0_59 = arith.constant 0 : index
    %c0_60 = arith.constant 0 : index
    %160 = vector.load %arg13[%c0_58, %c0_59, %c0_60] : memref<2x1x2048xf32, #tpu.memory_space<vmem>>, vector<1x1x2048xf32>
    %161 = vector.shape_cast %160 : vector<1x1x2048xf32> to vector<1x2048xf32>
    %162 = vector.broadcast %161 : vector<1x2048xf32> to vector<64x2048xf32>
    %163 = arith.addf %159, %162 : vector<64x2048xf32>
    %cst_61 = arith.constant 0.000000e+00 : f32
    %164 = vector.broadcast %cst_61 : f32 to vector<64x2048xf32>
    %165 = arith.maximumf %163, %164 : vector<64x2048xf32>
    %166 = arith.truncf %165 : vector<64x2048xf32> to vector<64x2048xbf16>
    %c0_62 = arith.constant 0 : index
    %c0_63 = arith.constant 0 : index
    %c0_64 = arith.constant 0 : index
    %167 = vector.load %arg14[%c0_62, %c0_63, %c0_64] : memref<2x2048x32xbf16, #tpu.memory_space<vmem>>, vector<1x2048x32xbf16>
    %168 = vector.shape_cast %167 : vector<1x2048x32xbf16> to vector<2048x32xbf16>
    %cst_65 = arith.constant dense<0.000000e+00> : vector<64x32xf32>
    %169 = tpu.matmul %166, %168, %cst_65 {dimension_numbers = #tpu.dot_dimension_numbers<[1], [0], [0], [1], [0, 0, 1, 1], [], []>} : vector<64x2048xbf16>, vector<2048x32xbf16>, vector<64x32xf32> -> vector<64x32xf32>
    %c0_66 = arith.constant 0 : index
    %c0_67 = arith.constant 0 : index
    %c0_68 = arith.constant 0 : index
    %170 = vector.load %arg15[%c0_66, %c0_67, %c0_68] : memref<2x1x32xf32, #tpu.memory_space<vmem>>, vector<1x1x32xf32>
    %171 = vector.shape_cast %170 : vector<1x1x32xf32> to vector<1x32xf32>
    %172 = vector.broadcast %171 : vector<1x32xf32> to vector<64x32xf32>
    %173 = arith.addf %169, %172 : vector<64x32xf32>
    %174 = arith.addf %155, %173 : vector<64x32xf32>
    %c0_69 = arith.constant 0 : index
    %c0_70 = arith.constant 0 : index
    %c0_71 = arith.constant 0 : index
    %175 = vector.load %arg10[%c0_69, %c0_70, %c0_71] : memref<2x1x32xf32, #tpu.memory_space<vmem>>, vector<1x1x32xf32>
    %176 = vector.shape_cast %175 : vector<1x1x32xf32> to vector<1x32xf32>
    %c0_72 = arith.constant 0 : index
    %c0_73 = arith.constant 0 : index
    %c0_74 = arith.constant 0 : index
    %177 = vector.load %arg11[%c0_72, %c0_73, %c0_74] : memref<2x1x32xf32, #tpu.memory_space<vmem>>, vector<1x1x32xf32>
    %178 = vector.shape_cast %177 : vector<1x1x32xf32> to vector<1x32xf32>
    %cst_75 = arith.constant dense<0.000000e+00> : vector<64xf32>
    %179 = vector.multi_reduction <add>, %174, %cst_75 [1] : vector<64x32xf32> to vector<64xf32>
    %180 = vector.shape_cast %179 : vector<64xf32> to vector<64x1xf32>
    %cst_76 = arith.constant 3.200000e+01 : f32
    %181 = vector.broadcast %cst_76 : f32 to vector<64x1xf32>
    %182 = arith.divf %180, %181 : vector<64x1xf32>
    %183 = vector.broadcast %182 : vector<64x1xf32> to vector<64x32xf32>
    %184 = arith.subf %174, %183 : vector<64x32xf32>
    %185 = arith.mulf %184, %184 : vector<64x32xf32>
    %cst_77 = arith.constant dense<0.000000e+00> : vector<64xf32>
    %186 = vector.multi_reduction <add>, %185, %cst_77 [1] : vector<64x32xf32> to vector<64xf32>
    %187 = vector.shape_cast %186 : vector<64xf32> to vector<64x1xf32>
    %cst_78 = arith.constant 3.200000e+01 : f32
    %188 = vector.broadcast %cst_78 : f32 to vector<64x1xf32>
    %189 = arith.divf %187, %188 : vector<64x1xf32>
    %190 = vector.broadcast %182 : vector<64x1xf32> to vector<64x32xf32>
    %191 = arith.subf %174, %190 : vector<64x32xf32>
    %cst_79 = arith.constant 9.99999974E-6 : f32
    %192 = vector.broadcast %cst_79 : f32 to vector<64x1xf32>
    %193 = arith.addf %189, %192 : vector<64x1xf32>
    %194 = math.rsqrt %193 : vector<64x1xf32>
    %195 = vector.broadcast %194 : vector<64x1xf32> to vector<64x32xf32>
    %196 = arith.mulf %191, %195 : vector<64x32xf32>
    %197 = vector.broadcast %176 : vector<1x32xf32> to vector<64x32xf32>
    %198 = arith.mulf %196, %197 : vector<64x32xf32>
    %199 = vector.broadcast %178 : vector<1x32xf32> to vector<64x32xf32>
    %200 = arith.addf %198, %199 : vector<64x32xf32>
    %201 = arith.truncf %200 : vector<64x32xf32> to vector<64x32xbf16>
    %c1 = arith.constant 1 : index
    %c0_80 = arith.constant 0 : index
    %c0_81 = arith.constant 0 : index
    %202 = vector.load %arg4[%c1, %c0_80, %c0_81] : memref<2x32x96xbf16, #tpu.memory_space<vmem>>, vector<1x32x96xbf16>
    %203 = vector.shape_cast %202 : vector<1x32x96xbf16> to vector<32x96xbf16>
    %cst_82 = arith.constant dense<0.000000e+00> : vector<64x96xf32>
    %204 = tpu.matmul %201, %203, %cst_82 {dimension_numbers = #tpu.dot_dimension_numbers<[1], [0], [0], [1], [0, 0, 1, 1], [], []>} : vector<64x32xbf16>, vector<32x96xbf16>, vector<64x96xf32> -> vector<64x96xf32>
    %c1_83 = arith.constant 1 : index
    %c0_84 = arith.constant 0 : index
    %c0_85 = arith.constant 0 : index
    %205 = vector.load %arg5[%c1_83, %c0_84, %c0_85] : memref<2x1x96xf32, #tpu.memory_space<vmem>>, vector<1x1x96xf32>
    %206 = vector.shape_cast %205 : vector<1x1x96xf32> to vector<1x96xf32>
    %207 = vector.broadcast %206 : vector<1x96xf32> to vector<64x96xf32>
    %208 = arith.addf %204, %207 : vector<64x96xf32>
    %209 = vector.extract_strided_slice %208 {offsets = [0, 0], sizes = [64, 32], strides = [1, 1]} : vector<64x96xf32> to vector<64x32xf32>
    %210 = vector.shape_cast %209 : vector<64x32xf32> to vector<8x8x32xf32>
    %211 = arith.truncf %210 : vector<8x8x32xf32> to vector<8x8x32xbf16>
    %212 = vector.extract_strided_slice %208 {offsets = [0, 32], sizes = [64, 32], strides = [1, 1]} : vector<64x96xf32> to vector<64x32xf32>
    %213 = vector.shape_cast %212 : vector<64x32xf32> to vector<8x8x32xf32>
    %214 = arith.truncf %213 : vector<8x8x32xf32> to vector<8x8x32xbf16>
    %215 = vector.extract_strided_slice %208 {offsets = [0, 64], sizes = [64, 32], strides = [1, 1]} : vector<64x96xf32> to vector<64x32xf32>
    %216 = vector.shape_cast %215 : vector<64x32xf32> to vector<8x8x32xf32>
    %217 = arith.truncf %216 : vector<8x8x32xf32> to vector<8x8x32xbf16>
    %c1_86 = arith.constant 1 : index
    %c0_87 = arith.constant 0 : index
    %c0_88 = arith.constant 0 : index
    %c0_89 = arith.constant 0 : index
    %218 = vector.load %arg6[%c1_86, %c0_87, %c0_88, %c0_89] : memref<2x4x8x32xbf16, #tpu.memory_space<vmem>>, vector<1x4x8x32xbf16>
    %219 = vector.shape_cast %218 : vector<1x4x8x32xbf16> to vector<4x8x32xbf16>
    %cst_90 = arith.constant 0.000000e+00 : f32
    %220 = vector.broadcast %cst_90 : f32 to vector<64x32xf32>
    %c1_91 = arith.constant 1 : index
    %c0_92 = arith.constant 0 : index
    %c0_93 = arith.constant 0 : index
    %221 = vector.load %arg7[%c1_91, %c0_92, %c0_93] : memref<2x1x32xf32, #tpu.memory_space<vmem>>, vector<1x1x32xf32>
    %222 = vector.shape_cast %221 : vector<1x1x32xf32> to vector<1x32xf32>
    %223 = vector.broadcast %222 : vector<1x32xf32> to vector<64x32xf32>
    %224 = arith.addf %220, %223 : vector<64x32xf32>
    %225 = vector.extract_strided_slice %211 {offsets = [0, 0, 0], sizes = [8, 8, 8], strides = [1, 1, 1]} : vector<8x8x32xbf16> to vector<8x8x8xbf16>
    %226 = vector.extract_strided_slice %214 {offsets = [0, 0, 0], sizes = [8, 8, 8], strides = [1, 1, 1]} : vector<8x8x32xbf16> to vector<8x8x8xbf16>
    "tpu.trace_start"() <{level = 10 : i32, message = "bqd,bkd->bqk"}> : () -> ()
    %cst_94 = arith.constant dense<0.000000e+00> : vector<8x8x8xf32>
    %227 = tpu.matmul %225, %226, %cst_94 {dimension_numbers = #tpu.dot_dimension_numbers<[2], [2], [1], [1], [0, 0, 0, 1, 1, 1], [0], [0]>} : vector<8x8x8xbf16>, vector<8x8x8xbf16>, vector<8x8x8xf32> -> vector<8x8x8xf32>
    "tpu.trace_stop"() : () -> ()
    %228 = arith.addf %227, %12 : vector<8x8x8xf32>
    %cst_95 = arith.constant dense<0xFF800000> : vector<8x8xf32>
    %229 = vector.multi_reduction <maximumf>, %228, %cst_95 [2] : vector<8x8x8xf32> to vector<8x8xf32>
    %230 = vector.shape_cast %229 : vector<8x8xf32> to vector<8x8x1xf32>
    %231 = vector.broadcast %230 : vector<8x8x1xf32> to vector<8x8x8xf32>
    %232 = arith.subf %228, %231 : vector<8x8x8xf32>
    %233 = math.exp %232 : vector<8x8x8xf32>
    %cst_96 = arith.constant dense<0.000000e+00> : vector<8x8xf32>
    %234 = vector.multi_reduction <add>, %233, %cst_96 [2] : vector<8x8x8xf32> to vector<8x8xf32>
    %235 = vector.shape_cast %234 : vector<8x8xf32> to vector<8x8x1xf32>
    %236 = tpu.reciprocal %235 {approx = true} : vector<8x8x1xf32> -> vector<8x8x1xf32>
    %237 = vector.broadcast %236 : vector<8x8x1xf32> to vector<8x8x8xf32>
    %238 = arith.mulf %233, %237 : vector<8x8x8xf32>
    %239 = arith.truncf %238 : vector<8x8x8xf32> to vector<8x8x8xbf16>
    %240 = vector.extract_strided_slice %217 {offsets = [0, 0, 0], sizes = [8, 8, 8], strides = [1, 1, 1]} : vector<8x8x32xbf16> to vector<8x8x8xbf16>
    "tpu.trace_start"() <{level = 10 : i32, message = "bqk,bkd->bqd"}> : () -> ()
    %cst_97 = arith.constant dense<0.000000e+00> : vector<8x8x8xf32>
    %241 = tpu.matmul %239, %240, %cst_97 {dimension_numbers = #tpu.dot_dimension_numbers<[2], [1], [1], [2], [0, 0, 0, 1, 1, 2], [0], [0]>} : vector<8x8x8xbf16>, vector<8x8x8xbf16>, vector<8x8x8xf32> -> vector<8x8x8xf32>
    "tpu.trace_stop"() : () -> ()
    %242 = vector.shape_cast %241 : vector<8x8x8xf32> to vector<64x8xf32>
    %243 = arith.truncf %242 : vector<64x8xf32> to vector<64x8xbf16>
    %244 = vector.extract_strided_slice %219 {offsets = [0, 0, 0], sizes = [1, 8, 32], strides = [1, 1, 1]} : vector<4x8x32xbf16> to vector<1x8x32xbf16>
    %245 = vector.shape_cast %244 : vector<1x8x32xbf16> to vector<8x32xbf16>
    %cst_98 = arith.constant dense<0.000000e+00> : vector<64x32xf32>
    %246 = tpu.matmul %243, %245, %cst_98 {dimension_numbers = #tpu.dot_dimension_numbers<[1], [0], [0], [1], [0, 0, 1, 1], [], []>} : vector<64x8xbf16>, vector<8x32xbf16>, vector<64x32xf32> -> vector<64x32xf32>
    %247 = arith.addf %224, %246 : vector<64x32xf32>
    %248 = vector.extract_strided_slice %211 {offsets = [0, 0, 8], sizes = [8, 8, 8], strides = [1, 1, 1]} : vector<8x8x32xbf16> to vector<8x8x8xbf16>
    %249 = vector.extract_strided_slice %214 {offsets = [0, 0, 8], sizes = [8, 8, 8], strides = [1, 1, 1]} : vector<8x8x32xbf16> to vector<8x8x8xbf16>
    "tpu.trace_start"() <{level = 10 : i32, message = "bqd,bkd->bqk"}> : () -> ()
    %cst_99 = arith.constant dense<0.000000e+00> : vector<8x8x8xf32>
    %250 = tpu.matmul %248, %249, %cst_99 {dimension_numbers = #tpu.dot_dimension_numbers<[2], [2], [1], [1], [0, 0, 0, 1, 1, 1], [0], [0]>} : vector<8x8x8xbf16>, vector<8x8x8xbf16>, vector<8x8x8xf32> -> vector<8x8x8xf32>
    "tpu.trace_stop"() : () -> ()
    %251 = arith.addf %250, %12 : vector<8x8x8xf32>
    %cst_100 = arith.constant dense<0xFF800000> : vector<8x8xf32>
    %252 = vector.multi_reduction <maximumf>, %251, %cst_100 [2] : vector<8x8x8xf32> to vector<8x8xf32>
    %253 = vector.shape_cast %252 : vector<8x8xf32> to vector<8x8x1xf32>
    %254 = vector.broadcast %253 : vector<8x8x1xf32> to vector<8x8x8xf32>
    %255 = arith.subf %251, %254 : vector<8x8x8xf32>
    %256 = math.exp %255 : vector<8x8x8xf32>
    %cst_101 = arith.constant dense<0.000000e+00> : vector<8x8xf32>
    %257 = vector.multi_reduction <add>, %256, %cst_101 [2] : vector<8x8x8xf32> to vector<8x8xf32>
    %258 = vector.shape_cast %257 : vector<8x8xf32> to vector<8x8x1xf32>
    %259 = tpu.reciprocal %258 {approx = true} : vector<8x8x1xf32> -> vector<8x8x1xf32>
    %260 = vector.broadcast %259 : vector<8x8x1xf32> to vector<8x8x8xf32>
    %261 = arith.mulf %256, %260 : vector<8x8x8xf32>
    %262 = arith.truncf %261 : vector<8x8x8xf32> to vector<8x8x8xbf16>
    %263 = vector.extract_strided_slice %217 {offsets = [0, 0, 8], sizes = [8, 8, 8], strides = [1, 1, 1]} : vector<8x8x32xbf16> to vector<8x8x8xbf16>
    "tpu.trace_start"() <{level = 10 : i32, message = "bqk,bkd->bqd"}> : () -> ()
    %cst_102 = arith.constant dense<0.000000e+00> : vector<8x8x8xf32>
    %264 = tpu.matmul %262, %263, %cst_102 {dimension_numbers = #tpu.dot_dimension_numbers<[2], [1], [1], [2], [0, 0, 0, 1, 1, 2], [0], [0]>} : vector<8x8x8xbf16>, vector<8x8x8xbf16>, vector<8x8x8xf32> -> vector<8x8x8xf32>
    "tpu.trace_stop"() : () -> ()
    %265 = vector.shape_cast %264 : vector<8x8x8xf32> to vector<64x8xf32>
    %266 = arith.truncf %265 : vector<64x8xf32> to vector<64x8xbf16>
    %267 = vector.extract_strided_slice %219 {offsets = [1, 0, 0], sizes = [1, 8, 32], strides = [1, 1, 1]} : vector<4x8x32xbf16> to vector<1x8x32xbf16>
    %268 = vector.shape_cast %267 : vector<1x8x32xbf16> to vector<8x32xbf16>
    %cst_103 = arith.constant dense<0.000000e+00> : vector<64x32xf32>
    %269 = tpu.matmul %266, %268, %cst_103 {dimension_numbers = #tpu.dot_dimension_numbers<[1], [0], [0], [1], [0, 0, 1, 1], [], []>} : vector<64x8xbf16>, vector<8x32xbf16>, vector<64x32xf32> -> vector<64x32xf32>
    %270 = arith.addf %247, %269 : vector<64x32xf32>
    %271 = vector.extract_strided_slice %211 {offsets = [0, 0, 16], sizes = [8, 8, 8], strides = [1, 1, 1]} : vector<8x8x32xbf16> to vector<8x8x8xbf16>
    %272 = vector.extract_strided_slice %214 {offsets = [0, 0, 16], sizes = [8, 8, 8], strides = [1, 1, 1]} : vector<8x8x32xbf16> to vector<8x8x8xbf16>
    "tpu.trace_start"() <{level = 10 : i32, message = "bqd,bkd->bqk"}> : () -> ()
    %cst_104 = arith.constant dense<0.000000e+00> : vector<8x8x8xf32>
    %273 = tpu.matmul %271, %272, %cst_104 {dimension_numbers = #tpu.dot_dimension_numbers<[2], [2], [1], [1], [0, 0, 0, 1, 1, 1], [0], [0]>} : vector<8x8x8xbf16>, vector<8x8x8xbf16>, vector<8x8x8xf32> -> vector<8x8x8xf32>
    "tpu.trace_stop"() : () -> ()
    %274 = arith.addf %273, %12 : vector<8x8x8xf32>
    %cst_105 = arith.constant dense<0xFF800000> : vector<8x8xf32>
    %275 = vector.multi_reduction <maximumf>, %274, %cst_105 [2] : vector<8x8x8xf32> to vector<8x8xf32>
    %276 = vector.shape_cast %275 : vector<8x8xf32> to vector<8x8x1xf32>
    %277 = vector.broadcast %276 : vector<8x8x1xf32> to vector<8x8x8xf32>
    %278 = arith.subf %274, %277 : vector<8x8x8xf32>
    %279 = math.exp %278 : vector<8x8x8xf32>
    %cst_106 = arith.constant dense<0.000000e+00> : vector<8x8xf32>
    %280 = vector.multi_reduction <add>, %279, %cst_106 [2] : vector<8x8x8xf32> to vector<8x8xf32>
    %281 = vector.shape_cast %280 : vector<8x8xf32> to vector<8x8x1xf32>
    %282 = tpu.reciprocal %281 {approx = true} : vector<8x8x1xf32> -> vector<8x8x1xf32>
    %283 = vector.broadcast %282 : vector<8x8x1xf32> to vector<8x8x8xf32>
    %284 = arith.mulf %279, %283 : vector<8x8x8xf32>
    %285 = arith.truncf %284 : vector<8x8x8xf32> to vector<8x8x8xbf16>
    %286 = vector.extract_strided_slice %217 {offsets = [0, 0, 16], sizes = [8, 8, 8], strides = [1, 1, 1]} : vector<8x8x32xbf16> to vector<8x8x8xbf16>
    "tpu.trace_start"() <{level = 10 : i32, message = "bqk,bkd->bqd"}> : () -> ()
    %cst_107 = arith.constant dense<0.000000e+00> : vector<8x8x8xf32>
    %287 = tpu.matmul %285, %286, %cst_107 {dimension_numbers = #tpu.dot_dimension_numbers<[2], [1], [1], [2], [0, 0, 0, 1, 1, 2], [0], [0]>} : vector<8x8x8xbf16>, vector<8x8x8xbf16>, vector<8x8x8xf32> -> vector<8x8x8xf32>
    "tpu.trace_stop"() : () -> ()
    %288 = vector.shape_cast %287 : vector<8x8x8xf32> to vector<64x8xf32>
    %289 = arith.truncf %288 : vector<64x8xf32> to vector<64x8xbf16>
    %290 = vector.extract_strided_slice %219 {offsets = [2, 0, 0], sizes = [1, 8, 32], strides = [1, 1, 1]} : vector<4x8x32xbf16> to vector<1x8x32xbf16>
    %291 = vector.shape_cast %290 : vector<1x8x32xbf16> to vector<8x32xbf16>
    %cst_108 = arith.constant dense<0.000000e+00> : vector<64x32xf32>
    %292 = tpu.matmul %289, %291, %cst_108 {dimension_numbers = #tpu.dot_dimension_numbers<[1], [0], [0], [1], [0, 0, 1, 1], [], []>} : vector<64x8xbf16>, vector<8x32xbf16>, vector<64x32xf32> -> vector<64x32xf32>
    %293 = arith.addf %270, %292 : vector<64x32xf32>
    %294 = vector.extract_strided_slice %211 {offsets = [0, 0, 24], sizes = [8, 8, 8], strides = [1, 1, 1]} : vector<8x8x32xbf16> to vector<8x8x8xbf16>
    %295 = vector.extract_strided_slice %214 {offsets = [0, 0, 24], sizes = [8, 8, 8], strides = [1, 1, 1]} : vector<8x8x32xbf16> to vector<8x8x8xbf16>
    "tpu.trace_start"() <{level = 10 : i32, message = "bqd,bkd->bqk"}> : () -> ()
    %cst_109 = arith.constant dense<0.000000e+00> : vector<8x8x8xf32>
    %296 = tpu.matmul %294, %295, %cst_109 {dimension_numbers = #tpu.dot_dimension_numbers<[2], [2], [1], [1], [0, 0, 0, 1, 1, 1], [0], [0]>} : vector<8x8x8xbf16>, vector<8x8x8xbf16>, vector<8x8x8xf32> -> vector<8x8x8xf32>
    "tpu.trace_stop"() : () -> ()
    %297 = arith.addf %296, %12 : vector<8x8x8xf32>
    %cst_110 = arith.constant dense<0xFF800000> : vector<8x8xf32>
    %298 = vector.multi_reduction <maximumf>, %297, %cst_110 [2] : vector<8x8x8xf32> to vector<8x8xf32>
    %299 = vector.shape_cast %298 : vector<8x8xf32> to vector<8x8x1xf32>
    %300 = vector.broadcast %299 : vector<8x8x1xf32> to vector<8x8x8xf32>
    %301 = arith.subf %297, %300 : vector<8x8x8xf32>
    %302 = math.exp %301 : vector<8x8x8xf32>
    %cst_111 = arith.constant dense<0.000000e+00> : vector<8x8xf32>
    %303 = vector.multi_reduction <add>, %302, %cst_111 [2] : vector<8x8x8xf32> to vector<8x8xf32>
    %304 = vector.shape_cast %303 : vector<8x8xf32> to vector<8x8x1xf32>
    %305 = tpu.reciprocal %304 {approx = true} : vector<8x8x1xf32> -> vector<8x8x1xf32>
    %306 = vector.broadcast %305 : vector<8x8x1xf32> to vector<8x8x8xf32>
    %307 = arith.mulf %302, %306 : vector<8x8x8xf32>
    %308 = arith.truncf %307 : vector<8x8x8xf32> to vector<8x8x8xbf16>
    %309 = vector.extract_strided_slice %217 {offsets = [0, 0, 24], sizes = [8, 8, 8], strides = [1, 1, 1]} : vector<8x8x32xbf16> to vector<8x8x8xbf16>
    "tpu.trace_start"() <{level = 10 : i32, message = "bqk,bkd->bqd"}> : () -> ()
    %cst_112 = arith.constant dense<0.000000e+00> : vector<8x8x8xf32>
    %310 = tpu.matmul %308, %309, %cst_112 {dimension_numbers = #tpu.dot_dimension_numbers<[2], [1], [1], [2], [0, 0, 0, 1, 1, 2], [0], [0]>} : vector<8x8x8xbf16>, vector<8x8x8xbf16>, vector<8x8x8xf32> -> vector<8x8x8xf32>
    "tpu.trace_stop"() : () -> ()
    %311 = vector.shape_cast %310 : vector<8x8x8xf32> to vector<64x8xf32>
    %312 = arith.truncf %311 : vector<64x8xf32> to vector<64x8xbf16>
    %313 = vector.extract_strided_slice %219 {offsets = [3, 0, 0], sizes = [1, 8, 32], strides = [1, 1, 1]} : vector<4x8x32xbf16> to vector<1x8x32xbf16>
    %314 = vector.shape_cast %313 : vector<1x8x32xbf16> to vector<8x32xbf16>
    %cst_113 = arith.constant dense<0.000000e+00> : vector<64x32xf32>
    %315 = tpu.matmul %312, %314, %cst_113 {dimension_numbers = #tpu.dot_dimension_numbers<[1], [0], [0], [1], [0, 0, 1, 1], [], []>} : vector<64x8xbf16>, vector<8x32xbf16>, vector<64x32xf32> -> vector<64x32xf32>
    %316 = arith.addf %293, %315 : vector<64x32xf32>
    %317 = arith.addf %200, %316 : vector<64x32xf32>
    %c1_114 = arith.constant 1 : index
    %c0_115 = arith.constant 0 : index
    %c0_116 = arith.constant 0 : index
    %318 = vector.load %arg8[%c1_114, %c0_115, %c0_116] : memref<2x1x32xf32, #tpu.memory_space<vmem>>, vector<1x1x32xf32>
    %319 = vector.shape_cast %318 : vector<1x1x32xf32> to vector<1x32xf32>
    %c1_117 = arith.constant 1 : index
    %c0_118 = arith.constant 0 : index
    %c0_119 = arith.constant 0 : index
    %320 = vector.load %arg9[%c1_117, %c0_118, %c0_119] : memref<2x1x32xf32, #tpu.memory_space<vmem>>, vector<1x1x32xf32>
    %321 = vector.shape_cast %320 : vector<1x1x32xf32> to vector<1x32xf32>
    %cst_120 = arith.constant dense<0.000000e+00> : vector<64xf32>
    %322 = vector.multi_reduction <add>, %317, %cst_120 [1] : vector<64x32xf32> to vector<64xf32>
    %323 = vector.shape_cast %322 : vector<64xf32> to vector<64x1xf32>
    %cst_121 = arith.constant 3.200000e+01 : f32
    %324 = vector.broadcast %cst_121 : f32 to vector<64x1xf32>
    %325 = arith.divf %323, %324 : vector<64x1xf32>
    %326 = vector.broadcast %325 : vector<64x1xf32> to vector<64x32xf32>
    %327 = arith.subf %317, %326 : vector<64x32xf32>
    %328 = arith.mulf %327, %327 : vector<64x32xf32>
    %cst_122 = arith.constant dense<0.000000e+00> : vector<64xf32>
    %329 = vector.multi_reduction <add>, %328, %cst_122 [1] : vector<64x32xf32> to vector<64xf32>
    %330 = vector.shape_cast %329 : vector<64xf32> to vector<64x1xf32>
    %cst_123 = arith.constant 3.200000e+01 : f32
    %331 = vector.broadcast %cst_123 : f32 to vector<64x1xf32>
    %332 = arith.divf %330, %331 : vector<64x1xf32>
    %333 = vector.broadcast %325 : vector<64x1xf32> to vector<64x32xf32>
    %334 = arith.subf %317, %333 : vector<64x32xf32>
    %cst_124 = arith.constant 9.99999974E-6 : f32
    %335 = vector.broadcast %cst_124 : f32 to vector<64x1xf32>
    %336 = arith.addf %332, %335 : vector<64x1xf32>
    %337 = math.rsqrt %336 : vector<64x1xf32>
    %338 = vector.broadcast %337 : vector<64x1xf32> to vector<64x32xf32>
    %339 = arith.mulf %334, %338 : vector<64x32xf32>
    %340 = vector.broadcast %319 : vector<1x32xf32> to vector<64x32xf32>
    %341 = arith.mulf %339, %340 : vector<64x32xf32>
    %342 = vector.broadcast %321 : vector<1x32xf32> to vector<64x32xf32>
    %343 = arith.addf %341, %342 : vector<64x32xf32>
    %344 = arith.truncf %343 : vector<64x32xf32> to vector<64x32xbf16>
    %c1_125 = arith.constant 1 : index
    %c0_126 = arith.constant 0 : index
    %c0_127 = arith.constant 0 : index
    %345 = vector.load %arg12[%c1_125, %c0_126, %c0_127] : memref<2x32x2048xbf16, #tpu.memory_space<vmem>>, vector<1x32x2048xbf16>
    %346 = vector.shape_cast %345 : vector<1x32x2048xbf16> to vector<32x2048xbf16>
    %cst_128 = arith.constant dense<0.000000e+00> : vector<64x2048xf32>
    %347 = tpu.matmul %344, %346, %cst_128 {dimension_numbers = #tpu.dot_dimension_numbers<[1], [0], [0], [1], [0, 0, 1, 1], [], []>} : vector<64x32xbf16>, vector<32x2048xbf16>, vector<64x2048xf32> -> vector<64x2048xf32>
    %c1_129 = arith.constant 1 : index
    %c0_130 = arith.constant 0 : index
    %c0_131 = arith.constant 0 : index
    %348 = vector.load %arg13[%c1_129, %c0_130, %c0_131] : memref<2x1x2048xf32, #tpu.memory_space<vmem>>, vector<1x1x2048xf32>
    %349 = vector.shape_cast %348 : vector<1x1x2048xf32> to vector<1x2048xf32>
    %350 = vector.broadcast %349 : vector<1x2048xf32> to vector<64x2048xf32>
    %351 = arith.addf %347, %350 : vector<64x2048xf32>
    %cst_132 = arith.constant 0.000000e+00 : f32
    %352 = vector.broadcast %cst_132 : f32 to vector<64x2048xf32>
    %353 = arith.maximumf %351, %352 : vector<64x2048xf32>
    %354 = arith.truncf %353 : vector<64x2048xf32> to vector<64x2048xbf16>
    %c1_133 = arith.constant 1 : index
    %c0_134 = arith.constant 0 : index
    %c0_135 = arith.constant 0 : index
    %355 = vector.load %arg14[%c1_133, %c0_134, %c0_135] : memref<2x2048x32xbf16, #tpu.memory_space<vmem>>, vector<1x2048x32xbf16>
    %356 = vector.shape_cast %355 : vector<1x2048x32xbf16> to vector<2048x32xbf16>
    %cst_136 = arith.constant dense<0.000000e+00> : vector<64x32xf32>
    %357 = tpu.matmul %354, %356, %cst_136 {dimension_numbers = #tpu.dot_dimension_numbers<[1], [0], [0], [1], [0, 0, 1, 1], [], []>} : vector<64x2048xbf16>, vector<2048x32xbf16>, vector<64x32xf32> -> vector<64x32xf32>
    %c1_137 = arith.constant 1 : index
    %c0_138 = arith.constant 0 : index
    %c0_139 = arith.constant 0 : index
    %358 = vector.load %arg15[%c1_137, %c0_138, %c0_139] : memref<2x1x32xf32, #tpu.memory_space<vmem>>, vector<1x1x32xf32>
    %359 = vector.shape_cast %358 : vector<1x1x32xf32> to vector<1x32xf32>
    %360 = vector.broadcast %359 : vector<1x32xf32> to vector<64x32xf32>
    %361 = arith.addf %357, %360 : vector<64x32xf32>
    %362 = arith.addf %343, %361 : vector<64x32xf32>
    %c1_140 = arith.constant 1 : index
    %c0_141 = arith.constant 0 : index
    %c0_142 = arith.constant 0 : index
    %363 = vector.load %arg10[%c1_140, %c0_141, %c0_142] : memref<2x1x32xf32, #tpu.memory_space<vmem>>, vector<1x1x32xf32>
    %364 = vector.shape_cast %363 : vector<1x1x32xf32> to vector<1x32xf32>
    %c1_143 = arith.constant 1 : index
    %c0_144 = arith.constant 0 : index
    %c0_145 = arith.constant 0 : index
    %365 = vector.load %arg11[%c1_143, %c0_144, %c0_145] : memref<2x1x32xf32, #tpu.memory_space<vmem>>, vector<1x1x32xf32>
    %366 = vector.shape_cast %365 : vector<1x1x32xf32> to vector<1x32xf32>
    %cst_146 = arith.constant dense<0.000000e+00> : vector<64xf32>
    %367 = vector.multi_reduction <add>, %362, %cst_146 [1] : vector<64x32xf32> to vector<64xf32>
    %368 = vector.shape_cast %367 : vector<64xf32> to vector<64x1xf32>
    %cst_147 = arith.constant 3.200000e+01 : f32
    %369 = vector.broadcast %cst_147 : f32 to vector<64x1xf32>
    %370 = arith.divf %368, %369 : vector<64x1xf32>
    %371 = vector.broadcast %370 : vector<64x1xf32> to vector<64x32xf32>
    %372 = arith.subf %362, %371 : vector<64x32xf32>
    %373 = arith.mulf %372, %372 : vector<64x32xf32>
    %cst_148 = arith.constant dense<0.000000e+00> : vector<64xf32>
    %374 = vector.multi_reduction <add>, %373, %cst_148 [1] : vector<64x32xf32> to vector<64xf32>
    %375 = vector.shape_cast %374 : vector<64xf32> to vector<64x1xf32>
    %cst_149 = arith.constant 3.200000e+01 : f32
    %376 = vector.broadcast %cst_149 : f32 to vector<64x1xf32>
    %377 = arith.divf %375, %376 : vector<64x1xf32>
    %378 = vector.broadcast %370 : vector<64x1xf32> to vector<64x32xf32>
    %379 = arith.subf %362, %378 : vector<64x32xf32>
    %cst_150 = arith.constant 9.99999974E-6 : f32
    %380 = vector.broadcast %cst_150 : f32 to vector<64x1xf32>
    %381 = arith.addf %377, %380 : vector<64x1xf32>
    %382 = math.rsqrt %381 : vector<64x1xf32>
    %383 = vector.broadcast %382 : vector<64x1xf32> to vector<64x32xf32>
    %384 = arith.mulf %379, %383 : vector<64x32xf32>
    %385 = vector.broadcast %364 : vector<1x32xf32> to vector<64x32xf32>
    %386 = arith.mulf %384, %385 : vector<64x32xf32>
    %387 = vector.broadcast %366 : vector<1x32xf32> to vector<64x32xf32>
    %388 = arith.addf %386, %387 : vector<64x32xf32>
    %cst_151 = arith.constant dense<0.000000e+00> : vector<8x1xf32>
    %389 = vector.multi_reduction <add>, %6, %cst_151 [2] : vector<8x1x8xf32> to vector<8x1xf32>
    %390 = vector.shape_cast %389 : vector<8x1xf32> to vector<8x1x1xf32>
    %cst_152 = arith.constant 9.99999996E-13 : f32
    %391 = vector.broadcast %cst_152 : f32 to vector<8x1x1xf32>
    %392 = arith.addf %390, %391 : vector<8x1x1xf32>
    %393 = tpu.reciprocal %392 {approx = true} : vector<8x1x1xf32> -> vector<8x1x1xf32>
    %394 = vector.broadcast %393 : vector<8x1x1xf32> to vector<8x1x8xf32>
    %395 = arith.mulf %6, %394 : vector<8x1x8xf32>
    %396 = vector.shape_cast %388 : vector<64x32xf32> to vector<8x8x32xf32>
    "tpu.trace_start"() <{level = 10 : i32, message = "bol,blh->boh"}> : () -> ()
    %cst_153 = arith.constant dense<0.000000e+00> : vector<8x1x32xf32>
    %397 = tpu.matmul %395, %396, %cst_153 {dimension_numbers = #tpu.dot_dimension_numbers<[2], [1], [1], [2], [0, 0, 0, 1, 1, 2], [0], [0]>} : vector<8x1x8xf32>, vector<8x8x32xf32>, vector<8x1x32xf32> -> vector<8x1x32xf32>
    "tpu.trace_stop"() : () -> ()
    %398 = vector.shape_cast %397 : vector<8x1x32xf32> to vector<8x32xf32>
    %c0_154 = arith.constant 0 : index
    %c0_155 = arith.constant 0 : index
    %399 = vector.load %arg16[%c0_154, %c0_155] : memref<8x32xf32, #tpu.memory_space<vmem>>, vector<8x32xf32>
    tpu.vector_store %arg16[%c0_154, %c0_155], %398 {strides = array<i32>} : memref<8x32xf32, #tpu.memory_space<vmem>>, vector<8x32xf32>,
    return
  }
  func.func @transform_0(%arg0: i32) -> (i32, i32, i32) {
    %c0_i32 = arith.constant 0 : i32
    %c0_i32_0 = arith.constant 0 : i32
    %c0_i32_1 = arith.constant 0 : i32
    return %arg0, %c0_i32, %c0_i32_0 : i32, i32, i32
  }
  func.func @transform_1(%arg0: i32) -> (i32, i32, i32) {
    %c0_i32 = arith.constant 0 : i32
    %c0_i32_0 = arith.constant 0 : i32
    %c0_i32_1 = arith.constant 0 : i32
    return %arg0, %c0_i32, %c0_i32_0 : i32, i32, i32
  }
  func.func @transform_2(%arg0: i32) -> (i32, i32) {
    %c0_i32 = arith.constant 0 : i32
    %c0_i32_0 = arith.constant 0 : i32
    %c0_i32_1 = arith.constant 0 : i32
    return %c0_i32, %c0_i32_0 : i32, i32
  }
  func.func @transform_3(%arg0: i32) -> (i32, i32, i32) {
    %c0_i32 = arith.constant 0 : i32
    %c0_i32_0 = arith.constant 0 : i32
    %c0_i32_1 = arith.constant 0 : i32
    %c0_i32_2 = arith.constant 0 : i32
    return %c0_i32, %c0_i32_0, %c0_i32_1 : i32, i32, i32
  }
  func.func @transform_4(%arg0: i32) -> (i32, i32, i32) {
    %c0_i32 = arith.constant 0 : i32
    %c0_i32_0 = arith.constant 0 : i32
    %c0_i32_1 = arith.constant 0 : i32
    %c0_i32_2 = arith.constant 0 : i32
    return %c0_i32, %c0_i32_0, %c0_i32_1 : i32, i32, i32
  }
  func.func @transform_5(%arg0: i32) -> (i32, i32, i32, i32) {
    %c0_i32 = arith.constant 0 : i32
    %c0_i32_0 = arith.constant 0 : i32
    %c0_i32_1 = arith.constant 0 : i32
    %c0_i32_2 = arith.constant 0 : i32
    %c0_i32_3 = arith.constant 0 : i32
    return %c0_i32, %c0_i32_0, %c0_i32_1, %c0_i32_2 : i32, i32, i32, i32
  }
  func.func @transform_6(%arg0: i32) -> (i32, i32, i32) {
    %c0_i32 = arith.constant 0 : i32
    %c0_i32_0 = arith.constant 0 : i32
    %c0_i32_1 = arith.constant 0 : i32
    %c0_i32_2 = arith.constant 0 : i32
    return %c0_i32, %c0_i32_0, %c0_i32_1 : i32, i32, i32
  }
  func.func @transform_7(%arg0: i32) -> (i32, i32, i32) {
    %c0_i32 = arith.constant 0 : i32
    %c0_i32_0 = arith.constant 0 : i32
    %c0_i32_1 = arith.constant 0 : i32
    %c0_i32_2 = arith.constant 0 : i32
    return %c0_i32, %c0_i32_0, %c0_i32_1 : i32, i32, i32
  }
  func.func @transform_8(%arg0: i32) -> (i32, i32, i32) {
    %c0_i32 = arith.constant 0 : i32
    %c0_i32_0 = arith.constant 0 : i32
    %c0_i32_1 = arith.constant 0 : i32
    %c0_i32_2 = arith.constant 0 : i32
    return %c0_i32, %c0_i32_0, %c0_i32_1 : i32, i32, i32
  }
  func.func @transform_9(%arg0: i32) -> (i32, i32, i32) {
    %c0_i32 = arith.constant 0 : i32
    %c0_i32_0 = arith.constant 0 : i32
    %c0_i32_1 = arith.constant 0 : i32
    %c0_i32_2 = arith.constant 0 : i32
    return %c0_i32, %c0_i32_0, %c0_i32_1 : i32, i32, i32
  }
  func.func @transform_10(%arg0: i32) -> (i32, i32, i32) {
    %c0_i32 = arith.constant 0 : i32
    %c0_i32_0 = arith.constant 0 : i32
    %c0_i32_1 = arith.constant 0 : i32
    %c0_i32_2 = arith.constant 0 : i32
    return %c0_i32, %c0_i32_0, %c0_i32_1 : i32, i32, i32
  }
  func.func @transform_11(%arg0: i32) -> (i32, i32, i32) {
    %c0_i32 = arith.constant 0 : i32
    %c0_i32_0 = arith.constant 0 : i32
    %c0_i32_1 = arith.constant 0 : i32
    %c0_i32_2 = arith.constant 0 : i32
    return %c0_i32, %c0_i32_0, %c0_i32_1 : i32, i32, i32
  }
  func.func @transform_12(%arg0: i32) -> (i32, i32, i32) {
    %c0_i32 = arith.constant 0 : i32
    %c0_i32_0 = arith.constant 0 : i32
    %c0_i32_1 = arith.constant 0 : i32
    %c0_i32_2 = arith.constant 0 : i32
    return %c0_i32, %c0_i32_0, %c0_i32_1 : i32, i32, i32
  }
  func.func @transform_13(%arg0: i32) -> (i32, i32, i32) {
    %c0_i32 = arith.constant 0 : i32
    %c0_i32_0 = arith.constant 0 : i32
    %c0_i32_1 = arith.constant 0 : i32
    %c0_i32_2 = arith.constant 0 : i32
    return %c0_i32, %c0_i32_0, %c0_i32_1 : i32, i32, i32
  }
  func.func @transform_14(%arg0: i32) -> (i32, i32, i32) {
    %c0_i32 = arith.constant 0 : i32
    %c0_i32_0 = arith.constant 0 : i32
    %c0_i32_1 = arith.constant 0 : i32
    %c0_i32_2 = arith.constant 0 : i32
    return %c0_i32, %c0_i32_0, %c0_i32_1 : i32, i32, i32
  }
  func.func @transform_15(%arg0: i32) -> (i32, i32) {
    %c0_i32 = arith.constant 0 : i32
    %c0_i32_0 = arith.constant 0 : i32
    return %arg0, %c0_i32 : i32, i32
  }
}

</mosaic_0001>

<llo_original>
// kernel: tpu_custom_call.1
$region0: #{tpu_custom_call.1}
  #allocation0 [shape = 'u32[]', space=smem, size = 0x4, offset = 0x4, fixed_abs, tag = 'smem constant byte address 0x4 - core index']
  #allocation1 [shape = 'u32[72,128]{1,0:T(1,128)}', space=vmem, size = 0x9000, scoped, tag = 'internal scratch']
  %s0 = inlined_call_operand.vmem [shape: f32[8,8,32], index: 0, kind: input, shape index: {}]
  %s1 = inlined_call_operand.vmem [shape: f32[8,1,8], index: 1, kind: input, shape index: {}]
  %s2 = inlined_call_operand.vmem [shape: f32[8,32], index: 2, kind: input, shape index: {}]
  %s3 = inlined_call_operand.vmem [shape: bf16[2,32,96], index: 3, kind: input, shape index: {}]
  %s4 = inlined_call_operand.vmem [shape: f32[2,1,96], index: 4, kind: input, shape index: {}]
  %s5 = inlined_call_operand.vmem [shape: bf16[2,4,8,32], index: 5, kind: input, shape index: {}]
  %s6 = inlined_call_operand.vmem [shape: f32[2,1,32], index: 6, kind: input, shape index: {}]
  %s7 = inlined_call_operand.vmem [shape: f32[2,1,32], index: 7, kind: input, shape index: {}]
  %s8 = inlined_call_operand.vmem [shape: f32[2,1,32], index: 8, kind: input, shape index: {}]
  %s9 = inlined_call_operand.vmem [shape: f32[2,1,32], index: 9, kind: input, shape index: {}]
  %s10 = inlined_call_operand.vmem [shape: f32[2,1,32], index: 10, kind: input, shape index: {}]
  %s11 = inlined_call_operand.vmem [shape: bf16[2,32,2048], index: 11, kind: input, shape index: {}]
  %s12 = inlined_call_operand.vmem [shape: f32[2,1,2048], index: 12, kind: input, shape index: {}]
  %s13 = inlined_call_operand.vmem [shape: bf16[2,2048,32], index: 13, kind: input, shape index: {}]
  %s14 = inlined_call_operand.vmem [shape: f32[2,1,32], index: 14, kind: input, shape index: {}]
  %s15 = inlined_call_operand.hbm [shape: f32[8,32], index: 15, kind: output, shape index: {}]
  %s16 = sld [smem:[#allocation0]]
  $region70: #{tpu_custom_call.1} parent=0
    _
  %s18 = ssub.s32 1, %s16
  %s19 = scalar_select 0, %s18, %s16
  $region1: #{tpu_custom_call.1} parent=0
    #allocation2 [shape = 'u8[4096]{0}', space=vmem, size = 0x1000, scoped, tag = 'output window, operand 0, single buffered']
    #allocation3 [shape = 's32[1]{0}', space=sflag, size = 0x4, scoped, tag = 'scoped memory for tpu_custom_call.1']
    %20 = vsyncpa [#allocation3], 0
    // Predicated region
    $region2: #{tpu_custom_call.1} parent=1 // pred_check
      _
    $region3: #{tpu_custom_call.1} parent=1 // pred_check_branch
      %22 = sbr.rel (0) target = $region5
    $region4: #{tpu_custom_call.1} parent=1 // pred_region
      _
    $region5: #{tpu_custom_call.1} parent=1 // pred_fallthru
      _
    // Predicated region
    $region6: #{tpu_custom_call.1} parent=1 // pred_check
      _
    $region7: #{tpu_custom_call.1} parent=1 // pred_check_branch
      %24 = sbr.rel (0) target = $region9
    $region8: #{tpu_custom_call.1} parent=1 // pred_region
      _
    $region9: #{tpu_custom_call.1} parent=1 // pred_fallthru
      _
    // Predicated region
    $region10: #{tpu_custom_call.1} parent=1 // pred_check
      _
    $region11: #{tpu_custom_call.1} parent=1 // pred_check_branch
      %26 = sbr.rel (0) target = $region13
    $region12: #{tpu_custom_call.1} parent=1 // pred_region
      _
    $region13: #{tpu_custom_call.1} parent=1 // pred_fallthru
      _
    // Predicated region
    $region14: #{tpu_custom_call.1} parent=1 // pred_check
      _
    $region15: #{tpu_custom_call.1} parent=1 // pred_check_branch
      %28 = sbr.rel (0) target = $region17
    $region16: #{tpu_custom_call.1} parent=1 // pred_region
      _
    $region17: #{tpu_custom_call.1} parent=1 // pred_fallthru
      _
    // Predicated region
    $region18: #{tpu_custom_call.1} parent=1 // pred_check
      _
    $region19: #{tpu_custom_call.1} parent=1 // pred_check_branch
      %30 = sbr.rel (0) target = $region21
    $region20: #{tpu_custom_call.1} parent=1 // pred_region
      _
    $region21: #{tpu_custom_call.1} parent=1 // pred_fallthru
      _
    // Predicated region
    $region22: #{tpu_custom_call.1} parent=1 // pred_check
      _
    $region23: #{tpu_custom_call.1} parent=1 // pred_check_branch
      %32 = sbr.rel (0) target = $region25
    $region24: #{tpu_custom_call.1} parent=1 // pred_region
      _
    $region25: #{tpu_custom_call.1} parent=1 // pred_fallthru
      _
    // Predicated region
    $region26: #{tpu_custom_call.1} parent=1 // pred_check
      _
    $region27: #{tpu_custom_call.1} parent=1 // pred_check_branch
      %34 = sbr.rel (0) target = $region29
    $region28: #{tpu_custom_call.1} parent=1 // pred_region
      _
    $region29: #{tpu_custom_call.1} parent=1 // pred_fallthru
      _
    // Predicated region
    $region30: #{tpu_custom_call.1} parent=1 // pred_check
      _
    $region31: #{tpu_custom_call.1} parent=1 // pred_check_branch
      %36 = sbr.rel (0) target = $region33
    $region32: #{tpu_custom_call.1} parent=1 // pred_region
      _
    $region33: #{tpu_custom_call.1} parent=1 // pred_fallthru
      _
    // Predicated region
    $region34: #{tpu_custom_call.1} parent=1 // pred_check
      _
    $region35: #{tpu_custom_call.1} parent=1 // pred_check_branch
      %38 = sbr.rel (0) target = $region37
    $region36: #{tpu_custom_call.1} parent=1 // pred_region
      _
    $region37: #{tpu_custom_call.1} parent=1 // pred_fallthru
      _
    // Predicated region
    $region38: #{tpu_custom_call.1} parent=1 // pred_check
      _
    $region39: #{tpu_custom_call.1} parent=1 // pred_check_branch
      %40 = sbr.rel (0) target = $region41
    $region40: #{tpu_custom_call.1} parent=1 // pred_region
      _
    $region41: #{tpu_custom_call.1} parent=1 // pred_fallthru
      _
    // Predicated region
    $region42: #{tpu_custom_call.1} parent=1 // pred_check
      _
    $region43: #{tpu_custom_call.1} parent=1 // pred_check_branch
      %42 = sbr.rel (0) target = $region45
    $region44: #{tpu_custom_call.1} parent=1 // pred_region
      _
    $region45: #{tpu_custom_call.1} parent=1 // pred_fallthru
      _
    // Predicated region
    $region46: #{tpu_custom_call.1} parent=1 // pred_check
      _
    $region47: #{tpu_custom_call.1} parent=1 // pred_check_branch
      %44 = sbr.rel (0) target = $region49
    $region48: #{tpu_custom_call.1} parent=1 // pred_region
      _
    $region49: #{tpu_custom_call.1} parent=1 // pred_fallthru
      _
    // Predicated region
    $region50: #{tpu_custom_call.1} parent=1 // pred_check
      _
    $region51: #{tpu_custom_call.1} parent=1 // pred_check_branch
      %46 = sbr.rel (0) target = $region53
    $region52: #{tpu_custom_call.1} parent=1 // pred_region
      _
    $region53: #{tpu_custom_call.1} parent=1 // pred_fallthru
      _
    // Predicated region
    $region54: #{tpu_custom_call.1} parent=1 // pred_check
      _
    $region55: #{tpu_custom_call.1} parent=1 // pred_check_branch
      %48 = sbr.rel (0) target = $region57
    $region56: #{tpu_custom_call.1} parent=1 // pred_region
      _
    $region57: #{tpu_custom_call.1} parent=1 // pred_fallthru
      _
    // Predicated region
    $region58: #{tpu_custom_call.1} parent=1 // pred_check
      _
    $region59: #{tpu_custom_call.1} parent=1 // pred_check_branch
      %50 = sbr.rel (0) target = $region61
    $region60: #{tpu_custom_call.1} parent=1 // pred_region
      _
    $region61: #{tpu_custom_call.1} parent=1 // pred_fallthru
      _
    %v52 = vld [vmem:[%s0] sm:$0xff]
    %v53 = vld [vmem:[%s0 + $0x8] sm:$0xff]
    %v54 = vld [vmem:[%s0 + $0x10] sm:$0xff]
    %v55 = vld [vmem:[%s0 + $0x18] sm:$0xff]
    %v56 = vld [vmem:[%s0 + $0x20] sm:$0xff]
    %v57 = vld [vmem:[%s0 + $0x28] sm:$0xff]
    %v58 = vld [vmem:[%s0 + $0x30] sm:$0xff]
    %v59 = vld [vmem:[%s0 + $0x38] sm:$0xff]
    %v60 = vld [vmem:[%s2] sm:$0xff]
    %v61 = vadd.f32 %v52, %v60
    %v62 = vadd.f32 %v53, %v60
    %v63 = vadd.f32 %v54, %v60
    %v64 = vadd.f32 %v55, %v60
    %v65 = vadd.f32 %v56, %v60
    %v66 = vadd.f32 %v57, %v60
    %v67 = vadd.f32 %v58, %v60
    %v68 = vadd.f32 %v59, %v60
    %v69 = vld [vmem:[%s1] sm:$0x1]
    %v70 = vld [vmem:[%s1 + $0x1] sm:$0x1]
    %v71 = vld [vmem:[%s1 + $0x2] sm:$0x1]
    %v72 = vld [vmem:[%s1 + $0x3] sm:$0x1]
    %v73 = vld [vmem:[%s1 + $0x4] sm:$0x1]
    %v74 = vld [vmem:[%s1 + $0x5] sm:$0x1]
    %v75 = vld [vmem:[%s1 + $0x6] sm:$0x1]
    %v76 = vld [vmem:[%s1 + $0x7] sm:$0x1]
    %v77 = vsub.f32 1.0, %v69
    %v78 = vsub.f32 1.0, %v70
    %v79 = vsub.f32 1.0, %v71
    %v80 = vsub.f32 1.0, %v72
    %v81 = vsub.f32 1.0, %v73
    %v82 = vsub.f32 1.0, %v74
    %v83 = vsub.f32 1.0, %v75
    %v84 = vsub.f32 1.0, %v76
    %v85 = vmul.f32 %v77, -1e+30
    %v86 = vmul.f32 %v78, -1e+30
    %v87 = vmul.f32 %v79, -1e+30
    %v88 = vmul.f32 %v80, -1e+30
    %v89 = vmul.f32 %v81, -1e+30
    %v90 = vmul.f32 %v82, -1e+30
    %v91 = vmul.f32 %v83, -1e+30
    %v92 = vmul.f32 %v84, -1e+30
    %v101 = vperm.slane %v85, 0
    %v102 = vperm.slane %v86, 0
    %v103 = vperm.slane %v87, 0
    %v104 = vperm.slane %v88, 0
    %v105 = vperm.slane %v89, 0
    %v106 = vperm.slane %v90, 0
    %v107 = vperm.slane %v91, 0
    %v108 = vperm.slane %v92, 0
    %v117 = vpack.c.bf16 %v62, %v61
    %v118 = vpack.c.bf16 %v64, %v63
    %v119 = vpack.c.bf16 %v66, %v65
    %v120 = vpack.c.bf16 %v68, %v67
    %v121 = vld [vmem:[%s3] sm:$0xf]
    %v122 = vld [vmem:[%s3 + $0x4] sm:$0xf]
    %v123 = vld [vmem:[%s3 + $0x8] sm:$0xf]
    %v124 = vld [vmem:[%s3 + $0xc] sm:$0xf]
    %v125 = vld [vmem:[%s4] sm:$0x1]
    %v127 = vperm.slane %v125, 0
    %v133 = vunpack.c.l.b16 %v121
    %v134 = vunpack.c.l.b16 %v122
    %v135 = vunpack.c.l.b16 %v123
    %v136 = vunpack.c.l.b16 %v124
    %v137 = vpack.c.b16 %v134, %v133
    %v138 = vpack.c.b16 %v136, %v135
    %vm141 = vcmask 261120
    %v143 = vsel %vm141, %v117, 0
    %v146 = vsel %vm141, %v118, 0
    %v149 = vsel %vm141, %v119, 0
    %v152 = vsel %vm141, %v120, 0
    %154 = vmatpush.bf16.msra.mxu0 0
    %155 = vmatpush.bf16.msra.mxu0 0
    %156 = vmatpush.bf16.msra.mxu0 0
    %157 = vmatpush.bf16.msra.mxu0 0
    %158 = vmatpush.bf16.msra.mxu0 0
    %159 = vmatpush.bf16.msra.mxu0 0
    %160 = vmatpush.bf16.msra.mxu0 %v138
    %161 = vmatpush.bf16.msra.mxu0 %v137
    %162 = vmatmul.bf16.gmra.mxu0 %v143
    %v163 = vpop.f32.mrf.mxu0
    %v164 = vadd.f32 %v127, %v163
    %v165 = vpop.f32.mrf.mxu0
    %v166 = vadd.f32 %v127, %v165
    %167 = vmatmul.bf16.gmra.mxu0 %v146
    %v168 = vpop.f32.mrf.mxu0
    %v169 = vadd.f32 %v127, %v168
    %v170 = vpop.f32.mrf.mxu0
    %v171 = vadd.f32 %v127, %v170
    %172 = vmatmul.bf16.gmra.mxu0 %v149
    %v173 = vpop.f32.mrf.mxu0
    %v174 = vadd.f32 %v127, %v173
    %v175 = vpop.f32.mrf.mxu0
    %v176 = vadd.f32 %v127, %v175
    %177 = vmatmul.bf16.gmra.mxu0 %v152
    %v178 = vpop.f32.mrf.mxu0
    %v179 = vadd.f32 %v127, %v178
    %v180 = vpop.f32.mrf.mxu0
    %v181 = vadd.f32 %v127, %v180
    %182 = vdwg.mxu0
    %v183 = vpack.c.bf16 %v164, %v164
    %v184 = vpack.c.bf16 %v166, %v166
    %v185 = vpack.c.bf16 %v169, %v169
    %v186 = vpack.c.bf16 %v171, %v171
    %v187 = vpack.c.bf16 %v174, %v174
    %v188 = vpack.c.bf16 %v176, %v176
    %v189 = vpack.c.bf16 %v179, %v179
    %v190 = vpack.c.bf16 %v181, %v181
    %v191 = vld [vmem:[%s5] sm:$0xf]
    %v192 = vld [vmem:[%s5 + $0x4] sm:$0xf]
    %v193 = vld [vmem:[%s5 + $0x8] sm:$0xf]
    %v194 = vld [vmem:[%s5 + $0xc] sm:$0xf]
    %v195 = vld [vmem:[%s6] sm:$0x1]
    %v197 = vperm.slane %v195, 0
    %v199 = vadd.f32 %v197, 0.0
    %v201 = vunpack.c.l.b16 %v183
    %v202 = vpack.c.b16 %v201, %v201
    %203 = vrot.lane.b32.xlu0 %v202, 96
    %v204 = vpop.permute.xlu0 %203
    %vm205 = vcmask 64512
    %v207 = vsel %vm205, %v183, 0
    %v210 = vsel %vm205, %v204, 0
    %212 = vmatpush.bf16.xpose.msra.mxu0 0
    %213 = vmatpush.bf16.xpose.msra.mxu0 0
    %214 = vmatpush.bf16.xpose.msra.mxu0 0
    %215 = vmatpush.bf16.xpose.msra.mxu0 0
    %216 = vmatpush.bf16.xpose.msra.mxu0 0
    %217 = vmatpush.bf16.xpose.msra.mxu0 0
    %218 = vmatpush.bf16.xpose.msra.mxu0 0
    %219 = vmatpush.bf16.xpose.msra.mxu0 %v210
    %220 = vmatmul.bf16.gmra.mxu0 %v207
    %v221 = vpop.f32.mrf.mxu0
    %v222 = vadd.f32 %v101, %v221
    %v223 = vpop.f32.mrf.mxu0
    %224 = vdwg.mxu0
    %v226 = vunpack.c.l.b16 %v184
    %v227 = vpack.c.b16 %v226, %v226
    %228 = vrot.lane.b32.xlu0 %v227, 96
    %v229 = vpop.permute.xlu0 %228
    %v231 = vsel %vm205, %v184, 0
    %v234 = vsel %vm205, %v229, 0
    %236 = vmatpush.bf16.xpose.msra.mxu0 0
    %237 = vmatpush.bf16.xpose.msra.mxu0 0
    %238 = vmatpush.bf16.xpose.msra.mxu0 0
    %239 = vmatpush.bf16.xpose.msra.mxu0 0
    %240 = vmatpush.bf16.xpose.msra.mxu0 0
    %241 = vmatpush.bf16.xpose.msra.mxu0 0
    %242 = vmatpush.bf16.xpose.msra.mxu0 0
    %243 = vmatpush.bf16.xpose.msra.mxu0 %v234
    %244 = vmatmul.bf16.gmra.mxu0 %v231
    %v245 = vpop.f32.mrf.mxu0
    %v246 = vadd.f32 %v102, %v245
    %v247 = vpop.f32.mrf.mxu0
    %248 = vdwg.mxu0
    %v250 = vunpack.c.l.b16 %v185
    %v251 = vpack.c.b16 %v250, %v250
    %252 = vrot.lane.b32.xlu0 %v251, 96
    %v253 = vpop.permute.xlu0 %252
    %v255 = vsel %vm205, %v185, 0
    %v258 = vsel %vm205, %v253, 0
    %260 = vmatpush.bf16.xpose.msra.mxu0 0
    %261 = vmatpush.bf16.xpose.msra.mxu0 0
    %262 = vmatpush.bf16.xpose.msra.mxu0 0
    %263 = vmatpush.bf16.xpose.msra.mxu0 0
    %264 = vmatpush.bf16.xpose.msra.mxu0 0
    %265 = vmatpush.bf16.xpose.msra.mxu0 0
    %266 = vmatpush.bf16.xpose.msra.mxu0 0
    %267 = vmatpush.bf16.xpose.msra.mxu0 %v258
    %268 = vmatmul.bf16.gmra.mxu0 %v255
    %v269 = vpop.f32.mrf.mxu0
    %v270 = vadd.f32 %v103, %v269
    %v271 = vpop.f32.mrf.mxu0
    %272 = vdwg.mxu0
    %v274 = vunpack.c.l.b16 %v186
    %v275 = vpack.c.b16 %v274, %v274
    %276 = vrot.lane.b32.xlu0 %v275, 96
    %v277 = vpop.permute.xlu0 %276
    %v279 = vsel %vm205, %v186, 0
    %v282 = vsel %vm205, %v277, 0
    %284 = vmatpush.bf16.xpose.msra.mxu0 0
    %285 = vmatpush.bf16.xpose.msra.mxu0 0
    %286 = vmatpush.bf16.xpose.msra.mxu0 0
    %287 = vmatpush.bf16.xpose.msra.mxu0 0
    %288 = vmatpush.bf16.xpose.msra.mxu0 0
    %289 = vmatpush.bf16.xpose.msra.mxu0 0
    %290 = vmatpush.bf16.xpose.msra.mxu0 0
    %291 = vmatpush.bf16.xpose.msra.mxu0 %v282
    %292 = vmatmul.bf16.gmra.mxu0 %v279
    %v293 = vpop.f32.mrf.mxu0
    %v294 = vadd.f32 %v104, %v293
    %v295 = vpop.f32.mrf.mxu0
    %296 = vdwg.mxu0
    %v298 = vunpack.c.l.b16 %v187
    %v299 = vpack.c.b16 %v298, %v298
    %300 = vrot.lane.b32.xlu0 %v299, 96
    %v301 = vpop.permute.xlu0 %300
    %v303 = vsel %vm205, %v187, 0
    %v306 = vsel %vm205, %v301, 0
    %308 = vmatpush.bf16.xpose.msra.mxu0 0
    %309 = vmatpush.bf16.xpose.msra.mxu0 0
    %310 = vmatpush.bf16.xpose.msra.mxu0 0
    %311 = vmatpush.bf16.xpose.msra.mxu0 0
    %312 = vmatpush.bf16.xpose.msra.mxu0 0
    %313 = vmatpush.bf16.xpose.msra.mxu0 0
    %314 = vmatpush.bf16.xpose.msra.mxu0 0
    %315 = vmatpush.bf16.xpose.msra.mxu0 %v306
    %316 = vmatmul.bf16.gmra.mxu0 %v303
    %v317 = vpop.f32.mrf.mxu0
    %v318 = vadd.f32 %v105, %v317
    %v319 = vpop.f32.mrf.mxu0
    %320 = vdwg.mxu0
    %v322 = vunpack.c.l.b16 %v188
    %v323 = vpack.c.b16 %v322, %v322
    %324 = vrot.lane.b32.xlu0 %v323, 96
    %v325 = vpop.permute.xlu0 %324
    %v327 = vsel %vm205, %v188, 0
    %v330 = vsel %vm205, %v325, 0
    %332 = vmatpush.bf16.xpose.msra.mxu0 0
    %333 = vmatpush.bf16.xpose.msra.mxu0 0
    %334 = vmatpush.bf16.xpose.msra.mxu0 0
    %335 = vmatpush.bf16.xpose.msra.mxu0 0
    %336 = vmatpush.bf16.xpose.msra.mxu0 0
    %337 = vmatpush.bf16.xpose.msra.mxu0 0
    %338 = vmatpush.bf16.xpose.msra.mxu0 0
    %339 = vmatpush.bf16.xpose.msra.mxu0 %v330
    %340 = vmatmul.bf16.gmra.mxu0 %v327
    %v341 = vpop.f32.mrf.mxu0
    %v342 = vadd.f32 %v106, %v341
    %v343 = vpop.f32.mrf.mxu0
    %344 = vdwg.mxu0
    %v346 = vunpack.c.l.b16 %v189
    %v347 = vpack.c.b16 %v346, %v346
    %348 = vrot.lane.b32.xlu0 %v347, 96
    %v349 = vpop.permute.xlu0 %348
    %v351 = vsel %vm205, %v189, 0
    %v354 = vsel %vm205, %v349, 0
    %356 = vmatpush.bf16.xpose.msra.mxu0 0
    %357 = vmatpush.bf16.xpose.msra.mxu0 0
    %358 = vmatpush.bf16.xpose.msra.mxu0 0
    %359 = vmatpush.bf16.xpose.msra.mxu0 0
    %360 = vmatpush.bf16.xpose.msra.mxu0 0
    %361 = vmatpush.bf16.xpose.msra.mxu0 0
    %362 = vmatpush.bf16.xpose.msra.mxu0 0
    %363 = vmatpush.bf16.xpose.msra.mxu0 %v354
    %364 = vmatmul.bf16.gmra.mxu0 %v351
    %v365 = vpop.f32.mrf.mxu0
    %v366 = vadd.f32 %v107, %v365
    %v367 = vpop.f32.mrf.mxu0
    %368 = vdwg.mxu0
    %v370 = vunpack.c.l.b16 %v190
    %v371 = vpack.c.b16 %v370, %v370
    %372 = vrot.lane.b32.xlu0 %v371, 96
    %v373 = vpop.permute.xlu0 %372
    %v375 = vsel %vm205, %v190, 0
    %v378 = vsel %vm205, %v373, 0
    %380 = vmatpush.bf16.xpose.msra.mxu0 0
    %381 = vmatpush.bf16.xpose.msra.mxu0 0
    %382 = vmatpush.bf16.xpose.msra.mxu0 0
    %383 = vmatpush.bf16.xpose.msra.mxu0 0
    %384 = vmatpush.bf16.xpose.msra.mxu0 0
    %385 = vmatpush.bf16.xpose.msra.mxu0 0
    %386 = vmatpush.bf16.xpose.msra.mxu0 0
    %387 = vmatpush.bf16.xpose.msra.mxu0 %v378
    %388 = vmatmul.bf16.gmra.mxu0 %v375
    %v389 = vpop.f32.mrf.mxu0
    %v390 = vadd.f32 %v108, %v389
    %v391 = vpop.f32.mrf.mxu0
    %392 = vdwg.mxu0
    %v393 = vsel %vm205, %v222, -inf
    %394 = vmax.xlane.f32.xlu0 %v393
    %v395 = vpop.xlane.xlu0 %394
    %v396 = vsel %vm205, %v246, -inf
    %397 = vmax.xlane.f32.xlu0 %v396
    %v398 = vpop.xlane.xlu0 %397
    %v399 = vsel %vm205, %v270, -inf
    %400 = vmax.xlane.f32.xlu0 %v399
    %v401 = vpop.xlane.xlu0 %400
    %v402 = vsel %vm205, %v294, -inf
    %403 = vmax.xlane.f32.xlu0 %v402
    %v404 = vpop.xlane.xlu0 %403
    %v405 = vsel %vm205, %v318, -inf
    %406 = vmax.xlane.f32.xlu0 %v405
    %v407 = vpop.xlane.xlu0 %406
    %v408 = vsel %vm205, %v342, -inf
    %409 = vmax.xlane.f32.xlu0 %v408
    %v410 = vpop.xlane.xlu0 %409
    %v411 = vsel %vm205, %v366, -inf
    %412 = vmax.xlane.f32.xlu0 %v411
    %v413 = vpop.xlane.xlu0 %412
    %v414 = vsel %vm205, %v390, -inf
    %415 = vmax.xlane.f32.xlu0 %v414
    %v416 = vpop.xlane.xlu0 %415
    %v417 = vsub.f32 %v222, %v395
    %v418 = vsub.f32 %v246, %v398
    %v419 = vsub.f32 %v270, %v401
    %v420 = vsub.f32 %v294, %v404
    %v421 = vsub.f32 %v318, %v407
    %v422 = vsub.f32 %v342, %v410
    %v423 = vsub.f32 %v366, %v413
    %v424 = vsub.f32 %v390, %v416
    %v425 = vmul.f32 %v417, 1.442695
    %v426 = vpow.pop %v425
    %v427 = vmul.f32 %v418, 1.442695
    %v428 = vpow.pop %v427
    %v429 = vmul.f32 %v419, 1.442695
    %v430 = vpow.pop %v429
    %v431 = vmul.f32 %v420, 1.442695
    %v432 = vpow.pop %v431
    %v433 = vmul.f32 %v421, 1.442695
    %v434 = vpow.pop %v433
    %v435 = vmul.f32 %v422, 1.442695
    %v436 = vpow.pop %v435
    %v437 = vmul.f32 %v423, 1.442695
    %v438 = vpow.pop %v437
    %v439 = vmul.f32 %v424, 1.442695
    %v440 = vpow.pop %v439
    %v441 = vsel %vm205, %v426, 0.0
    %442 = vadd.xlane.f32.xlu0 %v441
    %v443 = vpop.xlane.xlu0 %442
    %v444 = vsel %vm205, %v428, 0.0
    %445 = vadd.xlane.f32.xlu0 %v444
    %v446 = vpop.xlane.xlu0 %445
    %v447 = vsel %vm205, %v430, 0.0
    %448 = vadd.xlane.f32.xlu0 %v447
    %v449 = vpop.xlane.xlu0 %448
    %v450 = vsel %vm205, %v432, 0.0
    %451 = vadd.xlane.f32.xlu0 %v450
    %v452 = vpop.xlane.xlu0 %451
    %v453 = vsel %vm205, %v434, 0.0
    %454 = vadd.xlane.f32.xlu0 %v453
    %v455 = vpop.xlane.xlu0 %454
    %v456 = vsel %vm205, %v436, 0.0
    %457 = vadd.xlane.f32.xlu0 %v456
    %v458 = vpop.xlane.xlu0 %457
    %v459 = vsel %vm205, %v438, 0.0
    %460 = vadd.xlane.f32.xlu0 %v459
    %v461 = vpop.xlane.xlu0 %460
    %v462 = vsel %vm205, %v440, 0.0
    %463 = vadd.xlane.f32.xlu0 %v462
    %v464 = vpop.xlane.xlu0 %463
    %v465 = vrcp.pop %v443
    %v466 = vrcp.pop %v446
    %v467 = vrcp.pop %v449
    %v468 = vrcp.pop %v452
    %v469 = vrcp.pop %v455
    %v470 = vrcp.pop %v458
    %v471 = vrcp.pop %v461
    %v472 = vrcp.pop %v464
    %v473 = vmul.f32 %v426, %v465
    %v474 = vmul.f32 %v428, %v466
    %v475 = vmul.f32 %v430, %v467
    %v476 = vmul.f32 %v432, %v468
    %v477 = vmul.f32 %v434, %v469
    %v478 = vmul.f32 %v436, %v470
    %v479 = vmul.f32 %v438, %v471
    %v480 = vmul.f32 %v440, %v472
    %v481 = vpack.c.bf16 %v473, %v473
    %v482 = vpack.c.bf16 %v474, %v474
    %v483 = vpack.c.bf16 %v475, %v475
    %v484 = vpack.c.bf16 %v476, %v476
    %v485 = vpack.c.bf16 %v477, %v477
    %v486 = vpack.c.bf16 %v478, %v478
    %v487 = vpack.c.bf16 %v479, %v479
    %v488 = vpack.c.bf16 %v480, %v480
    %489 = vrot.lane.b32.xlu0 %v202, 64
    %v490 = vpop.permute.xlu0 %489
    %v492 = vsel %vm205, %v481, 0
    %vm494 = vcmask 1043456
    %v496 = vsel %vm494, %v490, 0
    %498 = vmatpush.bf16.msra.mxu0 0
    %499 = vmatpush.bf16.msra.mxu0 0
    %500 = vmatpush.bf16.msra.mxu0 0
    %501 = vmatpush.bf16.msra.mxu0 0
    %502 = vmatpush.bf16.msra.mxu0 0
    %503 = vmatpush.bf16.msra.mxu0 0
    %504 = vmatpush.bf16.msra.mxu0 0
    %505 = vmatpush.bf16.msra.mxu0 %v496
    %506 = vmatmul.bf16.gmra.mxu0 %v492
    %v507 = vpop.f32.mrf.mxu0
    %v508 = vadd.f32 0.0, %v507
    %v509 = vpop.f32.mrf.mxu0
    %510 = vdwg.mxu0
    %511 = vrot.lane.b32.xlu0 %v227, 64
    %v512 = vpop.permute.xlu0 %511
    %v514 = vsel %vm205, %v482, 0
    %v517 = vsel %vm494, %v512, 0
    %519 = vmatpush.bf16.msra.mxu0 0
    %520 = vmatpush.bf16.msra.mxu0 0
    %521 = vmatpush.bf16.msra.mxu0 0
    %522 = vmatpush.bf16.msra.mxu0 0
    %523 = vmatpush.bf16.msra.mxu0 0
    %524 = vmatpush.bf16.msra.mxu0 0
    %525 = vmatpush.bf16.msra.mxu0 0
    %526 = vmatpush.bf16.msra.mxu0 %v517
    %527 = vmatmul.bf16.gmra.mxu0 %v514
    %v528 = vpop.f32.mrf.mxu0
    %v529 = vadd.f32 0.0, %v528
    %v530 = vpop.f32.mrf.mxu0
    %531 = vdwg.mxu0
    %532 = vrot.lane.b32.xlu0 %v251, 64
    %v533 = vpop.permute.xlu0 %532
    %v535 = vsel %vm205, %v483, 0
    %v538 = vsel %vm494, %v533, 0
    %540 = vmatpush.bf16.msra.mxu0 0
    %541 = vmatpush.bf16.msra.mxu0 0
    %542 = vmatpush.bf16.msra.mxu0 0
    %543 = vmatpush.bf16.msra.mxu0 0
    %544 = vmatpush.bf16.msra.mxu0 0
    %545 = vmatpush.bf16.msra.mxu0 0
    %546 = vmatpush.bf16.msra.mxu0 0
    %547 = vmatpush.bf16.msra.mxu0 %v538
    %548 = vmatmul.bf16.gmra.mxu0 %v535
    %v549 = vpop.f32.mrf.mxu0
    %v550 = vadd.f32 0.0, %v549
    %v551 = vpop.f32.mrf.mxu0
    %552 = vdwg.mxu0
    %553 = vrot.lane.b32.xlu0 %v275, 64
    %v554 = vpop.permute.xlu0 %553
    %v556 = vsel %vm205, %v484, 0
    %v559 = vsel %vm494, %v554, 0
    %561 = vmatpush.bf16.msra.mxu0 0
    %562 = vmatpush.bf16.msra.mxu0 0
    %563 = vmatpush.bf16.msra.mxu0 0
    %564 = vmatpush.bf16.msra.mxu0 0
    %565 = vmatpush.bf16.msra.mxu0 0
    %566 = vmatpush.bf16.msra.mxu0 0
    %567 = vmatpush.bf16.msra.mxu0 0
    %568 = vmatpush.bf16.msra.mxu0 %v559
    %569 = vmatmul.bf16.gmra.mxu0 %v556
    %v570 = vpop.f32.mrf.mxu0
    %v571 = vadd.f32 0.0, %v570
    %v572 = vpop.f32.mrf.mxu0
    %573 = vdwg.mxu0
    %574 = vrot.lane.b32.xlu0 %v299, 64
    %v575 = vpop.permute.xlu0 %574
    %v577 = vsel %vm205, %v485, 0
    %v580 = vsel %vm494, %v575, 0
    %582 = vmatpush.bf16.msra.mxu0 0
    %583 = vmatpush.bf16.msra.mxu0 0
    %584 = vmatpush.bf16.msra.mxu0 0
    %585 = vmatpush.bf16.msra.mxu0 0
    %586 = vmatpush.bf16.msra.mxu0 0
    %587 = vmatpush.bf16.msra.mxu0 0
    %588 = vmatpush.bf16.msra.mxu0 0
    %589 = vmatpush.bf16.msra.mxu0 %v580
    %590 = vmatmul.bf16.gmra.mxu0 %v577
    %v591 = vpop.f32.mrf.mxu0
    %v592 = vadd.f32 0.0, %v591
    %v593 = vpop.f32.mrf.mxu0
    %594 = vdwg.mxu0
    %595 = vrot.lane.b32.xlu0 %v323, 64
    %v596 = vpop.permute.xlu0 %595
    %v598 = vsel %vm205, %v486, 0
    %v601 = vsel %vm494, %v596, 0
    %603 = vmatpush.bf16.msra.mxu0 0
    %604 = vmatpush.bf16.msra.mxu0 0
    %605 = vmatpush.bf16.msra.mxu0 0
    %606 = vmatpush.bf16.msra.mxu0 0
    %607 = vmatpush.bf16.msra.mxu0 0
    %608 = vmatpush.bf16.msra.mxu0 0
    %609 = vmatpush.bf16.msra.mxu0 0
    %610 = vmatpush.bf16.msra.mxu0 %v601
    %611 = vmatmul.bf16.gmra.mxu0 %v598
    %v612 = vpop.f32.mrf.mxu0
    %v613 = vadd.f32 0.0, %v612
    %v614 = vpop.f32.mrf.mxu0
    %615 = vdwg.mxu0
    %616 = vrot.lane.b32.xlu0 %v347, 64
    %v617 = vpop.permute.xlu0 %616
    %v619 = vsel %vm205, %v487, 0
    %v622 = vsel %vm494, %v617, 0
    %624 = vmatpush.bf16.msra.mxu0 0
    %625 = vmatpush.bf16.msra.mxu0 0
    %626 = vmatpush.bf16.msra.mxu0 0
    %627 = vmatpush.bf16.msra.mxu0 0
    %628 = vmatpush.bf16.msra.mxu0 0
    %629 = vmatpush.bf16.msra.mxu0 0
    %630 = vmatpush.bf16.msra.mxu0 0
    %631 = vmatpush.bf16.msra.mxu0 %v622
    %632 = vmatmul.bf16.gmra.mxu0 %v619
    %v633 = vpop.f32.mrf.mxu0
    %v634 = vadd.f32 0.0, %v633
    %v635 = vpop.f32.mrf.mxu0
    %636 = vdwg.mxu0
    %637 = vrot.lane.b32.xlu0 %v371, 64
    %v638 = vpop.permute.xlu0 %637
    %v640 = vsel %vm205, %v488, 0
    %v643 = vsel %vm494, %v638, 0
    %645 = vmatpush.bf16.msra.mxu0 0
    %646 = vmatpush.bf16.msra.mxu0 0
    %647 = vmatpush.bf16.msra.mxu0 0
    %648 = vmatpush.bf16.msra.mxu0 0
    %649 = vmatpush.bf16.msra.mxu0 0
    %650 = vmatpush.bf16.msra.mxu0 0
    %651 = vmatpush.bf16.msra.mxu0 0
    %652 = vmatpush.bf16.msra.mxu0 %v643
    %653 = vmatmul.bf16.gmra.mxu0 %v640
    %v654 = vpop.f32.mrf.mxu0
    %v655 = vadd.f32 0.0, %v654
    %v656 = vpop.f32.mrf.mxu0
    %657 = vdwg.mxu0
    %v658 = vpack.c.bf16 %v529, %v508
    %v659 = vpack.c.bf16 %v571, %v550
    %v660 = vpack.c.bf16 %v613, %v592
    %v661 = vpack.c.bf16 %v655, %v634
    %v663 = vsel %vm205, %v658, 0
    %v666 = vsel %vm205, %v659, 0
    %v669 = vsel %vm205, %v660, 0
    %v672 = vsel %vm205, %v661, 0
    %v675 = vsel %vm494, %v191, 0
    %677 = vmatpush.bf16.msra.mxu0 0
    %678 = vmatpush.bf16.msra.mxu0 0
    %679 = vmatpush.bf16.msra.mxu0 0
    %680 = vmatpush.bf16.msra.mxu0 0
    %681 = vmatpush.bf16.msra.mxu0 0
    %682 = vmatpush.bf16.msra.mxu0 0
    %683 = vmatpush.bf16.msra.mxu0 0
    %684 = vmatpush.bf16.msra.mxu0 %v675
    %685 = vmatmul.bf16.gmra.mxu0 %v663
    %v686 = vpop.f32.mrf.mxu0
    %v687 = vadd.f32 0.0, %v686
    %v688 = vpop.f32.mrf.mxu0
    %v689 = vadd.f32 0.0, %v688
    %690 = vmatmul.bf16.gmra.mxu0 %v666
    %v691 = vpop.f32.mrf.mxu0
    %v692 = vadd.f32 0.0, %v691
    %v693 = vpop.f32.mrf.mxu0
    %v694 = vadd.f32 0.0, %v693
    %695 = vmatmul.bf16.gmra.mxu0 %v669
    %v696 = vpop.f32.mrf.mxu0
    %v697 = vadd.f32 0.0, %v696
    %v698 = vpop.f32.mrf.mxu0
    %v699 = vadd.f32 0.0, %v698
    %700 = vmatmul.bf16.gmra.mxu0 %v672
    %v701 = vpop.f32.mrf.mxu0
    %v702 = vadd.f32 0.0, %v701
    %v703 = vpop.f32.mrf.mxu0
    %v704 = vadd.f32 0.0, %v703
    %705 = vdwg.mxu0
    %v706 = vadd.f32 %v199, %v687
    %v707 = vadd.f32 %v199, %v689
    %v708 = vadd.f32 %v199, %v692
    %v709 = vadd.f32 %v199, %v694
    %v710 = vadd.f32 %v199, %v697
    %v711 = vadd.f32 %v199, %v699
    %v712 = vadd.f32 %v199, %v702
    %v713 = vadd.f32 %v199, %v704
    %714 = vrot.lane.b32.xlu0 %v202, 120
    %v715 = vpop.permute.xlu0 %714
    %716 = vrot.lane.b32.xlu0 %v202, 88
    %v717 = vpop.permute.xlu0 %716
    %v719 = vsel %vm205, %v715, 0
    %v722 = vsel %vm205, %v717, 0
    %724 = vmatpush.bf16.xpose.msra.mxu0 0
    %725 = vmatpush.bf16.xpose.msra.mxu0 0
    %726 = vmatpush.bf16.xpose.msra.mxu0 0
    %727 = vmatpush.bf16.xpose.msra.mxu0 0
    %728 = vmatpush.bf16.xpose.msra.mxu0 0
    %729 = vmatpush.bf16.xpose.msra.mxu0 0
    %730 = vmatpush.bf16.xpose.msra.mxu0 0
    %731 = vmatpush.bf16.xpose.msra.mxu0 %v722
    %732 = vmatmul.bf16.gmra.mxu0 %v719
    %v733 = vpop.f32.mrf.mxu0
    %v734 = vadd.f32 %v101, %v733
    %v735 = vpop.f32.mrf.mxu0
    %736 = vdwg.mxu0
    %737 = vrot.lane.b32.xlu0 %v227, 120
    %v738 = vpop.permute.xlu0 %737
    %739 = vrot.lane.b32.xlu0 %v227, 88
    %v740 = vpop.permute.xlu0 %739
    %v742 = vsel %vm205, %v738, 0
    %v745 = vsel %vm205, %v740, 0
    %747 = vmatpush.bf16.xpose.msra.mxu0 0
    %748 = vmatpush.bf16.xpose.msra.mxu0 0
    %749 = vmatpush.bf16.xpose.msra.mxu0 0
    %750 = vmatpush.bf16.xpose.msra.mxu0 0
    %751 = vmatpush.bf16.xpose.msra.mxu0 0
    %752 = vmatpush.bf16.xpose.msra.mxu0 0
    %753 = vmatpush.bf16.xpose.msra.mxu0 0
    %754 = vmatpush.bf16.xpose.msra.mxu0 %v745
    %755 = vmatmul.bf16.gmra.mxu0 %v742
    %v756 = vpop.f32.mrf.mxu0
    %v757 = vadd.f32 %v102, %v756
    %v758 = vpop.f32.mrf.mxu0
    %759 = vdwg.mxu0
    %760 = vrot.lane.b32.xlu0 %v251, 120
    %v761 = vpop.permute.xlu0 %760
    %762 = vrot.lane.b32.xlu0 %v251, 88
    %v763 = vpop.permute.xlu0 %762
    %v765 = vsel %vm205, %v761, 0
    %v768 = vsel %vm205, %v763, 0
    %770 = vmatpush.bf16.xpose.msra.mxu0 0
    %771 = vmatpush.bf16.xpose.msra.mxu0 0
    %772 = vmatpush.bf16.xpose.msra.mxu0 0
    %773 = vmatpush.bf16.xpose.msra.mxu0 0
    %774 = vmatpush.bf16.xpose.msra.mxu0 0
    %775 = vmatpush.bf16.xpose.msra.mxu0 0
    %776 = vmatpush.bf16.xpose.msra.mxu0 0
    %777 = vmatpush.bf16.xpose.msra.mxu0 %v768
    %778 = vmatmul.bf16.gmra.mxu0 %v765
    %v779 = vpop.f32.mrf.mxu0
    %v780 = vadd.f32 %v103, %v779
    %v781 = vpop.f32.mrf.mxu0
    %782 = vdwg.mxu0
    %783 = vrot.lane.b32.xlu0 %v275, 120
    %v784 = vpop.permute.xlu0 %783
    %785 = vrot.lane.b32.xlu0 %v275, 88
    %v786 = vpop.permute.xlu0 %785
    %v788 = vsel %vm205, %v784, 0
    %v791 = vsel %vm205, %v786, 0
    %793 = vmatpush.bf16.xpose.msra.mxu0 0
    %794 = vmatpush.bf16.xpose.msra.mxu0 0
    %795 = vmatpush.bf16.xpose.msra.mxu0 0
    %796 = vmatpush.bf16.xpose.msra.mxu0 0
    %797 = vmatpush.bf16.xpose.msra.mxu0 0
    %798 = vmatpush.bf16.xpose.msra.mxu0 0
    %799 = vmatpush.bf16.xpose.msra.mxu0 0
    %800 = vmatpush.bf16.xpose.msra.mxu0 %v791
    %801 = vmatmul.bf16.gmra.mxu0 %v788
    %v802 = vpop.f32.mrf.mxu0
    %v803 = vadd.f32 %v104, %v802
    %v804 = vpop.f32.mrf.mxu0
    %805 = vdwg.mxu0
    %806 = vrot.lane.b32.xlu0 %v299, 120
    %v807 = vpop.permute.xlu0 %806
    %808 = vrot.lane.b32.xlu0 %v299, 88
    %v809 = vpop.permute.xlu0 %808
    %v811 = vsel %vm205, %v807, 0
    %v814 = vsel %vm205, %v809, 0
    %816 = vmatpush.bf16.xpose.msra.mxu0 0
    %817 = vmatpush.bf16.xpose.msra.mxu0 0
    %818 = vmatpush.bf16.xpose.msra.mxu0 0
    %819 = vmatpush.bf16.xpose.msra.mxu0 0
    %820 = vmatpush.bf16.xpose.msra.mxu0 0
    %821 = vmatpush.bf16.xpose.msra.mxu0 0
    %822 = vmatpush.bf16.xpose.msra.mxu0 0
    %823 = vmatpush.bf16.xpose.msra.mxu0 %v814
    %824 = vmatmul.bf16.gmra.mxu0 %v811
    %v825 = vpop.f32.mrf.mxu0
    %v826 = vadd.f32 %v105, %v825
    %v827 = vpop.f32.mrf.mxu0
    %828 = vdwg.mxu0
    %829 = vrot.lane.b32.xlu0 %v323, 120
    %v830 = vpop.permute.xlu0 %829
    %831 = vrot.lane.b32.xlu0 %v323, 88
    %v832 = vpop.permute.xlu0 %831
    %v834 = vsel %vm205, %v830, 0
    %v837 = vsel %vm205, %v832, 0
    %839 = vmatpush.bf16.xpose.msra.mxu0 0
    %840 = vmatpush.bf16.xpose.msra.mxu0 0
    %841 = vmatpush.bf16.xpose.msra.mxu0 0
    %842 = vmatpush.bf16.xpose.msra.mxu0 0
    %843 = vmatpush.bf16.xpose.msra.mxu0 0
    %844 = vmatpush.bf16.xpose.msra.mxu0 0
    %845 = vmatpush.bf16.xpose.msra.mxu0 0
    %846 = vmatpush.bf16.xpose.msra.mxu0 %v837
    %847 = vmatmul.bf16.gmra.mxu0 %v834
    %v848 = vpop.f32.mrf.mxu0
    %v849 = vadd.f32 %v106, %v848
    %v850 = vpop.f32.mrf.mxu0
    %851 = vdwg.mxu0
    %852 = vrot.lane.b32.xlu0 %v347, 120
    %v853 = vpop.permute.xlu0 %852
    %854 = vrot.lane.b32.xlu0 %v347, 88
    %v855 = vpop.permute.xlu0 %854
    %v857 = vsel %vm205, %v853, 0
    %v860 = vsel %vm205, %v855, 0
    %862 = vmatpush.bf16.xpose.msra.mxu0 0
    %863 = vmatpush.bf16.xpose.msra.mxu0 0
    %864 = vmatpush.bf16.xpose.msra.mxu0 0
    %865 = vmatpush.bf16.xpose.msra.mxu0 0
    %866 = vmatpush.bf16.xpose.msra.mxu0 0
    %867 = vmatpush.bf16.xpose.msra.mxu0 0
    %868 = vmatpush.bf16.xpose.msra.mxu0 0
    %869 = vmatpush.bf16.xpose.msra.mxu0 %v860
    %870 = vmatmul.bf16.gmra.mxu0 %v857
    %v871 = vpop.f32.mrf.mxu0
    %v872 = vadd.f32 %v107, %v871
    %v873 = vpop.f32.mrf.mxu0
    %874 = vdwg.mxu0
    %875 = vrot.lane.b32.xlu0 %v371, 120
    %v876 = vpop.permute.xlu0 %875
    %877 = vrot.lane.b32.xlu0 %v371, 88
    %v878 = vpop.permute.xlu0 %877
    %v880 = vsel %vm205, %v876, 0
    %v883 = vsel %vm205, %v878, 0
    %885 = vmatpush.bf16.xpose.msra.mxu0 0
    %886 = vmatpush.bf16.xpose.msra.mxu0 0
    %887 = vmatpush.bf16.xpose.msra.mxu0 0
    %888 = vmatpush.bf16.xpose.msra.mxu0 0
    %889 = vmatpush.bf16.xpose.msra.mxu0 0
    %890 = vmatpush.bf16.xpose.msra.mxu0 0
    %891 = vmatpush.bf16.xpose.msra.mxu0 0
    %892 = vmatpush.bf16.xpose.msra.mxu0 %v883
    %893 = vmatmul.bf16.gmra.mxu0 %v880
    %v894 = vpop.f32.mrf.mxu0
    %v895 = vadd.f32 %v108, %v894
    %v896 = vpop.f32.mrf.mxu0
    %897 = vdwg.mxu0
    %v898 = vsel %vm205, %v734, -inf
    %899 = vmax.xlane.f32.xlu0 %v898
    %v900 = vpop.xlane.xlu0 %899
    %v901 = vsel %vm205, %v757, -inf
    %902 = vmax.xlane.f32.xlu0 %v901
    %v903 = vpop.xlane.xlu0 %902
    %v904 = vsel %vm205, %v780, -inf
    %905 = vmax.xlane.f32.xlu0 %v904
    %v906 = vpop.xlane.xlu0 %905
    %v907 = vsel %vm205, %v803, -inf
    %908 = vmax.xlane.f32.xlu0 %v907
    %v909 = vpop.xlane.xlu0 %908
    %v910 = vsel %vm205, %v826, -inf
    %911 = vmax.xlane.f32.xlu0 %v910
    %v912 = vpop.xlane.xlu0 %911
    %v913 = vsel %vm205, %v849, -inf
    %914 = vmax.xlane.f32.xlu0 %v913
    %v915 = vpop.xlane.xlu0 %914
    %v916 = vsel %vm205, %v872, -inf
    %917 = vmax.xlane.f32.xlu0 %v916
    %v918 = vpop.xlane.xlu0 %917
    %v919 = vsel %vm205, %v895, -inf
    %920 = vmax.xlane.f32.xlu0 %v919
    %v921 = vpop.xlane.xlu0 %920
    %v922 = vsub.f32 %v734, %v900
    %v923 = vsub.f32 %v757, %v903
    %v924 = vsub.f32 %v780, %v906
    %v925 = vsub.f32 %v803, %v909
    %v926 = vsub.f32 %v826, %v912
    %v927 = vsub.f32 %v849, %v915
    %v928 = vsub.f32 %v872, %v918
    %v929 = vsub.f32 %v895, %v921
    %v930 = vmul.f32 %v922, 1.442695
    %v931 = vpow.pop %v930
    %v932 = vmul.f32 %v923, 1.442695
    %v933 = vpow.pop %v932
    %v934 = vmul.f32 %v924, 1.442695
    %v935 = vpow.pop %v934
    %v936 = vmul.f32 %v925, 1.442695
    %v937 = vpow.pop %v936
    %v938 = vmul.f32 %v926, 1.442695
    %v939 = vpow.pop %v938
    %v940 = vmul.f32 %v927, 1.442695
    %v941 = vpow.pop %v940
    %v942 = vmul.f32 %v928, 1.442695
    %v943 = vpow.pop %v942
    %v944 = vmul.f32 %v929, 1.442695
    %v945 = vpow.pop %v944
    %v946 = vsel %vm205, %v931, 0.0
    %947 = vadd.xlane.f32.xlu0 %v946
    %v948 = vpop.xlane.xlu0 %947
    %v949 = vsel %vm205, %v933, 0.0
    %950 = vadd.xlane.f32.xlu0 %v949
    %v951 = vpop.xlane.xlu0 %950
    %v952 = vsel %vm205, %v935, 0.0
    %953 = vadd.xlane.f32.xlu0 %v952
    %v954 = vpop.xlane.xlu0 %953
    %v955 = vsel %vm205, %v937, 0.0
    %956 = vadd.xlane.f32.xlu0 %v955
    %v957 = vpop.xlane.xlu0 %956
    %v958 = vsel %vm205, %v939, 0.0
    %959 = vadd.xlane.f32.xlu0 %v958
    %v960 = vpop.xlane.xlu0 %959
    %v961 = vsel %vm205, %v941, 0.0
    %962 = vadd.xlane.f32.xlu0 %v961
    %v963 = vpop.xlane.xlu0 %962
    %v964 = vsel %vm205, %v943, 0.0
    %965 = vadd.xlane.f32.xlu0 %v964
    %v966 = vpop.xlane.xlu0 %965
    %v967 = vsel %vm205, %v945, 0.0
    %968 = vadd.xlane.f32.xlu0 %v967
    %v969 = vpop.xlane.xlu0 %968
    %v970 = vrcp.pop %v948
    %v971 = vrcp.pop %v951
    %v972 = vrcp.pop %v954
    %v973 = vrcp.pop %v957
    %v974 = vrcp.pop %v960
    %v975 = vrcp.pop %v963
    %v976 = vrcp.pop %v966
    %v977 = vrcp.pop %v969
    %v978 = vmul.f32 %v931, %v970
    %v979 = vmul.f32 %v933, %v971
    %v980 = vmul.f32 %v935, %v972
    %v981 = vmul.f32 %v937, %v973
    %v982 = vmul.f32 %v939, %v974
    %v983 = vmul.f32 %v941, %v975
    %v984 = vmul.f32 %v943, %v976
    %v985 = vmul.f32 %v945, %v977
    %v986 = vpack.c.bf16 %v978, %v978
    %v987 = vpack.c.bf16 %v979, %v979
    %v988 = vpack.c.bf16 %v980, %v980
    %v989 = vpack.c.bf16 %v981, %v981
    %v990 = vpack.c.bf16 %v982, %v982
    %v991 = vpack.c.bf16 %v983, %v983
    %v992 = vpack.c.bf16 %v984, %v984
    %v993 = vpack.c.bf16 %v985, %v985
    %994 = vrot.lane.b32.xlu0 %v202, 56
    %v995 = vpop.permute.xlu0 %994
    %v997 = vsel %vm205, %v986, 0
    %v1000 = vsel %vm494, %v995, 0
    %1002 = vmatpush.bf16.msra.mxu0 0
    %1003 = vmatpush.bf16.msra.mxu0 0
    %1004 = vmatpush.bf16.msra.mxu0 0
    %1005 = vmatpush.bf16.msra.mxu0 0
    %1006 = vmatpush.bf16.msra.mxu0 0
    %1007 = vmatpush.bf16.msra.mxu0 0
    %1008 = vmatpush.bf16.msra.mxu0 0
    %1009 = vmatpush.bf16.msra.mxu0 %v1000
    %1010 = vmatmul.bf16.gmra.mxu0 %v997
    %v1011 = vpop.f32.mrf.mxu0
    %v1012 = vadd.f32 0.0, %v1011
    %v1013 = vpop.f32.mrf.mxu0
    %1014 = vdwg.mxu0
    %1015 = vrot.lane.b32.xlu0 %v227, 56
    %v1016 = vpop.permute.xlu0 %1015
    %v1018 = vsel %vm205, %v987, 0
    %v1021 = vsel %vm494, %v1016, 0
    %1023 = vmatpush.bf16.msra.mxu0 0
    %1024 = vmatpush.bf16.msra.mxu0 0
    %1025 = vmatpush.bf16.msra.mxu0 0
    %1026 = vmatpush.bf16.msra.mxu0 0
    %1027 = vmatpush.bf16.msra.mxu0 0
    %1028 = vmatpush.bf16.msra.mxu0 0
    %1029 = vmatpush.bf16.msra.mxu0 0
    %1030 = vmatpush.bf16.msra.mxu0 %v1021
    %1031 = vmatmul.bf16.gmra.mxu0 %v1018
    %v1032 = vpop.f32.mrf.mxu0
    %v1033 = vadd.f32 0.0, %v1032
    %v1034 = vpop.f32.mrf.mxu0
    %1035 = vdwg.mxu0
    %1036 = vrot.lane.b32.xlu0 %v251, 56
    %v1037 = vpop.permute.xlu0 %1036
    %v1039 = vsel %vm205, %v988, 0
    %v1042 = vsel %vm494, %v1037, 0
    %1044 = vmatpush.bf16.msra.mxu0 0
    %1045 = vmatpush.bf16.msra.mxu0 0
    %1046 = vmatpush.bf16.msra.mxu0 0
    %1047 = vmatpush.bf16.msra.mxu0 0
    %1048 = vmatpush.bf16.msra.mxu0 0
    %1049 = vmatpush.bf16.msra.mxu0 0
    %1050 = vmatpush.bf16.msra.mxu0 0
    %1051 = vmatpush.bf16.msra.mxu0 %v1042
    %1052 = vmatmul.bf16.gmra.mxu0 %v1039
    %v1053 = vpop.f32.mrf.mxu0
    %v1054 = vadd.f32 0.0, %v1053
    %v1055 = vpop.f32.mrf.mxu0
    %1056 = vdwg.mxu0
    %1057 = vrot.lane.b32.xlu0 %v275, 56
    %v1058 = vpop.permute.xlu0 %1057
    %v1060 = vsel %vm205, %v989, 0
    %v1063 = vsel %vm494, %v1058, 0
    %1065 = vmatpush.bf16.msra.mxu0 0
    %1066 = vmatpush.bf16.msra.mxu0 0
    %1067 = vmatpush.bf16.msra.mxu0 0
    %1068 = vmatpush.bf16.msra.mxu0 0
    %1069 = vmatpush.bf16.msra.mxu0 0
    %1070 = vmatpush.bf16.msra.mxu0 0
    %1071 = vmatpush.bf16.msra.mxu0 0
    %1072 = vmatpush.bf16.msra.mxu0 %v1063
    %1073 = vmatmul.bf16.gmra.mxu0 %v1060
    %v1074 = vpop.f32.mrf.mxu0
    %v1075 = vadd.f32 0.0, %v1074
    %v1076 = vpop.f32.mrf.mxu0
    %1077 = vdwg.mxu0
    %1078 = vrot.lane.b32.xlu0 %v299, 56
    %v1079 = vpop.permute.xlu0 %1078
    %v1081 = vsel %vm205, %v990, 0
    %v1084 = vsel %vm494, %v1079, 0
    %1086 = vmatpush.bf16.msra.mxu0 0
    %1087 = vmatpush.bf16.msra.mxu0 0
    %1088 = vmatpush.bf16.msra.mxu0 0
    %1089 = vmatpush.bf16.msra.mxu0 0
    %1090 = vmatpush.bf16.msra.mxu0 0
    %1091 = vmatpush.bf16.msra.mxu0 0
    %1092 = vmatpush.bf16.msra.mxu0 0
    %1093 = vmatpush.bf16.msra.mxu0 %v1084
    %1094 = vmatmul.bf16.gmra.mxu0 %v1081
    %v1095 = vpop.f32.mrf.mxu0
    %v1096 = vadd.f32 0.0, %v1095
    %v1097 = vpop.f32.mrf.mxu0
    %1098 = vdwg.mxu0
    %1099 = vrot.lane.b32.xlu0 %v323, 56
    %v1100 = vpop.permute.xlu0 %1099
    %v1102 = vsel %vm205, %v991, 0
    %v1105 = vsel %vm494, %v1100, 0
    %1107 = vmatpush.bf16.msra.mxu0 0
    %1108 = vmatpush.bf16.msra.mxu0 0
    %1109 = vmatpush.bf16.msra.mxu0 0
    %1110 = vmatpush.bf16.msra.mxu0 0
    %1111 = vmatpush.bf16.msra.mxu0 0
    %1112 = vmatpush.bf16.msra.mxu0 0
    %1113 = vmatpush.bf16.msra.mxu0 0
    %1114 = vmatpush.bf16.msra.mxu0 %v1105
    %1115 = vmatmul.bf16.gmra.mxu0 %v1102
    %v1116 = vpop.f32.mrf.mxu0
    %v1117 = vadd.f32 0.0, %v1116
    %v1118 = vpop.f32.mrf.mxu0
    %1119 = vdwg.mxu0
    %1120 = vrot.lane.b32.xlu0 %v347, 56
    %v1121 = vpop.permute.xlu0 %1120
    %v1123 = vsel %vm205, %v992, 0
    %v1126 = vsel %vm494, %v1121, 0
    %1128 = vmatpush.bf16.msra.mxu0 0
    %1129 = vmatpush.bf16.msra.mxu0 0
    %1130 = vmatpush.bf16.msra.mxu0 0
    %1131 = vmatpush.bf16.msra.mxu0 0
    %1132 = vmatpush.bf16.msra.mxu0 0
    %1133 = vmatpush.bf16.msra.mxu0 0
    %1134 = vmatpush.bf16.msra.mxu0 0
    %1135 = vmatpush.bf16.msra.mxu0 %v1126
    %1136 = vmatmul.bf16.gmra.mxu0 %v1123
    %v1137 = vpop.f32.mrf.mxu0
    %v1138 = vadd.f32 0.0, %v1137
    %v1139 = vpop.f32.mrf.mxu0
    %1140 = vdwg.mxu0
    %1141 = vrot.lane.b32.xlu0 %v371, 56
    %v1142 = vpop.permute.xlu0 %1141
    %v1144 = vsel %vm205, %v993, 0
    %v1147 = vsel %vm494, %v1142, 0
    %1149 = vmatpush.bf16.msra.mxu0 0
    %1150 = vmatpush.bf16.msra.mxu0 0
    %1151 = vmatpush.bf16.msra.mxu0 0
    %1152 = vmatpush.bf16.msra.mxu0 0
    %1153 = vmatpush.bf16.msra.mxu0 0
    %1154 = vmatpush.bf16.msra.mxu0 0
    %1155 = vmatpush.bf16.msra.mxu0 0
    %1156 = vmatpush.bf16.msra.mxu0 %v1147
    %1157 = vmatmul.bf16.gmra.mxu0 %v1144
    %v1158 = vpop.f32.mrf.mxu0
    %v1159 = vadd.f32 0.0, %v1158
    %v1160 = vpop.f32.mrf.mxu0
    %1161 = vdwg.mxu0
    %v1162 = vpack.c.bf16 %v1033, %v1012
    %v1163 = vpack.c.bf16 %v1075, %v1054
    %v1164 = vpack.c.bf16 %v1117, %v1096
    %v1165 = vpack.c.bf16 %v1159, %v1138
    %v1167 = vsel %vm205, %v1162, 0
    %v1170 = vsel %vm205, %v1163, 0
    %v1173 = vsel %vm205, %v1164, 0
    %v1176 = vsel %vm205, %v1165, 0
    %v1179 = vsel %vm494, %v192, 0
    %1181 = vmatpush.bf16.msra.mxu0 0
    %1182 = vmatpush.bf16.msra.mxu0 0
    %1183 = vmatpush.bf16.msra.mxu0 0
    %1184 = vmatpush.bf16.msra.mxu0 0
    %1185 = vmatpush.bf16.msra.mxu0 0
    %1186 = vmatpush.bf16.msra.mxu0 0
    %1187 = vmatpush.bf16.msra.mxu0 0
    %1188 = vmatpush.bf16.msra.mxu0 %v1179
    %1189 = vmatmul.bf16.gmra.mxu0 %v1167
    %v1190 = vpop.f32.mrf.mxu0
    %v1191 = vadd.f32 0.0, %v1190
    %v1192 = vpop.f32.mrf.mxu0
    %v1193 = vadd.f32 0.0, %v1192
    %1194 = vmatmul.bf16.gmra.mxu0 %v1170
    %v1195 = vpop.f32.mrf.mxu0
    %v1196 = vadd.f32 0.0, %v1195
    %v1197 = vpop.f32.mrf.mxu0
    %v1198 = vadd.f32 0.0, %v1197
    %1199 = vmatmul.bf16.gmra.mxu0 %v1173
    %v1200 = vpop.f32.mrf.mxu0
    %v1201 = vadd.f32 0.0, %v1200
    %v1202 = vpop.f32.mrf.mxu0
    %v1203 = vadd.f32 0.0, %v1202
    %1204 = vmatmul.bf16.gmra.mxu0 %v1176
    %v1205 = vpop.f32.mrf.mxu0
    %v1206 = vadd.f32 0.0, %v1205
    %v1207 = vpop.f32.mrf.mxu0
    %v1208 = vadd.f32 0.0, %v1207
    %1209 = vdwg.mxu0
    %v1210 = vadd.f32 %v706, %v1191
    %v1211 = vadd.f32 %v707, %v1193
    %v1212 = vadd.f32 %v708, %v1196
    %v1213 = vadd.f32 %v709, %v1198
    %v1214 = vadd.f32 %v710, %v1201
    %v1215 = vadd.f32 %v711, %v1203
    %v1216 = vadd.f32 %v712, %v1206
    %v1217 = vadd.f32 %v713, %v1208
    %1218 = vrot.lane.b32.xlu0 %v202, 112
    %v1219 = vpop.permute.xlu0 %1218
    %1220 = vrot.lane.b32.xlu0 %v202, 80
    %v1221 = vpop.permute.xlu0 %1220
    %v1223 = vsel %vm205, %v1219, 0
    %v1226 = vsel %vm205, %v1221, 0
    %1228 = vmatpush.bf16.xpose.msra.mxu0 0
    %1229 = vmatpush.bf16.xpose.msra.mxu0 0
    %1230 = vmatpush.bf16.xpose.msra.mxu0 0
    %1231 = vmatpush.bf16.xpose.msra.mxu0 0
    %1232 = vmatpush.bf16.xpose.msra.mxu0 0
    %1233 = vmatpush.bf16.xpose.msra.mxu0 0
    %1234 = vmatpush.bf16.xpose.msra.mxu0 0
    %1235 = vmatpush.bf16.xpose.msra.mxu0 %v1226
    %1236 = vmatmul.bf16.gmra.mxu0 %v1223
    %v1237 = vpop.f32.mrf.mxu0
    %v1238 = vadd.f32 %v101, %v1237
    %v1239 = vpop.f32.mrf.mxu0
    %1240 = vdwg.mxu0
    %1241 = vrot.lane.b32.xlu0 %v227, 112
    %v1242 = vpop.permute.xlu0 %1241
    %1243 = vrot.lane.b32.xlu0 %v227, 80
    %v1244 = vpop.permute.xlu0 %1243
    %v1246 = vsel %vm205, %v1242, 0
    %v1249 = vsel %vm205, %v1244, 0
    %1251 = vmatpush.bf16.xpose.msra.mxu0 0
    %1252 = vmatpush.bf16.xpose.msra.mxu0 0
    %1253 = vmatpush.bf16.xpose.msra.mxu0 0
    %1254 = vmatpush.bf16.xpose.msra.mxu0 0
    %1255 = vmatpush.bf16.xpose.msra.mxu0 0
    %1256 = vmatpush.bf16.xpose.msra.mxu0 0
    %1257 = vmatpush.bf16.xpose.msra.mxu0 0
    %1258 = vmatpush.bf16.xpose.msra.mxu0 %v1249
    %1259 = vmatmul.bf16.gmra.mxu0 %v1246
    %v1260 = vpop.f32.mrf.mxu0
    %v1261 = vadd.f32 %v102, %v1260
    %v1262 = vpop.f32.mrf.mxu0
    %1263 = vdwg.mxu0
    %1264 = vrot.lane.b32.xlu0 %v251, 112
    %v1265 = vpop.permute.xlu0 %1264
    %1266 = vrot.lane.b32.xlu0 %v251, 80
    %v1267 = vpop.permute.xlu0 %1266
    %v1269 = vsel %vm205, %v1265, 0
    %v1272 = vsel %vm205, %v1267, 0
    %1274 = vmatpush.bf16.xpose.msra.mxu0 0
    %1275 = vmatpush.bf16.xpose.msra.mxu0 0
    %1276 = vmatpush.bf16.xpose.msra.mxu0 0
    %1277 = vmatpush.bf16.xpose.msra.mxu0 0
    %1278 = vmatpush.bf16.xpose.msra.mxu0 0
    %1279 = vmatpush.bf16.xpose.msra.mxu0 0
    %1280 = vmatpush.bf16.xpose.msra.mxu0 0
    %1281 = vmatpush.bf16.xpose.msra.mxu0 %v1272
    %1282 = vmatmul.bf16.gmra.mxu0 %v1269
    %v1283 = vpop.f32.mrf.mxu0
    %v1284 = vadd.f32 %v103, %v1283
    %v1285 = vpop.f32.mrf.mxu0
    %1286 = vdwg.mxu0
    %1287 = vrot.lane.b32.xlu0 %v275, 112
    %v1288 = vpop.permute.xlu0 %1287
    %1289 = vrot.lane.b32.xlu0 %v275, 80
    %v1290 = vpop.permute.xlu0 %1289
    %v1292 = vsel %vm205, %v1288, 0
    %v1295 = vsel %vm205, %v1290, 0
    %1297 = vmatpush.bf16.xpose.msra.mxu0 0
    %1298 = vmatpush.bf16.xpose.msra.mxu0 0
    %1299 = vmatpush.bf16.xpose.msra.mxu0 0
    %1300 = vmatpush.bf16.xpose.msra.mxu0 0
    %1301 = vmatpush.bf16.xpose.msra.mxu0 0
    %1302 = vmatpush.bf16.xpose.msra.mxu0 0
    %1303 = vmatpush.bf16.xpose.msra.mxu0 0
    %1304 = vmatpush.bf16.xpose.msra.mxu0 %v1295
    %1305 = vmatmul.bf16.gmra.mxu0 %v1292
    %v1306 = vpop.f32.mrf.mxu0
    %v1307 = vadd.f32 %v104, %v1306
    %v1308 = vpop.f32.mrf.mxu0
    %1309 = vdwg.mxu0
    %1310 = vrot.lane.b32.xlu0 %v299, 112
    %v1311 = vpop.permute.xlu0 %1310
    %1312 = vrot.lane.b32.xlu0 %v299, 80
    %v1313 = vpop.permute.xlu0 %1312
    %v1315 = vsel %vm205, %v1311, 0
    %v1318 = vsel %vm205, %v1313, 0
    %1320 = vmatpush.bf16.xpose.msra.mxu0 0
    %1321 = vmatpush.bf16.xpose.msra.mxu0 0
    %1322 = vmatpush.bf16.xpose.msra.mxu0 0
    %1323 = vmatpush.bf16.xpose.msra.mxu0 0
    %1324 = vmatpush.bf16.xpose.msra.mxu0 0
    %1325 = vmatpush.bf16.xpose.msra.mxu0 0
    %1326 = vmatpush.bf16.xpose.msra.mxu0 0
    %1327 = vmatpush.bf16.xpose.msra.mxu0 %v1318
    %1328 = vmatmul.bf16.gmra.mxu0 %v1315
    %v1329 = vpop.f32.mrf.mxu0
    %v1330 = vadd.f32 %v105, %v1329
    %v1331 = vpop.f32.mrf.mxu0
    %1332 = vdwg.mxu0
    %1333 = vrot.lane.b32.xlu0 %v323, 112
    %v1334 = vpop.permute.xlu0 %1333
    %1335 = vrot.lane.b32.xlu0 %v323, 80
    %v1336 = vpop.permute.xlu0 %1335
    %v1338 = vsel %vm205, %v1334, 0
    %v1341 = vsel %vm205, %v1336, 0
    %1343 = vmatpush.bf16.xpose.msra.mxu0 0
    %1344 = vmatpush.bf16.xpose.msra.mxu0 0
    %1345 = vmatpush.bf16.xpose.msra.mxu0 0
    %1346 = vmatpush.bf16.xpose.msra.mxu0 0
    %1347 = vmatpush.bf16.xpose.msra.mxu0 0
    %1348 = vmatpush.bf16.xpose.msra.mxu0 0
    %1349 = vmatpush.bf16.xpose.msra.mxu0 0
    %1350 = vmatpush.bf16.xpose.msra.mxu0 %v1341
    %1351 = vmatmul.bf16.gmra.mxu0 %v1338
    %v1352 = vpop.f32.mrf.mxu0
    %v1353 = vadd.f32 %v106, %v1352
    %v1354 = vpop.f32.mrf.mxu0
    %1355 = vdwg.mxu0
    %1356 = vrot.lane.b32.xlu0 %v347, 112
    %v1357 = vpop.permute.xlu0 %1356
    %1358 = vrot.lane.b32.xlu0 %v347, 80
    %v1359 = vpop.permute.xlu0 %1358
    %v1361 = vsel %vm205, %v1357, 0
    %v1364 = vsel %vm205, %v1359, 0
    %1366 = vmatpush.bf16.xpose.msra.mxu0 0
    %1367 = vmatpush.bf16.xpose.msra.mxu0 0
    %1368 = vmatpush.bf16.xpose.msra.mxu0 0
    %1369 = vmatpush.bf16.xpose.msra.mxu0 0
    %1370 = vmatpush.bf16.xpose.msra.mxu0 0
    %1371 = vmatpush.bf16.xpose.msra.mxu0 0
    %1372 = vmatpush.bf16.xpose.msra.mxu0 0
    %1373 = vmatpush.bf16.xpose.msra.mxu0 %v1364
    %1374 = vmatmul.bf16.gmra.mxu0 %v1361
    %v1375 = vpop.f32.mrf.mxu0
    %v1376 = vadd.f32 %v107, %v1375
    %v1377 = vpop.f32.mrf.mxu0
    %1378 = vdwg.mxu0
    %1379 = vrot.lane.b32.xlu0 %v371, 112
    %v1380 = vpop.permute.xlu0 %1379
    %1381 = vrot.lane.b32.xlu0 %v371, 80
    %v1382 = vpop.permute.xlu0 %1381
    %v1384 = vsel %vm205, %v1380, 0
    %v1387 = vsel %vm205, %v1382, 0
    %1389 = vmatpush.bf16.xpose.msra.mxu0 0
    %1390 = vmatpush.bf16.xpose.msra.mxu0 0
    %1391 = vmatpush.bf16.xpose.msra.mxu0 0
    %1392 = vmatpush.bf16.xpose.msra.mxu0 0
    %1393 = vmatpush.bf16.xpose.msra.mxu0 0
    %1394 = vmatpush.bf16.xpose.msra.mxu0 0
    %1395 = vmatpush.bf16.xpose.msra.mxu0 0
    %1396 = vmatpush.bf16.xpose.msra.mxu0 %v1387
    %1397 = vmatmul.bf16.gmra.mxu0 %v1384
    %v1398 = vpop.f32.mrf.mxu0
    %v1399 = vadd.f32 %v108, %v1398
    %v1400 = vpop.f32.mrf.mxu0
    %1401 = vdwg.mxu0
    %v1402 = vsel %vm205, %v1238, -inf
    %1403 = vmax.xlane.f32.xlu0 %v1402
    %v1404 = vpop.xlane.xlu0 %1403
    %v1405 = vsel %vm205, %v1261, -inf
    %1406 = vmax.xlane.f32.xlu0 %v1405
    %v1407 = vpop.xlane.xlu0 %1406
    %v1408 = vsel %vm205, %v1284, -inf
    %1409 = vmax.xlane.f32.xlu0 %v1408
    %v1410 = vpop.xlane.xlu0 %1409
    %v1411 = vsel %vm205, %v1307, -inf
    %1412 = vmax.xlane.f32.xlu0 %v1411
    %v1413 = vpop.xlane.xlu0 %1412
    %v1414 = vsel %vm205, %v1330, -inf
    %1415 = vmax.xlane.f32.xlu0 %v1414
    %v1416 = vpop.xlane.xlu0 %1415
    %v1417 = vsel %vm205, %v1353, -inf
    %1418 = vmax.xlane.f32.xlu0 %v1417
    %v1419 = vpop.xlane.xlu0 %1418
    %v1420 = vsel %vm205, %v1376, -inf
    %1421 = vmax.xlane.f32.xlu0 %v1420
    %v1422 = vpop.xlane.xlu0 %1421
    %v1423 = vsel %vm205, %v1399, -inf
    %1424 = vmax.xlane.f32.xlu0 %v1423
    %v1425 = vpop.xlane.xlu0 %1424
    %v1426 = vsub.f32 %v1238, %v1404
    %v1427 = vsub.f32 %v1261, %v1407
    %v1428 = vsub.f32 %v1284, %v1410
    %v1429 = vsub.f32 %v1307, %v1413
    %v1430 = vsub.f32 %v1330, %v1416
    %v1431 = vsub.f32 %v1353, %v1419
    %v1432 = vsub.f32 %v1376, %v1422
    %v1433 = vsub.f32 %v1399, %v1425
    %v1434 = vmul.f32 %v1426, 1.442695
    %v1435 = vpow.pop %v1434
    %v1436 = vmul.f32 %v1427, 1.442695
    %v1437 = vpow.pop %v1436
    %v1438 = vmul.f32 %v1428, 1.442695
    %v1439 = vpow.pop %v1438
    %v1440 = vmul.f32 %v1429, 1.442695
    %v1441 = vpow.pop %v1440
    %v1442 = vmul.f32 %v1430, 1.442695
    %v1443 = vpow.pop %v1442
    %v1444 = vmul.f32 %v1431, 1.442695
    %v1445 = vpow.pop %v1444
    %v1446 = vmul.f32 %v1432, 1.442695
    %v1447 = vpow.pop %v1446
    %v1448 = vmul.f32 %v1433, 1.442695
    %v1449 = vpow.pop %v1448
    %v1450 = vsel %vm205, %v1435, 0.0
    %1451 = vadd.xlane.f32.xlu0 %v1450
    %v1452 = vpop.xlane.xlu0 %1451
    %v1453 = vsel %vm205, %v1437, 0.0
    %1454 = vadd.xlane.f32.xlu0 %v1453
    %v1455 = vpop.xlane.xlu0 %1454
    %v1456 = vsel %vm205, %v1439, 0.0
    %1457 = vadd.xlane.f32.xlu0 %v1456
    %v1458 = vpop.xlane.xlu0 %1457
    %v1459 = vsel %vm205, %v1441, 0.0
    %1460 = vadd.xlane.f32.xlu0 %v1459
    %v1461 = vpop.xlane.xlu0 %1460
    %v1462 = vsel %vm205, %v1443, 0.0
    %1463 = vadd.xlane.f32.xlu0 %v1462
    %v1464 = vpop.xlane.xlu0 %1463
    %v1465 = vsel %vm205, %v1445, 0.0
    %1466 = vadd.xlane.f32.xlu0 %v1465
    %v1467 = vpop.xlane.xlu0 %1466
    %v1468 = vsel %vm205, %v1447, 0.0
    %1469 = vadd.xlane.f32.xlu0 %v1468
    %v1470 = vpop.xlane.xlu0 %1469
    %v1471 = vsel %vm205, %v1449, 0.0
    %1472 = vadd.xlane.f32.xlu0 %v1471
    %v1473 = vpop.xlane.xlu0 %1472
    %v1474 = vrcp.pop %v1452
    %v1475 = vrcp.pop %v1455
    %v1476 = vrcp.pop %v1458
    %v1477 = vrcp.pop %v1461
    %v1478 = vrcp.pop %v1464
    %v1479 = vrcp.pop %v1467
    %v1480 = vrcp.pop %v1470
    %v1481 = vrcp.pop %v1473
    %v1482 = vmul.f32 %v1435, %v1474
    %v1483 = vmul.f32 %v1437, %v1475
    %v1484 = vmul.f32 %v1439, %v1476
    %v1485 = vmul.f32 %v1441, %v1477
    %v1486 = vmul.f32 %v1443, %v1478
    %v1487 = vmul.f32 %v1445, %v1479
    %v1488 = vmul.f32 %v1447, %v1480
    %v1489 = vmul.f32 %v1449, %v1481
    %v1490 = vpack.c.bf16 %v1482, %v1482
    %v1491 = vpack.c.bf16 %v1483, %v1483
    %v1492 = vpack.c.bf16 %v1484, %v1484
    %v1493 = vpack.c.bf16 %v1485, %v1485
    %v1494 = vpack.c.bf16 %v1486, %v1486
    %v1495 = vpack.c.bf16 %v1487, %v1487
    %v1496 = vpack.c.bf16 %v1488, %v1488
    %v1497 = vpack.c.bf16 %v1489, %v1489
    %1498 = vrot.lane.b32.xlu0 %v202, 48
    %v1499 = vpop.permute.xlu0 %1498
    %v1501 = vsel %vm205, %v1490, 0
    %v1504 = vsel %vm494, %v1499, 0
    %1506 = vmatpush.bf16.msra.mxu0 0
    %1507 = vmatpush.bf16.msra.mxu0 0
    %1508 = vmatpush.bf16.msra.mxu0 0
    %1509 = vmatpush.bf16.msra.mxu0 0
    %1510 = vmatpush.bf16.msra.mxu0 0
    %1511 = vmatpush.bf16.msra.mxu0 0
    %1512 = vmatpush.bf16.msra.mxu0 0
    %1513 = vmatpush.bf16.msra.mxu0 %v1504
    %1514 = vmatmul.bf16.gmra.mxu0 %v1501
    %v1515 = vpop.f32.mrf.mxu0
    %v1516 = vadd.f32 0.0, %v1515
    %v1517 = vpop.f32.mrf.mxu0
    %1518 = vdwg.mxu0
    %1519 = vrot.lane.b32.xlu0 %v227, 48
    %v1520 = vpop.permute.xlu0 %1519
    %v1522 = vsel %vm205, %v1491, 0
    %v1525 = vsel %vm494, %v1520, 0
    %1527 = vmatpush.bf16.msra.mxu0 0
    %1528 = vmatpush.bf16.msra.mxu0 0
    %1529 = vmatpush.bf16.msra.mxu0 0
    %1530 = vmatpush.bf16.msra.mxu0 0
    %1531 = vmatpush.bf16.msra.mxu0 0
    %1532 = vmatpush.bf16.msra.mxu0 0
    %1533 = vmatpush.bf16.msra.mxu0 0
    %1534 = vmatpush.bf16.msra.mxu0 %v1525
    %1535 = vmatmul.bf16.gmra.mxu0 %v1522
    %v1536 = vpop.f32.mrf.mxu0
    %v1537 = vadd.f32 0.0, %v1536
    %v1538 = vpop.f32.mrf.mxu0
    %1539 = vdwg.mxu0
    %1540 = vrot.lane.b32.xlu0 %v251, 48
    %v1541 = vpop.permute.xlu0 %1540
    %v1543 = vsel %vm205, %v1492, 0
    %v1546 = vsel %vm494, %v1541, 0
    %1548 = vmatpush.bf16.msra.mxu0 0
    %1549 = vmatpush.bf16.msra.mxu0 0
    %1550 = vmatpush.bf16.msra.mxu0 0
    %1551 = vmatpush.bf16.msra.mxu0 0
    %1552 = vmatpush.bf16.msra.mxu0 0
    %1553 = vmatpush.bf16.msra.mxu0 0
    %1554 = vmatpush.bf16.msra.mxu0 0
    %1555 = vmatpush.bf16.msra.mxu0 %v1546
    %1556 = vmatmul.bf16.gmra.mxu0 %v1543
    %v1557 = vpop.f32.mrf.mxu0
    %v1558 = vadd.f32 0.0, %v1557
    %v1559 = vpop.f32.mrf.mxu0
    %1560 = vdwg.mxu0
    %1561 = vrot.lane.b32.xlu0 %v275, 48
    %v1562 = vpop.permute.xlu0 %1561
    %v1564 = vsel %vm205, %v1493, 0
    %v1567 = vsel %vm494, %v1562, 0
    %1569 = vmatpush.bf16.msra.mxu0 0
    %1570 = vmatpush.bf16.msra.mxu0 0
    %1571 = vmatpush.bf16.msra.mxu0 0
    %1572 = vmatpush.bf16.msra.mxu0 0
    %1573 = vmatpush.bf16.msra.mxu0 0
    %1574 = vmatpush.bf16.msra.mxu0 0
    %1575 = vmatpush.bf16.msra.mxu0 0
    %1576 = vmatpush.bf16.msra.mxu0 %v1567
    %1577 = vmatmul.bf16.gmra.mxu0 %v1564
    %v1578 = vpop.f32.mrf.mxu0
    %v1579 = vadd.f32 0.0, %v1578
    %v1580 = vpop.f32.mrf.mxu0
    %1581 = vdwg.mxu0
    %1582 = vrot.lane.b32.xlu0 %v299, 48
    %v1583 = vpop.permute.xlu0 %1582
    %v1585 = vsel %vm205, %v1494, 0
    %v1588 = vsel %vm494, %v1583, 0
    %1590 = vmatpush.bf16.msra.mxu0 0
    %1591 = vmatpush.bf16.msra.mxu0 0
    %1592 = vmatpush.bf16.msra.mxu0 0
    %1593 = vmatpush.bf16.msra.mxu0 0
    %1594 = vmatpush.bf16.msra.mxu0 0
    %1595 = vmatpush.bf16.msra.mxu0 0
    %1596 = vmatpush.bf16.msra.mxu0 0
    %1597 = vmatpush.bf16.msra.mxu0 %v1588
    %1598 = vmatmul.bf16.gmra.mxu0 %v1585
    %v1599 = vpop.f32.mrf.mxu0
    %v1600 = vadd.f32 0.0, %v1599
    %v1601 = vpop.f32.mrf.mxu0
    %1602 = vdwg.mxu0
    %1603 = vrot.lane.b32.xlu0 %v323, 48
    %v1604 = vpop.permute.xlu0 %1603
    %v1606 = vsel %vm205, %v1495, 0
    %v1609 = vsel %vm494, %v1604, 0
    %1611 = vmatpush.bf16.msra.mxu0 0
    %1612 = vmatpush.bf16.msra.mxu0 0
    %1613 = vmatpush.bf16.msra.mxu0 0
    %1614 = vmatpush.bf16.msra.mxu0 0
    %1615 = vmatpush.bf16.msra.mxu0 0
    %1616 = vmatpush.bf16.msra.mxu0 0
    %1617 = vmatpush.bf16.msra.mxu0 0
    %1618 = vmatpush.bf16.msra.mxu0 %v1609
    %1619 = vmatmul.bf16.gmra.mxu0 %v1606
    %v1620 = vpop.f32.mrf.mxu0
    %v1621 = vadd.f32 0.0, %v1620
    %v1622 = vpop.f32.mrf.mxu0
    %1623 = vdwg.mxu0
    %1624 = vrot.lane.b32.xlu0 %v347, 48
    %v1625 = vpop.permute.xlu0 %1624
    %v1627 = vsel %vm205, %v1496, 0
    %v1630 = vsel %vm494, %v1625, 0
    %1632 = vmatpush.bf16.msra.mxu0 0
    %1633 = vmatpush.bf16.msra.mxu0 0
    %1634 = vmatpush.bf16.msra.mxu0 0
    %1635 = vmatpush.bf16.msra.mxu0 0
    %1636 = vmatpush.bf16.msra.mxu0 0
    %1637 = vmatpush.bf16.msra.mxu0 0
    %1638 = vmatpush.bf16.msra.mxu0 0
    %1639 = vmatpush.bf16.msra.mxu0 %v1630
    %1640 = vmatmul.bf16.gmra.mxu0 %v1627
    %v1641 = vpop.f32.mrf.mxu0
    %v1642 = vadd.f32 0.0, %v1641
    %v1643 = vpop.f32.mrf.mxu0
    %1644 = vdwg.mxu0
    %1645 = vrot.lane.b32.xlu0 %v371, 48
    %v1646 = vpop.permute.xlu0 %1645
    %v1648 = vsel %vm205, %v1497, 0
    %v1651 = vsel %vm494, %v1646, 0
    %1653 = vmatpush.bf16.msra.mxu0 0
    %1654 = vmatpush.bf16.msra.mxu0 0
    %1655 = vmatpush.bf16.msra.mxu0 0
    %1656 = vmatpush.bf16.msra.mxu0 0
    %1657 = vmatpush.bf16.msra.mxu0 0
    %1658 = vmatpush.bf16.msra.mxu0 0
    %1659 = vmatpush.bf16.msra.mxu0 0
    %1660 = vmatpush.bf16.msra.mxu0 %v1651
    %1661 = vmatmul.bf16.gmra.mxu0 %v1648
    %v1662 = vpop.f32.mrf.mxu0
    %v1663 = vadd.f32 0.0, %v1662
    %v1664 = vpop.f32.mrf.mxu0
    %1665 = vdwg.mxu0
    %v1666 = vpack.c.bf16 %v1537, %v1516
    %v1667 = vpack.c.bf16 %v1579, %v1558
    %v1668 = vpack.c.bf16 %v1621, %v1600
    %v1669 = vpack.c.bf16 %v1663, %v1642
    %v1671 = vsel %vm205, %v1666, 0
    %v1674 = vsel %vm205, %v1667, 0
    %v1677 = vsel %vm205, %v1668, 0
    %v1680 = vsel %vm205, %v1669, 0
    %v1683 = vsel %vm494, %v193, 0
    %1685 = vmatpush.bf16.msra.mxu0 0
    %1686 = vmatpush.bf16.msra.mxu0 0
    %1687 = vmatpush.bf16.msra.mxu0 0
    %1688 = vmatpush.bf16.msra.mxu0 0
    %1689 = vmatpush.bf16.msra.mxu0 0
    %1690 = vmatpush.bf16.msra.mxu0 0
    %1691 = vmatpush.bf16.msra.mxu0 0
    %1692 = vmatpush.bf16.msra.mxu0 %v1683
    %1693 = vmatmul.bf16.gmra.mxu0 %v1671
    %v1694 = vpop.f32.mrf.mxu0
    %v1695 = vadd.f32 0.0, %v1694
    %v1696 = vpop.f32.mrf.mxu0
    %v1697 = vadd.f32 0.0, %v1696
    %1698 = vmatmul.bf16.gmra.mxu0 %v1674
    %v1699 = vpop.f32.mrf.mxu0
    %v1700 = vadd.f32 0.0, %v1699
    %v1701 = vpop.f32.mrf.mxu0
    %v1702 = vadd.f32 0.0, %v1701
    %1703 = vmatmul.bf16.gmra.mxu0 %v1677
    %v1704 = vpop.f32.mrf.mxu0
    %v1705 = vadd.f32 0.0, %v1704
    %v1706 = vpop.f32.mrf.mxu0
    %v1707 = vadd.f32 0.0, %v1706
    %1708 = vmatmul.bf16.gmra.mxu0 %v1680
    %v1709 = vpop.f32.mrf.mxu0
    %v1710 = vadd.f32 0.0, %v1709
    %v1711 = vpop.f32.mrf.mxu0
    %v1712 = vadd.f32 0.0, %v1711
    %1713 = vdwg.mxu0
    %v1714 = vadd.f32 %v1210, %v1695
    %v1715 = vadd.f32 %v1211, %v1697
    %v1716 = vadd.f32 %v1212, %v1700
    %v1717 = vadd.f32 %v1213, %v1702
    %v1718 = vadd.f32 %v1214, %v1705
    %v1719 = vadd.f32 %v1215, %v1707
    %v1720 = vadd.f32 %v1216, %v1710
    %v1721 = vadd.f32 %v1217, %v1712
    %1722 = vrot.lane.b32.xlu0 %v202, 104
    %v1723 = vpop.permute.xlu0 %1722
    %1724 = vrot.lane.b32.xlu0 %v202, 72
    %v1725 = vpop.permute.xlu0 %1724
    %v1727 = vsel %vm205, %v1723, 0
    %v1730 = vsel %vm205, %v1725, 0
    %1732 = vmatpush.bf16.xpose.msra.mxu0 0
    %1733 = vmatpush.bf16.xpose.msra.mxu0 0
    %1734 = vmatpush.bf16.xpose.msra.mxu0 0
    %1735 = vmatpush.bf16.xpose.msra.mxu0 0
    %1736 = vmatpush.bf16.xpose.msra.mxu0 0
    %1737 = vmatpush.bf16.xpose.msra.mxu0 0
    %1738 = vmatpush.bf16.xpose.msra.mxu0 0
    %1739 = vmatpush.bf16.xpose.msra.mxu0 %v1730
    %1740 = vmatmul.bf16.gmra.mxu0 %v1727
    %v1741 = vpop.f32.mrf.mxu0
    %v1742 = vadd.f32 %v101, %v1741
    %v1743 = vpop.f32.mrf.mxu0
    %1744 = vdwg.mxu0
    %1745 = vrot.lane.b32.xlu0 %v227, 104
    %v1746 = vpop.permute.xlu0 %1745
    %1747 = vrot.lane.b32.xlu0 %v227, 72
    %v1748 = vpop.permute.xlu0 %1747
    %v1750 = vsel %vm205, %v1746, 0
    %v1753 = vsel %vm205, %v1748, 0
    %1755 = vmatpush.bf16.xpose.msra.mxu0 0
    %1756 = vmatpush.bf16.xpose.msra.mxu0 0
    %1757 = vmatpush.bf16.xpose.msra.mxu0 0
    %1758 = vmatpush.bf16.xpose.msra.mxu0 0
    %1759 = vmatpush.bf16.xpose.msra.mxu0 0
    %1760 = vmatpush.bf16.xpose.msra.mxu0 0
    %1761 = vmatpush.bf16.xpose.msra.mxu0 0
    %1762 = vmatpush.bf16.xpose.msra.mxu0 %v1753
    %1763 = vmatmul.bf16.gmra.mxu0 %v1750
    %v1764 = vpop.f32.mrf.mxu0
    %v1765 = vadd.f32 %v102, %v1764
    %v1766 = vpop.f32.mrf.mxu0
    %1767 = vdwg.mxu0
    %1768 = vrot.lane.b32.xlu0 %v251, 104
    %v1769 = vpop.permute.xlu0 %1768
    %1770 = vrot.lane.b32.xlu0 %v251, 72
    %v1771 = vpop.permute.xlu0 %1770
    %v1773 = vsel %vm205, %v1769, 0
    %v1776 = vsel %vm205, %v1771, 0
    %1778 = vmatpush.bf16.xpose.msra.mxu0 0
    %1779 = vmatpush.bf16.xpose.msra.mxu0 0
    %1780 = vmatpush.bf16.xpose.msra.mxu0 0
    %1781 = vmatpush.bf16.xpose.msra.mxu0 0
    %1782 = vmatpush.bf16.xpose.msra.mxu0 0
    %1783 = vmatpush.bf16.xpose.msra.mxu0 0
    %1784 = vmatpush.bf16.xpose.msra.mxu0 0
    %1785 = vmatpush.bf16.xpose.msra.mxu0 %v1776
    %1786 = vmatmul.bf16.gmra.mxu0 %v1773
    %v1787 = vpop.f32.mrf.mxu0
    %v1788 = vadd.f32 %v103, %v1787
    %v1789 = vpop.f32.mrf.mxu0
    %1790 = vdwg.mxu0
    %1791 = vrot.lane.b32.xlu0 %v275, 104
    %v1792 = vpop.permute.xlu0 %1791
    %1793 = vrot.lane.b32.xlu0 %v275, 72
    %v1794 = vpop.permute.xlu0 %1793
    %v1796 = vsel %vm205, %v1792, 0
    %v1799 = vsel %vm205, %v1794, 0
    %1801 = vmatpush.bf16.xpose.msra.mxu0 0
    %1802 = vmatpush.bf16.xpose.msra.mxu0 0
    %1803 = vmatpush.bf16.xpose.msra.mxu0 0
    %1804 = vmatpush.bf16.xpose.msra.mxu0 0
    %1805 = vmatpush.bf16.xpose.msra.mxu0 0
    %1806 = vmatpush.bf16.xpose.msra.mxu0 0
    %1807 = vmatpush.bf16.xpose.msra.mxu0 0
    %1808 = vmatpush.bf16.xpose.msra.mxu0 %v1799
    %1809 = vmatmul.bf16.gmra.mxu0 %v1796
    %v1810 = vpop.f32.mrf.mxu0
    %v1811 = vadd.f32 %v104, %v1810
    %v1812 = vpop.f32.mrf.mxu0
    %1813 = vdwg.mxu0
    %1814 = vrot.lane.b32.xlu0 %v299, 104
    %v1815 = vpop.permute.xlu0 %1814
    %1816 = vrot.lane.b32.xlu0 %v299, 72
    %v1817 = vpop.permute.xlu0 %1816
    %v1819 = vsel %vm205, %v1815, 0
    %v1822 = vsel %vm205, %v1817, 0
    %1824 = vmatpush.bf16.xpose.msra.mxu0 0
    %1825 = vmatpush.bf16.xpose.msra.mxu0 0
    %1826 = vmatpush.bf16.xpose.msra.mxu0 0
    %1827 = vmatpush.bf16.xpose.msra.mxu0 0
    %1828 = vmatpush.bf16.xpose.msra.mxu0 0
    %1829 = vmatpush.bf16.xpose.msra.mxu0 0
    %1830 = vmatpush.bf16.xpose.msra.mxu0 0
    %1831 = vmatpush.bf16.xpose.msra.mxu0 %v1822
    %1832 = vmatmul.bf16.gmra.mxu0 %v1819
    %v1833 = vpop.f32.mrf.mxu0
    %v1834 = vadd.f32 %v105, %v1833
    %v1835 = vpop.f32.mrf.mxu0
    %1836 = vdwg.mxu0
    %1837 = vrot.lane.b32.xlu0 %v323, 104
    %v1838 = vpop.permute.xlu0 %1837
    %1839 = vrot.lane.b32.xlu0 %v323, 72
    %v1840 = vpop.permute.xlu0 %1839
    %v1842 = vsel %vm205, %v1838, 0
    %v1845 = vsel %vm205, %v1840, 0
    %1847 = vmatpush.bf16.xpose.msra.mxu0 0
    %1848 = vmatpush.bf16.xpose.msra.mxu0 0
    %1849 = vmatpush.bf16.xpose.msra.mxu0 0
    %1850 = vmatpush.bf16.xpose.msra.mxu0 0
    %1851 = vmatpush.bf16.xpose.msra.mxu0 0
    %1852 = vmatpush.bf16.xpose.msra.mxu0 0
    %1853 = vmatpush.bf16.xpose.msra.mxu0 0
    %1854 = vmatpush.bf16.xpose.msra.mxu0 %v1845
    %1855 = vmatmul.bf16.gmra.mxu0 %v1842
    %v1856 = vpop.f32.mrf.mxu0
    %v1857 = vadd.f32 %v106, %v1856
    %v1858 = vpop.f32.mrf.mxu0
    %1859 = vdwg.mxu0
    %1860 = vrot.lane.b32.xlu0 %v347, 104
    %v1861 = vpop.permute.xlu0 %1860
    %1862 = vrot.lane.b32.xlu0 %v347, 72
    %v1863 = vpop.permute.xlu0 %1862
    %v1865 = vsel %vm205, %v1861, 0
    %v1868 = vsel %vm205, %v1863, 0
    %1870 = vmatpush.bf16.xpose.msra.mxu0 0
    %1871 = vmatpush.bf16.xpose.msra.mxu0 0
    %1872 = vmatpush.bf16.xpose.msra.mxu0 0
    %1873 = vmatpush.bf16.xpose.msra.mxu0 0
    %1874 = vmatpush.bf16.xpose.msra.mxu0 0
    %1875 = vmatpush.bf16.xpose.msra.mxu0 0
    %1876 = vmatpush.bf16.xpose.msra.mxu0 0
    %1877 = vmatpush.bf16.xpose.msra.mxu0 %v1868
    %1878 = vmatmul.bf16.gmra.mxu0 %v1865
    %v1879 = vpop.f32.mrf.mxu0
    %v1880 = vadd.f32 %v107, %v1879
    %v1881 = vpop.f32.mrf.mxu0
    %1882 = vdwg.mxu0
    %1883 = vrot.lane.b32.xlu0 %v371, 104
    %v1884 = vpop.permute.xlu0 %1883
    %1885 = vrot.lane.b32.xlu0 %v371, 72
    %v1886 = vpop.permute.xlu0 %1885
    %v1888 = vsel %vm205, %v1884, 0
    %v1891 = vsel %vm205, %v1886, 0
    %1893 = vmatpush.bf16.xpose.msra.mxu0 0
    %1894 = vmatpush.bf16.xpose.msra.mxu0 0
    %1895 = vmatpush.bf16.xpose.msra.mxu0 0
    %1896 = vmatpush.bf16.xpose.msra.mxu0 0
    %1897 = vmatpush.bf16.xpose.msra.mxu0 0
    %1898 = vmatpush.bf16.xpose.msra.mxu0 0
    %1899 = vmatpush.bf16.xpose.msra.mxu0 0
    %1900 = vmatpush.bf16.xpose.msra.mxu0 %v1891
    %1901 = vmatmul.bf16.gmra.mxu0 %v1888
    %v1902 = vpop.f32.mrf.mxu0
    %v1903 = vadd.f32 %v108, %v1902
    %v1904 = vpop.f32.mrf.mxu0
    %1905 = vdwg.mxu0
    %v1906 = vsel %vm205, %v1742, -inf
    %1907 = vmax.xlane.f32.xlu0 %v1906
    %v1908 = vpop.xlane.xlu0 %1907
    %v1909 = vsel %vm205, %v1765, -inf
    %1910 = vmax.xlane.f32.xlu0 %v1909
    %v1911 = vpop.xlane.xlu0 %1910
    %v1912 = vsel %vm205, %v1788, -inf
    %1913 = vmax.xlane.f32.xlu0 %v1912
    %v1914 = vpop.xlane.xlu0 %1913
    %v1915 = vsel %vm205, %v1811, -inf
    %1916 = vmax.xlane.f32.xlu0 %v1915
    %v1917 = vpop.xlane.xlu0 %1916
    %v1918 = vsel %vm205, %v1834, -inf
    %1919 = vmax.xlane.f32.xlu0 %v1918
    %v1920 = vpop.xlane.xlu0 %1919
    %v1921 = vsel %vm205, %v1857, -inf
    %1922 = vmax.xlane.f32.xlu0 %v1921
    %v1923 = vpop.xlane.xlu0 %1922
    %v1924 = vsel %vm205, %v1880, -inf
    %1925 = vmax.xlane.f32.xlu0 %v1924
    %v1926 = vpop.xlane.xlu0 %1925
    %v1927 = vsel %vm205, %v1903, -inf
    %1928 = vmax.xlane.f32.xlu0 %v1927
    %v1929 = vpop.xlane.xlu0 %1928
    %v1930 = vsub.f32 %v1742, %v1908
    %v1931 = vsub.f32 %v1765, %v1911
    %v1932 = vsub.f32 %v1788, %v1914
    %v1933 = vsub.f32 %v1811, %v1917
    %v1934 = vsub.f32 %v1834, %v1920
    %v1935 = vsub.f32 %v1857, %v1923
    %v1936 = vsub.f32 %v1880, %v1926
    %v1937 = vsub.f32 %v1903, %v1929
    %v1938 = vmul.f32 %v1930, 1.442695
    %v1939 = vpow.pop %v1938
    %v1940 = vmul.f32 %v1931, 1.442695
    %v1941 = vpow.pop %v1940
    %v1942 = vmul.f32 %v1932, 1.442695
    %v1943 = vpow.pop %v1942
    %v1944 = vmul.f32 %v1933, 1.442695
    %v1945 = vpow.pop %v1944
    %v1946 = vmul.f32 %v1934, 1.442695
    %v1947 = vpow.pop %v1946
    %v1948 = vmul.f32 %v1935, 1.442695
    %v1949 = vpow.pop %v1948
    %v1950 = vmul.f32 %v1936, 1.442695
    %v1951 = vpow.pop %v1950
    %v1952 = vmul.f32 %v1937, 1.442695
    %v1953 = vpow.pop %v1952
    %v1954 = vsel %vm205, %v1939, 0.0
    %1955 = vadd.xlane.f32.xlu0 %v1954
    %v1956 = vpop.xlane.xlu0 %1955
    %v1957 = vsel %vm205, %v1941, 0.0
    %1958 = vadd.xlane.f32.xlu0 %v1957
    %v1959 = vpop.xlane.xlu0 %1958
    %v1960 = vsel %vm205, %v1943, 0.0
    %1961 = vadd.xlane.f32.xlu0 %v1960
    %v1962 = vpop.xlane.xlu0 %1961
    %v1963 = vsel %vm205, %v1945, 0.0
    %1964 = vadd.xlane.f32.xlu0 %v1963
    %v1965 = vpop.xlane.xlu0 %1964
    %v1966 = vsel %vm205, %v1947, 0.0
    %1967 = vadd.xlane.f32.xlu0 %v1966
    %v1968 = vpop.xlane.xlu0 %1967
    %v1969 = vsel %vm205, %v1949, 0.0
    %1970 = vadd.xlane.f32.xlu0 %v1969
    %v1971 = vpop.xlane.xlu0 %1970
    %v1972 = vsel %vm205, %v1951, 0.0
    %1973 = vadd.xlane.f32.xlu0 %v1972
    %v1974 = vpop.xlane.xlu0 %1973
    %v1975 = vsel %vm205, %v1953, 0.0
    %1976 = vadd.xlane.f32.xlu0 %v1975
    %v1977 = vpop.xlane.xlu0 %1976
    %v1978 = vrcp.pop %v1956
    %v1979 = vrcp.pop %v1959
    %v1980 = vrcp.pop %v1962
    %v1981 = vrcp.pop %v1965
    %v1982 = vrcp.pop %v1968
    %v1983 = vrcp.pop %v1971
    %v1984 = vrcp.pop %v1974
    %v1985 = vrcp.pop %v1977
    %v1986 = vmul.f32 %v1939, %v1978
    %v1987 = vmul.f32 %v1941, %v1979
    %v1988 = vmul.f32 %v1943, %v1980
    %v1989 = vmul.f32 %v1945, %v1981
    %v1990 = vmul.f32 %v1947, %v1982
    %v1991 = vmul.f32 %v1949, %v1983
    %v1992 = vmul.f32 %v1951, %v1984
    %v1993 = vmul.f32 %v1953, %v1985
    %v1994 = vpack.c.bf16 %v1986, %v1986
    %v1995 = vpack.c.bf16 %v1987, %v1987
    %v1996 = vpack.c.bf16 %v1988, %v1988
    %v1997 = vpack.c.bf16 %v1989, %v1989
    %v1998 = vpack.c.bf16 %v1990, %v1990
    %v1999 = vpack.c.bf16 %v1991, %v1991
    %v2000 = vpack.c.bf16 %v1992, %v1992
    %v2001 = vpack.c.bf16 %v1993, %v1993
    %2002 = vrot.lane.b32.xlu0 %v202, 40
    %v2003 = vpop.permute.xlu0 %2002
    %v2005 = vsel %vm205, %v1994, 0
    %v2008 = vsel %vm494, %v2003, 0
    %2010 = vmatpush.bf16.msra.mxu0 0
    %2011 = vmatpush.bf16.msra.mxu0 0
    %2012 = vmatpush.bf16.msra.mxu0 0
    %2013 = vmatpush.bf16.msra.mxu0 0
    %2014 = vmatpush.bf16.msra.mxu0 0
    %2015 = vmatpush.bf16.msra.mxu0 0
    %2016 = vmatpush.bf16.msra.mxu0 0
    %2017 = vmatpush.bf16.msra.mxu0 %v2008
    %2018 = vmatmul.bf16.gmra.mxu0 %v2005
    %v2019 = vpop.f32.mrf.mxu0
    %v2020 = vadd.f32 0.0, %v2019
    %v2021 = vpop.f32.mrf.mxu0
    %2022 = vdwg.mxu0
    %2023 = vrot.lane.b32.xlu0 %v227, 40
    %v2024 = vpop.permute.xlu0 %2023
    %v2026 = vsel %vm205, %v1995, 0
    %v2029 = vsel %vm494, %v2024, 0
    %2031 = vmatpush.bf16.msra.mxu0 0
    %2032 = vmatpush.bf16.msra.mxu0 0
    %2033 = vmatpush.bf16.msra.mxu0 0
    %2034 = vmatpush.bf16.msra.mxu0 0
    %2035 = vmatpush.bf16.msra.mxu0 0
    %2036 = vmatpush.bf16.msra.mxu0 0
    %2037 = vmatpush.bf16.msra.mxu0 0
    %2038 = vmatpush.bf16.msra.mxu0 %v2029
    %2039 = vmatmul.bf16.gmra.mxu0 %v2026
    %v2040 = vpop.f32.mrf.mxu0
    %v2041 = vadd.f32 0.0, %v2040
    %v2042 = vpop.f32.mrf.mxu0
    %2043 = vdwg.mxu0
    %2044 = vrot.lane.b32.xlu0 %v251, 40
    %v2045 = vpop.permute.xlu0 %2044
    %v2047 = vsel %vm205, %v1996, 0
    %v2050 = vsel %vm494, %v2045, 0
    %2052 = vmatpush.bf16.msra.mxu0 0
    %2053 = vmatpush.bf16.msra.mxu0 0
    %2054 = vmatpush.bf16.msra.mxu0 0
    %2055 = vmatpush.bf16.msra.mxu0 0
    %2056 = vmatpush.bf16.msra.mxu0 0
    %2057 = vmatpush.bf16.msra.mxu0 0
    %2058 = vmatpush.bf16.msra.mxu0 0
    %2059 = vmatpush.bf16.msra.mxu0 %v2050
    %2060 = vmatmul.bf16.gmra.mxu0 %v2047
    %v2061 = vpop.f32.mrf.mxu0
    %v2062 = vadd.f32 0.0, %v2061
    %v2063 = vpop.f32.mrf.mxu0
    %2064 = vdwg.mxu0
    %2065 = vrot.lane.b32.xlu0 %v275, 40
    %v2066 = vpop.permute.xlu0 %2065
    %v2068 = vsel %vm205, %v1997, 0
    %v2071 = vsel %vm494, %v2066, 0
    %2073 = vmatpush.bf16.msra.mxu0 0
    %2074 = vmatpush.bf16.msra.mxu0 0
    %2075 = vmatpush.bf16.msra.mxu0 0
    %2076 = vmatpush.bf16.msra.mxu0 0
    %2077 = vmatpush.bf16.msra.mxu0 0
    %2078 = vmatpush.bf16.msra.mxu0 0
    %2079 = vmatpush.bf16.msra.mxu0 0
    %2080 = vmatpush.bf16.msra.mxu0 %v2071
    %2081 = vmatmul.bf16.gmra.mxu0 %v2068
    %v2082 = vpop.f32.mrf.mxu0
    %v2083 = vadd.f32 0.0, %v2082
    %v2084 = vpop.f32.mrf.mxu0
    %2085 = vdwg.mxu0
    %2086 = vrot.lane.b32.xlu0 %v299, 40
    %v2087 = vpop.permute.xlu0 %2086
    %v2089 = vsel %vm205, %v1998, 0
    %v2092 = vsel %vm494, %v2087, 0
    %2094 = vmatpush.bf16.msra.mxu0 0
    %2095 = vmatpush.bf16.msra.mxu0 0
    %2096 = vmatpush.bf16.msra.mxu0 0
    %2097 = vmatpush.bf16.msra.mxu0 0
    %2098 = vmatpush.bf16.msra.mxu0 0
    %2099 = vmatpush.bf16.msra.mxu0 0
    %2100 = vmatpush.bf16.msra.mxu0 0
    %2101 = vmatpush.bf16.msra.mxu0 %v2092
    %2102 = vmatmul.bf16.gmra.mxu0 %v2089
    %v2103 = vpop.f32.mrf.mxu0
    %v2104 = vadd.f32 0.0, %v2103
    %v2105 = vpop.f32.mrf.mxu0
    %2106 = vdwg.mxu0
    %2107 = vrot.lane.b32.xlu0 %v323, 40
    %v2108 = vpop.permute.xlu0 %2107
    %v2110 = vsel %vm205, %v1999, 0
    %v2113 = vsel %vm494, %v2108, 0
    %2115 = vmatpush.bf16.msra.mxu0 0
    %2116 = vmatpush.bf16.msra.mxu0 0
    %2117 = vmatpush.bf16.msra.mxu0 0
    %2118 = vmatpush.bf16.msra.mxu0 0
    %2119 = vmatpush.bf16.msra.mxu0 0
    %2120 = vmatpush.bf16.msra.mxu0 0
    %2121 = vmatpush.bf16.msra.mxu0 0
    %2122 = vmatpush.bf16.msra.mxu0 %v2113
    %2123 = vmatmul.bf16.gmra.mxu0 %v2110
    %v2124 = vpop.f32.mrf.mxu0
    %v2125 = vadd.f32 0.0, %v2124
    %v2126 = vpop.f32.mrf.mxu0
    %2127 = vdwg.mxu0
    %2128 = vrot.lane.b32.xlu0 %v347, 40
    %v2129 = vpop.permute.xlu0 %2128
    %v2131 = vsel %vm205, %v2000, 0
    %v2134 = vsel %vm494, %v2129, 0
    %2136 = vmatpush.bf16.msra.mxu0 0
    %2137 = vmatpush.bf16.msra.mxu0 0
    %2138 = vmatpush.bf16.msra.mxu0 0
    %2139 = vmatpush.bf16.msra.mxu0 0
    %2140 = vmatpush.bf16.msra.mxu0 0
    %2141 = vmatpush.bf16.msra.mxu0 0
    %2142 = vmatpush.bf16.msra.mxu0 0
    %2143 = vmatpush.bf16.msra.mxu0 %v2134
    %2144 = vmatmul.bf16.gmra.mxu0 %v2131
    %v2145 = vpop.f32.mrf.mxu0
    %v2146 = vadd.f32 0.0, %v2145
    %v2147 = vpop.f32.mrf.mxu0
    %2148 = vdwg.mxu0
    %2149 = vrot.lane.b32.xlu0 %v371, 40
    %v2150 = vpop.permute.xlu0 %2149
    %v2152 = vsel %vm205, %v2001, 0
    %v2155 = vsel %vm494, %v2150, 0
    %2157 = vmatpush.bf16.msra.mxu0 0
    %2158 = vmatpush.bf16.msra.mxu0 0
    %2159 = vmatpush.bf16.msra.mxu0 0
    %2160 = vmatpush.bf16.msra.mxu0 0
    %2161 = vmatpush.bf16.msra.mxu0 0
    %2162 = vmatpush.bf16.msra.mxu0 0
    %2163 = vmatpush.bf16.msra.mxu0 0
    %2164 = vmatpush.bf16.msra.mxu0 %v2155
    %2165 = vmatmul.bf16.gmra.mxu0 %v2152
    %v2166 = vpop.f32.mrf.mxu0
    %v2167 = vadd.f32 0.0, %v2166
    %v2168 = vpop.f32.mrf.mxu0
    %2169 = vdwg.mxu0
    %v2170 = vpack.c.bf16 %v2041, %v2020
    %v2171 = vpack.c.bf16 %v2083, %v2062
    %v2172 = vpack.c.bf16 %v2125, %v2104
    %v2173 = vpack.c.bf16 %v2167, %v2146
    %v2175 = vsel %vm205, %v2170, 0
    %v2178 = vsel %vm205, %v2171, 0
    %v2181 = vsel %vm205, %v2172, 0
    %v2184 = vsel %vm205, %v2173, 0
    %v2187 = vsel %vm494, %v194, 0
    %2189 = vmatpush.bf16.msra.mxu0 0
    %2190 = vmatpush.bf16.msra.mxu0 0
    %2191 = vmatpush.bf16.msra.mxu0 0
    %2192 = vmatpush.bf16.msra.mxu0 0
    %2193 = vmatpush.bf16.msra.mxu0 0
    %2194 = vmatpush.bf16.msra.mxu0 0
    %2195 = vmatpush.bf16.msra.mxu0 0
    %2196 = vmatpush.bf16.msra.mxu0 %v2187
    %2197 = vmatmul.bf16.gmra.mxu0 %v2175
    %v2198 = vpop.f32.mrf.mxu0
    %v2199 = vadd.f32 0.0, %v2198
    %v2200 = vpop.f32.mrf.mxu0
    %v2201 = vadd.f32 0.0, %v2200
    %2202 = vmatmul.bf16.gmra.mxu0 %v2178
    %v2203 = vpop.f32.mrf.mxu0
    %v2204 = vadd.f32 0.0, %v2203
    %v2205 = vpop.f32.mrf.mxu0
    %v2206 = vadd.f32 0.0, %v2205
    %2207 = vmatmul.bf16.gmra.mxu0 %v2181
    %v2208 = vpop.f32.mrf.mxu0
    %v2209 = vadd.f32 0.0, %v2208
    %v2210 = vpop.f32.mrf.mxu0
    %v2211 = vadd.f32 0.0, %v2210
    %2212 = vmatmul.bf16.gmra.mxu0 %v2184
    %v2213 = vpop.f32.mrf.mxu0
    %v2214 = vadd.f32 0.0, %v2213
    %v2215 = vpop.f32.mrf.mxu0
    %v2216 = vadd.f32 0.0, %v2215
    %2217 = vdwg.mxu0
    %v2218 = vadd.f32 %v1714, %v2199
    %v2219 = vadd.f32 %v1715, %v2201
    %v2220 = vadd.f32 %v1716, %v2204
    %v2221 = vadd.f32 %v1717, %v2206
    %v2222 = vadd.f32 %v1718, %v2209
    %v2223 = vadd.f32 %v1719, %v2211
    %v2224 = vadd.f32 %v1720, %v2214
    %v2225 = vadd.f32 %v1721, %v2216
    %v2226 = vadd.f32 %v61, %v2218
    %v2227 = vadd.f32 %v62, %v2219
    %v2228 = vadd.f32 %v63, %v2220
    %v2229 = vadd.f32 %v64, %v2221
    %v2230 = vadd.f32 %v65, %v2222
    %v2231 = vadd.f32 %v66, %v2223
    %v2232 = vadd.f32 %v67, %v2224
    %v2233 = vadd.f32 %v68, %v2225
    %v2234 = vld [vmem:[%s7] sm:$0x1]
    %v2235 = vld [vmem:[%s8] sm:$0x1]
    %v2236 = vsel %vm141, %v2226, 0.0
    %2237 = vadd.xlane.f32.xlu0 %v2236
    %v2238 = vpop.xlane.xlu0 %2237
    %v2239 = vsel %vm141, %v2227, 0.0
    %2240 = vadd.xlane.f32.xlu0 %v2239
    %v2241 = vpop.xlane.xlu0 %2240
    %v2242 = vsel %vm141, %v2228, 0.0
    %2243 = vadd.xlane.f32.xlu0 %v2242
    %v2244 = vpop.xlane.xlu0 %2243
    %v2245 = vsel %vm141, %v2229, 0.0
    %2246 = vadd.xlane.f32.xlu0 %v2245
    %v2247 = vpop.xlane.xlu0 %2246
    %v2248 = vsel %vm141, %v2230, 0.0
    %2249 = vadd.xlane.f32.xlu0 %v2248
    %v2250 = vpop.xlane.xlu0 %2249
    %v2251 = vsel %vm141, %v2231, 0.0
    %2252 = vadd.xlane.f32.xlu0 %v2251
    %v2253 = vpop.xlane.xlu0 %2252
    %v2254 = vsel %vm141, %v2232, 0.0
    %2255 = vadd.xlane.f32.xlu0 %v2254
    %v2256 = vpop.xlane.xlu0 %2255
    %v2257 = vsel %vm141, %v2233, 0.0
    %2258 = vadd.xlane.f32.xlu0 %v2257
    %v2259 = vpop.xlane.xlu0 %2258
    %v2260 = vrcp.pop 32.0
    %v2261 = vmul.f32 32.0, %v2260
    %v2262 = vsub.f32 1.0, %v2261
    %v2263 = vmul.f32 %v2260, %v2262
    %v2264 = vadd.f32 %v2260, %v2263
    %vm2265 = vweird.f32 %v2260
    %v2266 = vsel %vm2265, %v2260, %v2264
    %v2267 = vmul.f32 %v2238, %v2266
    %v2268 = vmul.f32 %v2241, %v2266
    %v2269 = vmul.f32 %v2244, %v2266
    %v2270 = vmul.f32 %v2247, %v2266
    %v2271 = vmul.f32 %v2250, %v2266
    %v2272 = vmul.f32 %v2253, %v2266
    %v2273 = vmul.f32 %v2256, %v2266
    %v2274 = vmul.f32 %v2259, %v2266
    %v2275 = vsub.f32 %v2226, %v2267
    %v2276 = vsub.f32 %v2227, %v2268
    %v2277 = vsub.f32 %v2228, %v2269
    %v2278 = vsub.f32 %v2229, %v2270
    %v2279 = vsub.f32 %v2230, %v2271
    %v2280 = vsub.f32 %v2231, %v2272
    %v2281 = vsub.f32 %v2232, %v2273
    %v2282 = vsub.f32 %v2233, %v2274
    %v2283 = vmul.f32 %v2275, %v2275
    %v2284 = vmul.f32 %v2276, %v2276
    %v2285 = vmul.f32 %v2277, %v2277
    %v2286 = vmul.f32 %v2278, %v2278
    %v2287 = vmul.f32 %v2279, %v2279
    %v2288 = vmul.f32 %v2280, %v2280
    %v2289 = vmul.f32 %v2281, %v2281
    %v2290 = vmul.f32 %v2282, %v2282
    %v2291 = vsel %vm141, %v2283, 0.0
    %2292 = vadd.xlane.f32.xlu0 %v2291
    %v2293 = vpop.xlane.xlu0 %2292
    %v2294 = vsel %vm141, %v2284, 0.0
    %2295 = vadd.xlane.f32.xlu0 %v2294
    %v2296 = vpop.xlane.xlu0 %2295
    %v2297 = vsel %vm141, %v2285, 0.0
    %2298 = vadd.xlane.f32.xlu0 %v2297
    %v2299 = vpop.xlane.xlu0 %2298
    %v2300 = vsel %vm141, %v2286, 0.0
    %2301 = vadd.xlane.f32.xlu0 %v2300
    %v2302 = vpop.xlane.xlu0 %2301
    %v2303 = vsel %vm141, %v2287, 0.0
    %2304 = vadd.xlane.f32.xlu0 %v2303
    %v2305 = vpop.xlane.xlu0 %2304
    %v2306 = vsel %vm141, %v2288, 0.0
    %2307 = vadd.xlane.f32.xlu0 %v2306
    %v2308 = vpop.xlane.xlu0 %2307
    %v2309 = vsel %vm141, %v2289, 0.0
    %2310 = vadd.xlane.f32.xlu0 %v2309
    %v2311 = vpop.xlane.xlu0 %2310
    %v2312 = vsel %vm141, %v2290, 0.0
    %2313 = vadd.xlane.f32.xlu0 %v2312
    %v2314 = vpop.xlane.xlu0 %2313
    %v2315 = vmul.f32 %v2293, %v2266
    %v2316 = vmul.f32 %v2296, %v2266
    %v2317 = vmul.f32 %v2299, %v2266
    %v2318 = vmul.f32 %v2302, %v2266
    %v2319 = vmul.f32 %v2305, %v2266
    %v2320 = vmul.f32 %v2308, %v2266
    %v2321 = vmul.f32 %v2311, %v2266
    %v2322 = vmul.f32 %v2314, %v2266
    %v2323 = vadd.f32 %v2315, 1e-05
    %v2324 = vadd.f32 %v2316, 1e-05
    %v2325 = vadd.f32 %v2317, 1e-05
    %v2326 = vadd.f32 %v2318, 1e-05
    %v2327 = vadd.f32 %v2319, 1e-05
    %v2328 = vadd.f32 %v2320, 1e-05
    %v2329 = vadd.f32 %v2321, 1e-05
    %v2330 = vadd.f32 %v2322, 1e-05
    %v2331 = vrsqrt.pop %v2323
    %v2332 = vmul.f32 %v2331, %v2323
    %v2333 = vmul.f32 %v2332, %v2331
    %v2334 = vmul.f32 0.5, %v2333
    %v2335 = vsub.f32 1.5, %v2334
    %v2336 = vmul.f32 %v2331, %v2335
    %vm2337 = vweird.f32 %v2323
    %vm2338 = vweird.f32 %v2331
    %vm2339 = vmor %vm2337, %vm2338
    %v2340 = vsel %vm2339, %v2331, %v2336
    %v2341 = vrsqrt.pop %v2324
    %v2342 = vmul.f32 %v2341, %v2324
    %v2343 = vmul.f32 %v2342, %v2341
    %v2344 = vmul.f32 0.5, %v2343
    %v2345 = vsub.f32 1.5, %v2344
    %v2346 = vmul.f32 %v2341, %v2345
    %vm2347 = vweird.f32 %v2324
    %vm2348 = vweird.f32 %v2341
    %vm2349 = vmor %vm2347, %vm2348
    %v2350 = vsel %vm2349, %v2341, %v2346
    %v2351 = vrsqrt.pop %v2325
    %v2352 = vmul.f32 %v2351, %v2325
    %v2353 = vmul.f32 %v2352, %v2351
    %v2354 = vmul.f32 0.5, %v2353
    %v2355 = vsub.f32 1.5, %v2354
    %v2356 = vmul.f32 %v2351, %v2355
    %vm2357 = vweird.f32 %v2325
    %vm2358 = vweird.f32 %v2351
    %vm2359 = vmor %vm2357, %vm2358
    %v2360 = vsel %vm2359, %v2351, %v2356
    %v2361 = vrsqrt.pop %v2326
    %v2362 = vmul.f32 %v2361, %v2326
    %v2363 = vmul.f32 %v2362, %v2361
    %v2364 = vmul.f32 0.5, %v2363
    %v2365 = vsub.f32 1.5, %v2364
    %v2366 = vmul.f32 %v2361, %v2365
    %vm2367 = vweird.f32 %v2326
    %vm2368 = vweird.f32 %v2361
    %vm2369 = vmor %vm2367, %vm2368
    %v2370 = vsel %vm2369, %v2361, %v2366
    %v2371 = vrsqrt.pop %v2327
    %v2372 = vmul.f32 %v2371, %v2327
    %v2373 = vmul.f32 %v2372, %v2371
    %v2374 = vmul.f32 0.5, %v2373
    %v2375 = vsub.f32 1.5, %v2374
    %v2376 = vmul.f32 %v2371, %v2375
    %vm2377 = vweird.f32 %v2327
    %vm2378 = vweird.f32 %v2371
    %vm2379 = vmor %vm2377, %vm2378
    %v2380 = vsel %vm2379, %v2371, %v2376
    %v2381 = vrsqrt.pop %v2328
    %v2382 = vmul.f32 %v2381, %v2328
    %v2383 = vmul.f32 %v2382, %v2381
    %v2384 = vmul.f32 0.5, %v2383
    %v2385 = vsub.f32 1.5, %v2384
    %v2386 = vmul.f32 %v2381, %v2385
    %vm2387 = vweird.f32 %v2328
    %vm2388 = vweird.f32 %v2381
    %vm2389 = vmor %vm2387, %vm2388
    %v2390 = vsel %vm2389, %v2381, %v2386
    %v2391 = vrsqrt.pop %v2329
    %v2392 = vmul.f32 %v2391, %v2329
    %v2393 = vmul.f32 %v2392, %v2391
    %v2394 = vmul.f32 0.5, %v2393
    %v2395 = vsub.f32 1.5, %v2394
    %v2396 = vmul.f32 %v2391, %v2395
    %vm2397 = vweird.f32 %v2329
    %vm2398 = vweird.f32 %v2391
    %vm2399 = vmor %vm2397, %vm2398
    %v2400 = vsel %vm2399, %v2391, %v2396
    %v2401 = vrsqrt.pop %v2330
    %v2402 = vmul.f32 %v2401, %v2330
    %v2403 = vmul.f32 %v2402, %v2401
    %v2404 = vmul.f32 0.5, %v2403
    %v2405 = vsub.f32 1.5, %v2404
    %v2406 = vmul.f32 %v2401, %v2405
    %vm2407 = vweird.f32 %v2330
    %vm2408 = vweird.f32 %v2401
    %vm2409 = vmor %vm2407, %vm2408
    %v2410 = vsel %vm2409, %v2401, %v2406
    %v2411 = vmul.f32 %v2275, %v2340
    %v2412 = vmul.f32 %v2276, %v2350
    %v2413 = vmul.f32 %v2277, %v2360
    %v2414 = vmul.f32 %v2278, %v2370
    %v2415 = vmul.f32 %v2279, %v2380
    %v2416 = vmul.f32 %v2280, %v2390
    %v2417 = vmul.f32 %v2281, %v2400
    %v2418 = vmul.f32 %v2282, %v2410
    %v2420 = vperm.slane %v2234, 0
    %v2422 = vmul.f32 %v2411, %v2420
    %v2423 = vmul.f32 %v2412, %v2420
    %v2424 = vmul.f32 %v2413, %v2420
    %v2425 = vmul.f32 %v2414, %v2420
    %v2426 = vmul.f32 %v2415, %v2420
    %v2427 = vmul.f32 %v2416, %v2420
    %v2428 = vmul.f32 %v2417, %v2420
    %v2429 = vmul.f32 %v2418, %v2420
    %v2431 = vperm.slane %v2235, 0
    %v2433 = vadd.f32 %v2422, %v2431
    %v2434 = vadd.f32 %v2423, %v2431
    %v2435 = vadd.f32 %v2424, %v2431
    %v2436 = vadd.f32 %v2425, %v2431
    %v2437 = vadd.f32 %v2426, %v2431
    %v2438 = vadd.f32 %v2427, %v2431
    %v2439 = vadd.f32 %v2428, %v2431
    %v2440 = vadd.f32 %v2429, %v2431
    %v2441 = vpack.c.bf16 %v2434, %v2433
    %v2442 = vpack.c.bf16 %v2436, %v2435
    %v2443 = vpack.c.bf16 %v2438, %v2437
    %v2444 = vpack.c.bf16 %v2440, %v2439
    %v2445 = vld [vmem:[%s11] sm:$0xff]
    %v2446 = vld [vmem:[%s11 + $0x8] sm:$0xff]
    %v2447 = vld [vmem:[%s11 + $0x10] sm:$0xff]
    %v2448 = vld [vmem:[%s11 + $0x18] sm:$0xff]
    %v2449 = vld [vmem:[%s11 + $0x20] sm:$0xff]
    %v2450 = vld [vmem:[%s11 + $0x28] sm:$0xff]
    %v2451 = vld [vmem:[%s11 + $0x30] sm:$0xff]
    %v2452 = vld [vmem:[%s11 + $0x38] sm:$0xff]
    %v2453 = vld [vmem:[%s11 + $0x40] sm:$0xff]
    %v2454 = vld [vmem:[%s11 + $0x48] sm:$0xff]
    %v2455 = vld [vmem:[%s11 + $0x50] sm:$0xff]
    %v2456 = vld [vmem:[%s11 + $0x58] sm:$0xff]
    %v2457 = vld [vmem:[%s11 + $0x60] sm:$0xff]
    %v2458 = vld [vmem:[%s11 + $0x68] sm:$0xff]
    %v2459 = vld [vmem:[%s11 + $0x70] sm:$0xff]
    %v2460 = vld [vmem:[%s11 + $0x78] sm:$0xff]
    %v2461 = vld [vmem:[%s11 + $0x80] sm:$0xff]
    %v2462 = vld [vmem:[%s11 + $0x88] sm:$0xff]
    %v2463 = vld [vmem:[%s11 + $0x90] sm:$0xff]
    %v2464 = vld [vmem:[%s11 + $0x98] sm:$0xff]
    %v2465 = vld [vmem:[%s11 + $0xa0] sm:$0xff]
    %v2466 = vld [vmem:[%s11 + $0xa8] sm:$0xff]
    %v2467 = vld [vmem:[%s11 + $0xb0] sm:$0xff]
    %v2468 = vld [vmem:[%s11 + $0xb8] sm:$0xff]
    %v2469 = vld [vmem:[%s11 + $0xc0] sm:$0xff]
    %v2470 = vld [vmem:[%s11 + $0xc8] sm:$0xff]
    %v2471 = vld [vmem:[%s11 + $0xd0] sm:$0xff]
    %v2472 = vld [vmem:[%s11 + $0xd8] sm:$0xff]
    %v2473 = vld [vmem:[%s11 + $0xe0] sm:$0xff]
    %v2474 = vld [vmem:[%s11 + $0xe8] sm:$0xff]
    %v2475 = vld [vmem:[%s11 + $0xf0] sm:$0xff]
    %v2476 = vld [vmem:[%s11 + $0xf8] sm:$0xff]
    %v2477 = vld [vmem:[%s12] sm:$0xff]
    %v2478 = vld [vmem:[%s12 + $0x8] sm:$0xff]
    %v2481 = vperm.slane %v2477, 0
    %v2482 = vperm.slane %v2477, 1
    %v2483 = vperm.slane %v2477, 2
    %v2484 = vperm.slane %v2477, 3
    %v2485 = vperm.slane %v2477, 4
    %v2486 = vperm.slane %v2477, 5
    %v2487 = vperm.slane %v2477, 6
    %v2488 = vperm.slane %v2477, 7
    %v2489 = vperm.slane %v2478, 0
    %v2490 = vperm.slane %v2478, 1
    %v2491 = vperm.slane %v2478, 2
    %v2492 = vperm.slane %v2478, 3
    %v2493 = vperm.slane %v2478, 4
    %v2494 = vperm.slane %v2478, 5
    %v2495 = vperm.slane %v2478, 6
    %v2496 = vperm.slane %v2478, 7
    %v2545 = vunpack.c.l.b16 %v2445
    %v2546 = vunpack.c.h.b16 %v2445
    %v2547 = vunpack.c.l.b16 %v2446
    %v2548 = vunpack.c.h.b16 %v2446
    %v2549 = vunpack.c.l.b16 %v2447
    %v2550 = vunpack.c.h.b16 %v2447
    %v2551 = vunpack.c.l.b16 %v2448
    %v2552 = vunpack.c.h.b16 %v2448
    %v2553 = vunpack.c.l.b16 %v2449
    %v2554 = vunpack.c.h.b16 %v2449
    %v2555 = vunpack.c.l.b16 %v2450
    %v2556 = vunpack.c.h.b16 %v2450
    %v2557 = vunpack.c.l.b16 %v2451
    %v2558 = vunpack.c.h.b16 %v2451
    %v2559 = vunpack.c.l.b16 %v2452
    %v2560 = vunpack.c.h.b16 %v2452
    %v2561 = vunpack.c.l.b16 %v2453
    %v2562 = vunpack.c.h.b16 %v2453
    %v2563 = vunpack.c.l.b16 %v2454
    %v2564 = vunpack.c.h.b16 %v2454
    %v2565 = vunpack.c.l.b16 %v2455
    %v2566 = vunpack.c.h.b16 %v2455
    %v2567 = vunpack.c.l.b16 %v2456
    %v2568 = vunpack.c.h.b16 %v2456
    %v2569 = vunpack.c.l.b16 %v2457
    %v2570 = vunpack.c.h.b16 %v2457
    %v2571 = vunpack.c.l.b16 %v2458
    %v2572 = vunpack.c.h.b16 %v2458
    %v2573 = vunpack.c.l.b16 %v2459
    %v2574 = vunpack.c.h.b16 %v2459
    %v2575 = vunpack.c.l.b16 %v2460
    %v2576 = vunpack.c.h.b16 %v2460
    %v2577 = vunpack.c.l.b16 %v2461
    %v2578 = vunpack.c.h.b16 %v2461
    %v2579 = vunpack.c.l.b16 %v2462
    %v2580 = vunpack.c.h.b16 %v2462
    %v2581 = vunpack.c.l.b16 %v2463
    %v2582 = vunpack.c.h.b16 %v2463
    %v2583 = vunpack.c.l.b16 %v2464
    %v2584 = vunpack.c.h.b16 %v2464
    %v2585 = vunpack.c.l.b16 %v2465
    %v2586 = vunpack.c.h.b16 %v2465
    %v2587 = vunpack.c.l.b16 %v2466
    %v2588 = vunpack.c.h.b16 %v2466
    %v2589 = vunpack.c.l.b16 %v2467
    %v2590 = vunpack.c.h.b16 %v2467
    %v2591 = vunpack.c.l.b16 %v2468
    %v2592 = vunpack.c.h.b16 %v2468
    %v2593 = vunpack.c.l.b16 %v2469
    %v2594 = vunpack.c.h.b16 %v2469
    %v2595 = vunpack.c.l.b16 %v2470
    %v2596 = vunpack.c.h.b16 %v2470
    %v2597 = vunpack.c.l.b16 %v2471
    %v2598 = vunpack.c.h.b16 %v2471
    %v2599 = vunpack.c.l.b16 %v2472
    %v2600 = vunpack.c.h.b16 %v2472
    %v2601 = vunpack.c.l.b16 %v2473
    %v2602 = vunpack.c.h.b16 %v2473
    %v2603 = vunpack.c.l.b16 %v2474
    %v2604 = vunpack.c.h.b16 %v2474
    %v2605 = vunpack.c.l.b16 %v2475
    %v2606 = vunpack.c.h.b16 %v2475
    %v2607 = vunpack.c.l.b16 %v2476
    %v2608 = vunpack.c.h.b16 %v2476
    %v2609 = vpack.c.b16 %v2561, %v2545
    %v2610 = vpack.c.b16 %v2562, %v2546
    %v2611 = vpack.c.b16 %v2563, %v2547
    %v2612 = vpack.c.b16 %v2564, %v2548
    %v2613 = vpack.c.b16 %v2565, %v2549
    %v2614 = vpack.c.b16 %v2566, %v2550
    %v2615 = vpack.c.b16 %v2567, %v2551
    %v2616 = vpack.c.b16 %v2568, %v2552
    %v2617 = vpack.c.b16 %v2569, %v2553
    %v2618 = vpack.c.b16 %v2570, %v2554
    %v2619 = vpack.c.b16 %v2571, %v2555
    %v2620 = vpack.c.b16 %v2572, %v2556
    %v2621 = vpack.c.b16 %v2573, %v2557
    %v2622 = vpack.c.b16 %v2574, %v2558
    %v2623 = vpack.c.b16 %v2575, %v2559
    %v2624 = vpack.c.b16 %v2576, %v2560
    %v2625 = vpack.c.b16 %v2593, %v2577
    %v2626 = vpack.c.b16 %v2594, %v2578
    %v2627 = vpack.c.b16 %v2595, %v2579
    %v2628 = vpack.c.b16 %v2596, %v2580
    %v2629 = vpack.c.b16 %v2597, %v2581
    %v2630 = vpack.c.b16 %v2598, %v2582
    %v2631 = vpack.c.b16 %v2599, %v2583
    %v2632 = vpack.c.b16 %v2600, %v2584
    %v2633 = vpack.c.b16 %v2601, %v2585
    %v2634 = vpack.c.b16 %v2602, %v2586
    %v2635 = vpack.c.b16 %v2603, %v2587
    %v2636 = vpack.c.b16 %v2604, %v2588
    %v2637 = vpack.c.b16 %v2605, %v2589
    %v2638 = vpack.c.b16 %v2606, %v2590
    %v2639 = vpack.c.b16 %v2607, %v2591
    %v2640 = vpack.c.b16 %v2608, %v2592
    %v2674 = vsel %vm141, %v2441, 0
    %v2677 = vsel %vm141, %v2442, 0
    %v2680 = vsel %vm141, %v2443, 0
    %v2683 = vsel %vm141, %v2444, 0
    %2685 = vmatpush.bf16.msra.mxu0 0
    %2686 = vmatpush.bf16.msra.mxu0 0
    %2687 = vmatpush.bf16.msra.mxu0 0
    %2688 = vmatpush.bf16.msra.mxu0 0
    %2689 = vmatpush.bf16.msra.mxu0 0
    %2690 = vmatpush.bf16.msra.mxu0 0
    %2691 = vmatpush.bf16.msra.mxu0 %v2625
    %2692 = vmatpush.bf16.msra.mxu0 %v2609
    %2693 = vmatmul.bf16.gmra.mxu0 %v2674
    %v2694 = vpop.f32.mrf.mxu0
    %v2695 = vadd.f32 %v2481, %v2694
    %v2696 = vpop.f32.mrf.mxu0
    %v2697 = vadd.f32 %v2481, %v2696
    %2698 = vmatmul.bf16.gmra.mxu0 %v2677
    %v2699 = vpop.f32.mrf.mxu0
    %v2700 = vadd.f32 %v2481, %v2699
    %v2701 = vpop.f32.mrf.mxu0
    %v2702 = vadd.f32 %v2481, %v2701
    %2703 = vmatmul.bf16.gmra.mxu0 %v2680
    %v2704 = vpop.f32.mrf.mxu0
    %v2705 = vadd.f32 %v2481, %v2704
    %v2706 = vpop.f32.mrf.mxu0
    %v2707 = vadd.f32 %v2481, %v2706
    %2708 = vmatmul.bf16.gmra.mxu0 %v2683
    %v2709 = vpop.f32.mrf.mxu0
    %v2710 = vadd.f32 %v2481, %v2709
    %v2711 = vpop.f32.mrf.mxu0
    %v2712 = vadd.f32 %v2481, %v2711
    %2713 = vdwg.mxu0
    %2714 = vmatpush.bf16.msra.mxu0 0
    %2715 = vmatpush.bf16.msra.mxu0 0
    %2716 = vmatpush.bf16.msra.mxu0 0
    %2717 = vmatpush.bf16.msra.mxu0 0
    %2718 = vmatpush.bf16.msra.mxu0 0
    %2719 = vmatpush.bf16.msra.mxu0 0
    %2720 = vmatpush.bf16.msra.mxu0 %v2626
    %2721 = vmatpush.bf16.msra.mxu0 %v2610
    %2722 = vmatmul.bf16.gmra.mxu0 %v2674
    %v2723 = vpop.f32.mrf.mxu0
    %v2724 = vadd.f32 %v2482, %v2723
    %v2725 = vpop.f32.mrf.mxu0
    %v2726 = vadd.f32 %v2482, %v2725
    %2727 = vmatmul.bf16.gmra.mxu0 %v2677
    %v2728 = vpop.f32.mrf.mxu0
    %v2729 = vadd.f32 %v2482, %v2728
    %v2730 = vpop.f32.mrf.mxu0
    %v2731 = vadd.f32 %v2482, %v2730
    %2732 = vmatmul.bf16.gmra.mxu0 %v2680
    %v2733 = vpop.f32.mrf.mxu0
    %v2734 = vadd.f32 %v2482, %v2733
    %v2735 = vpop.f32.mrf.mxu0
    %v2736 = vadd.f32 %v2482, %v2735
    %2737 = vmatmul.bf16.gmra.mxu0 %v2683
    %v2738 = vpop.f32.mrf.mxu0
    %v2739 = vadd.f32 %v2482, %v2738
    %v2740 = vpop.f32.mrf.mxu0
    %v2741 = vadd.f32 %v2482, %v2740
    %2742 = vdwg.mxu0
    %2743 = vmatpush.bf16.msra.mxu0 0
    %2744 = vmatpush.bf16.msra.mxu0 0
    %2745 = vmatpush.bf16.msra.mxu0 0
    %2746 = vmatpush.bf16.msra.mxu0 0
    %2747 = vmatpush.bf16.msra.mxu0 0
    %2748 = vmatpush.bf16.msra.mxu0 0
    %2749 = vmatpush.bf16.msra.mxu0 %v2627
    %2750 = vmatpush.bf16.msra.mxu0 %v2611
    %2751 = vmatmul.bf16.gmra.mxu0 %v2674
    %v2752 = vpop.f32.mrf.mxu0
    %v2753 = vadd.f32 %v2483, %v2752
    %v2754 = vpop.f32.mrf.mxu0
    %v2755 = vadd.f32 %v2483, %v2754
    %2756 = vmatmul.bf16.gmra.mxu0 %v2677
    %v2757 = vpop.f32.mrf.mxu0
    %v2758 = vadd.f32 %v2483, %v2757
    %v2759 = vpop.f32.mrf.mxu0
    %v2760 = vadd.f32 %v2483, %v2759
    %2761 = vmatmul.bf16.gmra.mxu0 %v2680
    %v2762 = vpop.f32.mrf.mxu0
    %v2763 = vadd.f32 %v2483, %v2762
    %v2764 = vpop.f32.mrf.mxu0
    %v2765 = vadd.f32 %v2483, %v2764
    %2766 = vmatmul.bf16.gmra.mxu0 %v2683
    %v2767 = vpop.f32.mrf.mxu0
    %v2768 = vadd.f32 %v2483, %v2767
    %v2769 = vpop.f32.mrf.mxu0
    %v2770 = vadd.f32 %v2483, %v2769
    %2771 = vdwg.mxu0
    %2772 = vmatpush.bf16.msra.mxu0 0
    %2773 = vmatpush.bf16.msra.mxu0 0
    %2774 = vmatpush.bf16.msra.mxu0 0
    %2775 = vmatpush.bf16.msra.mxu0 0
    %2776 = vmatpush.bf16.msra.mxu0 0
    %2777 = vmatpush.bf16.msra.mxu0 0
    %2778 = vmatpush.bf16.msra.mxu0 %v2628
    %2779 = vmatpush.bf16.msra.mxu0 %v2612
    %2780 = vmatmul.bf16.gmra.mxu0 %v2674
    %v2781 = vpop.f32.mrf.mxu0
    %v2782 = vadd.f32 %v2484, %v2781
    %v2783 = vpop.f32.mrf.mxu0
    %v2784 = vadd.f32 %v2484, %v2783
    %2785 = vmatmul.bf16.gmra.mxu0 %v2677
    %v2786 = vpop.f32.mrf.mxu0
    %v2787 = vadd.f32 %v2484, %v2786
    %v2788 = vpop.f32.mrf.mxu0
    %v2789 = vadd.f32 %v2484, %v2788
    %2790 = vmatmul.bf16.gmra.mxu0 %v2680
    %v2791 = vpop.f32.mrf.mxu0
    %v2792 = vadd.f32 %v2484, %v2791
    %v2793 = vpop.f32.mrf.mxu0
    %v2794 = vadd.f32 %v2484, %v2793
    %2795 = vmatmul.bf16.gmra.mxu0 %v2683
    %v2796 = vpop.f32.mrf.mxu0
    %v2797 = vadd.f32 %v2484, %v2796
    %v2798 = vpop.f32.mrf.mxu0
    %v2799 = vadd.f32 %v2484, %v2798
    %2800 = vdwg.mxu0
    %2801 = vmatpush.bf16.msra.mxu0 0
    %2802 = vmatpush.bf16.msra.mxu0 0
    %2803 = vmatpush.bf16.msra.mxu0 0
    %2804 = vmatpush.bf16.msra.mxu0 0
    %2805 = vmatpush.bf16.msra.mxu0 0
    %2806 = vmatpush.bf16.msra.mxu0 0
    %2807 = vmatpush.bf16.msra.mxu0 %v2629
    %2808 = vmatpush.bf16.msra.mxu0 %v2613
    %2809 = vmatmul.bf16.gmra.mxu0 %v2674
    %v2810 = vpop.f32.mrf.mxu0
    %v2811 = vadd.f32 %v2485, %v2810
    %v2812 = vpop.f32.mrf.mxu0
    %v2813 = vadd.f32 %v2485, %v2812
    %2814 = vmatmul.bf16.gmra.mxu0 %v2677
    %v2815 = vpop.f32.mrf.mxu0
    %v2816 = vadd.f32 %v2485, %v2815
    %v2817 = vpop.f32.mrf.mxu0
    %v2818 = vadd.f32 %v2485, %v2817
    %2819 = vmatmul.bf16.gmra.mxu0 %v2680
    %v2820 = vpop.f32.mrf.mxu0
    %v2821 = vadd.f32 %v2485, %v2820
    %v2822 = vpop.f32.mrf.mxu0
    %v2823 = vadd.f32 %v2485, %v2822
    %2824 = vmatmul.bf16.gmra.mxu0 %v2683
    %v2825 = vpop.f32.mrf.mxu0
    %v2826 = vadd.f32 %v2485, %v2825
    %v2827 = vpop.f32.mrf.mxu0
    %v2828 = vadd.f32 %v2485, %v2827
    %2829 = vdwg.mxu0
    %2830 = vmatpush.bf16.msra.mxu0 0
    %2831 = vmatpush.bf16.msra.mxu0 0
    %2832 = vmatpush.bf16.msra.mxu0 0
    %2833 = vmatpush.bf16.msra.mxu0 0
    %2834 = vmatpush.bf16.msra.mxu0 0
    %2835 = vmatpush.bf16.msra.mxu0 0
    %2836 = vmatpush.bf16.msra.mxu0 %v2630
    %2837 = vmatpush.bf16.msra.mxu0 %v2614
    %2838 = vmatmul.bf16.gmra.mxu0 %v2674
    %v2839 = vpop.f32.mrf.mxu0
    %v2840 = vadd.f32 %v2486, %v2839
    %v2841 = vpop.f32.mrf.mxu0
    %v2842 = vadd.f32 %v2486, %v2841
    %2843 = vmatmul.bf16.gmra.mxu0 %v2677
    %v2844 = vpop.f32.mrf.mxu0
    %v2845 = vadd.f32 %v2486, %v2844
    %v2846 = vpop.f32.mrf.mxu0
    %v2847 = vadd.f32 %v2486, %v2846
    %2848 = vmatmul.bf16.gmra.mxu0 %v2680
    %v2849 = vpop.f32.mrf.mxu0
    %v2850 = vadd.f32 %v2486, %v2849
    %v2851 = vpop.f32.mrf.mxu0
    %v2852 = vadd.f32 %v2486, %v2851
    %2853 = vmatmul.bf16.gmra.mxu0 %v2683
    %v2854 = vpop.f32.mrf.mxu0
    %v2855 = vadd.f32 %v2486, %v2854
    %v2856 = vpop.f32.mrf.mxu0
    %v2857 = vadd.f32 %v2486, %v2856
    %2858 = vdwg.mxu0
    %2859 = vmatpush.bf16.msra.mxu0 0
    %2860 = vmatpush.bf16.msra.mxu0 0
    %2861 = vmatpush.bf16.msra.mxu0 0
    %2862 = vmatpush.bf16.msra.mxu0 0
    %2863 = vmatpush.bf16.msra.mxu0 0
    %2864 = vmatpush.bf16.msra.mxu0 0
    %2865 = vmatpush.bf16.msra.mxu0 %v2631
    %2866 = vmatpush.bf16.msra.mxu0 %v2615
    %2867 = vmatmul.bf16.gmra.mxu0 %v2674
    %v2868 = vpop.f32.mrf.mxu0
    %v2869 = vadd.f32 %v2487, %v2868
    %v2870 = vpop.f32.mrf.mxu0
    %v2871 = vadd.f32 %v2487, %v2870
    %2872 = vmatmul.bf16.gmra.mxu0 %v2677
    %v2873 = vpop.f32.mrf.mxu0
    %v2874 = vadd.f32 %v2487, %v2873
    %v2875 = vpop.f32.mrf.mxu0
    %v2876 = vadd.f32 %v2487, %v2875
    %2877 = vmatmul.bf16.gmra.mxu0 %v2680
    %v2878 = vpop.f32.mrf.mxu0
    %v2879 = vadd.f32 %v2487, %v2878
    %v2880 = vpop.f32.mrf.mxu0
    %v2881 = vadd.f32 %v2487, %v2880
    %2882 = vmatmul.bf16.gmra.mxu0 %v2683
    %v2883 = vpop.f32.mrf.mxu0
    %v2884 = vadd.f32 %v2487, %v2883
    %v2885 = vpop.f32.mrf.mxu0
    %v2886 = vadd.f32 %v2487, %v2885
    %2887 = vdwg.mxu0
    %2888 = vmatpush.bf16.msra.mxu0 0
    %2889 = vmatpush.bf16.msra.mxu0 0
    %2890 = vmatpush.bf16.msra.mxu0 0
    %2891 = vmatpush.bf16.msra.mxu0 0
    %2892 = vmatpush.bf16.msra.mxu0 0
    %2893 = vmatpush.bf16.msra.mxu0 0
    %2894 = vmatpush.bf16.msra.mxu0 %v2632
    %2895 = vmatpush.bf16.msra.mxu0 %v2616
    %2896 = vmatmul.bf16.gmra.mxu0 %v2674
    %v2897 = vpop.f32.mrf.mxu0
    %v2898 = vadd.f32 %v2488, %v2897
    %v2899 = vpop.f32.mrf.mxu0
    %v2900 = vadd.f32 %v2488, %v2899
    %2901 = vmatmul.bf16.gmra.mxu0 %v2677
    %v2902 = vpop.f32.mrf.mxu0
    %v2903 = vadd.f32 %v2488, %v2902
    %v2904 = vpop.f32.mrf.mxu0
    %v2905 = vadd.f32 %v2488, %v2904
    %2906 = vmatmul.bf16.gmra.mxu0 %v2680
    %v2907 = vpop.f32.mrf.mxu0
    %v2908 = vadd.f32 %v2488, %v2907
    %v2909 = vpop.f32.mrf.mxu0
    %v2910 = vadd.f32 %v2488, %v2909
    %2911 = vmatmul.bf16.gmra.mxu0 %v2683
    %v2912 = vpop.f32.mrf.mxu0
    %v2913 = vadd.f32 %v2488, %v2912
    %v2914 = vpop.f32.mrf.mxu0
    %v2915 = vadd.f32 %v2488, %v2914
    %2916 = vdwg.mxu0
    %2917 = vmatpush.bf16.msra.mxu0 0
    %2918 = vmatpush.bf16.msra.mxu0 0
    %2919 = vmatpush.bf16.msra.mxu0 0
    %2920 = vmatpush.bf16.msra.mxu0 0
    %2921 = vmatpush.bf16.msra.mxu0 0
    %2922 = vmatpush.bf16.msra.mxu0 0
    %2923 = vmatpush.bf16.msra.mxu0 %v2633
    %2924 = vmatpush.bf16.msra.mxu0 %v2617
    %2925 = vmatmul.bf16.gmra.mxu0 %v2674
    %v2926 = vpop.f32.mrf.mxu0
    %v2927 = vadd.f32 %v2489, %v2926
    %v2928 = vpop.f32.mrf.mxu0
    %v2929 = vadd.f32 %v2489, %v2928
    %2930 = vmatmul.bf16.gmra.mxu0 %v2677
    %v2931 = vpop.f32.mrf.mxu0
    %v2932 = vadd.f32 %v2489, %v2931
    %v2933 = vpop.f32.mrf.mxu0
    %v2934 = vadd.f32 %v2489, %v2933
    %2935 = vmatmul.bf16.gmra.mxu0 %v2680
    %v2936 = vpop.f32.mrf.mxu0
    %v2937 = vadd.f32 %v2489, %v2936
    %v2938 = vpop.f32.mrf.mxu0
    %v2939 = vadd.f32 %v2489, %v2938
    %2940 = vmatmul.bf16.gmra.mxu0 %v2683
    %v2941 = vpop.f32.mrf.mxu0
    %v2942 = vadd.f32 %v2489, %v2941
    %v2943 = vpop.f32.mrf.mxu0
    %v2944 = vadd.f32 %v2489, %v2943
    %2945 = vdwg.mxu0
    %2946 = vmatpush.bf16.msra.mxu0 0
    %2947 = vmatpush.bf16.msra.mxu0 0
    %2948 = vmatpush.bf16.msra.mxu0 0
    %2949 = vmatpush.bf16.msra.mxu0 0
    %2950 = vmatpush.bf16.msra.mxu0 0
    %2951 = vmatpush.bf16.msra.mxu0 0
    %2952 = vmatpush.bf16.msra.mxu0 %v2634
    %2953 = vmatpush.bf16.msra.mxu0 %v2618
    %2954 = vmatmul.bf16.gmra.mxu0 %v2674
    %v2955 = vpop.f32.mrf.mxu0
    %v2956 = vadd.f32 %v2490, %v2955
    %v2957 = vpop.f32.mrf.mxu0
    %v2958 = vadd.f32 %v2490, %v2957
    %2959 = vmatmul.bf16.gmra.mxu0 %v2677
    %v2960 = vpop.f32.mrf.mxu0
    %v2961 = vadd.f32 %v2490, %v2960
    %v2962 = vpop.f32.mrf.mxu0
    %v2963 = vadd.f32 %v2490, %v2962
    %2964 = vmatmul.bf16.gmra.mxu0 %v2680
    %v2965 = vpop.f32.mrf.mxu0
    %v2966 = vadd.f32 %v2490, %v2965
    %v2967 = vpop.f32.mrf.mxu0
    %v2968 = vadd.f32 %v2490, %v2967
    %2969 = vmatmul.bf16.gmra.mxu0 %v2683
    %v2970 = vpop.f32.mrf.mxu0
    %v2971 = vadd.f32 %v2490, %v2970
    %v2972 = vpop.f32.mrf.mxu0
    %v2973 = vadd.f32 %v2490, %v2972
    %2974 = vdwg.mxu0
    %2975 = vmatpush.bf16.msra.mxu0 0
    %2976 = vmatpush.bf16.msra.mxu0 0
    %2977 = vmatpush.bf16.msra.mxu0 0
    %2978 = vmatpush.bf16.msra.mxu0 0
    %2979 = vmatpush.bf16.msra.mxu0 0
    %2980 = vmatpush.bf16.msra.mxu0 0
    %2981 = vmatpush.bf16.msra.mxu0 %v2635
    %2982 = vmatpush.bf16.msra.mxu0 %v2619
    %2983 = vmatmul.bf16.gmra.mxu0 %v2674
    %v2984 = vpop.f32.mrf.mxu0
    %v2985 = vadd.f32 %v2491, %v2984
    %v2986 = vpop.f32.mrf.mxu0
    %v2987 = vadd.f32 %v2491, %v2986
    %2988 = vmatmul.bf16.gmra.mxu0 %v2677
    %v2989 = vpop.f32.mrf.mxu0
    %v2990 = vadd.f32 %v2491, %v2989
    %v2991 = vpop.f32.mrf.mxu0
    %v2992 = vadd.f32 %v2491, %v2991
    %2993 = vmatmul.bf16.gmra.mxu0 %v2680
    %v2994 = vpop.f32.mrf.mxu0
    %v2995 = vadd.f32 %v2491, %v2994
    %v2996 = vpop.f32.mrf.mxu0
    %v2997 = vadd.f32 %v2491, %v2996
    %2998 = vmatmul.bf16.gmra.mxu0 %v2683
    %v2999 = vpop.f32.mrf.mxu0
    %v3000 = vadd.f32 %v2491, %v2999
    %v3001 = vpop.f32.mrf.mxu0
    %v3002 = vadd.f32 %v2491, %v3001
    %3003 = vdwg.mxu0
    %3004 = vmatpush.bf16.msra.mxu0 0
    %3005 = vmatpush.bf16.msra.mxu0 0
    %3006 = vmatpush.bf16.msra.mxu0 0
    %3007 = vmatpush.bf16.msra.mxu0 0
    %3008 = vmatpush.bf16.msra.mxu0 0
    %3009 = vmatpush.bf16.msra.mxu0 0
    %3010 = vmatpush.bf16.msra.mxu0 %v2636
    %3011 = vmatpush.bf16.msra.mxu0 %v2620
    %3012 = vmatmul.bf16.gmra.mxu0 %v2674
    %v3013 = vpop.f32.mrf.mxu0
    %v3014 = vadd.f32 %v2492, %v3013
    %v3015 = vpop.f32.mrf.mxu0
    %v3016 = vadd.f32 %v2492, %v3015
    %3017 = vmatmul.bf16.gmra.mxu0 %v2677
    %v3018 = vpop.f32.mrf.mxu0
    %v3019 = vadd.f32 %v2492, %v3018
    %v3020 = vpop.f32.mrf.mxu0
    %v3021 = vadd.f32 %v2492, %v3020
    %3022 = vmatmul.bf16.gmra.mxu0 %v2680
    %v3023 = vpop.f32.mrf.mxu0
    %v3024 = vadd.f32 %v2492, %v3023
    %v3025 = vpop.f32.mrf.mxu0
    %v3026 = vadd.f32 %v2492, %v3025
    %3027 = vmatmul.bf16.gmra.mxu0 %v2683
    %v3028 = vpop.f32.mrf.mxu0
    %v3029 = vadd.f32 %v2492, %v3028
    %v3030 = vpop.f32.mrf.mxu0
    %v3031 = vadd.f32 %v2492, %v3030
    %3032 = vdwg.mxu0
    %3033 = vmatpush.bf16.msra.mxu0 0
    %3034 = vmatpush.bf16.msra.mxu0 0
    %3035 = vmatpush.bf16.msra.mxu0 0
    %3036 = vmatpush.bf16.msra.mxu0 0
    %3037 = vmatpush.bf16.msra.mxu0 0
    %3038 = vmatpush.bf16.msra.mxu0 0
    %3039 = vmatpush.bf16.msra.mxu0 %v2637
    %3040 = vmatpush.bf16.msra.mxu0 %v2621
    %3041 = vmatmul.bf16.gmra.mxu0 %v2674
    %v3042 = vpop.f32.mrf.mxu0
    %v3043 = vadd.f32 %v2493, %v3042
    %v3044 = vpop.f32.mrf.mxu0
    %v3045 = vadd.f32 %v2493, %v3044
    %3046 = vmatmul.bf16.gmra.mxu0 %v2677
    %v3047 = vpop.f32.mrf.mxu0
    %v3048 = vadd.f32 %v2493, %v3047
    %v3049 = vpop.f32.mrf.mxu0
    %v3050 = vadd.f32 %v2493, %v3049
    %3051 = vmatmul.bf16.gmra.mxu0 %v2680
    %v3052 = vpop.f32.mrf.mxu0
    %v3053 = vadd.f32 %v2493, %v3052
    %v3054 = vpop.f32.mrf.mxu0
    %v3055 = vadd.f32 %v2493, %v3054
    %3056 = vmatmul.bf16.gmra.mxu0 %v2683
    %v3057 = vpop.f32.mrf.mxu0
    %v3058 = vadd.f32 %v2493, %v3057
    %v3059 = vpop.f32.mrf.mxu0
    %v3060 = vadd.f32 %v2493, %v3059
    %3061 = vdwg.mxu0
    %3062 = vmatpush.bf16.msra.mxu0 0
    %3063 = vmatpush.bf16.msra.mxu0 0
    %3064 = vmatpush.bf16.msra.mxu0 0
    %3065 = vmatpush.bf16.msra.mxu0 0
    %3066 = vmatpush.bf16.msra.mxu0 0
    %3067 = vmatpush.bf16.msra.mxu0 0
    %3068 = vmatpush.bf16.msra.mxu0 %v2638
    %3069 = vmatpush.bf16.msra.mxu0 %v2622
    %3070 = vmatmul.bf16.gmra.mxu0 %v2674
    %v3071 = vpop.f32.mrf.mxu0
    %v3072 = vadd.f32 %v2494, %v3071
    %v3073 = vpop.f32.mrf.mxu0
    %v3074 = vadd.f32 %v2494, %v3073
    %3075 = vmatmul.bf16.gmra.mxu0 %v2677
    %v3076 = vpop.f32.mrf.mxu0
    %v3077 = vadd.f32 %v2494, %v3076
    %v3078 = vpop.f32.mrf.mxu0
    %v3079 = vadd.f32 %v2494, %v3078
    %3080 = vmatmul.bf16.gmra.mxu0 %v2680
    %v3081 = vpop.f32.mrf.mxu0
    %v3082 = vadd.f32 %v2494, %v3081
    %v3083 = vpop.f32.mrf.mxu0
    %v3084 = vadd.f32 %v2494, %v3083
    %3085 = vmatmul.bf16.gmra.mxu0 %v2683
    %v3086 = vpop.f32.mrf.mxu0
    %v3087 = vadd.f32 %v2494, %v3086
    %v3088 = vpop.f32.mrf.mxu0
    %v3089 = vadd.f32 %v2494, %v3088
    %3090 = vdwg.mxu0
    %3091 = vmatpush.bf16.msra.mxu0 0
    %3092 = vmatpush.bf16.msra.mxu0 0
    %3093 = vmatpush.bf16.msra.mxu0 0
    %3094 = vmatpush.bf16.msra.mxu0 0
    %3095 = vmatpush.bf16.msra.mxu0 0
    %3096 = vmatpush.bf16.msra.mxu0 0
    %3097 = vmatpush.bf16.msra.mxu0 %v2639
    %3098 = vmatpush.bf16.msra.mxu0 %v2623
    %3099 = vmatmul.bf16.gmra.mxu0 %v2674
    %v3100 = vpop.f32.mrf.mxu0
    %v3101 = vadd.f32 %v2495, %v3100
    %v3102 = vpop.f32.mrf.mxu0
    %v3103 = vadd.f32 %v2495, %v3102
    %3104 = vmatmul.bf16.gmra.mxu0 %v2677
    %v3105 = vpop.f32.mrf.mxu0
    %v3106 = vadd.f32 %v2495, %v3105
    %v3107 = vpop.f32.mrf.mxu0
    %v3108 = vadd.f32 %v2495, %v3107
    %3109 = vmatmul.bf16.gmra.mxu0 %v2680
    %v3110 = vpop.f32.mrf.mxu0
    %v3111 = vadd.f32 %v2495, %v3110
    %v3112 = vpop.f32.mrf.mxu0
    %v3113 = vadd.f32 %v2495, %v3112
    %3114 = vmatmul.bf16.gmra.mxu0 %v2683
    %v3115 = vpop.f32.mrf.mxu0
    %v3116 = vadd.f32 %v2495, %v3115
    %v3117 = vpop.f32.mrf.mxu0
    %v3118 = vadd.f32 %v2495, %v3117
    %3119 = vdwg.mxu0
    %3120 = vmatpush.bf16.msra.mxu0 0
    %3121 = vmatpush.bf16.msra.mxu0 0
    %3122 = vmatpush.bf16.msra.mxu0 0
    %3123 = vmatpush.bf16.msra.mxu0 0
    %3124 = vmatpush.bf16.msra.mxu0 0
    %3125 = vmatpush.bf16.msra.mxu0 0
    %3126 = vmatpush.bf16.msra.mxu0 %v2640
    %3127 = vmatpush.bf16.msra.mxu0 %v2624
    %3128 = vmatmul.bf16.gmra.mxu0 %v2674
    %v3129 = vpop.f32.mrf.mxu0
    %v3130 = vadd.f32 %v2496, %v3129
    %v3131 = vpop.f32.mrf.mxu0
    %v3132 = vadd.f32 %v2496, %v3131
    %3133 = vmatmul.bf16.gmra.mxu0 %v2677
    %v3134 = vpop.f32.mrf.mxu0
    %v3135 = vadd.f32 %v2496, %v3134
    %v3136 = vpop.f32.mrf.mxu0
    %v3137 = vadd.f32 %v2496, %v3136
    %3138 = vmatmul.bf16.gmra.mxu0 %v2680
    %v3139 = vpop.f32.mrf.mxu0
    %v3140 = vadd.f32 %v2496, %v3139
    %v3141 = vpop.f32.mrf.mxu0
    %v3142 = vadd.f32 %v2496, %v3141
    %3143 = vmatmul.bf16.gmra.mxu0 %v2683
    %v3144 = vpop.f32.mrf.mxu0
    %v3145 = vadd.f32 %v2496, %v3144
    %v3146 = vpop.f32.mrf.mxu0
    %v3147 = vadd.f32 %v2496, %v3146
    %3148 = vdwg.mxu0
    %v3149 = vmax.f32 %v2695, 0.0
    %v3150 = vmax.f32 %v2724, 0.0
    %v3151 = vmax.f32 %v2753, 0.0
    %v3152 = vmax.f32 %v2782, 0.0
    %v3153 = vmax.f32 %v2811, 0.0
    %v3154 = vmax.f32 %v2840, 0.0
    %v3155 = vmax.f32 %v2869, 0.0
    %v3156 = vmax.f32 %v2898, 0.0
    %v3157 = vmax.f32 %v2927, 0.0
    %v3158 = vmax.f32 %v2956, 0.0
    %v3159 = vmax.f32 %v2985, 0.0
    %v3160 = vmax.f32 %v3014, 0.0
    %v3161 = vmax.f32 %v3043, 0.0
    %v3162 = vmax.f32 %v3072, 0.0
    %v3163 = vmax.f32 %v3101, 0.0
    %v3164 = vmax.f32 %v3130, 0.0
    %v3165 = vmax.f32 %v2697, 0.0
    %v3166 = vmax.f32 %v2726, 0.0
    %v3167 = vmax.f32 %v2755, 0.0
    %v3168 = vmax.f32 %v2784, 0.0
    %v3169 = vmax.f32 %v2813, 0.0
    %v3170 = vmax.f32 %v2842, 0.0
    %v3171 = vmax.f32 %v2871, 0.0
    %v3172 = vmax.f32 %v2900, 0.0
    %v3173 = vmax.f32 %v2929, 0.0
    %v3174 = vmax.f32 %v2958, 0.0
    %v3175 = vmax.f32 %v2987, 0.0
    %v3176 = vmax.f32 %v3016, 0.0
    %v3177 = vmax.f32 %v3045, 0.0
    %v3178 = vmax.f32 %v3074, 0.0
    %v3179 = vmax.f32 %v3103, 0.0
    %v3180 = vmax.f32 %v3132, 0.0
    %v3181 = vmax.f32 %v2700, 0.0
    %v3182 = vmax.f32 %v2729, 0.0
    %v3183 = vmax.f32 %v2758, 0.0
    %v3184 = vmax.f32 %v2787, 0.0
    %v3185 = vmax.f32 %v2816, 0.0
    %v3186 = vmax.f32 %v2845, 0.0
    %v3187 = vmax.f32 %v2874, 0.0
    %v3188 = vmax.f32 %v2903, 0.0
    %v3189 = vmax.f32 %v2932, 0.0
    %v3190 = vmax.f32 %v2961, 0.0
    %v3191 = vmax.f32 %v2990, 0.0
    %v3192 = vmax.f32 %v3019, 0.0
    %v3193 = vmax.f32 %v3048, 0.0
    %v3194 = vmax.f32 %v3077, 0.0
    %v3195 = vmax.f32 %v3106, 0.0
    %v3196 = vmax.f32 %v3135, 0.0
    %v3197 = vmax.f32 %v2702, 0.0
    %v3198 = vmax.f32 %v2731, 0.0
    %v3199 = vmax.f32 %v2760, 0.0
    %v3200 = vmax.f32 %v2789, 0.0
    %v3201 = vmax.f32 %v2818, 0.0
    %v3202 = vmax.f32 %v2847, 0.0
    %v3203 = vmax.f32 %v2876, 0.0
    %v3204 = vmax.f32 %v2905, 0.0
    %v3205 = vmax.f32 %v2934, 0.0
    %v3206 = vmax.f32 %v2963, 0.0
    %v3207 = vmax.f32 %v2992, 0.0
    %v3208 = vmax.f32 %v3021, 0.0
    %v3209 = vmax.f32 %v3050, 0.0
    %v3210 = vmax.f32 %v3079, 0.0
    %v3211 = vmax.f32 %v3108, 0.0
    %v3212 = vmax.f32 %v3137, 0.0
    %v3213 = vmax.f32 %v2705, 0.0
    %v3214 = vmax.f32 %v2734, 0.0
    %v3215 = vmax.f32 %v2763, 0.0
    %v3216 = vmax.f32 %v2792, 0.0
    %v3217 = vmax.f32 %v2821, 0.0
    %v3218 = vmax.f32 %v2850, 0.0
    %v3219 = vmax.f32 %v2879, 0.0
    %v3220 = vmax.f32 %v2908, 0.0
    %v3221 = vmax.f32 %v2937, 0.0
    %v3222 = vmax.f32 %v2966, 0.0
    %v3223 = vmax.f32 %v2995, 0.0
    %v3224 = vmax.f32 %v3024, 0.0
    %v3225 = vmax.f32 %v3053, 0.0
    %v3226 = vmax.f32 %v3082, 0.0
    %v3227 = vmax.f32 %v3111, 0.0
    %v3228 = vmax.f32 %v3140, 0.0
    %v3229 = vmax.f32 %v2707, 0.0
    %v3230 = vmax.f32 %v2736, 0.0
    %v3231 = vmax.f32 %v2765, 0.0
    %v3232 = vmax.f32 %v2794, 0.0
    %v3233 = vmax.f32 %v2823, 0.0
    %v3234 = vmax.f32 %v2852, 0.0
    %v3235 = vmax.f32 %v2881, 0.0
    %v3236 = vmax.f32 %v2910, 0.0
    %v3237 = vmax.f32 %v2939, 0.0
    %v3238 = vmax.f32 %v2968, 0.0
    %v3239 = vmax.f32 %v2997, 0.0
    %v3240 = vmax.f32 %v3026, 0.0
    %v3241 = vmax.f32 %v3055, 0.0
    %v3242 = vmax.f32 %v3084, 0.0
    %v3243 = vmax.f32 %v3113, 0.0
    %v3244 = vmax.f32 %v3142, 0.0
    %v3245 = vmax.f32 %v2710, 0.0
    %v3246 = vmax.f32 %v2739, 0.0
    %v3247 = vmax.f32 %v2768, 0.0
    %v3248 = vmax.f32 %v2797, 0.0
    %v3249 = vmax.f32 %v2826, 0.0
    %v3250 = vmax.f32 %v2855, 0.0
    %v3251 = vmax.f32 %v2884, 0.0
    %v3252 = vmax.f32 %v2913, 0.0
    %v3253 = vmax.f32 %v2942, 0.0
    %v3254 = vmax.f32 %v2971, 0.0
    %v3255 = vmax.f32 %v3000, 0.0
    %v3256 = vmax.f32 %v3029, 0.0
    %v3257 = vmax.f32 %v3058, 0.0
    %v3258 = vmax.f32 %v3087, 0.0
    %v3259 = vmax.f32 %v3116, 0.0
    %v3260 = vmax.f32 %v3145, 0.0
    %v3261 = vmax.f32 %v2712, 0.0
    %v3262 = vmax.f32 %v2741, 0.0
    %v3263 = vmax.f32 %v2770, 0.0
    %v3264 = vmax.f32 %v2799, 0.0
    %v3265 = vmax.f32 %v2828, 0.0
    %v3266 = vmax.f32 %v2857, 0.0
    %v3267 = vmax.f32 %v2886, 0.0
    %v3268 = vmax.f32 %v2915, 0.0
    %v3269 = vmax.f32 %v2944, 0.0
    %v3270 = vmax.f32 %v2973, 0.0
    %v3271 = vmax.f32 %v3002, 0.0
    %v3272 = vmax.f32 %v3031, 0.0
    %v3273 = vmax.f32 %v3060, 0.0
    %v3274 = vmax.f32 %v3089, 0.0
    %v3275 = vmax.f32 %v3118, 0.0
    %v3276 = vmax.f32 %v3147, 0.0
    %v3277 = vpack.c.bf16 %v3165, %v3149
    %v3278 = vpack.c.bf16 %v3166, %v3150
    %v3279 = vpack.c.bf16 %v3167, %v3151
    %v3280 = vpack.c.bf16 %v3168, %v3152
    %v3281 = vpack.c.bf16 %v3169, %v3153
    %v3282 = vpack.c.bf16 %v3170, %v3154
    %v3283 = vpack.c.bf16 %v3171, %v3155
    %v3284 = vpack.c.bf16 %v3172, %v3156
    %v3285 = vpack.c.bf16 %v3173, %v3157
    %v3286 = vpack.c.bf16 %v3174, %v3158
    %v3287 = vpack.c.bf16 %v3175, %v3159
    %v3288 = vpack.c.bf16 %v3176, %v3160
    %v3289 = vpack.c.bf16 %v3177, %v3161
    %v3290 = vpack.c.bf16 %v3178, %v3162
    %v3291 = vpack.c.bf16 %v3179, %v3163
    %v3292 = vpack.c.bf16 %v3180, %v3164
    %v3293 = vpack.c.bf16 %v3197, %v3181
    %v3294 = vpack.c.bf16 %v3198, %v3182
    %v3295 = vpack.c.bf16 %v3199, %v3183
    %v3296 = vpack.c.bf16 %v3200, %v3184
    %v3297 = vpack.c.bf16 %v3201, %v3185
    %v3298 = vpack.c.bf16 %v3202, %v3186
    %v3299 = vpack.c.bf16 %v3203, %v3187
    %v3300 = vpack.c.bf16 %v3204, %v3188
    %v3301 = vpack.c.bf16 %v3205, %v3189
    %v3302 = vpack.c.bf16 %v3206, %v3190
    %v3303 = vpack.c.bf16 %v3207, %v3191
    %v3304 = vpack.c.bf16 %v3208, %v3192
    %v3305 = vpack.c.bf16 %v3209, %v3193
    %v3306 = vpack.c.bf16 %v3210, %v3194
    %v3307 = vpack.c.bf16 %v3211, %v3195
    %v3308 = vpack.c.bf16 %v3212, %v3196
    %v3309 = vpack.c.bf16 %v3229, %v3213
    %v3310 = vpack.c.bf16 %v3230, %v3214
    %v3311 = vpack.c.bf16 %v3231, %v3215
    %v3312 = vpack.c.bf16 %v3232, %v3216
    %v3313 = vpack.c.bf16 %v3233, %v3217
    %v3314 = vpack.c.bf16 %v3234, %v3218
    %v3315 = vpack.c.bf16 %v3235, %v3219
    %v3316 = vpack.c.bf16 %v3236, %v3220
    %v3317 = vpack.c.bf16 %v3237, %v3221
    %v3318 = vpack.c.bf16 %v3238, %v3222
    %v3319 = vpack.c.bf16 %v3239, %v3223
    %v3320 = vpack.c.bf16 %v3240, %v3224
    %v3321 = vpack.c.bf16 %v3241, %v3225
    %v3322 = vpack.c.bf16 %v3242, %v3226
    %v3323 = vpack.c.bf16 %v3243, %v3227
    %v3324 = vpack.c.bf16 %v3244, %v3228
    %v3325 = vpack.c.bf16 %v3261, %v3245
    %v3326 = vpack.c.bf16 %v3262, %v3246
    %v3327 = vpack.c.bf16 %v3263, %v3247
    %v3328 = vpack.c.bf16 %v3264, %v3248
    %v3329 = vpack.c.bf16 %v3265, %v3249
    %v3330 = vpack.c.bf16 %v3266, %v3250
    %v3331 = vpack.c.bf16 %v3267, %v3251
    %v3332 = vpack.c.bf16 %v3268, %v3252
    %v3333 = vpack.c.bf16 %v3269, %v3253
    %v3334 = vpack.c.bf16 %v3270, %v3254
    %v3335 = vpack.c.bf16 %v3271, %v3255
    %v3336 = vpack.c.bf16 %v3272, %v3256
    %v3337 = vpack.c.bf16 %v3273, %v3257
    %v3338 = vpack.c.bf16 %v3274, %v3258
    %v3339 = vpack.c.bf16 %v3275, %v3259
    %v3340 = vpack.c.bf16 %v3276, %v3260
    %v3341 = vld [vmem:[%s13] sm:$0xf]
    %v3342 = vld [vmem:[%s13 + $0x4] sm:$0xf]
    %v3343 = vld [vmem:[%s13 + $0x8] sm:$0xf]
    %v3344 = vld [vmem:[%s13 + $0xc] sm:$0xf]
    %v3345 = vld [vmem:[%s13 + $0x10] sm:$0xf]
    %v3346 = vld [vmem:[%s13 + $0x14] sm:$0xf]
    %v3347 = vld [vmem:[%s13 + $0x18] sm:$0xf]
    %v3348 = vld [vmem:[%s13 + $0x1c] sm:$0xf]
    %v3349 = vld [vmem:[%s13 + $0x20] sm:$0xf]
    %v3350 = vld [vmem:[%s13 + $0x24] sm:$0xf]
    %v3351 = vld [vmem:[%s13 + $0x28] sm:$0xf]
    %v3352 = vld [vmem:[%s13 + $0x2c] sm:$0xf]
    %v3353 = vld [vmem:[%s13 + $0x30] sm:$0xf]
    %v3354 = vld [vmem:[%s13 + $0x34] sm:$0xf]
    %v3355 = vld [vmem:[%s13 + $0x38] sm:$0xf]
    %v3356 = vld [vmem:[%s13 + $0x3c] sm:$0xf]
    %v3357 = vld [vmem:[%s13 + $0x40] sm:$0xf]
    %v3358 = vld [vmem:[%s13 + $0x44] sm:$0xf]
    %v3359 = vld [vmem:[%s13 + $0x48] sm:$0xf]
    %v3360 = vld [vmem:[%s13 + $0x4c] sm:$0xf]
    %v3361 = vld [vmem:[%s13 + $0x50] sm:$0xf]
    %v3362 = vld [vmem:[%s13 + $0x54] sm:$0xf]
    %v3363 = vld [vmem:[%s13 + $0x58] sm:$0xf]
    %v3364 = vld [vmem:[%s13 + $0x5c] sm:$0xf]
    %v3365 = vld [vmem:[%s13 + $0x60] sm:$0xf]
    %v3366 = vld [vmem:[%s13 + $0x64] sm:$0xf]
    %v3367 = vld [vmem:[%s13 + $0x68] sm:$0xf]
    %v3368 = vld [vmem:[%s13 + $0x6c] sm:$0xf]
    %v3369 = vld [vmem:[%s13 + $0x70] sm:$0xf]
    %v3370 = vld [vmem:[%s13 + $0x74] sm:$0xf]
    %v3371 = vld [vmem:[%s13 + $0x78] sm:$0xf]
    %v3372 = vld [vmem:[%s13 + $0x7c] sm:$0xf]
    %v3373 = vld [vmem:[%s13 + $0x80] sm:$0xf]
    %v3374 = vld [vmem:[%s13 + $0x84] sm:$0xf]
    %v3375 = vld [vmem:[%s13 + $0x88] sm:$0xf]
    %v3376 = vld [vmem:[%s13 + $0x8c] sm:$0xf]
    %v3377 = vld [vmem:[%s13 + $0x90] sm:$0xf]
    %v3378 = vld [vmem:[%s13 + $0x94] sm:$0xf]
    %v3379 = vld [vmem:[%s13 + $0x98] sm:$0xf]
    %v3380 = vld [vmem:[%s13 + $0x9c] sm:$0xf]
    %v3381 = vld [vmem:[%s13 + $0xa0] sm:$0xf]
    %v3382 = vld [vmem:[%s13 + $0xa4] sm:$0xf]
    %v3383 = vld [vmem:[%s13 + $0xa8] sm:$0xf]
    %v3384 = vld [vmem:[%s13 + $0xac] sm:$0xf]
    %v3385 = vld [vmem:[%s13 + $0xb0] sm:$0xf]
    %v3386 = vld [vmem:[%s13 + $0xb4] sm:$0xf]
    %v3387 = vld [vmem:[%s13 + $0xb8] sm:$0xf]
    %v3388 = vld [vmem:[%s13 + $0xbc] sm:$0xf]
    %v3389 = vld [vmem:[%s13 + $0xc0] sm:$0xf]
    %v3390 = vld [vmem:[%s13 + $0xc4] sm:$0xf]
    %v3391 = vld [vmem:[%s13 + $0xc8] sm:$0xf]
    %v3392 = vld [vmem:[%s13 + $0xcc] sm:$0xf]
    %v3393 = vld [vmem:[%s13 + $0xd0] sm:$0xf]
    %v3394 = vld [vmem:[%s13 + $0xd4] sm:$0xf]
    %v3395 = vld [vmem:[%s13 + $0xd8] sm:$0xf]
    %v3396 = vld [vmem:[%s13 + $0xdc] sm:$0xf]
    %v3397 = vld [vmem:[%s13 + $0xe0] sm:$0xf]
    %v3398 = vld [vmem:[%s13 + $0xe4] sm:$0xf]
    %v3399 = vld [vmem:[%s13 + $0xe8] sm:$0xf]
    %v3400 = vld [vmem:[%s13 + $0xec] sm:$0xf]
    %v3401 = vld [vmem:[%s13 + $0xf0] sm:$0xf]
    %v3402 = vld [vmem:[%s13 + $0xf4] sm:$0xf]
    %v3403 = vld [vmem:[%s13 + $0xf8] sm:$0xf]
    %v3404 = vld [vmem:[%s13 + $0xfc] sm:$0xf]
    %v3405 = vld [vmem:[%s13 + $0x100] sm:$0xf]
    %v3406 = vld [vmem:[%s13 + $0x104] sm:$0xf]
    %v3407 = vld [vmem:[%s13 + $0x108] sm:$0xf]
    %v3408 = vld [vmem:[%s13 + $0x10c] sm:$0xf]
    %v3409 = vld [vmem:[%s13 + $0x110] sm:$0xf]
    %v3410 = vld [vmem:[%s13 + $0x114] sm:$0xf]
    %v3411 = vld [vmem:[%s13 + $0x118] sm:$0xf]
    %v3412 = vld [vmem:[%s13 + $0x11c] sm:$0xf]
    %v3413 = vld [vmem:[%s13 + $0x120] sm:$0xf]
    %v3414 = vld [vmem:[%s13 + $0x124] sm:$0xf]
    %v3415 = vld [vmem:[%s13 + $0x128] sm:$0xf]
    %v3416 = vld [vmem:[%s13 + $0x12c] sm:$0xf]
    %v3417 = vld [vmem:[%s13 + $0x130] sm:$0xf]
    %v3418 = vld [vmem:[%s13 + $0x134] sm:$0xf]
    %v3419 = vld [vmem:[%s13 + $0x138] sm:$0xf]
    %v3420 = vld [vmem:[%s13 + $0x13c] sm:$0xf]
    %v3421 = vld [vmem:[%s13 + $0x140] sm:$0xf]
    %v3422 = vld [vmem:[%s13 + $0x144] sm:$0xf]
    %v3423 = vld [vmem:[%s13 + $0x148] sm:$0xf]
    %v3424 = vld [vmem:[%s13 + $0x14c] sm:$0xf]
    %v3425 = vld [vmem:[%s13 + $0x150] sm:$0xf]
    %v3426 = vld [vmem:[%s13 + $0x154] sm:$0xf]
    %v3427 = vld [vmem:[%s13 + $0x158] sm:$0xf]
    %v3428 = vld [vmem:[%s13 + $0x15c] sm:$0xf]
    %v3429 = vld [vmem:[%s13 + $0x160] sm:$0xf]
    %v3430 = vld [vmem:[%s13 + $0x164] sm:$0xf]
    %v3431 = vld [vmem:[%s13 + $0x168] sm:$0xf]
    %v3432 = vld [vmem:[%s13 + $0x16c] sm:$0xf]
    %v3433 = vld [vmem:[%s13 + $0x170] sm:$0xf]
    %v3434 = vld [vmem:[%s13 + $0x174] sm:$0xf]
    %v3435 = vld [vmem:[%s13 + $0x178] sm:$0xf]
    %v3436 = vld [vmem:[%s13 + $0x17c] sm:$0xf]
    %v3437 = vld [vmem:[%s13 + $0x180] sm:$0xf]
    %v3438 = vld [vmem:[%s13 + $0x184] sm:$0xf]
    %v3439 = vld [vmem:[%s13 + $0x188] sm:$0xf]
    %v3440 = vld [vmem:[%s13 + $0x18c] sm:$0xf]
    %v3441 = vld [vmem:[%s13 + $0x190] sm:$0xf]
    %v3442 = vld [vmem:[%s13 + $0x194] sm:$0xf]
    %v3443 = vld [vmem:[%s13 + $0x198] sm:$0xf]
    %v3444 = vld [vmem:[%s13 + $0x19c] sm:$0xf]
    %v3445 = vld [vmem:[%s13 + $0x1a0] sm:$0xf]
    %v3446 = vld [vmem:[%s13 + $0x1a4] sm:$0xf]
    %v3447 = vld [vmem:[%s13 + $0x1a8] sm:$0xf]
    %v3448 = vld [vmem:[%s13 + $0x1ac] sm:$0xf]
    %v3449 = vld [vmem:[%s13 + $0x1b0] sm:$0xf]
    %v3450 = vld [vmem:[%s13 + $0x1b4] sm:$0xf]
    %v3451 = vld [vmem:[%s13 + $0x1b8] sm:$0xf]
    %v3452 = vld [vmem:[%s13 + $0x1bc] sm:$0xf]
    %v3453 = vld [vmem:[%s13 + $0x1c0] sm:$0xf]
    %v3454 = vld [vmem:[%s13 + $0x1c4] sm:$0xf]
    %v3455 = vld [vmem:[%s13 + $0x1c8] sm:$0xf]
    %v3456 = vld [vmem:[%s13 + $0x1cc] sm:$0xf]
    %v3457 = vld [vmem:[%s13 + $0x1d0] sm:$0xf]
    %v3458 = vld [vmem:[%s13 + $0x1d4] sm:$0xf]
    %v3459 = vld [vmem:[%s13 + $0x1d8] sm:$0xf]
    %v3460 = vld [vmem:[%s13 + $0x1dc] sm:$0xf]
    %v3461 = vld [vmem:[%s13 + $0x1e0] sm:$0xf]
    %v3462 = vld [vmem:[%s13 + $0x1e4] sm:$0xf]
    %v3463 = vld [vmem:[%s13 + $0x1e8] sm:$0xf]
    %v3464 = vld [vmem:[%s13 + $0x1ec] sm:$0xf]
    %v3465 = vld [vmem:[%s13 + $0x1f0] sm:$0xf]
    %v3466 = vld [vmem:[%s13 + $0x1f4] sm:$0xf]
    %v3467 = vld [vmem:[%s13 + $0x1f8] sm:$0xf]
    %v3468 = vld [vmem:[%s13 + $0x1fc] sm:$0xf]
    %v3469 = vld [vmem:[%s13 + $0x200] sm:$0xf]
    %v3470 = vld [vmem:[%s13 + $0x204] sm:$0xf]
    %v3471 = vld [vmem:[%s13 + $0x208] sm:$0xf]
    %v3472 = vld [vmem:[%s13 + $0x20c] sm:$0xf]
    %v3473 = vld [vmem:[%s13 + $0x210] sm:$0xf]
    %v3474 = vld [vmem:[%s13 + $0x214] sm:$0xf]
    %v3475 = vld [vmem:[%s13 + $0x218] sm:$0xf]
    %v3476 = vld [vmem:[%s13 + $0x21c] sm:$0xf]
    %v3477 = vld [vmem:[%s13 + $0x220] sm:$0xf]
    %v3478 = vld [vmem:[%s13 + $0x224] sm:$0xf]
    %v3479 = vld [vmem:[%s13 + $0x228] sm:$0xf]
    %v3480 = vld [vmem:[%s13 + $0x22c] sm:$0xf]
    %v3481 = vld [vmem:[%s13 + $0x230] sm:$0xf]
    %v3482 = vld [vmem:[%s13 + $0x234] sm:$0xf]
    %v3483 = vld [vmem:[%s13 + $0x238] sm:$0xf]
    %v3484 = vld [vmem:[%s13 + $0x23c] sm:$0xf]
    %v3485 = vld [vmem:[%s13 + $0x240] sm:$0xf]
    %v3486 = vld [vmem:[%s13 + $0x244] sm:$0xf]
    %v3487 = vld [vmem:[%s13 + $0x248] sm:$0xf]
    %v3488 = vld [vmem:[%s13 + $0x24c] sm:$0xf]
    %v3489 = vld [vmem:[%s13 + $0x250] sm:$0xf]
    %v3490 = vld [vmem:[%s13 + $0x254] sm:$0xf]
    %v3491 = vld [vmem:[%s13 + $0x258] sm:$0xf]
    %v3492 = vld [vmem:[%s13 + $0x25c] sm:$0xf]
    %v3493 = vld [vmem:[%s13 + $0x260] sm:$0xf]
    %v3494 = vld [vmem:[%s13 + $0x264] sm:$0xf]
    %v3495 = vld [vmem:[%s13 + $0x268] sm:$0xf]
    %v3496 = vld [vmem:[%s13 + $0x26c] sm:$0xf]
    %v3497 = vld [vmem:[%s13 + $0x270] sm:$0xf]
    %v3498 = vld [vmem:[%s13 + $0x274] sm:$0xf]
    %v3499 = vld [vmem:[%s13 + $0x278] sm:$0xf]
    %v3500 = vld [vmem:[%s13 + $0x27c] sm:$0xf]
    %v3501 = vld [vmem:[%s13 + $0x280] sm:$0xf]
    %v3502 = vld [vmem:[%s13 + $0x284] sm:$0xf]
    %v3503 = vld [vmem:[%s13 + $0x288] sm:$0xf]
    %v3504 = vld [vmem:[%s13 + $0x28c] sm:$0xf]
    %v3505 = vld [vmem:[%s13 + $0x290] sm:$0xf]
    %v3506 = vld [vmem:[%s13 + $0x294] sm:$0xf]
    %v3507 = vld [vmem:[%s13 + $0x298] sm:$0xf]
    %v3508 = vld [vmem:[%s13 + $0x29c] sm:$0xf]
    %v3509 = vld [vmem:[%s13 + $0x2a0] sm:$0xf]
    %v3510 = vld [vmem:[%s13 + $0x2a4] sm:$0xf]
    %v3511 = vld [vmem:[%s13 + $0x2a8] sm:$0xf]
    %v3512 = vld [vmem:[%s13 + $0x2ac] sm:$0xf]
    %v3513 = vld [vmem:[%s13 + $0x2b0] sm:$0xf]
    %v3514 = vld [vmem:[%s13 + $0x2b4] sm:$0xf]
    %v3515 = vld [vmem:[%s13 + $0x2b8] sm:$0xf]
    %v3516 = vld [vmem:[%s13 + $0x2bc] sm:$0xf]
    %v3517 = vld [vmem:[%s13 + $0x2c0] sm:$0xf]
    %v3518 = vld [vmem:[%s13 + $0x2c4] sm:$0xf]
    %v3519 = vld [vmem:[%s13 + $0x2c8] sm:$0xf]
    %v3520 = vld [vmem:[%s13 + $0x2cc] sm:$0xf]
    %v3521 = vld [vmem:[%s13 + $0x2d0] sm:$0xf]
    %v3522 = vld [vmem:[%s13 + $0x2d4] sm:$0xf]
    %v3523 = vld [vmem:[%s13 + $0x2d8] sm:$0xf]
    %v3524 = vld [vmem:[%s13 + $0x2dc] sm:$0xf]
    %v3525 = vld [vmem:[%s13 + $0x2e0] sm:$0xf]
    %v3526 = vld [vmem:[%s13 + $0x2e4] sm:$0xf]
    %v3527 = vld [vmem:[%s13 + $0x2e8] sm:$0xf]
    %v3528 = vld [vmem:[%s13 + $0x2ec] sm:$0xf]
    %v3529 = vld [vmem:[%s13 + $0x2f0] sm:$0xf]
    %v3530 = vld [vmem:[%s13 + $0x2f4] sm:$0xf]
    %v3531 = vld [vmem:[%s13 + $0x2f8] sm:$0xf]
    %v3532 = vld [vmem:[%s13 + $0x2fc] sm:$0xf]
    %v3533 = vld [vmem:[%s13 + $0x300] sm:$0xf]
    %v3534 = vld [vmem:[%s13 + $0x304] sm:$0xf]
    %v3535 = vld [vmem:[%s13 + $0x308] sm:$0xf]
    %v3536 = vld [vmem:[%s13 + $0x30c] sm:$0xf]
    %v3537 = vld [vmem:[%s13 + $0x310] sm:$0xf]
    %v3538 = vld [vmem:[%s13 + $0x314] sm:$0xf]
    %v3539 = vld [vmem:[%s13 + $0x318] sm:$0xf]
    %v3540 = vld [vmem:[%s13 + $0x31c] sm:$0xf]
    %v3541 = vld [vmem:[%s13 + $0x320] sm:$0xf]
    %v3542 = vld [vmem:[%s13 + $0x324] sm:$0xf]
    %v3543 = vld [vmem:[%s13 + $0x328] sm:$0xf]
    %v3544 = vld [vmem:[%s13 + $0x32c] sm:$0xf]
    %v3545 = vld [vmem:[%s13 + $0x330] sm:$0xf]
    %v3546 = vld [vmem:[%s13 + $0x334] sm:$0xf]
    %v3547 = vld [vmem:[%s13 + $0x338] sm:$0xf]
    %v3548 = vld [vmem:[%s13 + $0x33c] sm:$0xf]
    %v3549 = vld [vmem:[%s13 + $0x340] sm:$0xf]
    %v3550 = vld [vmem:[%s13 + $0x344] sm:$0xf]
    %v3551 = vld [vmem:[%s13 + $0x348] sm:$0xf]
    %v3552 = vld [vmem:[%s13 + $0x34c] sm:$0xf]
    %v3553 = vld [vmem:[%s13 + $0x350] sm:$0xf]
    %v3554 = vld [vmem:[%s13 + $0x354] sm:$0xf]
    %v3555 = vld [vmem:[%s13 + $0x358] sm:$0xf]
    %v3556 = vld [vmem:[%s13 + $0x35c] sm:$0xf]
    %v3557 = vld [vmem:[%s13 + $0x360] sm:$0xf]
    %v3558 = vld [vmem:[%s13 + $0x364] sm:$0xf]
    %v3559 = vld [vmem:[%s13 + $0x368] sm:$0xf]
    %v3560 = vld [vmem:[%s13 + $0x36c] sm:$0xf]
    %v3561 = vld [vmem:[%s13 + $0x370] sm:$0xf]
    %v3562 = vld [vmem:[%s13 + $0x374] sm:$0xf]
    %v3563 = vld [vmem:[%s13 + $0x378] sm:$0xf]
    %v3564 = vld [vmem:[%s13 + $0x37c] sm:$0xf]
    %v3565 = vld [vmem:[%s13 + $0x380] sm:$0xf]
    %v3566 = vld [vmem:[%s13 + $0x384] sm:$0xf]
    %v3567 = vld [vmem:[%s13 + $0x388] sm:$0xf]
    %v3568 = vld [vmem:[%s13 + $0x38c] sm:$0xf]
    %v3569 = vld [vmem:[%s13 + $0x390] sm:$0xf]
    %v3570 = vld [vmem:[%s13 + $0x394] sm:$0xf]
    %v3571 = vld [vmem:[%s13 + $0x398] sm:$0xf]
    %v3572 = vld [vmem:[%s13 + $0x39c] sm:$0xf]
    %v3573 = vld [vmem:[%s13 + $0x3a0] sm:$0xf]
    %v3574 = vld [vmem:[%s13 + $0x3a4] sm:$0xf]
    %v3575 = vld [vmem:[%s13 + $0x3a8] sm:$0xf]
    %v3576 = vld [vmem:[%s13 + $0x3ac] sm:$0xf]
    %v3577 = vld [vmem:[%s13 + $0x3b0] sm:$0xf]
    %v3578 = vld [vmem:[%s13 + $0x3b4] sm:$0xf]
    %v3579 = vld [vmem:[%s13 + $0x3b8] sm:$0xf]
    %v3580 = vld [vmem:[%s13 + $0x3bc] sm:$0xf]
    %v3581 = vld [vmem:[%s13 + $0x3c0] sm:$0xf]
    %v3582 = vld [vmem:[%s13 + $0x3c4] sm:$0xf]
    %v3583 = vld [vmem:[%s13 + $0x3c8] sm:$0xf]
    %v3584 = vld [vmem:[%s13 + $0x3cc] sm:$0xf]
    %v3585 = vld [vmem:[%s13 + $0x3d0] sm:$0xf]
    %v3586 = vld [vmem:[%s13 + $0x3d4] sm:$0xf]
    %v3587 = vld [vmem:[%s13 + $0x3d8] sm:$0xf]
    %v3588 = vld [vmem:[%s13 + $0x3dc] sm:$0xf]
    %v3589 = vld [vmem:[%s13 + $0x3e0] sm:$0xf]
    %v3590 = vld [vmem:[%s13 + $0x3e4] sm:$0xf]
    %v3591 = vld [vmem:[%s13 + $0x3e8] sm:$0xf]
    %v3592 = vld [vmem:[%s13 + $0x3ec] sm:$0xf]
    %v3593 = vld [vmem:[%s13 + $0x3f0] sm:$0xf]
    %v3594 = vld [vmem:[%s13 + $0x3f4] sm:$0xf]
    %v3595 = vld [vmem:[%s13 + $0x3f8] sm:$0xf]
    %v3596 = vld [vmem:[%s13 + $0x3fc] sm:$0xf]
    %v3597 = vld [vmem:[%s14] sm:$0x1]
    %v3599 = vperm.slane %v3597, 0
    %v3857 = vunpack.c.l.b16 %v3341
    %v3858 = vunpack.c.l.b16 %v3342
    %v3859 = vunpack.c.l.b16 %v3343
    %v3860 = vunpack.c.l.b16 %v3344
    %v3861 = vunpack.c.l.b16 %v3345
    %v3862 = vunpack.c.l.b16 %v3346
    %v3863 = vunpack.c.l.b16 %v3347
    %v3864 = vunpack.c.l.b16 %v3348
    %v3865 = vunpack.c.l.b16 %v3349
    %v3866 = vunpack.c.l.b16 %v3350
    %v3867 = vunpack.c.l.b16 %v3351
    %v3868 = vunpack.c.l.b16 %v3352
    %v3869 = vunpack.c.l.b16 %v3353
    %v3870 = vunpack.c.l.b16 %v3354
    %v3871 = vunpack.c.l.b16 %v3355
    %v3872 = vunpack.c.l.b16 %v3356
    %v3873 = vunpack.c.l.b16 %v3357
    %v3874 = vunpack.c.l.b16 %v3358
    %v3875 = vunpack.c.l.b16 %v3359
    %v3876 = vunpack.c.l.b16 %v3360
    %v3877 = vunpack.c.l.b16 %v3361
    %v3878 = vunpack.c.l.b16 %v3362
    %v3879 = vunpack.c.l.b16 %v3363
    %v3880 = vunpack.c.l.b16 %v3364
    %v3881 = vunpack.c.l.b16 %v3365
    %v3882 = vunpack.c.l.b16 %v3366
    %v3883 = vunpack.c.l.b16 %v3367
    %v3884 = vunpack.c.l.b16 %v3368
    %v3885 = vunpack.c.l.b16 %v3369
    %v3886 = vunpack.c.l.b16 %v3370
    %v3887 = vunpack.c.l.b16 %v3371
    %v3888 = vunpack.c.l.b16 %v3372
    %v3889 = vunpack.c.l.b16 %v3373
    %v3890 = vunpack.c.l.b16 %v3374
    %v3891 = vunpack.c.l.b16 %v3375
    %v3892 = vunpack.c.l.b16 %v3376
    %v3893 = vunpack.c.l.b16 %v3377
    %v3894 = vunpack.c.l.b16 %v3378
    %v3895 = vunpack.c.l.b16 %v3379
    %v3896 = vunpack.c.l.b16 %v3380
    %v3897 = vunpack.c.l.b16 %v3381
    %v3898 = vunpack.c.l.b16 %v3382
    %v3899 = vunpack.c.l.b16 %v3383
    %v3900 = vunpack.c.l.b16 %v3384
    %v3901 = vunpack.c.l.b16 %v3385
    %v3902 = vunpack.c.l.b16 %v3386
    %v3903 = vunpack.c.l.b16 %v3387
    %v3904 = vunpack.c.l.b16 %v3388
    %v3905 = vunpack.c.l.b16 %v3389
    %v3906 = vunpack.c.l.b16 %v3390
    %v3907 = vunpack.c.l.b16 %v3391
    %v3908 = vunpack.c.l.b16 %v3392
    %v3909 = vunpack.c.l.b16 %v3393
    %v3910 = vunpack.c.l.b16 %v3394
    %v3911 = vunpack.c.l.b16 %v3395
    %v3912 = vunpack.c.l.b16 %v3396
    %v3913 = vunpack.c.l.b16 %v3397
    %v3914 = vunpack.c.l.b16 %v3398
    %v3915 = vunpack.c.l.b16 %v3399
    %v3916 = vunpack.c.l.b16 %v3400
    %v3917 = vunpack.c.l.b16 %v3401
    %v3918 = vunpack.c.l.b16 %v3402
    %v3919 = vunpack.c.l.b16 %v3403
    %v3920 = vunpack.c.l.b16 %v3404
    %v3921 = vunpack.c.l.b16 %v3405
    %v3922 = vunpack.c.l.b16 %v3406
    %v3923 = vunpack.c.l.b16 %v3407
    %v3924 = vunpack.c.l.b16 %v3408
    %v3925 = vunpack.c.l.b16 %v3409
    %v3926 = vunpack.c.l.b16 %v3410
    %v3927 = vunpack.c.l.b16 %v3411
    %v3928 = vunpack.c.l.b16 %v3412
    %v3929 = vunpack.c.l.b16 %v3413
    %v3930 = vunpack.c.l.b16 %v3414
    %v3931 = vunpack.c.l.b16 %v3415
    %v3932 = vunpack.c.l.b16 %v3416
    %v3933 = vunpack.c.l.b16 %v3417
    %v3934 = vunpack.c.l.b16 %v3418
    %v3935 = vunpack.c.l.b16 %v3419
    %v3936 = vunpack.c.l.b16 %v3420
    %v3937 = vunpack.c.l.b16 %v3421
    %v3938 = vunpack.c.l.b16 %v3422
    %v3939 = vunpack.c.l.b16 %v3423
    %v3940 = vunpack.c.l.b16 %v3424
    %v3941 = vunpack.c.l.b16 %v3425
    %v3942 = vunpack.c.l.b16 %v3426
    %v3943 = vunpack.c.l.b16 %v3427
    %v3944 = vunpack.c.l.b16 %v3428
    %v3945 = vunpack.c.l.b16 %v3429
    %v3946 = vunpack.c.l.b16 %v3430
    %v3947 = vunpack.c.l.b16 %v3431
    %v3948 = vunpack.c.l.b16 %v3432
    %v3949 = vunpack.c.l.b16 %v3433
    %v3950 = vunpack.c.l.b16 %v3434
    %v3951 = vunpack.c.l.b16 %v3435
    %v3952 = vunpack.c.l.b16 %v3436
    %v3953 = vunpack.c.l.b16 %v3437
    %v3954 = vunpack.c.l.b16 %v3438
    %v3955 = vunpack.c.l.b16 %v3439
    %v3956 = vunpack.c.l.b16 %v3440
    %v3957 = vunpack.c.l.b16 %v3441
    %v3958 = vunpack.c.l.b16 %v3442
    %v3959 = vunpack.c.l.b16 %v3443
    %v3960 = vunpack.c.l.b16 %v3444
    %v3961 = vunpack.c.l.b16 %v3445
    %v3962 = vunpack.c.l.b16 %v3446
    %v3963 = vunpack.c.l.b16 %v3447
    %v3964 = vunpack.c.l.b16 %v3448
    %v3965 = vunpack.c.l.b16 %v3449
    %v3966 = vunpack.c.l.b16 %v3450
    %v3967 = vunpack.c.l.b16 %v3451
    %v3968 = vunpack.c.l.b16 %v3452
    %v3969 = vunpack.c.l.b16 %v3453
    %v3970 = vunpack.c.l.b16 %v3454
    %v3971 = vunpack.c.l.b16 %v3455
    %v3972 = vunpack.c.l.b16 %v3456
    %v3973 = vunpack.c.l.b16 %v3457
    %v3974 = vunpack.c.l.b16 %v3458
    %v3975 = vunpack.c.l.b16 %v3459
    %v3976 = vunpack.c.l.b16 %v3460
    %v3977 = vunpack.c.l.b16 %v3461
    %v3978 = vunpack.c.l.b16 %v3462
    %v3979 = vunpack.c.l.b16 %v3463
    %v3980 = vunpack.c.l.b16 %v3464
    %v3981 = vunpack.c.l.b16 %v3465
    %v3982 = vunpack.c.l.b16 %v3466
    %v3983 = vunpack.c.l.b16 %v3467
    %v3984 = vunpack.c.l.b16 %v3468
    %v3985 = vunpack.c.l.b16 %v3469
    %v3986 = vunpack.c.l.b16 %v3470
    %v3987 = vunpack.c.l.b16 %v3471
    %v3988 = vunpack.c.l.b16 %v3472
    %v3989 = vunpack.c.l.b16 %v3473
    %v3990 = vunpack.c.l.b16 %v3474
    %v3991 = vunpack.c.l.b16 %v3475
    %v3992 = vunpack.c.l.b16 %v3476
    %v3993 = vunpack.c.l.b16 %v3477
    %v3994 = vunpack.c.l.b16 %v3478
    %v3995 = vunpack.c.l.b16 %v3479
    %v3996 = vunpack.c.l.b16 %v3480
    %v3997 = vunpack.c.l.b16 %v3481
    %v3998 = vunpack.c.l.b16 %v3482
    %v3999 = vunpack.c.l.b16 %v3483
    %v4000 = vunpack.c.l.b16 %v3484
    %v4001 = vunpack.c.l.b16 %v3485
    %v4002 = vunpack.c.l.b16 %v3486
    %v4003 = vunpack.c.l.b16 %v3487
    %v4004 = vunpack.c.l.b16 %v3488
    %v4005 = vunpack.c.l.b16 %v3489
    %v4006 = vunpack.c.l.b16 %v3490
    %v4007 = vunpack.c.l.b16 %v3491
    %v4008 = vunpack.c.l.b16 %v3492
    %v4009 = vunpack.c.l.b16 %v3493
    %v4010 = vunpack.c.l.b16 %v3494
    %v4011 = vunpack.c.l.b16 %v3495
    %v4012 = vunpack.c.l.b16 %v3496
    %v4013 = vunpack.c.l.b16 %v3497
    %v4014 = vunpack.c.l.b16 %v3498
    %v4015 = vunpack.c.l.b16 %v3499
    %v4016 = vunpack.c.l.b16 %v3500
    %v4017 = vunpack.c.l.b16 %v3501
    %v4018 = vunpack.c.l.b16 %v3502
    %v4019 = vunpack.c.l.b16 %v3503
    %v4020 = vunpack.c.l.b16 %v3504
    %v4021 = vunpack.c.l.b16 %v3505
    %v4022 = vunpack.c.l.b16 %v3506
    %v4023 = vunpack.c.l.b16 %v3507
    %v4024 = vunpack.c.l.b16 %v3508
    %v4025 = vunpack.c.l.b16 %v3509
    %v4026 = vunpack.c.l.b16 %v3510
    %v4027 = vunpack.c.l.b16 %v3511
    %v4028 = vunpack.c.l.b16 %v3512
    %v4029 = vunpack.c.l.b16 %v3513
    %v4030 = vunpack.c.l.b16 %v3514
    %v4031 = vunpack.c.l.b16 %v3515
    %v4032 = vunpack.c.l.b16 %v3516
    %v4033 = vunpack.c.l.b16 %v3517
    %v4034 = vunpack.c.l.b16 %v3518
    %v4035 = vunpack.c.l.b16 %v3519
    %v4036 = vunpack.c.l.b16 %v3520
    %v4037 = vunpack.c.l.b16 %v3521
    %v4038 = vunpack.c.l.b16 %v3522
    %v4039 = vunpack.c.l.b16 %v3523
    %v4040 = vunpack.c.l.b16 %v3524
    %v4041 = vunpack.c.l.b16 %v3525
    %v4042 = vunpack.c.l.b16 %v3526
    %v4043 = vunpack.c.l.b16 %v3527
    %v4044 = vunpack.c.l.b16 %v3528
    %v4045 = vunpack.c.l.b16 %v3529
    %v4046 = vunpack.c.l.b16 %v3530
    %v4047 = vunpack.c.l.b16 %v3531
    %v4048 = vunpack.c.l.b16 %v3532
    %v4049 = vunpack.c.l.b16 %v3533
    %v4050 = vunpack.c.l.b16 %v3534
    %v4051 = vunpack.c.l.b16 %v3535
    %v4052 = vunpack.c.l.b16 %v3536
    %v4053 = vunpack.c.l.b16 %v3537
    %v4054 = vunpack.c.l.b16 %v3538
    %v4055 = vunpack.c.l.b16 %v3539
    %v4056 = vunpack.c.l.b16 %v3540
    %v4057 = vunpack.c.l.b16 %v3541
    %v4058 = vunpack.c.l.b16 %v3542
    %v4059 = vunpack.c.l.b16 %v3543
    %v4060 = vunpack.c.l.b16 %v3544
    %v4061 = vunpack.c.l.b16 %v3545
    %v4062 = vunpack.c.l.b16 %v3546
    %v4063 = vunpack.c.l.b16 %v3547
    %v4064 = vunpack.c.l.b16 %v3548
    %v4065 = vunpack.c.l.b16 %v3549
    %v4066 = vunpack.c.l.b16 %v3550
    %v4067 = vunpack.c.l.b16 %v3551
    %v4068 = vunpack.c.l.b16 %v3552
    %v4069 = vunpack.c.l.b16 %v3553
    %v4070 = vunpack.c.l.b16 %v3554
    %v4071 = vunpack.c.l.b16 %v3555
    %v4072 = vunpack.c.l.b16 %v3556
    %v4073 = vunpack.c.l.b16 %v3557
    %v4074 = vunpack.c.l.b16 %v3558
    %v4075 = vunpack.c.l.b16 %v3559
    %v4076 = vunpack.c.l.b16 %v3560
    %v4077 = vunpack.c.l.b16 %v3561
    %v4078 = vunpack.c.l.b16 %v3562
    %v4079 = vunpack.c.l.b16 %v3563
    %v4080 = vunpack.c.l.b16 %v3564
    %v4081 = vunpack.c.l.b16 %v3565
    %v4082 = vunpack.c.l.b16 %v3566
    %v4083 = vunpack.c.l.b16 %v3567
    %v4084 = vunpack.c.l.b16 %v3568
    %v4085 = vunpack.c.l.b16 %v3569
    %v4086 = vunpack.c.l.b16 %v3570
    %v4087 = vunpack.c.l.b16 %v3571
    %v4088 = vunpack.c.l.b16 %v3572
    %v4089 = vunpack.c.l.b16 %v3573
    %v4090 = vunpack.c.l.b16 %v3574
    %v4091 = vunpack.c.l.b16 %v3575
    %v4092 = vunpack.c.l.b16 %v3576
    %v4093 = vunpack.c.l.b16 %v3577
    %v4094 = vunpack.c.l.b16 %v3578
    %v4095 = vunpack.c.l.b16 %v3579
    %v4096 = vunpack.c.l.b16 %v3580
    %v4097 = vunpack.c.l.b16 %v3581
    %v4098 = vunpack.c.l.b16 %v3582
    %v4099 = vunpack.c.l.b16 %v3583
    %v4100 = vunpack.c.l.b16 %v3584
    %v4101 = vunpack.c.l.b16 %v3585
    %v4102 = vunpack.c.l.b16 %v3586
    %v4103 = vunpack.c.l.b16 %v3587
    %v4104 = vunpack.c.l.b16 %v3588
    %v4105 = vunpack.c.l.b16 %v3589
    %v4106 = vunpack.c.l.b16 %v3590
    %v4107 = vunpack.c.l.b16 %v3591
    %v4108 = vunpack.c.l.b16 %v3592
    %v4109 = vunpack.c.l.b16 %v3593
    %v4110 = vunpack.c.l.b16 %v3594
    %v4111 = vunpack.c.l.b16 %v3595
    %v4112 = vunpack.c.l.b16 %v3596
    %v4113 = vpack.c.b16 %v3858, %v3857
    %v4114 = vpack.c.b16 %v3860, %v3859
    %v4115 = vpack.c.b16 %v3862, %v3861
    %v4116 = vpack.c.b16 %v3864, %v3863
    %v4117 = vpack.c.b16 %v3866, %v3865
    %v4118 = vpack.c.b16 %v3868, %v3867
    %v4119 = vpack.c.b16 %v3870, %v3869
    %v4120 = vpack.c.b16 %v3872, %v3871
    %v4121 = vpack.c.b16 %v3874, %v3873
    %v4122 = vpack.c.b16 %v3876, %v3875
    %v4123 = vpack.c.b16 %v3878, %v3877
    %v4124 = vpack.c.b16 %v3880, %v3879
    %v4125 = vpack.c.b16 %v3882, %v3881
    %v4126 = vpack.c.b16 %v3884, %v3883
    %v4127 = vpack.c.b16 %v3886, %v3885
    %v4128 = vpack.c.b16 %v3888, %v3887
    %v4129 = vpack.c.b16 %v3890, %v3889
    %v4130 = vpack.c.b16 %v3892, %v3891
    %v4131 = vpack.c.b16 %v3894, %v3893
    %v4132 = vpack.c.b16 %v3896, %v3895
    %v4133 = vpack.c.b16 %v3898, %v3897
    %v4134 = vpack.c.b16 %v3900, %v3899
    %v4135 = vpack.c.b16 %v3902, %v3901
    %v4136 = vpack.c.b16 %v3904, %v3903
    %v4137 = vpack.c.b16 %v3906, %v3905
    %v4138 = vpack.c.b16 %v3908, %v3907
    %v4139 = vpack.c.b16 %v3910, %v3909
    %v4140 = vpack.c.b16 %v3912, %v3911
    %v4141 = vpack.c.b16 %v3914, %v3913
    %v4142 = vpack.c.b16 %v3916, %v3915
    %v4143 = vpack.c.b16 %v3918, %v3917
    %v4144 = vpack.c.b16 %v3920, %v3919
    %v4145 = vpack.c.b16 %v3922, %v3921
    %v4146 = vpack.c.b16 %v3924, %v3923
    %v4147 = vpack.c.b16 %v3926, %v3925
    %v4148 = vpack.c.b16 %v3928, %v3927
    %v4149 = vpack.c.b16 %v3930, %v3929
    %v4150 = vpack.c.b16 %v3932, %v3931
    %v4151 = vpack.c.b16 %v3934, %v3933
    %v4152 = vpack.c.b16 %v3936, %v3935
    %v4153 = vpack.c.b16 %v3938, %v3937
    %v4154 = vpack.c.b16 %v3940, %v3939
    %v4155 = vpack.c.b16 %v3942, %v3941
    %v4156 = vpack.c.b16 %v3944, %v3943
    %v4157 = vpack.c.b16 %v3946, %v3945
    %v4158 = vpack.c.b16 %v3948, %v3947
    %v4159 = vpack.c.b16 %v3950, %v3949
    %v4160 = vpack.c.b16 %v3952, %v3951
    %v4161 = vpack.c.b16 %v3954, %v3953
    %v4162 = vpack.c.b16 %v3956, %v3955
    %v4163 = vpack.c.b16 %v3958, %v3957
    %v4164 = vpack.c.b16 %v3960, %v3959
    %v4165 = vpack.c.b16 %v3962, %v3961
    %v4166 = vpack.c.b16 %v3964, %v3963
    %v4167 = vpack.c.b16 %v3966, %v3965
    %v4168 = vpack.c.b16 %v3968, %v3967
    %v4169 = vpack.c.b16 %v3970, %v3969
    %v4170 = vpack.c.b16 %v3972, %v3971
    %v4171 = vpack.c.b16 %v3974, %v3973
    %v4172 = vpack.c.b16 %v3976, %v3975
    %v4173 = vpack.c.b16 %v3978, %v3977
    %v4174 = vpack.c.b16 %v3980, %v3979
    %v4175 = vpack.c.b16 %v3982, %v3981
    %v4176 = vpack.c.b16 %v3984, %v3983
    %v4177 = vpack.c.b16 %v3986, %v3985
    %v4178 = vpack.c.b16 %v3988, %v3987
    %v4179 = vpack.c.b16 %v3990, %v3989
    %v4180 = vpack.c.b16 %v3992, %v3991
    %v4181 = vpack.c.b16 %v3994, %v3993
    %v4182 = vpack.c.b16 %v3996, %v3995
    %v4183 = vpack.c.b16 %v3998, %v3997
    %v4184 = vpack.c.b16 %v4000, %v3999
    %v4185 = vpack.c.b16 %v4002, %v4001
    %v4186 = vpack.c.b16 %v4004, %v4003
    %v4187 = vpack.c.b16 %v4006, %v4005
    %v4188 = vpack.c.b16 %v4008, %v4007
    %v4189 = vpack.c.b16 %v4010, %v4009
    %v4190 = vpack.c.b16 %v4012, %v4011
    %v4191 = vpack.c.b16 %v4014, %v4013
    %v4192 = vpack.c.b16 %v4016, %v4015
    %v4193 = vpack.c.b16 %v4018, %v4017
    %v4194 = vpack.c.b16 %v4020, %v4019
    %v4195 = vpack.c.b16 %v4022, %v4021
    %v4196 = vpack.c.b16 %v4024, %v4023
    %v4197 = vpack.c.b16 %v4026, %v4025
    %v4198 = vpack.c.b16 %v4028, %v4027
    %v4199 = vpack.c.b16 %v4030, %v4029
    %v4200 = vpack.c.b16 %v4032, %v4031
    %v4201 = vpack.c.b16 %v4034, %v4033
    %v4202 = vpack.c.b16 %v4036, %v4035
    %v4203 = vpack.c.b16 %v4038, %v4037
    %v4204 = vpack.c.b16 %v4040, %v4039
    %v4205 = vpack.c.b16 %v4042, %v4041
    %v4206 = vpack.c.b16 %v4044, %v4043
    %v4207 = vpack.c.b16 %v4046, %v4045
    %v4208 = vpack.c.b16 %v4048, %v4047
    %v4209 = vpack.c.b16 %v4050, %v4049
    %v4210 = vpack.c.b16 %v4052, %v4051
    %v4211 = vpack.c.b16 %v4054, %v4053
    %v4212 = vpack.c.b16 %v4056, %v4055
    %v4213 = vpack.c.b16 %v4058, %v4057
    %v4214 = vpack.c.b16 %v4060, %v4059
    %v4215 = vpack.c.b16 %v4062, %v4061
    %v4216 = vpack.c.b16 %v4064, %v4063
    %v4217 = vpack.c.b16 %v4066, %v4065
    %v4218 = vpack.c.b16 %v4068, %v4067
    %v4219 = vpack.c.b16 %v4070, %v4069
    %v4220 = vpack.c.b16 %v4072, %v4071
    %v4221 = vpack.c.b16 %v4074, %v4073
    %v4222 = vpack.c.b16 %v4076, %v4075
    %v4223 = vpack.c.b16 %v4078, %v4077
    %v4224 = vpack.c.b16 %v4080, %v4079
    %v4225 = vpack.c.b16 %v4082, %v4081
    %v4226 = vpack.c.b16 %v4084, %v4083
    %v4227 = vpack.c.b16 %v4086, %v4085
    %v4228 = vpack.c.b16 %v4088, %v4087
    %v4229 = vpack.c.b16 %v4090, %v4089
    %v4230 = vpack.c.b16 %v4092, %v4091
    %v4231 = vpack.c.b16 %v4094, %v4093
    %v4232 = vpack.c.b16 %v4096, %v4095
    %v4233 = vpack.c.b16 %v4098, %v4097
    %v4234 = vpack.c.b16 %v4100, %v4099
    %v4235 = vpack.c.b16 %v4102, %v4101
    %v4236 = vpack.c.b16 %v4104, %v4103
    %v4237 = vpack.c.b16 %v4106, %v4105
    %v4238 = vpack.c.b16 %v4108, %v4107
    %v4239 = vpack.c.b16 %v4110, %v4109
    %v4240 = vpack.c.b16 %v4112, %v4111
    %4369 = vmatpush.bf16.msra.mxu0 %v4120
    %4370 = vmatpush.bf16.msra.mxu0 %v4119
    %4371 = vmatpush.bf16.msra.mxu0 %v4118
    %4372 = vmatpush.bf16.msra.mxu0 %v4117
    %4373 = vmatpush.bf16.msra.mxu0 %v4116
    %4374 = vmatpush.bf16.msra.mxu0 %v4115
    %4375 = vmatpush.bf16.msra.mxu0 %v4114
    %4376 = vmatpush.bf16.msra.mxu0 %v4113
    %4377 = vmatmul.bf16.gmra.mxu0 %v3277
    %v4378 = vpop.f32.mrf.mxu0
    %v4379 = vadd.f32 %v3599, %v4378
    %v4380 = vpop.f32.mrf.mxu0
    %v4381 = vadd.f32 %v3599, %v4380
    %4382 = vmatmul.bf16.gmra.mxu0 %v3293
    %v4383 = vpop.f32.mrf.mxu0
    %v4384 = vadd.f32 %v3599, %v4383
    %v4385 = vpop.f32.mrf.mxu0
    %v4386 = vadd.f32 %v3599, %v4385
    %4387 = vmatmul.bf16.gmra.mxu0 %v3309
    %v4388 = vpop.f32.mrf.mxu0
    %v4389 = vadd.f32 %v3599, %v4388
    %v4390 = vpop.f32.mrf.mxu0
    %v4391 = vadd.f32 %v3599, %v4390
    %4392 = vmatmul.bf16.gmra.mxu0 %v3325
    %v4393 = vpop.f32.mrf.mxu0
    %v4394 = vadd.f32 %v3599, %v4393
    %v4395 = vpop.f32.mrf.mxu0
    %v4396 = vadd.f32 %v3599, %v4395
    %4397 = vdwg.mxu0
    %4398 = vmatpush.bf16.msra.mxu0 %v4128
    %4399 = vmatpush.bf16.msra.mxu0 %v4127
    %4400 = vmatpush.bf16.msra.mxu0 %v4126
    %4401 = vmatpush.bf16.msra.mxu0 %v4125
    %4402 = vmatpush.bf16.msra.mxu0 %v4124
    %4403 = vmatpush.bf16.msra.mxu0 %v4123
    %4404 = vmatpush.bf16.msra.mxu0 %v4122
    %4405 = vmatpush.bf16.msra.mxu0 %v4121
    %4406 = vmatmul.bf16.gmra.mxu0 %v3278
    %v4407 = vpop.f32.mrf.mxu0
    %v4408 = vadd.f32 %v4379, %v4407
    %v4409 = vpop.f32.mrf.mxu0
    %v4410 = vadd.f32 %v4381, %v4409
    %4411 = vmatmul.bf16.gmra.mxu0 %v3294
    %v4412 = vpop.f32.mrf.mxu0
    %v4413 = vadd.f32 %v4384, %v4412
    %v4414 = vpop.f32.mrf.mxu0
    %v4415 = vadd.f32 %v4386, %v4414
    %4416 = vmatmul.bf16.gmra.mxu0 %v3310
    %v4417 = vpop.f32.mrf.mxu0
    %v4418 = vadd.f32 %v4389, %v4417
    %v4419 = vpop.f32.mrf.mxu0
    %v4420 = vadd.f32 %v4391, %v4419
    %4421 = vmatmul.bf16.gmra.mxu0 %v3326
    %v4422 = vpop.f32.mrf.mxu0
    %v4423 = vadd.f32 %v4394, %v4422
    %v4424 = vpop.f32.mrf.mxu0
    %v4425 = vadd.f32 %v4396, %v4424
    %4426 = vdwg.mxu0
    %4427 = vmatpush.bf16.msra.mxu0 %v4136
    %4428 = vmatpush.bf16.msra.mxu0 %v4135
    %4429 = vmatpush.bf16.msra.mxu0 %v4134
    %4430 = vmatpush.bf16.msra.mxu0 %v4133
    %4431 = vmatpush.bf16.msra.mxu0 %v4132
    %4432 = vmatpush.bf16.msra.mxu0 %v4131
    %4433 = vmatpush.bf16.msra.mxu0 %v4130
    %4434 = vmatpush.bf16.msra.mxu0 %v4129
    %4435 = vmatmul.bf16.gmra.mxu0 %v3279
    %v4436 = vpop.f32.mrf.mxu0
    %v4437 = vadd.f32 %v4408, %v4436
    %v4438 = vpop.f32.mrf.mxu0
    %v4439 = vadd.f32 %v4410, %v4438
    %4440 = vmatmul.bf16.gmra.mxu0 %v3295
    %v4441 = vpop.f32.mrf.mxu0
    %v4442 = vadd.f32 %v4413, %v4441
    %v4443 = vpop.f32.mrf.mxu0
    %v4444 = vadd.f32 %v4415, %v4443
    %4445 = vmatmul.bf16.gmra.mxu0 %v3311
    %v4446 = vpop.f32.mrf.mxu0
    %v4447 = vadd.f32 %v4418, %v4446
    %v4448 = vpop.f32.mrf.mxu0
    %v4449 = vadd.f32 %v4420, %v4448
    %4450 = vmatmul.bf16.gmra.mxu0 %v3327
    %v4451 = vpop.f32.mrf.mxu0
    %v4452 = vadd.f32 %v4423, %v4451
    %v4453 = vpop.f32.mrf.mxu0
    %v4454 = vadd.f32 %v4425, %v4453
    %4455 = vdwg.mxu0
    %4456 = vmatpush.bf16.msra.mxu0 %v4144
    %4457 = vmatpush.bf16.msra.mxu0 %v4143
    %4458 = vmatpush.bf16.msra.mxu0 %v4142
    %4459 = vmatpush.bf16.msra.mxu0 %v4141
    %4460 = vmatpush.bf16.msra.mxu0 %v4140
    %4461 = vmatpush.bf16.msra.mxu0 %v4139
    %4462 = vmatpush.bf16.msra.mxu0 %v4138
    %4463 = vmatpush.bf16.msra.mxu0 %v4137
    %4464 = vmatmul.bf16.gmra.mxu0 %v3280
    %v4465 = vpop.f32.mrf.mxu0
    %v4466 = vadd.f32 %v4437, %v4465
    %v4467 = vpop.f32.mrf.mxu0
    %v4468 = vadd.f32 %v4439, %v4467
    %4469 = vmatmul.bf16.gmra.mxu0 %v3296
    %v4470 = vpop.f32.mrf.mxu0
    %v4471 = vadd.f32 %v4442, %v4470
    %v4472 = vpop.f32.mrf.mxu0
    %v4473 = vadd.f32 %v4444, %v4472
    %4474 = vmatmul.bf16.gmra.mxu0 %v3312
    %v4475 = vpop.f32.mrf.mxu0
    %v4476 = vadd.f32 %v4447, %v4475
    %v4477 = vpop.f32.mrf.mxu0
    %v4478 = vadd.f32 %v4449, %v4477
    %4479 = vmatmul.bf16.gmra.mxu0 %v3328
    %v4480 = vpop.f32.mrf.mxu0
    %v4481 = vadd.f32 %v4452, %v4480
    %v4482 = vpop.f32.mrf.mxu0
    %v4483 = vadd.f32 %v4454, %v4482
    %4484 = vdwg.mxu0
    %4485 = vmatpush.bf16.msra.mxu0 %v4152
    %4486 = vmatpush.bf16.msra.mxu0 %v4151
    %4487 = vmatpush.bf16.msra.mxu0 %v4150
    %4488 = vmatpush.bf16.msra.mxu0 %v4149
    %4489 = vmatpush.bf16.msra.mxu0 %v4148
    %4490 = vmatpush.bf16.msra.mxu0 %v4147
    %4491 = vmatpush.bf16.msra.mxu0 %v4146
    %4492 = vmatpush.bf16.msra.mxu0 %v4145
    %4493 = vmatmul.bf16.gmra.mxu0 %v3281
    %v4494 = vpop.f32.mrf.mxu0
    %v4495 = vadd.f32 %v4466, %v4494
    %v4496 = vpop.f32.mrf.mxu0
    %v4497 = vadd.f32 %v4468, %v4496
    %4498 = vmatmul.bf16.gmra.mxu0 %v3297
    %v4499 = vpop.f32.mrf.mxu0
    %v4500 = vadd.f32 %v4471, %v4499
    %v4501 = vpop.f32.mrf.mxu0
    %v4502 = vadd.f32 %v4473, %v4501
    %4503 = vmatmul.bf16.gmra.mxu0 %v3313
    %v4504 = vpop.f32.mrf.mxu0
    %v4505 = vadd.f32 %v4476, %v4504
    %v4506 = vpop.f32.mrf.mxu0
    %v4507 = vadd.f32 %v4478, %v4506
    %4508 = vmatmul.bf16.gmra.mxu0 %v3329
    %v4509 = vpop.f32.mrf.mxu0
    %v4510 = vadd.f32 %v4481, %v4509
    %v4511 = vpop.f32.mrf.mxu0
    %v4512 = vadd.f32 %v4483, %v4511
    %4513 = vdwg.mxu0
    %4514 = vmatpush.bf16.msra.mxu0 %v4160
    %4515 = vmatpush.bf16.msra.mxu0 %v4159
    %4516 = vmatpush.bf16.msra.mxu0 %v4158
    %4517 = vmatpush.bf16.msra.mxu0 %v4157
    %4518 = vmatpush.bf16.msra.mxu0 %v4156
    %4519 = vmatpush.bf16.msra.mxu0 %v4155
    %4520 = vmatpush.bf16.msra.mxu0 %v4154
    %4521 = vmatpush.bf16.msra.mxu0 %v4153
    %4522 = vmatmul.bf16.gmra.mxu0 %v3282
    %v4523 = vpop.f32.mrf.mxu0
    %v4524 = vadd.f32 %v4495, %v4523
    %v4525 = vpop.f32.mrf.mxu0
    %v4526 = vadd.f32 %v4497, %v4525
    %4527 = vmatmul.bf16.gmra.mxu0 %v3298
    %v4528 = vpop.f32.mrf.mxu0
    %v4529 = vadd.f32 %v4500, %v4528
    %v4530 = vpop.f32.mrf.mxu0
    %v4531 = vadd.f32 %v4502, %v4530
    %4532 = vmatmul.bf16.gmra.mxu0 %v3314
    %v4533 = vpop.f32.mrf.mxu0
    %v4534 = vadd.f32 %v4505, %v4533
    %v4535 = vpop.f32.mrf.mxu0
    %v4536 = vadd.f32 %v4507, %v4535
    %4537 = vmatmul.bf16.gmra.mxu0 %v3330
    %v4538 = vpop.f32.mrf.mxu0
    %v4539 = vadd.f32 %v4510, %v4538
    %v4540 = vpop.f32.mrf.mxu0
    %v4541 = vadd.f32 %v4512, %v4540
    %4542 = vdwg.mxu0
    %4543 = vmatpush.bf16.msra.mxu0 %v4168
    %4544 = vmatpush.bf16.msra.mxu0 %v4167
    %4545 = vmatpush.bf16.msra.mxu0 %v4166
    %4546 = vmatpush.bf16.msra.mxu0 %v4165
    %4547 = vmatpush.bf16.msra.mxu0 %v4164
    %4548 = vmatpush.bf16.msra.mxu0 %v4163
    %4549 = vmatpush.bf16.msra.mxu0 %v4162
    %4550 = vmatpush.bf16.msra.mxu0 %v4161
    %4551 = vmatmul.bf16.gmra.mxu0 %v3283
    %v4552 = vpop.f32.mrf.mxu0
    %v4553 = vadd.f32 %v4524, %v4552
    %v4554 = vpop.f32.mrf.mxu0
    %v4555 = vadd.f32 %v4526, %v4554
    %4556 = vmatmul.bf16.gmra.mxu0 %v3299
    %v4557 = vpop.f32.mrf.mxu0
    %v4558 = vadd.f32 %v4529, %v4557
    %v4559 = vpop.f32.mrf.mxu0
    %v4560 = vadd.f32 %v4531, %v4559
    %4561 = vmatmul.bf16.gmra.mxu0 %v3315
    %v4562 = vpop.f32.mrf.mxu0
    %v4563 = vadd.f32 %v4534, %v4562
    %v4564 = vpop.f32.mrf.mxu0
    %v4565 = vadd.f32 %v4536, %v4564
    %4566 = vmatmul.bf16.gmra.mxu0 %v3331
    %v4567 = vpop.f32.mrf.mxu0
    %v4568 = vadd.f32 %v4539, %v4567
    %v4569 = vpop.f32.mrf.mxu0
    %v4570 = vadd.f32 %v4541, %v4569
    %4571 = vdwg.mxu0
    %4572 = vmatpush.bf16.msra.mxu0 %v4176
    %4573 = vmatpush.bf16.msra.mxu0 %v4175
    %4574 = vmatpush.bf16.msra.mxu0 %v4174
    %4575 = vmatpush.bf16.msra.mxu0 %v4173
    %4576 = vmatpush.bf16.msra.mxu0 %v4172
    %4577 = vmatpush.bf16.msra.mxu0 %v4171
    %4578 = vmatpush.bf16.msra.mxu0 %v4170
    %4579 = vmatpush.bf16.msra.mxu0 %v4169
    %4580 = vmatmul.bf16.gmra.mxu0 %v3284
    %v4581 = vpop.f32.mrf.mxu0
    %v4582 = vadd.f32 %v4553, %v4581
    %v4583 = vpop.f32.mrf.mxu0
    %v4584 = vadd.f32 %v4555, %v4583
    %4585 = vmatmul.bf16.gmra.mxu0 %v3300
    %v4586 = vpop.f32.mrf.mxu0
    %v4587 = vadd.f32 %v4558, %v4586
    %v4588 = vpop.f32.mrf.mxu0
    %v4589 = vadd.f32 %v4560, %v4588
    %4590 = vmatmul.bf16.gmra.mxu0 %v3316
    %v4591 = vpop.f32.mrf.mxu0
    %v4592 = vadd.f32 %v4563, %v4591
    %v4593 = vpop.f32.mrf.mxu0
    %v4594 = vadd.f32 %v4565, %v4593
    %4595 = vmatmul.bf16.gmra.mxu0 %v3332
    %v4596 = vpop.f32.mrf.mxu0
    %v4597 = vadd.f32 %v4568, %v4596
    %v4598 = vpop.f32.mrf.mxu0
    %v4599 = vadd.f32 %v4570, %v4598
    %4600 = vdwg.mxu0
    %4601 = vmatpush.bf16.msra.mxu0 %v4184
    %4602 = vmatpush.bf16.msra.mxu0 %v4183
    %4603 = vmatpush.bf16.msra.mxu0 %v4182
    %4604 = vmatpush.bf16.msra.mxu0 %v4181
    %4605 = vmatpush.bf16.msra.mxu0 %v4180
    %4606 = vmatpush.bf16.msra.mxu0 %v4179
    %4607 = vmatpush.bf16.msra.mxu0 %v4178
    %4608 = vmatpush.bf16.msra.mxu0 %v4177
    %4609 = vmatmul.bf16.gmra.mxu0 %v3285
    %v4610 = vpop.f32.mrf.mxu0
    %v4611 = vadd.f32 %v4582, %v4610
    %v4612 = vpop.f32.mrf.mxu0
    %v4613 = vadd.f32 %v4584, %v4612
    %4614 = vmatmul.bf16.gmra.mxu0 %v3301
    %v4615 = vpop.f32.mrf.mxu0
    %v4616 = vadd.f32 %v4587, %v4615
    %v4617 = vpop.f32.mrf.mxu0
    %v4618 = vadd.f32 %v4589, %v4617
    %4619 = vmatmul.bf16.gmra.mxu0 %v3317
    %v4620 = vpop.f32.mrf.mxu0
    %v4621 = vadd.f32 %v4592, %v4620
    %v4622 = vpop.f32.mrf.mxu0
    %v4623 = vadd.f32 %v4594, %v4622
    %4624 = vmatmul.bf16.gmra.mxu0 %v3333
    %v4625 = vpop.f32.mrf.mxu0
    %v4626 = vadd.f32 %v4597, %v4625
    %v4627 = vpop.f32.mrf.mxu0
    %v4628 = vadd.f32 %v4599, %v4627
    %4629 = vdwg.mxu0
    %4630 = vmatpush.bf16.msra.mxu0 %v4192
    %4631 = vmatpush.bf16.msra.mxu0 %v4191
    %4632 = vmatpush.bf16.msra.mxu0 %v4190
    %4633 = vmatpush.bf16.msra.mxu0 %v4189
    %4634 = vmatpush.bf16.msra.mxu0 %v4188
    %4635 = vmatpush.bf16.msra.mxu0 %v4187
    %4636 = vmatpush.bf16.msra.mxu0 %v4186
    %4637 = vmatpush.bf16.msra.mxu0 %v4185
    %4638 = vmatmul.bf16.gmra.mxu0 %v3286
    %v4639 = vpop.f32.mrf.mxu0
    %v4640 = vadd.f32 %v4611, %v4639
    %v4641 = vpop.f32.mrf.mxu0
    %v4642 = vadd.f32 %v4613, %v4641
    %4643 = vmatmul.bf16.gmra.mxu0 %v3302
    %v4644 = vpop.f32.mrf.mxu0
    %v4645 = vadd.f32 %v4616, %v4644
    %v4646 = vpop.f32.mrf.mxu0
    %v4647 = vadd.f32 %v4618, %v4646
    %4648 = vmatmul.bf16.gmra.mxu0 %v3318
    %v4649 = vpop.f32.mrf.mxu0
    %v4650 = vadd.f32 %v4621, %v4649
    %v4651 = vpop.f32.mrf.mxu0
    %v4652 = vadd.f32 %v4623, %v4651
    %4653 = vmatmul.bf16.gmra.mxu0 %v3334
    %v4654 = vpop.f32.mrf.mxu0
    %v4655 = vadd.f32 %v4626, %v4654
    %v4656 = vpop.f32.mrf.mxu0
    %v4657 = vadd.f32 %v4628, %v4656
    %4658 = vdwg.mxu0
    %4659 = vmatpush.bf16.msra.mxu0 %v4200
    %4660 = vmatpush.bf16.msra.mxu0 %v4199
    %4661 = vmatpush.bf16.msra.mxu0 %v4198
    %4662 = vmatpush.bf16.msra.mxu0 %v4197
    %4663 = vmatpush.bf16.msra.mxu0 %v4196
    %4664 = vmatpush.bf16.msra.mxu0 %v4195
    %4665 = vmatpush.bf16.msra.mxu0 %v4194
    %4666 = vmatpush.bf16.msra.mxu0 %v4193
    %4667 = vmatmul.bf16.gmra.mxu0 %v3287
    %v4668 = vpop.f32.mrf.mxu0
    %v4669 = vadd.f32 %v4640, %v4668
    %v4670 = vpop.f32.mrf.mxu0
    %v4671 = vadd.f32 %v4642, %v4670
    %4672 = vmatmul.bf16.gmra.mxu0 %v3303
    %v4673 = vpop.f32.mrf.mxu0
    %v4674 = vadd.f32 %v4645, %v4673
    %v4675 = vpop.f32.mrf.mxu0
    %v4676 = vadd.f32 %v4647, %v4675
    %4677 = vmatmul.bf16.gmra.mxu0 %v3319
    %v4678 = vpop.f32.mrf.mxu0
    %v4679 = vadd.f32 %v4650, %v4678
    %v4680 = vpop.f32.mrf.mxu0
    %v4681 = vadd.f32 %v4652, %v4680
    %4682 = vmatmul.bf16.gmra.mxu0 %v3335
    %v4683 = vpop.f32.mrf.mxu0
    %v4684 = vadd.f32 %v4655, %v4683
    %v4685 = vpop.f32.mrf.mxu0
    %v4686 = vadd.f32 %v4657, %v4685
    %4687 = vdwg.mxu0
    %4688 = vmatpush.bf16.msra.mxu0 %v4208
    %4689 = vmatpush.bf16.msra.mxu0 %v4207
    %4690 = vmatpush.bf16.msra.mxu0 %v4206
    %4691 = vmatpush.bf16.msra.mxu0 %v4205
    %4692 = vmatpush.bf16.msra.mxu0 %v4204
    %4693 = vmatpush.bf16.msra.mxu0 %v4203
    %4694 = vmatpush.bf16.msra.mxu0 %v4202
    %4695 = vmatpush.bf16.msra.mxu0 %v4201
    %4696 = vmatmul.bf16.gmra.mxu0 %v3288
    %v4697 = vpop.f32.mrf.mxu0
    %v4698 = vadd.f32 %v4669, %v4697
    %v4699 = vpop.f32.mrf.mxu0
    %v4700 = vadd.f32 %v4671, %v4699
    %4701 = vmatmul.bf16.gmra.mxu0 %v3304
    %v4702 = vpop.f32.mrf.mxu0
    %v4703 = vadd.f32 %v4674, %v4702
    %v4704 = vpop.f32.mrf.mxu0
    %v4705 = vadd.f32 %v4676, %v4704
    %4706 = vmatmul.bf16.gmra.mxu0 %v3320
    %v4707 = vpop.f32.mrf.mxu0
    %v4708 = vadd.f32 %v4679, %v4707
    %v4709 = vpop.f32.mrf.mxu0
    %v4710 = vadd.f32 %v4681, %v4709
    %4711 = vmatmul.bf16.gmra.mxu0 %v3336
    %v4712 = vpop.f32.mrf.mxu0
    %v4713 = vadd.f32 %v4684, %v4712
    %v4714 = vpop.f32.mrf.mxu0
    %v4715 = vadd.f32 %v4686, %v4714
    %4716 = vdwg.mxu0
    %4717 = vmatpush.bf16.msra.mxu0 %v4216
    %4718 = vmatpush.bf16.msra.mxu0 %v4215
    %4719 = vmatpush.bf16.msra.mxu0 %v4214
    %4720 = vmatpush.bf16.msra.mxu0 %v4213
    %4721 = vmatpush.bf16.msra.mxu0 %v4212
    %4722 = vmatpush.bf16.msra.mxu0 %v4211
    %4723 = vmatpush.bf16.msra.mxu0 %v4210
    %4724 = vmatpush.bf16.msra.mxu0 %v4209
    %4725 = vmatmul.bf16.gmra.mxu0 %v3289
    %v4726 = vpop.f32.mrf.mxu0
    %v4727 = vadd.f32 %v4698, %v4726
    %v4728 = vpop.f32.mrf.mxu0
    %v4729 = vadd.f32 %v4700, %v4728
    %4730 = vmatmul.bf16.gmra.mxu0 %v3305
    %v4731 = vpop.f32.mrf.mxu0
    %v4732 = vadd.f32 %v4703, %v4731
    %v4733 = vpop.f32.mrf.mxu0
    %v4734 = vadd.f32 %v4705, %v4733
    %4735 = vmatmul.bf16.gmra.mxu0 %v3321
    %v4736 = vpop.f32.mrf.mxu0
    %v4737 = vadd.f32 %v4708, %v4736
    %v4738 = vpop.f32.mrf.mxu0
    %v4739 = vadd.f32 %v4710, %v4738
    %4740 = vmatmul.bf16.gmra.mxu0 %v3337
    %v4741 = vpop.f32.mrf.mxu0
    %v4742 = vadd.f32 %v4713, %v4741
    %v4743 = vpop.f32.mrf.mxu0
    %v4744 = vadd.f32 %v4715, %v4743
    %4745 = vdwg.mxu0
    %4746 = vmatpush.bf16.msra.mxu0 %v4224
    %4747 = vmatpush.bf16.msra.mxu0 %v4223
    %4748 = vmatpush.bf16.msra.mxu0 %v4222
    %4749 = vmatpush.bf16.msra.mxu0 %v4221
    %4750 = vmatpush.bf16.msra.mxu0 %v4220
    %4751 = vmatpush.bf16.msra.mxu0 %v4219
    %4752 = vmatpush.bf16.msra.mxu0 %v4218
    %4753 = vmatpush.bf16.msra.mxu0 %v4217
    %4754 = vmatmul.bf16.gmra.mxu0 %v3290
    %v4755 = vpop.f32.mrf.mxu0
    %v4756 = vadd.f32 %v4727, %v4755
    %v4757 = vpop.f32.mrf.mxu0
    %v4758 = vadd.f32 %v4729, %v4757
    %4759 = vmatmul.bf16.gmra.mxu0 %v3306
    %v4760 = vpop.f32.mrf.mxu0
    %v4761 = vadd.f32 %v4732, %v4760
    %v4762 = vpop.f32.mrf.mxu0
    %v4763 = vadd.f32 %v4734, %v4762
    %4764 = vmatmul.bf16.gmra.mxu0 %v3322
    %v4765 = vpop.f32.mrf.mxu0
    %v4766 = vadd.f32 %v4737, %v4765
    %v4767 = vpop.f32.mrf.mxu0
    %v4768 = vadd.f32 %v4739, %v4767
    %4769 = vmatmul.bf16.gmra.mxu0 %v3338
    %v4770 = vpop.f32.mrf.mxu0
    %v4771 = vadd.f32 %v4742, %v4770
    %v4772 = vpop.f32.mrf.mxu0
    %v4773 = vadd.f32 %v4744, %v4772
    %4774 = vdwg.mxu0
    %4775 = vmatpush.bf16.msra.mxu0 %v4232
    %4776 = vmatpush.bf16.msra.mxu0 %v4231
    %4777 = vmatpush.bf16.msra.mxu0 %v4230
    %4778 = vmatpush.bf16.msra.mxu0 %v4229
    %4779 = vmatpush.bf16.msra.mxu0 %v4228
    %4780 = vmatpush.bf16.msra.mxu0 %v4227
    %4781 = vmatpush.bf16.msra.mxu0 %v4226
    %4782 = vmatpush.bf16.msra.mxu0 %v4225
    %4783 = vmatmul.bf16.gmra.mxu0 %v3291
    %v4784 = vpop.f32.mrf.mxu0
    %v4785 = vadd.f32 %v4756, %v4784
    %v4786 = vpop.f32.mrf.mxu0
    %v4787 = vadd.f32 %v4758, %v4786
    %4788 = vmatmul.bf16.gmra.mxu0 %v3307
    %v4789 = vpop.f32.mrf.mxu0
    %v4790 = vadd.f32 %v4761, %v4789
    %v4791 = vpop.f32.mrf.mxu0
    %v4792 = vadd.f32 %v4763, %v4791
    %4793 = vmatmul.bf16.gmra.mxu0 %v3323
    %v4794 = vpop.f32.mrf.mxu0
    %v4795 = vadd.f32 %v4766, %v4794
    %v4796 = vpop.f32.mrf.mxu0
    %v4797 = vadd.f32 %v4768, %v4796
    %4798 = vmatmul.bf16.gmra.mxu0 %v3339
    %v4799 = vpop.f32.mrf.mxu0
    %v4800 = vadd.f32 %v4771, %v4799
    %v4801 = vpop.f32.mrf.mxu0
    %v4802 = vadd.f32 %v4773, %v4801
    %4803 = vdwg.mxu0
    %4804 = vmatpush.bf16.msra.mxu0 %v4240
    %4805 = vmatpush.bf16.msra.mxu0 %v4239
    %4806 = vmatpush.bf16.msra.mxu0 %v4238
    %4807 = vmatpush.bf16.msra.mxu0 %v4237
    %4808 = vmatpush.bf16.msra.mxu0 %v4236
    %4809 = vmatpush.bf16.msra.mxu0 %v4235
    %4810 = vmatpush.bf16.msra.mxu0 %v4234
    %4811 = vmatpush.bf16.msra.mxu0 %v4233
    %4812 = vmatmul.bf16.gmra.mxu0 %v3292
    %v4813 = vpop.f32.mrf.mxu0
    %v4814 = vadd.f32 %v4785, %v4813
    %v4815 = vpop.f32.mrf.mxu0
    %v4816 = vadd.f32 %v4787, %v4815
    %4817 = vmatmul.bf16.gmra.mxu0 %v3308
    %v4818 = vpop.f32.mrf.mxu0
    %v4819 = vadd.f32 %v4790, %v4818
    %v4820 = vpop.f32.mrf.mxu0
    %v4821 = vadd.f32 %v4792, %v4820
    %4822 = vmatmul.bf16.gmra.mxu0 %v3324
    %v4823 = vpop.f32.mrf.mxu0
    %v4824 = vadd.f32 %v4795, %v4823
    %v4825 = vpop.f32.mrf.mxu0
    %v4826 = vadd.f32 %v4797, %v4825
    %4827 = vmatmul.bf16.gmra.mxu0 %v3340
    %v4828 = vpop.f32.mrf.mxu0
    %v4829 = vadd.f32 %v4800, %v4828
    %v4830 = vpop.f32.mrf.mxu0
    %v4831 = vadd.f32 %v4802, %v4830
    %4832 = vdwg.mxu0
    %v4833 = vadd.f32 %v2433, %v4814
    %v4834 = vadd.f32 %v2434, %v4816
    %v4835 = vadd.f32 %v2435, %v4819
    %v4836 = vadd.f32 %v2436, %v4821
    %v4837 = vadd.f32 %v2437, %v4824
    %v4838 = vadd.f32 %v2438, %v4826
    %v4839 = vadd.f32 %v2439, %v4829
    %v4840 = vadd.f32 %v2440, %v4831
    %v4841 = vld [vmem:[%s9] sm:$0x1]
    %v4842 = vld [vmem:[%s10] sm:$0x1]
    %v4843 = vsel %vm141, %v4833, 0.0
    %4844 = vadd.xlane.f32.xlu0 %v4843
    %v4845 = vpop.xlane.xlu0 %4844
    %v4846 = vsel %vm141, %v4834, 0.0
    %4847 = vadd.xlane.f32.xlu0 %v4846
    %v4848 = vpop.xlane.xlu0 %4847
    %v4849 = vsel %vm141, %v4835, 0.0
    %4850 = vadd.xlane.f32.xlu0 %v4849
    %v4851 = vpop.xlane.xlu0 %4850
    %v4852 = vsel %vm141, %v4836, 0.0
    %4853 = vadd.xlane.f32.xlu0 %v4852
    %v4854 = vpop.xlane.xlu0 %4853
    %v4855 = vsel %vm141, %v4837, 0.0
    %4856 = vadd.xlane.f32.xlu0 %v4855
    %v4857 = vpop.xlane.xlu0 %4856
    %v4858 = vsel %vm141, %v4838, 0.0
    %4859 = vadd.xlane.f32.xlu0 %v4858
    %v4860 = vpop.xlane.xlu0 %4859
    %v4861 = vsel %vm141, %v4839, 0.0
    %4862 = vadd.xlane.f32.xlu0 %v4861
    %v4863 = vpop.xlane.xlu0 %4862
    %v4864 = vsel %vm141, %v4840, 0.0
    %4865 = vadd.xlane.f32.xlu0 %v4864
    %v4866 = vpop.xlane.xlu0 %4865
    %v4867 = vmul.f32 %v4845, %v2266
    %v4868 = vmul.f32 %v4848, %v2266
    %v4869 = vmul.f32 %v4851, %v2266
    %v4870 = vmul.f32 %v4854, %v2266
    %v4871 = vmul.f32 %v4857, %v2266
    %v4872 = vmul.f32 %v4860, %v2266
    %v4873 = vmul.f32 %v4863, %v2266
    %v4874 = vmul.f32 %v4866, %v2266
    %v4875 = vsub.f32 %v4833, %v4867
    %v4876 = vsub.f32 %v4834, %v4868
    %v4877 = vsub.f32 %v4835, %v4869
    %v4878 = vsub.f32 %v4836, %v4870
    %v4879 = vsub.f32 %v4837, %v4871
    %v4880 = vsub.f32 %v4838, %v4872
    %v4881 = vsub.f32 %v4839, %v4873
    %v4882 = vsub.f32 %v4840, %v4874
    %v4883 = vmul.f32 %v4875, %v4875
    %v4884 = vmul.f32 %v4876, %v4876
    %v4885 = vmul.f32 %v4877, %v4877
    %v4886 = vmul.f32 %v4878, %v4878
    %v4887 = vmul.f32 %v4879, %v4879
    %v4888 = vmul.f32 %v4880, %v4880
    %v4889 = vmul.f32 %v4881, %v4881
    %v4890 = vmul.f32 %v4882, %v4882
    %v4891 = vsel %vm141, %v4883, 0.0
    %4892 = vadd.xlane.f32.xlu0 %v4891
    %v4893 = vpop.xlane.xlu0 %4892
    %v4894 = vsel %vm141, %v4884, 0.0
    %4895 = vadd.xlane.f32.xlu0 %v4894
    %v4896 = vpop.xlane.xlu0 %4895
    %v4897 = vsel %vm141, %v4885, 0.0
    %4898 = vadd.xlane.f32.xlu0 %v4897
    %v4899 = vpop.xlane.xlu0 %4898
    %v4900 = vsel %vm141, %v4886, 0.0
    %4901 = vadd.xlane.f32.xlu0 %v4900
    %v4902 = vpop.xlane.xlu0 %4901
    %v4903 = vsel %vm141, %v4887, 0.0
    %4904 = vadd.xlane.f32.xlu0 %v4903
    %v4905 = vpop.xlane.xlu0 %4904
    %v4906 = vsel %vm141, %v4888, 0.0
    %4907 = vadd.xlane.f32.xlu0 %v4906
    %v4908 = vpop.xlane.xlu0 %4907
    %v4909 = vsel %vm141, %v4889, 0.0
    %4910 = vadd.xlane.f32.xlu0 %v4909
    %v4911 = vpop.xlane.xlu0 %4910
    %v4912 = vsel %vm141, %v4890, 0.0
    %4913 = vadd.xlane.f32.xlu0 %v4912
    %v4914 = vpop.xlane.xlu0 %4913
    %v4915 = vmul.f32 %v4893, %v2266
    %v4916 = vmul.f32 %v4896, %v2266
    %v4917 = vmul.f32 %v4899, %v2266
    %v4918 = vmul.f32 %v4902, %v2266
    %v4919 = vmul.f32 %v4905, %v2266
    %v4920 = vmul.f32 %v4908, %v2266
    %v4921 = vmul.f32 %v4911, %v2266
    %v4922 = vmul.f32 %v4914, %v2266
    %v4923 = vadd.f32 %v4915, 1e-05
    %v4924 = vadd.f32 %v4916, 1e-05
    %v4925 = vadd.f32 %v4917, 1e-05
    %v4926 = vadd.f32 %v4918, 1e-05
    %v4927 = vadd.f32 %v4919, 1e-05
    %v4928 = vadd.f32 %v4920, 1e-05
    %v4929 = vadd.f32 %v4921, 1e-05
    %v4930 = vadd.f32 %v4922, 1e-05
    %v4931 = vrsqrt.pop %v4923
    %v4932 = vmul.f32 %v4931, %v4923
    %v4933 = vmul.f32 %v4932, %v4931
    %v4934 = vmul.f32 0.5, %v4933
    %v4935 = vsub.f32 1.5, %v4934
    %v4936 = vmul.f32 %v4931, %v4935
    %vm4937 = vweird.f32 %v4923
    %vm4938 = vweird.f32 %v4931
    %vm4939 = vmor %vm4937, %vm4938
    %v4940 = vsel %vm4939, %v4931, %v4936
    %v4941 = vrsqrt.pop %v4924
    %v4942 = vmul.f32 %v4941, %v4924
    %v4943 = vmul.f32 %v4942, %v4941
    %v4944 = vmul.f32 0.5, %v4943
    %v4945 = vsub.f32 1.5, %v4944
    %v4946 = vmul.f32 %v4941, %v4945
    %vm4947 = vweird.f32 %v4924
    %vm4948 = vweird.f32 %v4941
    %vm4949 = vmor %vm4947, %vm4948
    %v4950 = vsel %vm4949, %v4941, %v4946
    %v4951 = vrsqrt.pop %v4925
    %v4952 = vmul.f32 %v4951, %v4925
    %v4953 = vmul.f32 %v4952, %v4951
    %v4954 = vmul.f32 0.5, %v4953
    %v4955 = vsub.f32 1.5, %v4954
    %v4956 = vmul.f32 %v4951, %v4955
    %vm4957 = vweird.f32 %v4925
    %vm4958 = vweird.f32 %v4951
    %vm4959 = vmor %vm4957, %vm4958
    %v4960 = vsel %vm4959, %v4951, %v4956
    %v4961 = vrsqrt.pop %v4926
    %v4962 = vmul.f32 %v4961, %v4926
    %v4963 = vmul.f32 %v4962, %v4961
    %v4964 = vmul.f32 0.5, %v4963
    %v4965 = vsub.f32 1.5, %v4964
    %v4966 = vmul.f32 %v4961, %v4965
    %vm4967 = vweird.f32 %v4926
    %vm4968 = vweird.f32 %v4961
    %vm4969 = vmor %vm4967, %vm4968
    %v4970 = vsel %vm4969, %v4961, %v4966
    %v4971 = vrsqrt.pop %v4927
    %v4972 = vmul.f32 %v4971, %v4927
    %v4973 = vmul.f32 %v4972, %v4971
    %v4974 = vmul.f32 0.5, %v4973
    %v4975 = vsub.f32 1.5, %v4974
    %v4976 = vmul.f32 %v4971, %v4975
    %vm4977 = vweird.f32 %v4927
    %vm4978 = vweird.f32 %v4971
    %vm4979 = vmor %vm4977, %vm4978
    %v4980 = vsel %vm4979, %v4971, %v4976
    %v4981 = vrsqrt.pop %v4928
    %v4982 = vmul.f32 %v4981, %v4928
    %v4983 = vmul.f32 %v4982, %v4981
    %v4984 = vmul.f32 0.5, %v4983
    %v4985 = vsub.f32 1.5, %v4984
    %v4986 = vmul.f32 %v4981, %v4985
    %vm4987 = vweird.f32 %v4928
    %vm4988 = vweird.f32 %v4981
    %vm4989 = vmor %vm4987, %vm4988
    %v4990 = vsel %vm4989, %v4981, %v4986
    %v4991 = vrsqrt.pop %v4929
    %v4992 = vmul.f32 %v4991, %v4929
    %v4993 = vmul.f32 %v4992, %v4991
    %v4994 = vmul.f32 0.5, %v4993
    %v4995 = vsub.f32 1.5, %v4994
    %v4996 = vmul.f32 %v4991, %v4995
    %vm4997 = vweird.f32 %v4929
    %vm4998 = vweird.f32 %v4991
    %vm4999 = vmor %vm4997, %vm4998
    %v5000 = vsel %vm4999, %v4991, %v4996
    %v5001 = vrsqrt.pop %v4930
    %v5002 = vmul.f32 %v5001, %v4930
    %v5003 = vmul.f32 %v5002, %v5001
    %v5004 = vmul.f32 0.5, %v5003
    %v5005 = vsub.f32 1.5, %v5004
    %v5006 = vmul.f32 %v5001, %v5005
    %vm5007 = vweird.f32 %v4930
    %vm5008 = vweird.f32 %v5001
    %vm5009 = vmor %vm5007, %vm5008
    %v5010 = vsel %vm5009, %v5001, %v5006
    %v5011 = vmul.f32 %v4875, %v4940
    %v5012 = vmul.f32 %v4876, %v4950
    %v5013 = vmul.f32 %v4877, %v4960
    %v5014 = vmul.f32 %v4878, %v4970
    %v5015 = vmul.f32 %v4879, %v4980
    %v5016 = vmul.f32 %v4880, %v4990
    %v5017 = vmul.f32 %v4881, %v5000
    %v5018 = vmul.f32 %v4882, %v5010
    %v5020 = vperm.slane %v4841, 0
    %v5022 = vmul.f32 %v5011, %v5020
    %v5023 = vmul.f32 %v5012, %v5020
    %v5024 = vmul.f32 %v5013, %v5020
    %v5025 = vmul.f32 %v5014, %v5020
    %v5026 = vmul.f32 %v5015, %v5020
    %v5027 = vmul.f32 %v5016, %v5020
    %v5028 = vmul.f32 %v5017, %v5020
    %v5029 = vmul.f32 %v5018, %v5020
    %v5031 = vperm.slane %v4842, 0
    %v5033 = vadd.f32 %v5022, %v5031
    %v5034 = vadd.f32 %v5023, %v5031
    %v5035 = vadd.f32 %v5024, %v5031
    %v5036 = vadd.f32 %v5025, %v5031
    %v5037 = vadd.f32 %v5026, %v5031
    %v5038 = vadd.f32 %v5027, %v5031
    %v5039 = vadd.f32 %v5028, %v5031
    %v5040 = vadd.f32 %v5029, %v5031
    %v5041 = vpack.c.bf16 %v5034, %v5033
    %v5042 = vpack.c.bf16 %v5036, %v5035
    %v5043 = vpack.c.bf16 %v5038, %v5037
    %v5044 = vpack.c.bf16 %v5040, %v5039
    %s5045 = scalar_lea.vmem %s3, 16
    %v5046 = vld [vmem:[%s5045] sm:$0xf]
    %v5047 = vld [vmem:[%s5045 + $0x4] sm:$0xf]
    %v5048 = vld [vmem:[%s5045 + $0x8] sm:$0xf]
    %v5049 = vld [vmem:[%s5045 + $0xc] sm:$0xf]
    %s5050 = scalar_lea.vmem %s4, 1
    %v5051 = vld [vmem:[%s5050] sm:$0x1]
    %v5053 = vperm.slane %v5051, 0
    %v5059 = vunpack.c.l.b16 %v5046
    %v5060 = vunpack.c.l.b16 %v5047
    %v5061 = vunpack.c.l.b16 %v5048
    %v5062 = vunpack.c.l.b16 %v5049
    %v5063 = vpack.c.b16 %v5060, %v5059
    %v5064 = vpack.c.b16 %v5062, %v5061
    %v5068 = vsel %vm141, %v5041, 0
    %v5071 = vsel %vm141, %v5042, 0
    %v5074 = vsel %vm141, %v5043, 0
    %v5077 = vsel %vm141, %v5044, 0
    %5079 = vmatpush.bf16.msra.mxu0 0
    %5080 = vmatpush.bf16.msra.mxu0 0
    %5081 = vmatpush.bf16.msra.mxu0 0
    %5082 = vmatpush.bf16.msra.mxu0 0
    %5083 = vmatpush.bf16.msra.mxu0 0
    %5084 = vmatpush.bf16.msra.mxu0 0
    %5085 = vmatpush.bf16.msra.mxu0 %v5064
    %5086 = vmatpush.bf16.msra.mxu0 %v5063
    %5087 = vmatmul.bf16.gmra.mxu0 %v5068
    %v5088 = vpop.f32.mrf.mxu0
    %v5089 = vadd.f32 %v5053, %v5088
    %v5090 = vpop.f32.mrf.mxu0
    %v5091 = vadd.f32 %v5053, %v5090
    %5092 = vmatmul.bf16.gmra.mxu0 %v5071
    %v5093 = vpop.f32.mrf.mxu0
    %v5094 = vadd.f32 %v5053, %v5093
    %v5095 = vpop.f32.mrf.mxu0
    %v5096 = vadd.f32 %v5053, %v5095
    %5097 = vmatmul.bf16.gmra.mxu0 %v5074
    %v5098 = vpop.f32.mrf.mxu0
    %v5099 = vadd.f32 %v5053, %v5098
    %v5100 = vpop.f32.mrf.mxu0
    %v5101 = vadd.f32 %v5053, %v5100
    %5102 = vmatmul.bf16.gmra.mxu0 %v5077
    %v5103 = vpop.f32.mrf.mxu0
    %v5104 = vadd.f32 %v5053, %v5103
    %v5105 = vpop.f32.mrf.mxu0
    %v5106 = vadd.f32 %v5053, %v5105
    %5107 = vdwg.mxu0
    %v5108 = vpack.c.bf16 %v5089, %v5089
    %v5109 = vpack.c.bf16 %v5091, %v5091
    %v5110 = vpack.c.bf16 %v5094, %v5094
    %v5111 = vpack.c.bf16 %v5096, %v5096
    %v5112 = vpack.c.bf16 %v5099, %v5099
    %v5113 = vpack.c.bf16 %v5101, %v5101
    %v5114 = vpack.c.bf16 %v5104, %v5104
    %v5115 = vpack.c.bf16 %v5106, %v5106
    %s5116 = scalar_lea.vmem %s5, 16
    %v5117 = vld [vmem:[%s5116] sm:$0xf]
    %v5118 = vld [vmem:[%s5116 + $0x4] sm:$0xf]
    %v5119 = vld [vmem:[%s5116 + $0x8] sm:$0xf]
    %v5120 = vld [vmem:[%s5116 + $0xc] sm:$0xf]
    %s5121 = scalar_lea.vmem %s6, 1
    %v5122 = vld [vmem:[%s5121] sm:$0x1]
    %v5124 = vperm.slane %v5122, 0
    %v5126 = vadd.f32 %v5124, 0.0
    %v5128 = vunpack.c.l.b16 %v5108
    %v5129 = vpack.c.b16 %v5128, %v5128
    %5130 = vrot.lane.b32.xlu0 %v5129, 96
    %v5131 = vpop.permute.xlu0 %5130
    %v5133 = vsel %vm205, %v5108, 0
    %v5136 = vsel %vm205, %v5131, 0
    %5138 = vmatpush.bf16.xpose.msra.mxu0 0
    %5139 = vmatpush.bf16.xpose.msra.mxu0 0
    %5140 = vmatpush.bf16.xpose.msra.mxu0 0
    %5141 = vmatpush.bf16.xpose.msra.mxu0 0
    %5142 = vmatpush.bf16.xpose.msra.mxu0 0
    %5143 = vmatpush.bf16.xpose.msra.mxu0 0
    %5144 = vmatpush.bf16.xpose.msra.mxu0 0
    %5145 = vmatpush.bf16.xpose.msra.mxu0 %v5136
    %5146 = vmatmul.bf16.gmra.mxu0 %v5133
    %v5147 = vpop.f32.mrf.mxu0
    %v5148 = vadd.f32 %v101, %v5147
    %v5149 = vpop.f32.mrf.mxu0
    %5150 = vdwg.mxu0
    %v5152 = vunpack.c.l.b16 %v5109
    %v5153 = vpack.c.b16 %v5152, %v5152
    %5154 = vrot.lane.b32.xlu0 %v5153, 96
    %v5155 = vpop.permute.xlu0 %5154
    %v5157 = vsel %vm205, %v5109, 0
    %v5160 = vsel %vm205, %v5155, 0
    %5162 = vmatpush.bf16.xpose.msra.mxu0 0
    %5163 = vmatpush.bf16.xpose.msra.mxu0 0
    %5164 = vmatpush.bf16.xpose.msra.mxu0 0
    %5165 = vmatpush.bf16.xpose.msra.mxu0 0
    %5166 = vmatpush.bf16.xpose.msra.mxu0 0
    %5167 = vmatpush.bf16.xpose.msra.mxu0 0
    %5168 = vmatpush.bf16.xpose.msra.mxu0 0
    %5169 = vmatpush.bf16.xpose.msra.mxu0 %v5160
    %5170 = vmatmul.bf16.gmra.mxu0 %v5157
    %v5171 = vpop.f32.mrf.mxu0
    %v5172 = vadd.f32 %v102, %v5171
    %v5173 = vpop.f32.mrf.mxu0
    %5174 = vdwg.mxu0
    %v5176 = vunpack.c.l.b16 %v5110
    %v5177 = vpack.c.b16 %v5176, %v5176
    %5178 = vrot.lane.b32.xlu0 %v5177, 96
    %v5179 = vpop.permute.xlu0 %5178
    %v5181 = vsel %vm205, %v5110, 0
    %v5184 = vsel %vm205, %v5179, 0
    %5186 = vmatpush.bf16.xpose.msra.mxu0 0
    %5187 = vmatpush.bf16.xpose.msra.mxu0 0
    %5188 = vmatpush.bf16.xpose.msra.mxu0 0
    %5189 = vmatpush.bf16.xpose.msra.mxu0 0
    %5190 = vmatpush.bf16.xpose.msra.mxu0 0
    %5191 = vmatpush.bf16.xpose.msra.mxu0 0
    %5192 = vmatpush.bf16.xpose.msra.mxu0 0
    %5193 = vmatpush.bf16.xpose.msra.mxu0 %v5184
    %5194 = vmatmul.bf16.gmra.mxu0 %v5181
    %v5195 = vpop.f32.mrf.mxu0
    %v5196 = vadd.f32 %v103, %v5195
    %v5197 = vpop.f32.mrf.mxu0
    %5198 = vdwg.mxu0
    %v5200 = vunpack.c.l.b16 %v5111
    %v5201 = vpack.c.b16 %v5200, %v5200
    %5202 = vrot.lane.b32.xlu0 %v5201, 96
    %v5203 = vpop.permute.xlu0 %5202
    %v5205 = vsel %vm205, %v5111, 0
    %v5208 = vsel %vm205, %v5203, 0
    %5210 = vmatpush.bf16.xpose.msra.mxu0 0
    %5211 = vmatpush.bf16.xpose.msra.mxu0 0
    %5212 = vmatpush.bf16.xpose.msra.mxu0 0
    %5213 = vmatpush.bf16.xpose.msra.mxu0 0
    %5214 = vmatpush.bf16.xpose.msra.mxu0 0
    %5215 = vmatpush.bf16.xpose.msra.mxu0 0
    %5216 = vmatpush.bf16.xpose.msra.mxu0 0
    %5217 = vmatpush.bf16.xpose.msra.mxu0 %v5208
    %5218 = vmatmul.bf16.gmra.mxu0 %v5205
    %v5219 = vpop.f32.mrf.mxu0
    %v5220 = vadd.f32 %v104, %v5219
    %v5221 = vpop.f32.mrf.mxu0
    %5222 = vdwg.mxu0
    %v5224 = vunpack.c.l.b16 %v5112
    %v5225 = vpack.c.b16 %v5224, %v5224
    %5226 = vrot.lane.b32.xlu0 %v5225, 96
    %v5227 = vpop.permute.xlu0 %5226
    %v5229 = vsel %vm205, %v5112, 0
    %v5232 = vsel %vm205, %v5227, 0
    %5234 = vmatpush.bf16.xpose.msra.mxu0 0
    %5235 = vmatpush.bf16.xpose.msra.mxu0 0
    %5236 = vmatpush.bf16.xpose.msra.mxu0 0
    %5237 = vmatpush.bf16.xpose.msra.mxu0 0
    %5238 = vmatpush.bf16.xpose.msra.mxu0 0
    %5239 = vmatpush.bf16.xpose.msra.mxu0 0
    %5240 = vmatpush.bf16.xpose.msra.mxu0 0
    %5241 = vmatpush.bf16.xpose.msra.mxu0 %v5232
    %5242 = vmatmul.bf16.gmra.mxu0 %v5229
    %v5243 = vpop.f32.mrf.mxu0
    %v5244 = vadd.f32 %v105, %v5243
    %v5245 = vpop.f32.mrf.mxu0
    %5246 = vdwg.mxu0
    %v5248 = vunpack.c.l.b16 %v5113
    %v5249 = vpack.c.b16 %v5248, %v5248
    %5250 = vrot.lane.b32.xlu0 %v5249, 96
    %v5251 = vpop.permute.xlu0 %5250
    %v5253 = vsel %vm205, %v5113, 0
    %v5256 = vsel %vm205, %v5251, 0
    %5258 = vmatpush.bf16.xpose.msra.mxu0 0
    %5259 = vmatpush.bf16.xpose.msra.mxu0 0
    %5260 = vmatpush.bf16.xpose.msra.mxu0 0
    %5261 = vmatpush.bf16.xpose.msra.mxu0 0
    %5262 = vmatpush.bf16.xpose.msra.mxu0 0
    %5263 = vmatpush.bf16.xpose.msra.mxu0 0
    %5264 = vmatpush.bf16.xpose.msra.mxu0 0
    %5265 = vmatpush.bf16.xpose.msra.mxu0 %v5256
    %5266 = vmatmul.bf16.gmra.mxu0 %v5253
    %v5267 = vpop.f32.mrf.mxu0
    %v5268 = vadd.f32 %v106, %v5267
    %v5269 = vpop.f32.mrf.mxu0
    %5270 = vdwg.mxu0
    %v5272 = vunpack.c.l.b16 %v5114
    %v5273 = vpack.c.b16 %v5272, %v5272
    %5274 = vrot.lane.b32.xlu0 %v5273, 96
    %v5275 = vpop.permute.xlu0 %5274
    %v5277 = vsel %vm205, %v5114, 0
    %v5280 = vsel %vm205, %v5275, 0
    %5282 = vmatpush.bf16.xpose.msra.mxu0 0
    %5283 = vmatpush.bf16.xpose.msra.mxu0 0
    %5284 = vmatpush.bf16.xpose.msra.mxu0 0
    %5285 = vmatpush.bf16.xpose.msra.mxu0 0
    %5286 = vmatpush.bf16.xpose.msra.mxu0 0
    %5287 = vmatpush.bf16.xpose.msra.mxu0 0
    %5288 = vmatpush.bf16.xpose.msra.mxu0 0
    %5289 = vmatpush.bf16.xpose.msra.mxu0 %v5280
    %5290 = vmatmul.bf16.gmra.mxu0 %v5277
    %v5291 = vpop.f32.mrf.mxu0
    %v5292 = vadd.f32 %v107, %v5291
    %v5293 = vpop.f32.mrf.mxu0
    %5294 = vdwg.mxu0
    %v5296 = vunpack.c.l.b16 %v5115
    %v5297 = vpack.c.b16 %v5296, %v5296
    %5298 = vrot.lane.b32.xlu0 %v5297, 96
    %v5299 = vpop.permute.xlu0 %5298
    %v5301 = vsel %vm205, %v5115, 0
    %v5304 = vsel %vm205, %v5299, 0
    %5306 = vmatpush.bf16.xpose.msra.mxu0 0
    %5307 = vmatpush.bf16.xpose.msra.mxu0 0
    %5308 = vmatpush.bf16.xpose.msra.mxu0 0
    %5309 = vmatpush.bf16.xpose.msra.mxu0 0
    %5310 = vmatpush.bf16.xpose.msra.mxu0 0
    %5311 = vmatpush.bf16.xpose.msra.mxu0 0
    %5312 = vmatpush.bf16.xpose.msra.mxu0 0
    %5313 = vmatpush.bf16.xpose.msra.mxu0 %v5304
    %5314 = vmatmul.bf16.gmra.mxu0 %v5301
    %v5315 = vpop.f32.mrf.mxu0
    %v5316 = vadd.f32 %v108, %v5315
    %v5317 = vpop.f32.mrf.mxu0
    %5318 = vdwg.mxu0
    %v5319 = vsel %vm205, %v5148, -inf
    %5320 = vmax.xlane.f32.xlu0 %v5319
    %v5321 = vpop.xlane.xlu0 %5320
    %v5322 = vsel %vm205, %v5172, -inf
    %5323 = vmax.xlane.f32.xlu0 %v5322
    %v5324 = vpop.xlane.xlu0 %5323
    %v5325 = vsel %vm205, %v5196, -inf
    %5326 = vmax.xlane.f32.xlu0 %v5325
    %v5327 = vpop.xlane.xlu0 %5326
    %v5328 = vsel %vm205, %v5220, -inf
    %5329 = vmax.xlane.f32.xlu0 %v5328
    %v5330 = vpop.xlane.xlu0 %5329
    %v5331 = vsel %vm205, %v5244, -inf
    %5332 = vmax.xlane.f32.xlu0 %v5331
    %v5333 = vpop.xlane.xlu0 %5332
    %v5334 = vsel %vm205, %v5268, -inf
    %5335 = vmax.xlane.f32.xlu0 %v5334
    %v5336 = vpop.xlane.xlu0 %5335
    %v5337 = vsel %vm205, %v5292, -inf
    %5338 = vmax.xlane.f32.xlu0 %v5337
    %v5339 = vpop.xlane.xlu0 %5338
    %v5340 = vsel %vm205, %v5316, -inf
    %5341 = vmax.xlane.f32.xlu0 %v5340
    %v5342 = vpop.xlane.xlu0 %5341
    %v5343 = vsub.f32 %v5148, %v5321
    %v5344 = vsub.f32 %v5172, %v5324
    %v5345 = vsub.f32 %v5196, %v5327
    %v5346 = vsub.f32 %v5220, %v5330
    %v5347 = vsub.f32 %v5244, %v5333
    %v5348 = vsub.f32 %v5268, %v5336
    %v5349 = vsub.f32 %v5292, %v5339
    %v5350 = vsub.f32 %v5316, %v5342
    %v5351 = vmul.f32 %v5343, 1.442695
    %v5352 = vpow.pop %v5351
    %v5353 = vmul.f32 %v5344, 1.442695
    %v5354 = vpow.pop %v5353
    %v5355 = vmul.f32 %v5345, 1.442695
    %v5356 = vpow.pop %v5355
    %v5357 = vmul.f32 %v5346, 1.442695
    %v5358 = vpow.pop %v5357
    %v5359 = vmul.f32 %v5347, 1.442695
    %v5360 = vpow.pop %v5359
    %v5361 = vmul.f32 %v5348, 1.442695
    %v5362 = vpow.pop %v5361
    %v5363 = vmul.f32 %v5349, 1.442695
    %v5364 = vpow.pop %v5363
    %v5365 = vmul.f32 %v5350, 1.442695
    %v5366 = vpow.pop %v5365
    %v5367 = vsel %vm205, %v5352, 0.0
    %5368 = vadd.xlane.f32.xlu0 %v5367
    %v5369 = vpop.xlane.xlu0 %5368
    %v5370 = vsel %vm205, %v5354, 0.0
    %5371 = vadd.xlane.f32.xlu0 %v5370
    %v5372 = vpop.xlane.xlu0 %5371
    %v5373 = vsel %vm205, %v5356, 0.0
    %5374 = vadd.xlane.f32.xlu0 %v5373
    %v5375 = vpop.xlane.xlu0 %5374
    %v5376 = vsel %vm205, %v5358, 0.0
    %5377 = vadd.xlane.f32.xlu0 %v5376
    %v5378 = vpop.xlane.xlu0 %5377
    %v5379 = vsel %vm205, %v5360, 0.0
    %5380 = vadd.xlane.f32.xlu0 %v5379
    %v5381 = vpop.xlane.xlu0 %5380
    %v5382 = vsel %vm205, %v5362, 0.0
    %5383 = vadd.xlane.f32.xlu0 %v5382
    %v5384 = vpop.xlane.xlu0 %5383
    %v5385 = vsel %vm205, %v5364, 0.0
    %5386 = vadd.xlane.f32.xlu0 %v5385
    %v5387 = vpop.xlane.xlu0 %5386
    %v5388 = vsel %vm205, %v5366, 0.0
    %5389 = vadd.xlane.f32.xlu0 %v5388
    %v5390 = vpop.xlane.xlu0 %5389
    %v5391 = vrcp.pop %v5369
    %v5392 = vrcp.pop %v5372
    %v5393 = vrcp.pop %v5375
    %v5394 = vrcp.pop %v5378
    %v5395 = vrcp.pop %v5381
    %v5396 = vrcp.pop %v5384
    %v5397 = vrcp.pop %v5387
    %v5398 = vrcp.pop %v5390
    %v5399 = vmul.f32 %v5352, %v5391
    %v5400 = vmul.f32 %v5354, %v5392
    %v5401 = vmul.f32 %v5356, %v5393
    %v5402 = vmul.f32 %v5358, %v5394
    %v5403 = vmul.f32 %v5360, %v5395
    %v5404 = vmul.f32 %v5362, %v5396
    %v5405 = vmul.f32 %v5364, %v5397
    %v5406 = vmul.f32 %v5366, %v5398
    %v5407 = vpack.c.bf16 %v5399, %v5399
    %v5408 = vpack.c.bf16 %v5400, %v5400
    %v5409 = vpack.c.bf16 %v5401, %v5401
    %v5410 = vpack.c.bf16 %v5402, %v5402
    %v5411 = vpack.c.bf16 %v5403, %v5403
    %v5412 = vpack.c.bf16 %v5404, %v5404
    %v5413 = vpack.c.bf16 %v5405, %v5405
    %v5414 = vpack.c.bf16 %v5406, %v5406
    %5415 = vrot.lane.b32.xlu0 %v5129, 64
    %v5416 = vpop.permute.xlu0 %5415
    %v5418 = vsel %vm205, %v5407, 0
    %v5421 = vsel %vm494, %v5416, 0
    %5423 = vmatpush.bf16.msra.mxu0 0
    %5424 = vmatpush.bf16.msra.mxu0 0
    %5425 = vmatpush.bf16.msra.mxu0 0
    %5426 = vmatpush.bf16.msra.mxu0 0
    %5427 = vmatpush.bf16.msra.mxu0 0
    %5428 = vmatpush.bf16.msra.mxu0 0
    %5429 = vmatpush.bf16.msra.mxu0 0
    %5430 = vmatpush.bf16.msra.mxu0 %v5421
    %5431 = vmatmul.bf16.gmra.mxu0 %v5418
    %v5432 = vpop.f32.mrf.mxu0
    %v5433 = vadd.f32 0.0, %v5432
    %v5434 = vpop.f32.mrf.mxu0
    %5435 = vdwg.mxu0
    %5436 = vrot.lane.b32.xlu0 %v5153, 64
    %v5437 = vpop.permute.xlu0 %5436
    %v5439 = vsel %vm205, %v5408, 0
    %v5442 = vsel %vm494, %v5437, 0
    %5444 = vmatpush.bf16.msra.mxu0 0
    %5445 = vmatpush.bf16.msra.mxu0 0
    %5446 = vmatpush.bf16.msra.mxu0 0
    %5447 = vmatpush.bf16.msra.mxu0 0
    %5448 = vmatpush.bf16.msra.mxu0 0
    %5449 = vmatpush.bf16.msra.mxu0 0
    %5450 = vmatpush.bf16.msra.mxu0 0
    %5451 = vmatpush.bf16.msra.mxu0 %v5442
    %5452 = vmatmul.bf16.gmra.mxu0 %v5439
    %v5453 = vpop.f32.mrf.mxu0
    %v5454 = vadd.f32 0.0, %v5453
    %v5455 = vpop.f32.mrf.mxu0
    %5456 = vdwg.mxu0
    %5457 = vrot.lane.b32.xlu0 %v5177, 64
    %v5458 = vpop.permute.xlu0 %5457
    %v5460 = vsel %vm205, %v5409, 0
    %v5463 = vsel %vm494, %v5458, 0
    %5465 = vmatpush.bf16.msra.mxu0 0
    %5466 = vmatpush.bf16.msra.mxu0 0
    %5467 = vmatpush.bf16.msra.mxu0 0
    %5468 = vmatpush.bf16.msra.mxu0 0
    %5469 = vmatpush.bf16.msra.mxu0 0
    %5470 = vmatpush.bf16.msra.mxu0 0
    %5471 = vmatpush.bf16.msra.mxu0 0
    %5472 = vmatpush.bf16.msra.mxu0 %v5463
    %5473 = vmatmul.bf16.gmra.mxu0 %v5460
    %v5474 = vpop.f32.mrf.mxu0
    %v5475 = vadd.f32 0.0, %v5474
    %v5476 = vpop.f32.mrf.mxu0
    %5477 = vdwg.mxu0
    %5478 = vrot.lane.b32.xlu0 %v5201, 64
    %v5479 = vpop.permute.xlu0 %5478
    %v5481 = vsel %vm205, %v5410, 0
    %v5484 = vsel %vm494, %v5479, 0
    %5486 = vmatpush.bf16.msra.mxu0 0
    %5487 = vmatpush.bf16.msra.mxu0 0
    %5488 = vmatpush.bf16.msra.mxu0 0
    %5489 = vmatpush.bf16.msra.mxu0 0
    %5490 = vmatpush.bf16.msra.mxu0 0
    %5491 = vmatpush.bf16.msra.mxu0 0
    %5492 = vmatpush.bf16.msra.mxu0 0
    %5493 = vmatpush.bf16.msra.mxu0 %v5484
    %5494 = vmatmul.bf16.gmra.mxu0 %v5481
    %v5495 = vpop.f32.mrf.mxu0
    %v5496 = vadd.f32 0.0, %v5495
    %v5497 = vpop.f32.mrf.mxu0
    %5498 = vdwg.mxu0
    %5499 = vrot.lane.b32.xlu0 %v5225, 64
    %v5500 = vpop.permute.xlu0 %5499
    %v5502 = vsel %vm205, %v5411, 0
    %v5505 = vsel %vm494, %v5500, 0
    %5507 = vmatpush.bf16.msra.mxu0 0
    %5508 = vmatpush.bf16.msra.mxu0 0
    %5509 = vmatpush.bf16.msra.mxu0 0
    %5510 = vmatpush.bf16.msra.mxu0 0
    %5511 = vmatpush.bf16.msra.mxu0 0
    %5512 = vmatpush.bf16.msra.mxu0 0
    %5513 = vmatpush.bf16.msra.mxu0 0
    %5514 = vmatpush.bf16.msra.mxu0 %v5505
    %5515 = vmatmul.bf16.gmra.mxu0 %v5502
    %v5516 = vpop.f32.mrf.mxu0
    %v5517 = vadd.f32 0.0, %v5516
    %v5518 = vpop.f32.mrf.mxu0
    %5519 = vdwg.mxu0
    %5520 = vrot.lane.b32.xlu0 %v5249, 64
    %v5521 = vpop.permute.xlu0 %5520
    %v5523 = vsel %vm205, %v5412, 0
    %v5526 = vsel %vm494, %v5521, 0
    %5528 = vmatpush.bf16.msra.mxu0 0
    %5529 = vmatpush.bf16.msra.mxu0 0
    %5530 = vmatpush.bf16.msra.mxu0 0
    %5531 = vmatpush.bf16.msra.mxu0 0
    %5532 = vmatpush.bf16.msra.mxu0 0
    %5533 = vmatpush.bf16.msra.mxu0 0
    %5534 = vmatpush.bf16.msra.mxu0 0
    %5535 = vmatpush.bf16.msra.mxu0 %v5526
    %5536 = vmatmul.bf16.gmra.mxu0 %v5523
    %v5537 = vpop.f32.mrf.mxu0
    %v5538 = vadd.f32 0.0, %v5537
    %v5539 = vpop.f32.mrf.mxu0
    %5540 = vdwg.mxu0
    %5541 = vrot.lane.b32.xlu0 %v5273, 64
    %v5542 = vpop.permute.xlu0 %5541
    %v5544 = vsel %vm205, %v5413, 0
    %v5547 = vsel %vm494, %v5542, 0
    %5549 = vmatpush.bf16.msra.mxu0 0
    %5550 = vmatpush.bf16.msra.mxu0 0
    %5551 = vmatpush.bf16.msra.mxu0 0
    %5552 = vmatpush.bf16.msra.mxu0 0
    %5553 = vmatpush.bf16.msra.mxu0 0
    %5554 = vmatpush.bf16.msra.mxu0 0
    %5555 = vmatpush.bf16.msra.mxu0 0
    %5556 = vmatpush.bf16.msra.mxu0 %v5547
    %5557 = vmatmul.bf16.gmra.mxu0 %v5544
    %v5558 = vpop.f32.mrf.mxu0
    %v5559 = vadd.f32 0.0, %v5558
    %v5560 = vpop.f32.mrf.mxu0
    %5561 = vdwg.mxu0
    %5562 = vrot.lane.b32.xlu0 %v5297, 64
    %v5563 = vpop.permute.xlu0 %5562
    %v5565 = vsel %vm205, %v5414, 0
    %v5568 = vsel %vm494, %v5563, 0
    %5570 = vmatpush.bf16.msra.mxu0 0
    %5571 = vmatpush.bf16.msra.mxu0 0
    %5572 = vmatpush.bf16.msra.mxu0 0
    %5573 = vmatpush.bf16.msra.mxu0 0
    %5574 = vmatpush.bf16.msra.mxu0 0
    %5575 = vmatpush.bf16.msra.mxu0 0
    %5576 = vmatpush.bf16.msra.mxu0 0
    %5577 = vmatpush.bf16.msra.mxu0 %v5568
    %5578 = vmatmul.bf16.gmra.mxu0 %v5565
    %v5579 = vpop.f32.mrf.mxu0
    %v5580 = vadd.f32 0.0, %v5579
    %v5581 = vpop.f32.mrf.mxu0
    %5582 = vdwg.mxu0
    %v5583 = vpack.c.bf16 %v5454, %v5433
    %v5584 = vpack.c.bf16 %v5496, %v5475
    %v5585 = vpack.c.bf16 %v5538, %v5517
    %v5586 = vpack.c.bf16 %v5580, %v5559
    %v5588 = vsel %vm205, %v5583, 0
    %v5591 = vsel %vm205, %v5584, 0
    %v5594 = vsel %vm205, %v5585, 0
    %v5597 = vsel %vm205, %v5586, 0
    %v5600 = vsel %vm494, %v5117, 0
    %5602 = vmatpush.bf16.msra.mxu0 0
    %5603 = vmatpush.bf16.msra.mxu0 0
    %5604 = vmatpush.bf16.msra.mxu0 0
    %5605 = vmatpush.bf16.msra.mxu0 0
    %5606 = vmatpush.bf16.msra.mxu0 0
    %5607 = vmatpush.bf16.msra.mxu0 0
    %5608 = vmatpush.bf16.msra.mxu0 0
    %5609 = vmatpush.bf16.msra.mxu0 %v5600
    %5610 = vmatmul.bf16.gmra.mxu0 %v5588
    %v5611 = vpop.f32.mrf.mxu0
    %v5612 = vadd.f32 0.0, %v5611
    %v5613 = vpop.f32.mrf.mxu0
    %v5614 = vadd.f32 0.0, %v5613
    %5615 = vmatmul.bf16.gmra.mxu0 %v5591
    %v5616 = vpop.f32.mrf.mxu0
    %v5617 = vadd.f32 0.0, %v5616
    %v5618 = vpop.f32.mrf.mxu0
    %v5619 = vadd.f32 0.0, %v5618
    %5620 = vmatmul.bf16.gmra.mxu0 %v5594
    %v5621 = vpop.f32.mrf.mxu0
    %v5622 = vadd.f32 0.0, %v5621
    %v5623 = vpop.f32.mrf.mxu0
    %v5624 = vadd.f32 0.0, %v5623
    %5625 = vmatmul.bf16.gmra.mxu0 %v5597
    %v5626 = vpop.f32.mrf.mxu0
    %v5627 = vadd.f32 0.0, %v5626
    %v5628 = vpop.f32.mrf.mxu0
    %v5629 = vadd.f32 0.0, %v5628
    %5630 = vdwg.mxu0
    %v5631 = vadd.f32 %v5126, %v5612
    %v5632 = vadd.f32 %v5126, %v5614
    %v5633 = vadd.f32 %v5126, %v5617
    %v5634 = vadd.f32 %v5126, %v5619
    %v5635 = vadd.f32 %v5126, %v5622
    %v5636 = vadd.f32 %v5126, %v5624
    %v5637 = vadd.f32 %v5126, %v5627
    %v5638 = vadd.f32 %v5126, %v5629
    %5639 = vrot.lane.b32.xlu0 %v5129, 120
    %v5640 = vpop.permute.xlu0 %5639
    %5641 = vrot.lane.b32.xlu0 %v5129, 88
    %v5642 = vpop.permute.xlu0 %5641
    %v5644 = vsel %vm205, %v5640, 0
    %v5647 = vsel %vm205, %v5642, 0
    %5649 = vmatpush.bf16.xpose.msra.mxu0 0
    %5650 = vmatpush.bf16.xpose.msra.mxu0 0
    %5651 = vmatpush.bf16.xpose.msra.mxu0 0
    %5652 = vmatpush.bf16.xpose.msra.mxu0 0
    %5653 = vmatpush.bf16.xpose.msra.mxu0 0
    %5654 = vmatpush.bf16.xpose.msra.mxu0 0
    %5655 = vmatpush.bf16.xpose.msra.mxu0 0
    %5656 = vmatpush.bf16.xpose.msra.mxu0 %v5647
    %5657 = vmatmul.bf16.gmra.mxu0 %v5644
    %v5658 = vpop.f32.mrf.mxu0
    %v5659 = vadd.f32 %v101, %v5658
    %v5660 = vpop.f32.mrf.mxu0
    %5661 = vdwg.mxu0
    %5662 = vrot.lane.b32.xlu0 %v5153, 120
    %v5663 = vpop.permute.xlu0 %5662
    %5664 = vrot.lane.b32.xlu0 %v5153, 88
    %v5665 = vpop.permute.xlu0 %5664
    %v5667 = vsel %vm205, %v5663, 0
    %v5670 = vsel %vm205, %v5665, 0
    %5672 = vmatpush.bf16.xpose.msra.mxu0 0
    %5673 = vmatpush.bf16.xpose.msra.mxu0 0
    %5674 = vmatpush.bf16.xpose.msra.mxu0 0
    %5675 = vmatpush.bf16.xpose.msra.mxu0 0
    %5676 = vmatpush.bf16.xpose.msra.mxu0 0
    %5677 = vmatpush.bf16.xpose.msra.mxu0 0
    %5678 = vmatpush.bf16.xpose.msra.mxu0 0
    %5679 = vmatpush.bf16.xpose.msra.mxu0 %v5670
    %5680 = vmatmul.bf16.gmra.mxu0 %v5667
    %v5681 = vpop.f32.mrf.mxu0
    %v5682 = vadd.f32 %v102, %v5681
    %v5683 = vpop.f32.mrf.mxu0
    %5684 = vdwg.mxu0
    %5685 = vrot.lane.b32.xlu0 %v5177, 120
    %v5686 = vpop.permute.xlu0 %5685
    %5687 = vrot.lane.b32.xlu0 %v5177, 88
    %v5688 = vpop.permute.xlu0 %5687
    %v5690 = vsel %vm205, %v5686, 0
    %v5693 = vsel %vm205, %v5688, 0
    %5695 = vmatpush.bf16.xpose.msra.mxu0 0
    %5696 = vmatpush.bf16.xpose.msra.mxu0 0
    %5697 = vmatpush.bf16.xpose.msra.mxu0 0
    %5698 = vmatpush.bf16.xpose.msra.mxu0 0
    %5699 = vmatpush.bf16.xpose.msra.mxu0 0
    %5700 = vmatpush.bf16.xpose.msra.mxu0 0
    %5701 = vmatpush.bf16.xpose.msra.mxu0 0
    %5702 = vmatpush.bf16.xpose.msra.mxu0 %v5693
    %5703 = vmatmul.bf16.gmra.mxu0 %v5690
    %v5704 = vpop.f32.mrf.mxu0
    %v5705 = vadd.f32 %v103, %v5704
    %v5706 = vpop.f32.mrf.mxu0
    %5707 = vdwg.mxu0
    %5708 = vrot.lane.b32.xlu0 %v5201, 120
    %v5709 = vpop.permute.xlu0 %5708
    %5710 = vrot.lane.b32.xlu0 %v5201, 88
    %v5711 = vpop.permute.xlu0 %5710
    %v5713 = vsel %vm205, %v5709, 0
    %v5716 = vsel %vm205, %v5711, 0
    %5718 = vmatpush.bf16.xpose.msra.mxu0 0
    %5719 = vmatpush.bf16.xpose.msra.mxu0 0
    %5720 = vmatpush.bf16.xpose.msra.mxu0 0
    %5721 = vmatpush.bf16.xpose.msra.mxu0 0
    %5722 = vmatpush.bf16.xpose.msra.mxu0 0
    %5723 = vmatpush.bf16.xpose.msra.mxu0 0
    %5724 = vmatpush.bf16.xpose.msra.mxu0 0
    %5725 = vmatpush.bf16.xpose.msra.mxu0 %v5716
    %5726 = vmatmul.bf16.gmra.mxu0 %v5713
    %v5727 = vpop.f32.mrf.mxu0
    %v5728 = vadd.f32 %v104, %v5727
    %v5729 = vpop.f32.mrf.mxu0
    %5730 = vdwg.mxu0
    %5731 = vrot.lane.b32.xlu0 %v5225, 120
    %v5732 = vpop.permute.xlu0 %5731
    %5733 = vrot.lane.b32.xlu0 %v5225, 88
    %v5734 = vpop.permute.xlu0 %5733
    %v5736 = vsel %vm205, %v5732, 0
    %v5739 = vsel %vm205, %v5734, 0
    %5741 = vmatpush.bf16.xpose.msra.mxu0 0
    %5742 = vmatpush.bf16.xpose.msra.mxu0 0
    %5743 = vmatpush.bf16.xpose.msra.mxu0 0
    %5744 = vmatpush.bf16.xpose.msra.mxu0 0
    %5745 = vmatpush.bf16.xpose.msra.mxu0 0
    %5746 = vmatpush.bf16.xpose.msra.mxu0 0
    %5747 = vmatpush.bf16.xpose.msra.mxu0 0
    %5748 = vmatpush.bf16.xpose.msra.mxu0 %v5739
    %5749 = vmatmul.bf16.gmra.mxu0 %v5736
    %v5750 = vpop.f32.mrf.mxu0
    %v5751 = vadd.f32 %v105, %v5750
    %v5752 = vpop.f32.mrf.mxu0
    %5753 = vdwg.mxu0
    %5754 = vrot.lane.b32.xlu0 %v5249, 120
    %v5755 = vpop.permute.xlu0 %5754
    %5756 = vrot.lane.b32.xlu0 %v5249, 88
    %v5757 = vpop.permute.xlu0 %5756
    %v5759 = vsel %vm205, %v5755, 0
    %v5762 = vsel %vm205, %v5757, 0
    %5764 = vmatpush.bf16.xpose.msra.mxu0 0
    %5765 = vmatpush.bf16.xpose.msra.mxu0 0
    %5766 = vmatpush.bf16.xpose.msra.mxu0 0
    %5767 = vmatpush.bf16.xpose.msra.mxu0 0
    %5768 = vmatpush.bf16.xpose.msra.mxu0 0
    %5769 = vmatpush.bf16.xpose.msra.mxu0 0
    %5770 = vmatpush.bf16.xpose.msra.mxu0 0
    %5771 = vmatpush.bf16.xpose.msra.mxu0 %v5762
    %5772 = vmatmul.bf16.gmra.mxu0 %v5759
    %v5773 = vpop.f32.mrf.mxu0
    %v5774 = vadd.f32 %v106, %v5773
    %v5775 = vpop.f32.mrf.mxu0
    %5776 = vdwg.mxu0
    %5777 = vrot.lane.b32.xlu0 %v5273, 120
    %v5778 = vpop.permute.xlu0 %5777
    %5779 = vrot.lane.b32.xlu0 %v5273, 88
    %v5780 = vpop.permute.xlu0 %5779
    %v5782 = vsel %vm205, %v5778, 0
    %v5785 = vsel %vm205, %v5780, 0
    %5787 = vmatpush.bf16.xpose.msra.mxu0 0
    %5788 = vmatpush.bf16.xpose.msra.mxu0 0
    %5789 = vmatpush.bf16.xpose.msra.mxu0 0
    %5790 = vmatpush.bf16.xpose.msra.mxu0 0
    %5791 = vmatpush.bf16.xpose.msra.mxu0 0
    %5792 = vmatpush.bf16.xpose.msra.mxu0 0
    %5793 = vmatpush.bf16.xpose.msra.mxu0 0
    %5794 = vmatpush.bf16.xpose.msra.mxu0 %v5785
    %5795 = vmatmul.bf16.gmra.mxu0 %v5782
    %v5796 = vpop.f32.mrf.mxu0
    %v5797 = vadd.f32 %v107, %v5796
    %v5798 = vpop.f32.mrf.mxu0
    %5799 = vdwg.mxu0
    %5800 = vrot.lane.b32.xlu0 %v5297, 120
    %v5801 = vpop.permute.xlu0 %5800
    %5802 = vrot.lane.b32.xlu0 %v5297, 88
    %v5803 = vpop.permute.xlu0 %5802
    %v5805 = vsel %vm205, %v5801, 0
    %v5808 = vsel %vm205, %v5803, 0
    %5810 = vmatpush.bf16.xpose.msra.mxu0 0
    %5811 = vmatpush.bf16.xpose.msra.mxu0 0
    %5812 = vmatpush.bf16.xpose.msra.mxu0 0
    %5813 = vmatpush.bf16.xpose.msra.mxu0 0
    %5814 = vmatpush.bf16.xpose.msra.mxu0 0
    %5815 = vmatpush.bf16.xpose.msra.mxu0 0
    %5816 = vmatpush.bf16.xpose.msra.mxu0 0
    %5817 = vmatpush.bf16.xpose.msra.mxu0 %v5808
    %5818 = vmatmul.bf16.gmra.mxu0 %v5805
    %v5819 = vpop.f32.mrf.mxu0
    %v5820 = vadd.f32 %v108, %v5819
    %v5821 = vpop.f32.mrf.mxu0
    %5822 = vdwg.mxu0
    %v5823 = vsel %vm205, %v5659, -inf
    %5824 = vmax.xlane.f32.xlu0 %v5823
    %v5825 = vpop.xlane.xlu0 %5824
    %v5826 = vsel %vm205, %v5682, -inf
    %5827 = vmax.xlane.f32.xlu0 %v5826
    %v5828 = vpop.xlane.xlu0 %5827
    %v5829 = vsel %vm205, %v5705, -inf
    %5830 = vmax.xlane.f32.xlu0 %v5829
    %v5831 = vpop.xlane.xlu0 %5830
    %v5832 = vsel %vm205, %v5728, -inf
    %5833 = vmax.xlane.f32.xlu0 %v5832
    %v5834 = vpop.xlane.xlu0 %5833
    %v5835 = vsel %vm205, %v5751, -inf
    %5836 = vmax.xlane.f32.xlu0 %v5835
    %v5837 = vpop.xlane.xlu0 %5836
    %v5838 = vsel %vm205, %v5774, -inf
    %5839 = vmax.xlane.f32.xlu0 %v5838
    %v5840 = vpop.xlane.xlu0 %5839
    %v5841 = vsel %vm205, %v5797, -inf
    %5842 = vmax.xlane.f32.xlu0 %v5841
    %v5843 = vpop.xlane.xlu0 %5842
    %v5844 = vsel %vm205, %v5820, -inf
    %5845 = vmax.xlane.f32.xlu0 %v5844
    %v5846 = vpop.xlane.xlu0 %5845
    %v5847 = vsub.f32 %v5659, %v5825
    %v5848 = vsub.f32 %v5682, %v5828
    %v5849 = vsub.f32 %v5705, %v5831
    %v5850 = vsub.f32 %v5728, %v5834
    %v5851 = vsub.f32 %v5751, %v5837
    %v5852 = vsub.f32 %v5774, %v5840
    %v5853 = vsub.f32 %v5797, %v5843
    %v5854 = vsub.f32 %v5820, %v5846
    %v5855 = vmul.f32 %v5847, 1.442695
    %v5856 = vpow.pop %v5855
    %v5857 = vmul.f32 %v5848, 1.442695
    %v5858 = vpow.pop %v5857
    %v5859 = vmul.f32 %v5849, 1.442695
    %v5860 = vpow.pop %v5859
    %v5861 = vmul.f32 %v5850, 1.442695
    %v5862 = vpow.pop %v5861
    %v5863 = vmul.f32 %v5851, 1.442695
    %v5864 = vpow.pop %v5863
    %v5865 = vmul.f32 %v5852, 1.442695
    %v5866 = vpow.pop %v5865
    %v5867 = vmul.f32 %v5853, 1.442695
    %v5868 = vpow.pop %v5867
    %v5869 = vmul.f32 %v5854, 1.442695
    %v5870 = vpow.pop %v5869
    %v5871 = vsel %vm205, %v5856, 0.0
    %5872 = vadd.xlane.f32.xlu0 %v5871
    %v5873 = vpop.xlane.xlu0 %5872
    %v5874 = vsel %vm205, %v5858, 0.0
    %5875 = vadd.xlane.f32.xlu0 %v5874
    %v5876 = vpop.xlane.xlu0 %5875
    %v5877 = vsel %vm205, %v5860, 0.0
    %5878 = vadd.xlane.f32.xlu0 %v5877
    %v5879 = vpop.xlane.xlu0 %5878
    %v5880 = vsel %vm205, %v5862, 0.0
    %5881 = vadd.xlane.f32.xlu0 %v5880
    %v5882 = vpop.xlane.xlu0 %5881
    %v5883 = vsel %vm205, %v5864, 0.0
    %5884 = vadd.xlane.f32.xlu0 %v5883
    %v5885 = vpop.xlane.xlu0 %5884
    %v5886 = vsel %vm205, %v5866, 0.0
    %5887 = vadd.xlane.f32.xlu0 %v5886
    %v5888 = vpop.xlane.xlu0 %5887
    %v5889 = vsel %vm205, %v5868, 0.0
    %5890 = vadd.xlane.f32.xlu0 %v5889
    %v5891 = vpop.xlane.xlu0 %5890
    %v5892 = vsel %vm205, %v5870, 0.0
    %5893 = vadd.xlane.f32.xlu0 %v5892
    %v5894 = vpop.xlane.xlu0 %5893
    %v5895 = vrcp.pop %v5873
    %v5896 = vrcp.pop %v5876
    %v5897 = vrcp.pop %v5879
    %v5898 = vrcp.pop %v5882
    %v5899 = vrcp.pop %v5885
    %v5900 = vrcp.pop %v5888
    %v5901 = vrcp.pop %v5891
    %v5902 = vrcp.pop %v5894
    %v5903 = vmul.f32 %v5856, %v5895
    %v5904 = vmul.f32 %v5858, %v5896
    %v5905 = vmul.f32 %v5860, %v5897
    %v5906 = vmul.f32 %v5862, %v5898
    %v5907 = vmul.f32 %v5864, %v5899
    %v5908 = vmul.f32 %v5866, %v5900
    %v5909 = vmul.f32 %v5868, %v5901
    %v5910 = vmul.f32 %v5870, %v5902
    %v5911 = vpack.c.bf16 %v5903, %v5903
    %v5912 = vpack.c.bf16 %v5904, %v5904
    %v5913 = vpack.c.bf16 %v5905, %v5905
    %v5914 = vpack.c.bf16 %v5906, %v5906
    %v5915 = vpack.c.bf16 %v5907, %v5907
    %v5916 = vpack.c.bf16 %v5908, %v5908
    %v5917 = vpack.c.bf16 %v5909, %v5909
    %v5918 = vpack.c.bf16 %v5910, %v5910
    %5919 = vrot.lane.b32.xlu0 %v5129, 56
    %v5920 = vpop.permute.xlu0 %5919
    %v5922 = vsel %vm205, %v5911, 0
    %v5925 = vsel %vm494, %v5920, 0
    %5927 = vmatpush.bf16.msra.mxu0 0
    %5928 = vmatpush.bf16.msra.mxu0 0
    %5929 = vmatpush.bf16.msra.mxu0 0
    %5930 = vmatpush.bf16.msra.mxu0 0
    %5931 = vmatpush.bf16.msra.mxu0 0
    %5932 = vmatpush.bf16.msra.mxu0 0
    %5933 = vmatpush.bf16.msra.mxu0 0
    %5934 = vmatpush.bf16.msra.mxu0 %v5925
    %5935 = vmatmul.bf16.gmra.mxu0 %v5922
    %v5936 = vpop.f32.mrf.mxu0
    %v5937 = vadd.f32 0.0, %v5936
    %v5938 = vpop.f32.mrf.mxu0
    %5939 = vdwg.mxu0
    %5940 = vrot.lane.b32.xlu0 %v5153, 56
    %v5941 = vpop.permute.xlu0 %5940
    %v5943 = vsel %vm205, %v5912, 0
    %v5946 = vsel %vm494, %v5941, 0
    %5948 = vmatpush.bf16.msra.mxu0 0
    %5949 = vmatpush.bf16.msra.mxu0 0
    %5950 = vmatpush.bf16.msra.mxu0 0
    %5951 = vmatpush.bf16.msra.mxu0 0
    %5952 = vmatpush.bf16.msra.mxu0 0
    %5953 = vmatpush.bf16.msra.mxu0 0
    %5954 = vmatpush.bf16.msra.mxu0 0
    %5955 = vmatpush.bf16.msra.mxu0 %v5946
    %5956 = vmatmul.bf16.gmra.mxu0 %v5943
    %v5957 = vpop.f32.mrf.mxu0
    %v5958 = vadd.f32 0.0, %v5957
    %v5959 = vpop.f32.mrf.mxu0
    %5960 = vdwg.mxu0
    %5961 = vrot.lane.b32.xlu0 %v5177, 56
    %v5962 = vpop.permute.xlu0 %5961
    %v5964 = vsel %vm205, %v5913, 0
    %v5967 = vsel %vm494, %v5962, 0
    %5969 = vmatpush.bf16.msra.mxu0 0
    %5970 = vmatpush.bf16.msra.mxu0 0
    %5971 = vmatpush.bf16.msra.mxu0 0
    %5972 = vmatpush.bf16.msra.mxu0 0
    %5973 = vmatpush.bf16.msra.mxu0 0
    %5974 = vmatpush.bf16.msra.mxu0 0
    %5975 = vmatpush.bf16.msra.mxu0 0
    %5976 = vmatpush.bf16.msra.mxu0 %v5967
    %5977 = vmatmul.bf16.gmra.mxu0 %v5964
    %v5978 = vpop.f32.mrf.mxu0
    %v5979 = vadd.f32 0.0, %v5978
    %v5980 = vpop.f32.mrf.mxu0
    %5981 = vdwg.mxu0
    %5982 = vrot.lane.b32.xlu0 %v5201, 56
    %v5983 = vpop.permute.xlu0 %5982
    %v5985 = vsel %vm205, %v5914, 0
    %v5988 = vsel %vm494, %v5983, 0
    %5990 = vmatpush.bf16.msra.mxu0 0
    %5991 = vmatpush.bf16.msra.mxu0 0
    %5992 = vmatpush.bf16.msra.mxu0 0
    %5993 = vmatpush.bf16.msra.mxu0 0
    %5994 = vmatpush.bf16.msra.mxu0 0
    %5995 = vmatpush.bf16.msra.mxu0 0
    %5996 = vmatpush.bf16.msra.mxu0 0
    %5997 = vmatpush.bf16.msra.mxu0 %v5988
    %5998 = vmatmul.bf16.gmra.mxu0 %v5985
    %v5999 = vpop.f32.mrf.mxu0
    %v6000 = vadd.f32 0.0, %v5999
    %v6001 = vpop.f32.mrf.mxu0
    %6002 = vdwg.mxu0
    %6003 = vrot.lane.b32.xlu0 %v5225, 56
    %v6004 = vpop.permute.xlu0 %6003
    %v6006 = vsel %vm205, %v5915, 0
    %v6009 = vsel %vm494, %v6004, 0
    %6011 = vmatpush.bf16.msra.mxu0 0
    %6012 = vmatpush.bf16.msra.mxu0 0
    %6013 = vmatpush.bf16.msra.mxu0 0
    %6014 = vmatpush.bf16.msra.mxu0 0
    %6015 = vmatpush.bf16.msra.mxu0 0
    %6016 = vmatpush.bf16.msra.mxu0 0
    %6017 = vmatpush.bf16.msra.mxu0 0
    %6018 = vmatpush.bf16.msra.mxu0 %v6009
    %6019 = vmatmul.bf16.gmra.mxu0 %v6006
    %v6020 = vpop.f32.mrf.mxu0
    %v6021 = vadd.f32 0.0, %v6020
    %v6022 = vpop.f32.mrf.mxu0
    %6023 = vdwg.mxu0
    %6024 = vrot.lane.b32.xlu0 %v5249, 56
    %v6025 = vpop.permute.xlu0 %6024
    %v6027 = vsel %vm205, %v5916, 0
    %v6030 = vsel %vm494, %v6025, 0
    %6032 = vmatpush.bf16.msra.mxu0 0
    %6033 = vmatpush.bf16.msra.mxu0 0
    %6034 = vmatpush.bf16.msra.mxu0 0
    %6035 = vmatpush.bf16.msra.mxu0 0
    %6036 = vmatpush.bf16.msra.mxu0 0
    %6037 = vmatpush.bf16.msra.mxu0 0
    %6038 = vmatpush.bf16.msra.mxu0 0
    %6039 = vmatpush.bf16.msra.mxu0 %v6030
    %6040 = vmatmul.bf16.gmra.mxu0 %v6027
    %v6041 = vpop.f32.mrf.mxu0
    %v6042 = vadd.f32 0.0, %v6041
    %v6043 = vpop.f32.mrf.mxu0
    %6044 = vdwg.mxu0
    %6045 = vrot.lane.b32.xlu0 %v5273, 56
    %v6046 = vpop.permute.xlu0 %6045
    %v6048 = vsel %vm205, %v5917, 0
    %v6051 = vsel %vm494, %v6046, 0
    %6053 = vmatpush.bf16.msra.mxu0 0
    %6054 = vmatpush.bf16.msra.mxu0 0
    %6055 = vmatpush.bf16.msra.mxu0 0
    %6056 = vmatpush.bf16.msra.mxu0 0
    %6057 = vmatpush.bf16.msra.mxu0 0
    %6058 = vmatpush.bf16.msra.mxu0 0
    %6059 = vmatpush.bf16.msra.mxu0 0
    %6060 = vmatpush.bf16.msra.mxu0 %v6051
    %6061 = vmatmul.bf16.gmra.mxu0 %v6048
    %v6062 = vpop.f32.mrf.mxu0
    %v6063 = vadd.f32 0.0, %v6062
    %v6064 = vpop.f32.mrf.mxu0
    %6065 = vdwg.mxu0
    %6066 = vrot.lane.b32.xlu0 %v5297, 56
    %v6067 = vpop.permute.xlu0 %6066
    %v6069 = vsel %vm205, %v5918, 0
    %v6072 = vsel %vm494, %v6067, 0
    %6074 = vmatpush.bf16.msra.mxu0 0
    %6075 = vmatpush.bf16.msra.mxu0 0
    %6076 = vmatpush.bf16.msra.mxu0 0
    %6077 = vmatpush.bf16.msra.mxu0 0
    %6078 = vmatpush.bf16.msra.mxu0 0
    %6079 = vmatpush.bf16.msra.mxu0 0
    %6080 = vmatpush.bf16.msra.mxu0 0
    %6081 = vmatpush.bf16.msra.mxu0 %v6072
    %6082 = vmatmul.bf16.gmra.mxu0 %v6069
    %v6083 = vpop.f32.mrf.mxu0
    %v6084 = vadd.f32 0.0, %v6083
    %v6085 = vpop.f32.mrf.mxu0
    %6086 = vdwg.mxu0
    %v6087 = vpack.c.bf16 %v5958, %v5937
    %v6088 = vpack.c.bf16 %v6000, %v5979
    %v6089 = vpack.c.bf16 %v6042, %v6021
    %v6090 = vpack.c.bf16 %v6084, %v6063
    %v6092 = vsel %vm205, %v6087, 0
    %v6095 = vsel %vm205, %v6088, 0
    %v6098 = vsel %vm205, %v6089, 0
    %v6101 = vsel %vm205, %v6090, 0
    %v6104 = vsel %vm494, %v5118, 0
    %6106 = vmatpush.bf16.msra.mxu0 0
    %6107 = vmatpush.bf16.msra.mxu0 0
    %6108 = vmatpush.bf16.msra.mxu0 0
    %6109 = vmatpush.bf16.msra.mxu0 0
    %6110 = vmatpush.bf16.msra.mxu0 0
    %6111 = vmatpush.bf16.msra.mxu0 0
    %6112 = vmatpush.bf16.msra.mxu0 0
    %6113 = vmatpush.bf16.msra.mxu0 %v6104
    %6114 = vmatmul.bf16.gmra.mxu0 %v6092
    %v6115 = vpop.f32.mrf.mxu0
    %v6116 = vadd.f32 0.0, %v6115
    %v6117 = vpop.f32.mrf.mxu0
    %v6118 = vadd.f32 0.0, %v6117
    %6119 = vmatmul.bf16.gmra.mxu0 %v6095
    %v6120 = vpop.f32.mrf.mxu0
    %v6121 = vadd.f32 0.0, %v6120
    %v6122 = vpop.f32.mrf.mxu0
    %v6123 = vadd.f32 0.0, %v6122
    %6124 = vmatmul.bf16.gmra.mxu0 %v6098
    %v6125 = vpop.f32.mrf.mxu0
    %v6126 = vadd.f32 0.0, %v6125
    %v6127 = vpop.f32.mrf.mxu0
    %v6128 = vadd.f32 0.0, %v6127
    %6129 = vmatmul.bf16.gmra.mxu0 %v6101
    %v6130 = vpop.f32.mrf.mxu0
    %v6131 = vadd.f32 0.0, %v6130
    %v6132 = vpop.f32.mrf.mxu0
    %v6133 = vadd.f32 0.0, %v6132
    %6134 = vdwg.mxu0
    %v6135 = vadd.f32 %v5631, %v6116
    %v6136 = vadd.f32 %v5632, %v6118
    %v6137 = vadd.f32 %v5633, %v6121
    %v6138 = vadd.f32 %v5634, %v6123
    %v6139 = vadd.f32 %v5635, %v6126
    %v6140 = vadd.f32 %v5636, %v6128
    %v6141 = vadd.f32 %v5637, %v6131
    %v6142 = vadd.f32 %v5638, %v6133
    %6143 = vrot.lane.b32.xlu0 %v5129, 112
    %v6144 = vpop.permute.xlu0 %6143
    %6145 = vrot.lane.b32.xlu0 %v5129, 80
    %v6146 = vpop.permute.xlu0 %6145
    %v6148 = vsel %vm205, %v6144, 0
    %v6151 = vsel %vm205, %v6146, 0
    %6153 = vmatpush.bf16.xpose.msra.mxu0 0
    %6154 = vmatpush.bf16.xpose.msra.mxu0 0
    %6155 = vmatpush.bf16.xpose.msra.mxu0 0
    %6156 = vmatpush.bf16.xpose.msra.mxu0 0
    %6157 = vmatpush.bf16.xpose.msra.mxu0 0
    %6158 = vmatpush.bf16.xpose.msra.mxu0 0
    %6159 = vmatpush.bf16.xpose.msra.mxu0 0
    %6160 = vmatpush.bf16.xpose.msra.mxu0 %v6151
    %6161 = vmatmul.bf16.gmra.mxu0 %v6148
    %v6162 = vpop.f32.mrf.mxu0
    %v6163 = vadd.f32 %v101, %v6162
    %v6164 = vpop.f32.mrf.mxu0
    %6165 = vdwg.mxu0
    %6166 = vrot.lane.b32.xlu0 %v5153, 112
    %v6167 = vpop.permute.xlu0 %6166
    %6168 = vrot.lane.b32.xlu0 %v5153, 80
    %v6169 = vpop.permute.xlu0 %6168
    %v6171 = vsel %vm205, %v6167, 0
    %v6174 = vsel %vm205, %v6169, 0
    %6176 = vmatpush.bf16.xpose.msra.mxu0 0
    %6177 = vmatpush.bf16.xpose.msra.mxu0 0
    %6178 = vmatpush.bf16.xpose.msra.mxu0 0
    %6179 = vmatpush.bf16.xpose.msra.mxu0 0
    %6180 = vmatpush.bf16.xpose.msra.mxu0 0
    %6181 = vmatpush.bf16.xpose.msra.mxu0 0
    %6182 = vmatpush.bf16.xpose.msra.mxu0 0
    %6183 = vmatpush.bf16.xpose.msra.mxu0 %v6174
    %6184 = vmatmul.bf16.gmra.mxu0 %v6171
    %v6185 = vpop.f32.mrf.mxu0
    %v6186 = vadd.f32 %v102, %v6185
    %v6187 = vpop.f32.mrf.mxu0
    %6188 = vdwg.mxu0
    %6189 = vrot.lane.b32.xlu0 %v5177, 112
    %v6190 = vpop.permute.xlu0 %6189
    %6191 = vrot.lane.b32.xlu0 %v5177, 80
    %v6192 = vpop.permute.xlu0 %6191
    %v6194 = vsel %vm205, %v6190, 0
    %v6197 = vsel %vm205, %v6192, 0
    %6199 = vmatpush.bf16.xpose.msra.mxu0 0
    %6200 = vmatpush.bf16.xpose.msra.mxu0 0
    %6201 = vmatpush.bf16.xpose.msra.mxu0 0
    %6202 = vmatpush.bf16.xpose.msra.mxu0 0
    %6203 = vmatpush.bf16.xpose.msra.mxu0 0
    %6204 = vmatpush.bf16.xpose.msra.mxu0 0
    %6205 = vmatpush.bf16.xpose.msra.mxu0 0
    %6206 = vmatpush.bf16.xpose.msra.mxu0 %v6197
    %6207 = vmatmul.bf16.gmra.mxu0 %v6194
    %v6208 = vpop.f32.mrf.mxu0
    %v6209 = vadd.f32 %v103, %v6208
    %v6210 = vpop.f32.mrf.mxu0
    %6211 = vdwg.mxu0
    %6212 = vrot.lane.b32.xlu0 %v5201, 112
    %v6213 = vpop.permute.xlu0 %6212
    %6214 = vrot.lane.b32.xlu0 %v5201, 80
    %v6215 = vpop.permute.xlu0 %6214
    %v6217 = vsel %vm205, %v6213, 0
    %v6220 = vsel %vm205, %v6215, 0
    %6222 = vmatpush.bf16.xpose.msra.mxu0 0
    %6223 = vmatpush.bf16.xpose.msra.mxu0 0
    %6224 = vmatpush.bf16.xpose.msra.mxu0 0
    %6225 = vmatpush.bf16.xpose.msra.mxu0 0
    %6226 = vmatpush.bf16.xpose.msra.mxu0 0
    %6227 = vmatpush.bf16.xpose.msra.mxu0 0
    %6228 = vmatpush.bf16.xpose.msra.mxu0 0
    %6229 = vmatpush.bf16.xpose.msra.mxu0 %v6220
    %6230 = vmatmul.bf16.gmra.mxu0 %v6217
    %v6231 = vpop.f32.mrf.mxu0
    %v6232 = vadd.f32 %v104, %v6231
    %v6233 = vpop.f32.mrf.mxu0
    %6234 = vdwg.mxu0
    %6235 = vrot.lane.b32.xlu0 %v5225, 112
    %v6236 = vpop.permute.xlu0 %6235
    %6237 = vrot.lane.b32.xlu0 %v5225, 80
    %v6238 = vpop.permute.xlu0 %6237
    %v6240 = vsel %vm205, %v6236, 0
    %v6243 = vsel %vm205, %v6238, 0
    %6245 = vmatpush.bf16.xpose.msra.mxu0 0
    %6246 = vmatpush.bf16.xpose.msra.mxu0 0
    %6247 = vmatpush.bf16.xpose.msra.mxu0 0
    %6248 = vmatpush.bf16.xpose.msra.mxu0 0
    %6249 = vmatpush.bf16.xpose.msra.mxu0 0
    %6250 = vmatpush.bf16.xpose.msra.mxu0 0
    %6251 = vmatpush.bf16.xpose.msra.mxu0 0
    %6252 = vmatpush.bf16.xpose.msra.mxu0 %v6243
    %6253 = vmatmul.bf16.gmra.mxu0 %v6240
    %v6254 = vpop.f32.mrf.mxu0
    %v6255 = vadd.f32 %v105, %v6254
    %v6256 = vpop.f32.mrf.mxu0
    %6257 = vdwg.mxu0
    %6258 = vrot.lane.b32.xlu0 %v5249, 112
    %v6259 = vpop.permute.xlu0 %6258
    %6260 = vrot.lane.b32.xlu0 %v5249, 80
    %v6261 = vpop.permute.xlu0 %6260
    %v6263 = vsel %vm205, %v6259, 0
    %v6266 = vsel %vm205, %v6261, 0
    %6268 = vmatpush.bf16.xpose.msra.mxu0 0
    %6269 = vmatpush.bf16.xpose.msra.mxu0 0
    %6270 = vmatpush.bf16.xpose.msra.mxu0 0
    %6271 = vmatpush.bf16.xpose.msra.mxu0 0
    %6272 = vmatpush.bf16.xpose.msra.mxu0 0
    %6273 = vmatpush.bf16.xpose.msra.mxu0 0
    %6274 = vmatpush.bf16.xpose.msra.mxu0 0
    %6275 = vmatpush.bf16.xpose.msra.mxu0 %v6266
    %6276 = vmatmul.bf16.gmra.mxu0 %v6263
    %v6277 = vpop.f32.mrf.mxu0
    %v6278 = vadd.f32 %v106, %v6277
    %v6279 = vpop.f32.mrf.mxu0
    %6280 = vdwg.mxu0
    %6281 = vrot.lane.b32.xlu0 %v5273, 112
    %v6282 = vpop.permute.xlu0 %6281
    %6283 = vrot.lane.b32.xlu0 %v5273, 80
    %v6284 = vpop.permute.xlu0 %6283
    %v6286 = vsel %vm205, %v6282, 0
    %v6289 = vsel %vm205, %v6284, 0
    %6291 = vmatpush.bf16.xpose.msra.mxu0 0
    %6292 = vmatpush.bf16.xpose.msra.mxu0 0
    %6293 = vmatpush.bf16.xpose.msra.mxu0 0
    %6294 = vmatpush.bf16.xpose.msra.mxu0 0
    %6295 = vmatpush.bf16.xpose.msra.mxu0 0
    %6296 = vmatpush.bf16.xpose.msra.mxu0 0
    %6297 = vmatpush.bf16.xpose.msra.mxu0 0
    %6298 = vmatpush.bf16.xpose.msra.mxu0 %v6289
    %6299 = vmatmul.bf16.gmra.mxu0 %v6286
    %v6300 = vpop.f32.mrf.mxu0
    %v6301 = vadd.f32 %v107, %v6300
    %v6302 = vpop.f32.mrf.mxu0
    %6303 = vdwg.mxu0
    %6304 = vrot.lane.b32.xlu0 %v5297, 112
    %v6305 = vpop.permute.xlu0 %6304
    %6306 = vrot.lane.b32.xlu0 %v5297, 80
    %v6307 = vpop.permute.xlu0 %6306
    %v6309 = vsel %vm205, %v6305, 0
    %v6312 = vsel %vm205, %v6307, 0
    %6314 = vmatpush.bf16.xpose.msra.mxu0 0
    %6315 = vmatpush.bf16.xpose.msra.mxu0 0
    %6316 = vmatpush.bf16.xpose.msra.mxu0 0
    %6317 = vmatpush.bf16.xpose.msra.mxu0 0
    %6318 = vmatpush.bf16.xpose.msra.mxu0 0
    %6319 = vmatpush.bf16.xpose.msra.mxu0 0
    %6320 = vmatpush.bf16.xpose.msra.mxu0 0
    %6321 = vmatpush.bf16.xpose.msra.mxu0 %v6312
    %6322 = vmatmul.bf16.gmra.mxu0 %v6309
    %v6323 = vpop.f32.mrf.mxu0
    %v6324 = vadd.f32 %v108, %v6323
    %v6325 = vpop.f32.mrf.mxu0
    %6326 = vdwg.mxu0
    %v6327 = vsel %vm205, %v6163, -inf
    %6328 = vmax.xlane.f32.xlu0 %v6327
    %v6329 = vpop.xlane.xlu0 %6328
    %v6330 = vsel %vm205, %v6186, -inf
    %6331 = vmax.xlane.f32.xlu0 %v6330
    %v6332 = vpop.xlane.xlu0 %6331
    %v6333 = vsel %vm205, %v6209, -inf
    %6334 = vmax.xlane.f32.xlu0 %v6333
    %v6335 = vpop.xlane.xlu0 %6334
    %v6336 = vsel %vm205, %v6232, -inf
    %6337 = vmax.xlane.f32.xlu0 %v6336
    %v6338 = vpop.xlane.xlu0 %6337
    %v6339 = vsel %vm205, %v6255, -inf
    %6340 = vmax.xlane.f32.xlu0 %v6339
    %v6341 = vpop.xlane.xlu0 %6340
    %v6342 = vsel %vm205, %v6278, -inf
    %6343 = vmax.xlane.f32.xlu0 %v6342
    %v6344 = vpop.xlane.xlu0 %6343
    %v6345 = vsel %vm205, %v6301, -inf
    %6346 = vmax.xlane.f32.xlu0 %v6345
    %v6347 = vpop.xlane.xlu0 %6346
    %v6348 = vsel %vm205, %v6324, -inf
    %6349 = vmax.xlane.f32.xlu0 %v6348
    %v6350 = vpop.xlane.xlu0 %6349
    %v6351 = vsub.f32 %v6163, %v6329
    %v6352 = vsub.f32 %v6186, %v6332
    %v6353 = vsub.f32 %v6209, %v6335
    %v6354 = vsub.f32 %v6232, %v6338
    %v6355 = vsub.f32 %v6255, %v6341
    %v6356 = vsub.f32 %v6278, %v6344
    %v6357 = vsub.f32 %v6301, %v6347
    %v6358 = vsub.f32 %v6324, %v6350
    %v6359 = vmul.f32 %v6351, 1.442695
    %v6360 = vpow.pop %v6359
    %v6361 = vmul.f32 %v6352, 1.442695
    %v6362 = vpow.pop %v6361
    %v6363 = vmul.f32 %v6353, 1.442695
    %v6364 = vpow.pop %v6363
    %v6365 = vmul.f32 %v6354, 1.442695
    %v6366 = vpow.pop %v6365
    %v6367 = vmul.f32 %v6355, 1.442695
    %v6368 = vpow.pop %v6367
    %v6369 = vmul.f32 %v6356, 1.442695
    %v6370 = vpow.pop %v6369
    %v6371 = vmul.f32 %v6357, 1.442695
    %v6372 = vpow.pop %v6371
    %v6373 = vmul.f32 %v6358, 1.442695
    %v6374 = vpow.pop %v6373
    %v6375 = vsel %vm205, %v6360, 0.0
    %6376 = vadd.xlane.f32.xlu0 %v6375
    %v6377 = vpop.xlane.xlu0 %6376
    %v6378 = vsel %vm205, %v6362, 0.0
    %6379 = vadd.xlane.f32.xlu0 %v6378
    %v6380 = vpop.xlane.xlu0 %6379
    %v6381 = vsel %vm205, %v6364, 0.0
    %6382 = vadd.xlane.f32.xlu0 %v6381
    %v6383 = vpop.xlane.xlu0 %6382
    %v6384 = vsel %vm205, %v6366, 0.0
    %6385 = vadd.xlane.f32.xlu0 %v6384
    %v6386 = vpop.xlane.xlu0 %6385
    %v6387 = vsel %vm205, %v6368, 0.0
    %6388 = vadd.xlane.f32.xlu0 %v6387
    %v6389 = vpop.xlane.xlu0 %6388
    %v6390 = vsel %vm205, %v6370, 0.0
    %6391 = vadd.xlane.f32.xlu0 %v6390
    %v6392 = vpop.xlane.xlu0 %6391
    %v6393 = vsel %vm205, %v6372, 0.0
    %6394 = vadd.xlane.f32.xlu0 %v6393
    %v6395 = vpop.xlane.xlu0 %6394
    %v6396 = vsel %vm205, %v6374, 0.0
    %6397 = vadd.xlane.f32.xlu0 %v6396
    %v6398 = vpop.xlane.xlu0 %6397
    %v6399 = vrcp.pop %v6377
    %v6400 = vrcp.pop %v6380
    %v6401 = vrcp.pop %v6383
    %v6402 = vrcp.pop %v6386
    %v6403 = vrcp.pop %v6389
    %v6404 = vrcp.pop %v6392
    %v6405 = vrcp.pop %v6395
    %v6406 = vrcp.pop %v6398
    %v6407 = vmul.f32 %v6360, %v6399
    %v6408 = vmul.f32 %v6362, %v6400
    %v6409 = vmul.f32 %v6364, %v6401
    %v6410 = vmul.f32 %v6366, %v6402
    %v6411 = vmul.f32 %v6368, %v6403
    %v6412 = vmul.f32 %v6370, %v6404
    %v6413 = vmul.f32 %v6372, %v6405
    %v6414 = vmul.f32 %v6374, %v6406
    %v6415 = vpack.c.bf16 %v6407, %v6407
    %v6416 = vpack.c.bf16 %v6408, %v6408
    %v6417 = vpack.c.bf16 %v6409, %v6409
    %v6418 = vpack.c.bf16 %v6410, %v6410
    %v6419 = vpack.c.bf16 %v6411, %v6411
    %v6420 = vpack.c.bf16 %v6412, %v6412
    %v6421 = vpack.c.bf16 %v6413, %v6413
    %v6422 = vpack.c.bf16 %v6414, %v6414
    %6423 = vrot.lane.b32.xlu0 %v5129, 48
    %v6424 = vpop.permute.xlu0 %6423
    %v6426 = vsel %vm205, %v6415, 0
    %v6429 = vsel %vm494, %v6424, 0
    %6431 = vmatpush.bf16.msra.mxu0 0
    %6432 = vmatpush.bf16.msra.mxu0 0
    %6433 = vmatpush.bf16.msra.mxu0 0
    %6434 = vmatpush.bf16.msra.mxu0 0
    %6435 = vmatpush.bf16.msra.mxu0 0
    %6436 = vmatpush.bf16.msra.mxu0 0
    %6437 = vmatpush.bf16.msra.mxu0 0
    %6438 = vmatpush.bf16.msra.mxu0 %v6429
    %6439 = vmatmul.bf16.gmra.mxu0 %v6426
    %v6440 = vpop.f32.mrf.mxu0
    %v6441 = vadd.f32 0.0, %v6440
    %v6442 = vpop.f32.mrf.mxu0
    %6443 = vdwg.mxu0
    %6444 = vrot.lane.b32.xlu0 %v5153, 48
    %v6445 = vpop.permute.xlu0 %6444
    %v6447 = vsel %vm205, %v6416, 0
    %v6450 = vsel %vm494, %v6445, 0
    %6452 = vmatpush.bf16.msra.mxu0 0
    %6453 = vmatpush.bf16.msra.mxu0 0
    %6454 = vmatpush.bf16.msra.mxu0 0
    %6455 = vmatpush.bf16.msra.mxu0 0
    %6456 = vmatpush.bf16.msra.mxu0 0
    %6457 = vmatpush.bf16.msra.mxu0 0
    %6458 = vmatpush.bf16.msra.mxu0 0
    %6459 = vmatpush.bf16.msra.mxu0 %v6450
    %6460 = vmatmul.bf16.gmra.mxu0 %v6447
    %v6461 = vpop.f32.mrf.mxu0
    %v6462 = vadd.f32 0.0, %v6461
    %v6463 = vpop.f32.mrf.mxu0
    %6464 = vdwg.mxu0
    %6465 = vrot.lane.b32.xlu0 %v5177, 48
    %v6466 = vpop.permute.xlu0 %6465
    %v6468 = vsel %vm205, %v6417, 0
    %v6471 = vsel %vm494, %v6466, 0
    %6473 = vmatpush.bf16.msra.mxu0 0
    %6474 = vmatpush.bf16.msra.mxu0 0
    %6475 = vmatpush.bf16.msra.mxu0 0
    %6476 = vmatpush.bf16.msra.mxu0 0
    %6477 = vmatpush.bf16.msra.mxu0 0
    %6478 = vmatpush.bf16.msra.mxu0 0
    %6479 = vmatpush.bf16.msra.mxu0 0
    %6480 = vmatpush.bf16.msra.mxu0 %v6471
    %6481 = vmatmul.bf16.gmra.mxu0 %v6468
    %v6482 = vpop.f32.mrf.mxu0
    %v6483 = vadd.f32 0.0, %v6482
    %v6484 = vpop.f32.mrf.mxu0
    %6485 = vdwg.mxu0
    %6486 = vrot.lane.b32.xlu0 %v5201, 48
    %v6487 = vpop.permute.xlu0 %6486
    %v6489 = vsel %vm205, %v6418, 0
    %v6492 = vsel %vm494, %v6487, 0
    %6494 = vmatpush.bf16.msra.mxu0 0
    %6495 = vmatpush.bf16.msra.mxu0 0
    %6496 = vmatpush.bf16.msra.mxu0 0
    %6497 = vmatpush.bf16.msra.mxu0 0
    %6498 = vmatpush.bf16.msra.mxu0 0
    %6499 = vmatpush.bf16.msra.mxu0 0
    %6500 = vmatpush.bf16.msra.mxu0 0
    %6501 = vmatpush.bf16.msra.mxu0 %v6492
    %6502 = vmatmul.bf16.gmra.mxu0 %v6489
    %v6503 = vpop.f32.mrf.mxu0
    %v6504 = vadd.f32 0.0, %v6503
    %v6505 = vpop.f32.mrf.mxu0
    %6506 = vdwg.mxu0
    %6507 = vrot.lane.b32.xlu0 %v5225, 48
    %v6508 = vpop.permute.xlu0 %6507
    %v6510 = vsel %vm205, %v6419, 0
    %v6513 = vsel %vm494, %v6508, 0
    %6515 = vmatpush.bf16.msra.mxu0 0
    %6516 = vmatpush.bf16.msra.mxu0 0
    %6517 = vmatpush.bf16.msra.mxu0 0
    %6518 = vmatpush.bf16.msra.mxu0 0
    %6519 = vmatpush.bf16.msra.mxu0 0
    %6520 = vmatpush.bf16.msra.mxu0 0
    %6521 = vmatpush.bf16.msra.mxu0 0
    %6522 = vmatpush.bf16.msra.mxu0 %v6513
    %6523 = vmatmul.bf16.gmra.mxu0 %v6510
    %v6524 = vpop.f32.mrf.mxu0
    %v6525 = vadd.f32 0.0, %v6524
    %v6526 = vpop.f32.mrf.mxu0
    %6527 = vdwg.mxu0
    %6528 = vrot.lane.b32.xlu0 %v5249, 48
    %v6529 = vpop.permute.xlu0 %6528
    %v6531 = vsel %vm205, %v6420, 0
    %v6534 = vsel %vm494, %v6529, 0
    %6536 = vmatpush.bf16.msra.mxu0 0
    %6537 = vmatpush.bf16.msra.mxu0 0
    %6538 = vmatpush.bf16.msra.mxu0 0
    %6539 = vmatpush.bf16.msra.mxu0 0
    %6540 = vmatpush.bf16.msra.mxu0 0
    %6541 = vmatpush.bf16.msra.mxu0 0
    %6542 = vmatpush.bf16.msra.mxu0 0
    %6543 = vmatpush.bf16.msra.mxu0 %v6534
    %6544 = vmatmul.bf16.gmra.mxu0 %v6531
    %v6545 = vpop.f32.mrf.mxu0
    %v6546 = vadd.f32 0.0, %v6545
    %v6547 = vpop.f32.mrf.mxu0
    %6548 = vdwg.mxu0
    %6549 = vrot.lane.b32.xlu0 %v5273, 48
    %v6550 = vpop.permute.xlu0 %6549
    %v6552 = vsel %vm205, %v6421, 0
    %v6555 = vsel %vm494, %v6550, 0
    %6557 = vmatpush.bf16.msra.mxu0 0
    %6558 = vmatpush.bf16.msra.mxu0 0
    %6559 = vmatpush.bf16.msra.mxu0 0
    %6560 = vmatpush.bf16.msra.mxu0 0
    %6561 = vmatpush.bf16.msra.mxu0 0
    %6562 = vmatpush.bf16.msra.mxu0 0
    %6563 = vmatpush.bf16.msra.mxu0 0
    %6564 = vmatpush.bf16.msra.mxu0 %v6555
    %6565 = vmatmul.bf16.gmra.mxu0 %v6552
    %v6566 = vpop.f32.mrf.mxu0
    %v6567 = vadd.f32 0.0, %v6566
    %v6568 = vpop.f32.mrf.mxu0
    %6569 = vdwg.mxu0
    %6570 = vrot.lane.b32.xlu0 %v5297, 48
    %v6571 = vpop.permute.xlu0 %6570
    %v6573 = vsel %vm205, %v6422, 0
    %v6576 = vsel %vm494, %v6571, 0
    %6578 = vmatpush.bf16.msra.mxu0 0
    %6579 = vmatpush.bf16.msra.mxu0 0
    %6580 = vmatpush.bf16.msra.mxu0 0
    %6581 = vmatpush.bf16.msra.mxu0 0
    %6582 = vmatpush.bf16.msra.mxu0 0
    %6583 = vmatpush.bf16.msra.mxu0 0
    %6584 = vmatpush.bf16.msra.mxu0 0
    %6585 = vmatpush.bf16.msra.mxu0 %v6576
    %6586 = vmatmul.bf16.gmra.mxu0 %v6573
    %v6587 = vpop.f32.mrf.mxu0
    %v6588 = vadd.f32 0.0, %v6587
    %v6589 = vpop.f32.mrf.mxu0
    %6590 = vdwg.mxu0
    %v6591 = vpack.c.bf16 %v6462, %v6441
    %v6592 = vpack.c.bf16 %v6504, %v6483
    %v6593 = vpack.c.bf16 %v6546, %v6525
    %v6594 = vpack.c.bf16 %v6588, %v6567
    %v6596 = vsel %vm205, %v6591, 0
    %v6599 = vsel %vm205, %v6592, 0
    %v6602 = vsel %vm205, %v6593, 0
    %v6605 = vsel %vm205, %v6594, 0
    %v6608 = vsel %vm494, %v5119, 0
    %6610 = vmatpush.bf16.msra.mxu0 0
    %6611 = vmatpush.bf16.msra.mxu0 0
    %6612 = vmatpush.bf16.msra.mxu0 0
    %6613 = vmatpush.bf16.msra.mxu0 0
    %6614 = vmatpush.bf16.msra.mxu0 0
    %6615 = vmatpush.bf16.msra.mxu0 0
    %6616 = vmatpush.bf16.msra.mxu0 0
    %6617 = vmatpush.bf16.msra.mxu0 %v6608
    %6618 = vmatmul.bf16.gmra.mxu0 %v6596
    %v6619 = vpop.f32.mrf.mxu0
    %v6620 = vadd.f32 0.0, %v6619
    %v6621 = vpop.f32.mrf.mxu0
    %v6622 = vadd.f32 0.0, %v6621
    %6623 = vmatmul.bf16.gmra.mxu0 %v6599
    %v6624 = vpop.f32.mrf.mxu0
    %v6625 = vadd.f32 0.0, %v6624
    %v6626 = vpop.f32.mrf.mxu0
    %v6627 = vadd.f32 0.0, %v6626
    %6628 = vmatmul.bf16.gmra.mxu0 %v6602
    %v6629 = vpop.f32.mrf.mxu0
    %v6630 = vadd.f32 0.0, %v6629
    %v6631 = vpop.f32.mrf.mxu0
    %v6632 = vadd.f32 0.0, %v6631
    %6633 = vmatmul.bf16.gmra.mxu0 %v6605
    %v6634 = vpop.f32.mrf.mxu0
    %v6635 = vadd.f32 0.0, %v6634
    %v6636 = vpop.f32.mrf.mxu0
    %v6637 = vadd.f32 0.0, %v6636
    %6638 = vdwg.mxu0
    %v6639 = vadd.f32 %v6135, %v6620
    %v6640 = vadd.f32 %v6136, %v6622
    %v6641 = vadd.f32 %v6137, %v6625
    %v6642 = vadd.f32 %v6138, %v6627
    %v6643 = vadd.f32 %v6139, %v6630
    %v6644 = vadd.f32 %v6140, %v6632
    %v6645 = vadd.f32 %v6141, %v6635
    %v6646 = vadd.f32 %v6142, %v6637
    %6647 = vrot.lane.b32.xlu0 %v5129, 104
    %v6648 = vpop.permute.xlu0 %6647
    %6649 = vrot.lane.b32.xlu0 %v5129, 72
    %v6650 = vpop.permute.xlu0 %6649
    %v6652 = vsel %vm205, %v6648, 0
    %v6655 = vsel %vm205, %v6650, 0
    %6657 = vmatpush.bf16.xpose.msra.mxu0 0
    %6658 = vmatpush.bf16.xpose.msra.mxu0 0
    %6659 = vmatpush.bf16.xpose.msra.mxu0 0
    %6660 = vmatpush.bf16.xpose.msra.mxu0 0
    %6661 = vmatpush.bf16.xpose.msra.mxu0 0
    %6662 = vmatpush.bf16.xpose.msra.mxu0 0
    %6663 = vmatpush.bf16.xpose.msra.mxu0 0
    %6664 = vmatpush.bf16.xpose.msra.mxu0 %v6655
    %6665 = vmatmul.bf16.gmra.mxu0 %v6652
    %v6666 = vpop.f32.mrf.mxu0
    %v6667 = vadd.f32 %v101, %v6666
    %v6668 = vpop.f32.mrf.mxu0
    %6669 = vdwg.mxu0
    %6670 = vrot.lane.b32.xlu0 %v5153, 104
    %v6671 = vpop.permute.xlu0 %6670
    %6672 = vrot.lane.b32.xlu0 %v5153, 72
    %v6673 = vpop.permute.xlu0 %6672
    %v6675 = vsel %vm205, %v6671, 0
    %v6678 = vsel %vm205, %v6673, 0
    %6680 = vmatpush.bf16.xpose.msra.mxu0 0
    %6681 = vmatpush.bf16.xpose.msra.mxu0 0
    %6682 = vmatpush.bf16.xpose.msra.mxu0 0
    %6683 = vmatpush.bf16.xpose.msra.mxu0 0
    %6684 = vmatpush.bf16.xpose.msra.mxu0 0
    %6685 = vmatpush.bf16.xpose.msra.mxu0 0
    %6686 = vmatpush.bf16.xpose.msra.mxu0 0
    %6687 = vmatpush.bf16.xpose.msra.mxu0 %v6678
    %6688 = vmatmul.bf16.gmra.mxu0 %v6675
    %v6689 = vpop.f32.mrf.mxu0
    %v6690 = vadd.f32 %v102, %v6689
    %v6691 = vpop.f32.mrf.mxu0
    %6692 = vdwg.mxu0
    %6693 = vrot.lane.b32.xlu0 %v5177, 104
    %v6694 = vpop.permute.xlu0 %6693
    %6695 = vrot.lane.b32.xlu0 %v5177, 72
    %v6696 = vpop.permute.xlu0 %6695
    %v6698 = vsel %vm205, %v6694, 0
    %v6701 = vsel %vm205, %v6696, 0
    %6703 = vmatpush.bf16.xpose.msra.mxu0 0
    %6704 = vmatpush.bf16.xpose.msra.mxu0 0
    %6705 = vmatpush.bf16.xpose.msra.mxu0 0
    %6706 = vmatpush.bf16.xpose.msra.mxu0 0
    %6707 = vmatpush.bf16.xpose.msra.mxu0 0
    %6708 = vmatpush.bf16.xpose.msra.mxu0 0
    %6709 = vmatpush.bf16.xpose.msra.mxu0 0
    %6710 = vmatpush.bf16.xpose.msra.mxu0 %v6701
    %6711 = vmatmul.bf16.gmra.mxu0 %v6698
    %v6712 = vpop.f32.mrf.mxu0
    %v6713 = vadd.f32 %v103, %v6712
    %v6714 = vpop.f32.mrf.mxu0
    %6715 = vdwg.mxu0
    %6716 = vrot.lane.b32.xlu0 %v5201, 104
    %v6717 = vpop.permute.xlu0 %6716
    %6718 = vrot.lane.b32.xlu0 %v5201, 72
    %v6719 = vpop.permute.xlu0 %6718
    %v6721 = vsel %vm205, %v6717, 0
    %v6724 = vsel %vm205, %v6719, 0
    %6726 = vmatpush.bf16.xpose.msra.mxu0 0
    %6727 = vmatpush.bf16.xpose.msra.mxu0 0
    %6728 = vmatpush.bf16.xpose.msra.mxu0 0
    %6729 = vmatpush.bf16.xpose.msra.mxu0 0
    %6730 = vmatpush.bf16.xpose.msra.mxu0 0
    %6731 = vmatpush.bf16.xpose.msra.mxu0 0
    %6732 = vmatpush.bf16.xpose.msra.mxu0 0
    %6733 = vmatpush.bf16.xpose.msra.mxu0 %v6724
    %6734 = vmatmul.bf16.gmra.mxu0 %v6721
    %v6735 = vpop.f32.mrf.mxu0
    %v6736 = vadd.f32 %v104, %v6735
    %v6737 = vpop.f32.mrf.mxu0
    %6738 = vdwg.mxu0
    %6739 = vrot.lane.b32.xlu0 %v5225, 104
    %v6740 = vpop.permute.xlu0 %6739
    %6741 = vrot.lane.b32.xlu0 %v5225, 72
    %v6742 = vpop.permute.xlu0 %6741
    %v6744 = vsel %vm205, %v6740, 0
    %v6747 = vsel %vm205, %v6742, 0
    %6749 = vmatpush.bf16.xpose.msra.mxu0 0
    %6750 = vmatpush.bf16.xpose.msra.mxu0 0
    %6751 = vmatpush.bf16.xpose.msra.mxu0 0
    %6752 = vmatpush.bf16.xpose.msra.mxu0 0
    %6753 = vmatpush.bf16.xpose.msra.mxu0 0
    %6754 = vmatpush.bf16.xpose.msra.mxu0 0
    %6755 = vmatpush.bf16.xpose.msra.mxu0 0
    %6756 = vmatpush.bf16.xpose.msra.mxu0 %v6747
    %6757 = vmatmul.bf16.gmra.mxu0 %v6744
    %v6758 = vpop.f32.mrf.mxu0
    %v6759 = vadd.f32 %v105, %v6758
    %v6760 = vpop.f32.mrf.mxu0
    %6761 = vdwg.mxu0
    %6762 = vrot.lane.b32.xlu0 %v5249, 104
    %v6763 = vpop.permute.xlu0 %6762
    %6764 = vrot.lane.b32.xlu0 %v5249, 72
    %v6765 = vpop.permute.xlu0 %6764
    %v6767 = vsel %vm205, %v6763, 0
    %v6770 = vsel %vm205, %v6765, 0
    %6772 = vmatpush.bf16.xpose.msra.mxu0 0
    %6773 = vmatpush.bf16.xpose.msra.mxu0 0
    %6774 = vmatpush.bf16.xpose.msra.mxu0 0
    %6775 = vmatpush.bf16.xpose.msra.mxu0 0
    %6776 = vmatpush.bf16.xpose.msra.mxu0 0
    %6777 = vmatpush.bf16.xpose.msra.mxu0 0
    %6778 = vmatpush.bf16.xpose.msra.mxu0 0
    %6779 = vmatpush.bf16.xpose.msra.mxu0 %v6770
    %6780 = vmatmul.bf16.gmra.mxu0 %v6767
    %v6781 = vpop.f32.mrf.mxu0
    %v6782 = vadd.f32 %v106, %v6781
    %v6783 = vpop.f32.mrf.mxu0
    %6784 = vdwg.mxu0
    %6785 = vrot.lane.b32.xlu0 %v5273, 104
    %v6786 = vpop.permute.xlu0 %6785
    %6787 = vrot.lane.b32.xlu0 %v5273, 72
    %v6788 = vpop.permute.xlu0 %6787
    %v6790 = vsel %vm205, %v6786, 0
    %v6793 = vsel %vm205, %v6788, 0
    %6795 = vmatpush.bf16.xpose.msra.mxu0 0
    %6796 = vmatpush.bf16.xpose.msra.mxu0 0
    %6797 = vmatpush.bf16.xpose.msra.mxu0 0
    %6798 = vmatpush.bf16.xpose.msra.mxu0 0
    %6799 = vmatpush.bf16.xpose.msra.mxu0 0
    %6800 = vmatpush.bf16.xpose.msra.mxu0 0
    %6801 = vmatpush.bf16.xpose.msra.mxu0 0
    %6802 = vmatpush.bf16.xpose.msra.mxu0 %v6793
    %6803 = vmatmul.bf16.gmra.mxu0 %v6790
    %v6804 = vpop.f32.mrf.mxu0
    %v6805 = vadd.f32 %v107, %v6804
    %v6806 = vpop.f32.mrf.mxu0
    %6807 = vdwg.mxu0
    %6808 = vrot.lane.b32.xlu0 %v5297, 104
    %v6809 = vpop.permute.xlu0 %6808
    %6810 = vrot.lane.b32.xlu0 %v5297, 72
    %v6811 = vpop.permute.xlu0 %6810
    %v6813 = vsel %vm205, %v6809, 0
    %v6816 = vsel %vm205, %v6811, 0
    %6818 = vmatpush.bf16.xpose.msra.mxu0 0
    %6819 = vmatpush.bf16.xpose.msra.mxu0 0
    %6820 = vmatpush.bf16.xpose.msra.mxu0 0
    %6821 = vmatpush.bf16.xpose.msra.mxu0 0
    %6822 = vmatpush.bf16.xpose.msra.mxu0 0
    %6823 = vmatpush.bf16.xpose.msra.mxu0 0
    %6824 = vmatpush.bf16.xpose.msra.mxu0 0
    %6825 = vmatpush.bf16.xpose.msra.mxu0 %v6816
    %6826 = vmatmul.bf16.gmra.mxu0 %v6813
    %v6827 = vpop.f32.mrf.mxu0
    %v6828 = vadd.f32 %v108, %v6827
    %v6829 = vpop.f32.mrf.mxu0
    %6830 = vdwg.mxu0
    %v6831 = vsel %vm205, %v6667, -inf
    %6832 = vmax.xlane.f32.xlu0 %v6831
    %v6833 = vpop.xlane.xlu0 %6832
    %v6834 = vsel %vm205, %v6690, -inf
    %6835 = vmax.xlane.f32.xlu0 %v6834
    %v6836 = vpop.xlane.xlu0 %6835
    %v6837 = vsel %vm205, %v6713, -inf
    %6838 = vmax.xlane.f32.xlu0 %v6837
    %v6839 = vpop.xlane.xlu0 %6838
    %v6840 = vsel %vm205, %v6736, -inf
    %6841 = vmax.xlane.f32.xlu0 %v6840
    %v6842 = vpop.xlane.xlu0 %6841
    %v6843 = vsel %vm205, %v6759, -inf
    %6844 = vmax.xlane.f32.xlu0 %v6843
    %v6845 = vpop.xlane.xlu0 %6844
    %v6846 = vsel %vm205, %v6782, -inf
    %6847 = vmax.xlane.f32.xlu0 %v6846
    %v6848 = vpop.xlane.xlu0 %6847
    %v6849 = vsel %vm205, %v6805, -inf
    %6850 = vmax.xlane.f32.xlu0 %v6849
    %v6851 = vpop.xlane.xlu0 %6850
    %v6852 = vsel %vm205, %v6828, -inf
    %6853 = vmax.xlane.f32.xlu0 %v6852
    %v6854 = vpop.xlane.xlu0 %6853
    %v6855 = vsub.f32 %v6667, %v6833
    %v6856 = vsub.f32 %v6690, %v6836
    %v6857 = vsub.f32 %v6713, %v6839
    %v6858 = vsub.f32 %v6736, %v6842
    %v6859 = vsub.f32 %v6759, %v6845
    %v6860 = vsub.f32 %v6782, %v6848
    %v6861 = vsub.f32 %v6805, %v6851
    %v6862 = vsub.f32 %v6828, %v6854
    %v6863 = vmul.f32 %v6855, 1.442695
    %v6864 = vpow.pop %v6863
    %v6865 = vmul.f32 %v6856, 1.442695
    %v6866 = vpow.pop %v6865
    %v6867 = vmul.f32 %v6857, 1.442695
    %v6868 = vpow.pop %v6867
    %v6869 = vmul.f32 %v6858, 1.442695
    %v6870 = vpow.pop %v6869
    %v6871 = vmul.f32 %v6859, 1.442695
    %v6872 = vpow.pop %v6871
    %v6873 = vmul.f32 %v6860, 1.442695
    %v6874 = vpow.pop %v6873
    %v6875 = vmul.f32 %v6861, 1.442695
    %v6876 = vpow.pop %v6875
    %v6877 = vmul.f32 %v6862, 1.442695
    %v6878 = vpow.pop %v6877
    %v6879 = vsel %vm205, %v6864, 0.0
    %6880 = vadd.xlane.f32.xlu0 %v6879
    %v6881 = vpop.xlane.xlu0 %6880
    %v6882 = vsel %vm205, %v6866, 0.0
    %6883 = vadd.xlane.f32.xlu0 %v6882
    %v6884 = vpop.xlane.xlu0 %6883
    %v6885 = vsel %vm205, %v6868, 0.0
    %6886 = vadd.xlane.f32.xlu0 %v6885
    %v6887 = vpop.xlane.xlu0 %6886
    %v6888 = vsel %vm205, %v6870, 0.0
    %6889 = vadd.xlane.f32.xlu0 %v6888
    %v6890 = vpop.xlane.xlu0 %6889
    %v6891 = vsel %vm205, %v6872, 0.0
    %6892 = vadd.xlane.f32.xlu0 %v6891
    %v6893 = vpop.xlane.xlu0 %6892
    %v6894 = vsel %vm205, %v6874, 0.0
    %6895 = vadd.xlane.f32.xlu0 %v6894
    %v6896 = vpop.xlane.xlu0 %6895
    %v6897 = vsel %vm205, %v6876, 0.0
    %6898 = vadd.xlane.f32.xlu0 %v6897
    %v6899 = vpop.xlane.xlu0 %6898
    %v6900 = vsel %vm205, %v6878, 0.0
    %6901 = vadd.xlane.f32.xlu0 %v6900
    %v6902 = vpop.xlane.xlu0 %6901
    %v6903 = vrcp.pop %v6881
    %v6904 = vrcp.pop %v6884
    %v6905 = vrcp.pop %v6887
    %v6906 = vrcp.pop %v6890
    %v6907 = vrcp.pop %v6893
    %v6908 = vrcp.pop %v6896
    %v6909 = vrcp.pop %v6899
    %v6910 = vrcp.pop %v6902
    %v6911 = vmul.f32 %v6864, %v6903
    %v6912 = vmul.f32 %v6866, %v6904
    %v6913 = vmul.f32 %v6868, %v6905
    %v6914 = vmul.f32 %v6870, %v6906
    %v6915 = vmul.f32 %v6872, %v6907
    %v6916 = vmul.f32 %v6874, %v6908
    %v6917 = vmul.f32 %v6876, %v6909
    %v6918 = vmul.f32 %v6878, %v6910
    %v6919 = vpack.c.bf16 %v6911, %v6911
    %v6920 = vpack.c.bf16 %v6912, %v6912
    %v6921 = vpack.c.bf16 %v6913, %v6913
    %v6922 = vpack.c.bf16 %v6914, %v6914
    %v6923 = vpack.c.bf16 %v6915, %v6915
    %v6924 = vpack.c.bf16 %v6916, %v6916
    %v6925 = vpack.c.bf16 %v6917, %v6917
    %v6926 = vpack.c.bf16 %v6918, %v6918
    %6927 = vrot.lane.b32.xlu0 %v5129, 40
    %v6928 = vpop.permute.xlu0 %6927
    %v6930 = vsel %vm205, %v6919, 0
    %v6933 = vsel %vm494, %v6928, 0
    %6935 = vmatpush.bf16.msra.mxu0 0
    %6936 = vmatpush.bf16.msra.mxu0 0
    %6937 = vmatpush.bf16.msra.mxu0 0
    %6938 = vmatpush.bf16.msra.mxu0 0
    %6939 = vmatpush.bf16.msra.mxu0 0
    %6940 = vmatpush.bf16.msra.mxu0 0
    %6941 = vmatpush.bf16.msra.mxu0 0
    %6942 = vmatpush.bf16.msra.mxu0 %v6933
    %6943 = vmatmul.bf16.gmra.mxu0 %v6930
    %v6944 = vpop.f32.mrf.mxu0
    %v6945 = vadd.f32 0.0, %v6944
    %v6946 = vpop.f32.mrf.mxu0
    %6947 = vdwg.mxu0
    %6948 = vrot.lane.b32.xlu0 %v5153, 40
    %v6949 = vpop.permute.xlu0 %6948
    %v6951 = vsel %vm205, %v6920, 0
    %v6954 = vsel %vm494, %v6949, 0
    %6956 = vmatpush.bf16.msra.mxu0 0
    %6957 = vmatpush.bf16.msra.mxu0 0
    %6958 = vmatpush.bf16.msra.mxu0 0
    %6959 = vmatpush.bf16.msra.mxu0 0
    %6960 = vmatpush.bf16.msra.mxu0 0
    %6961 = vmatpush.bf16.msra.mxu0 0
    %6962 = vmatpush.bf16.msra.mxu0 0
    %6963 = vmatpush.bf16.msra.mxu0 %v6954
    %6964 = vmatmul.bf16.gmra.mxu0 %v6951
    %v6965 = vpop.f32.mrf.mxu0
    %v6966 = vadd.f32 0.0, %v6965
    %v6967 = vpop.f32.mrf.mxu0
    %6968 = vdwg.mxu0
    %6969 = vrot.lane.b32.xlu0 %v5177, 40
    %v6970 = vpop.permute.xlu0 %6969
    %v6972 = vsel %vm205, %v6921, 0
    %v6975 = vsel %vm494, %v6970, 0
    %6977 = vmatpush.bf16.msra.mxu0 0
    %6978 = vmatpush.bf16.msra.mxu0 0
    %6979 = vmatpush.bf16.msra.mxu0 0
    %6980 = vmatpush.bf16.msra.mxu0 0
    %6981 = vmatpush.bf16.msra.mxu0 0
    %6982 = vmatpush.bf16.msra.mxu0 0
    %6983 = vmatpush.bf16.msra.mxu0 0
    %6984 = vmatpush.bf16.msra.mxu0 %v6975
    %6985 = vmatmul.bf16.gmra.mxu0 %v6972
    %v6986 = vpop.f32.mrf.mxu0
    %v6987 = vadd.f32 0.0, %v6986
    %v6988 = vpop.f32.mrf.mxu0
    %6989 = vdwg.mxu0
    %6990 = vrot.lane.b32.xlu0 %v5201, 40
    %v6991 = vpop.permute.xlu0 %6990
    %v6993 = vsel %vm205, %v6922, 0
    %v6996 = vsel %vm494, %v6991, 0
    %6998 = vmatpush.bf16.msra.mxu0 0
    %6999 = vmatpush.bf16.msra.mxu0 0
    %7000 = vmatpush.bf16.msra.mxu0 0
    %7001 = vmatpush.bf16.msra.mxu0 0
    %7002 = vmatpush.bf16.msra.mxu0 0
    %7003 = vmatpush.bf16.msra.mxu0 0
    %7004 = vmatpush.bf16.msra.mxu0 0
    %7005 = vmatpush.bf16.msra.mxu0 %v6996
    %7006 = vmatmul.bf16.gmra.mxu0 %v6993
    %v7007 = vpop.f32.mrf.mxu0
    %v7008 = vadd.f32 0.0, %v7007
    %v7009 = vpop.f32.mrf.mxu0
    %7010 = vdwg.mxu0
    %7011 = vrot.lane.b32.xlu0 %v5225, 40
    %v7012 = vpop.permute.xlu0 %7011
    %v7014 = vsel %vm205, %v6923, 0
    %v7017 = vsel %vm494, %v7012, 0
    %7019 = vmatpush.bf16.msra.mxu0 0
    %7020 = vmatpush.bf16.msra.mxu0 0
    %7021 = vmatpush.bf16.msra.mxu0 0
    %7022 = vmatpush.bf16.msra.mxu0 0
    %7023 = vmatpush.bf16.msra.mxu0 0
    %7024 = vmatpush.bf16.msra.mxu0 0
    %7025 = vmatpush.bf16.msra.mxu0 0
    %7026 = vmatpush.bf16.msra.mxu0 %v7017
    %7027 = vmatmul.bf16.gmra.mxu0 %v7014
    %v7028 = vpop.f32.mrf.mxu0
    %v7029 = vadd.f32 0.0, %v7028
    %v7030 = vpop.f32.mrf.mxu0
    %7031 = vdwg.mxu0
    %7032 = vrot.lane.b32.xlu0 %v5249, 40
    %v7033 = vpop.permute.xlu0 %7032
    %v7035 = vsel %vm205, %v6924, 0
    %v7038 = vsel %vm494, %v7033, 0
    %7040 = vmatpush.bf16.msra.mxu0 0
    %7041 = vmatpush.bf16.msra.mxu0 0
    %7042 = vmatpush.bf16.msra.mxu0 0
    %7043 = vmatpush.bf16.msra.mxu0 0
    %7044 = vmatpush.bf16.msra.mxu0 0
    %7045 = vmatpush.bf16.msra.mxu0 0
    %7046 = vmatpush.bf16.msra.mxu0 0
    %7047 = vmatpush.bf16.msra.mxu0 %v7038
    %7048 = vmatmul.bf16.gmra.mxu0 %v7035
    %v7049 = vpop.f32.mrf.mxu0
    %v7050 = vadd.f32 0.0, %v7049
    %v7051 = vpop.f32.mrf.mxu0
    %7052 = vdwg.mxu0
    %7053 = vrot.lane.b32.xlu0 %v5273, 40
    %v7054 = vpop.permute.xlu0 %7053
    %v7056 = vsel %vm205, %v6925, 0
    %v7059 = vsel %vm494, %v7054, 0
    %7061 = vmatpush.bf16.msra.mxu0 0
    %7062 = vmatpush.bf16.msra.mxu0 0
    %7063 = vmatpush.bf16.msra.mxu0 0
    %7064 = vmatpush.bf16.msra.mxu0 0
    %7065 = vmatpush.bf16.msra.mxu0 0
    %7066 = vmatpush.bf16.msra.mxu0 0
    %7067 = vmatpush.bf16.msra.mxu0 0
    %7068 = vmatpush.bf16.msra.mxu0 %v7059
    %7069 = vmatmul.bf16.gmra.mxu0 %v7056
    %v7070 = vpop.f32.mrf.mxu0
    %v7071 = vadd.f32 0.0, %v7070
    %v7072 = vpop.f32.mrf.mxu0
    %7073 = vdwg.mxu0
    %7074 = vrot.lane.b32.xlu0 %v5297, 40
    %v7075 = vpop.permute.xlu0 %7074
    %v7077 = vsel %vm205, %v6926, 0
    %v7080 = vsel %vm494, %v7075, 0
    %7082 = vmatpush.bf16.msra.mxu0 0
    %7083 = vmatpush.bf16.msra.mxu0 0
    %7084 = vmatpush.bf16.msra.mxu0 0
    %7085 = vmatpush.bf16.msra.mxu0 0
    %7086 = vmatpush.bf16.msra.mxu0 0
    %7087 = vmatpush.bf16.msra.mxu0 0
    %7088 = vmatpush.bf16.msra.mxu0 0
    %7089 = vmatpush.bf16.msra.mxu0 %v7080
    %7090 = vmatmul.bf16.gmra.mxu0 %v7077
    %v7091 = vpop.f32.mrf.mxu0
    %v7092 = vadd.f32 0.0, %v7091
    %v7093 = vpop.f32.mrf.mxu0
    %7094 = vdwg.mxu0
    %v7095 = vpack.c.bf16 %v6966, %v6945
    %v7096 = vpack.c.bf16 %v7008, %v6987
    %v7097 = vpack.c.bf16 %v7050, %v7029
    %v7098 = vpack.c.bf16 %v7092, %v7071
    %v7100 = vsel %vm205, %v7095, 0
    %v7103 = vsel %vm205, %v7096, 0
    %v7106 = vsel %vm205, %v7097, 0
    %v7109 = vsel %vm205, %v7098, 0
    %v7112 = vsel %vm494, %v5120, 0
    %7114 = vmatpush.bf16.msra.mxu0 0
    %7115 = vmatpush.bf16.msra.mxu0 0
    %7116 = vmatpush.bf16.msra.mxu0 0
    %7117 = vmatpush.bf16.msra.mxu0 0
    %7118 = vmatpush.bf16.msra.mxu0 0
    %7119 = vmatpush.bf16.msra.mxu0 0
    %7120 = vmatpush.bf16.msra.mxu0 0
    %7121 = vmatpush.bf16.msra.mxu0 %v7112
    %7122 = vmatmul.bf16.gmra.mxu0 %v7100
    %v7123 = vpop.f32.mrf.mxu0
    %v7124 = vadd.f32 0.0, %v7123
    %v7125 = vpop.f32.mrf.mxu0
    %v7126 = vadd.f32 0.0, %v7125
    %7127 = vmatmul.bf16.gmra.mxu0 %v7103
    %v7128 = vpop.f32.mrf.mxu0
    %v7129 = vadd.f32 0.0, %v7128
    %v7130 = vpop.f32.mrf.mxu0
    %v7131 = vadd.f32 0.0, %v7130
    %7132 = vmatmul.bf16.gmra.mxu0 %v7106
    %v7133 = vpop.f32.mrf.mxu0
    %v7134 = vadd.f32 0.0, %v7133
    %v7135 = vpop.f32.mrf.mxu0
    %v7136 = vadd.f32 0.0, %v7135
    %7137 = vmatmul.bf16.gmra.mxu0 %v7109
    %v7138 = vpop.f32.mrf.mxu0
    %v7139 = vadd.f32 0.0, %v7138
    %v7140 = vpop.f32.mrf.mxu0
    %v7141 = vadd.f32 0.0, %v7140
    %7142 = vdwg.mxu0
    %v7143 = vadd.f32 %v6639, %v7124
    %v7144 = vadd.f32 %v6640, %v7126
    %v7145 = vadd.f32 %v6641, %v7129
    %v7146 = vadd.f32 %v6642, %v7131
    %v7147 = vadd.f32 %v6643, %v7134
    %v7148 = vadd.f32 %v6644, %v7136
    %v7149 = vadd.f32 %v6645, %v7139
    %v7150 = vadd.f32 %v6646, %v7141
    %v7151 = vadd.f32 %v5033, %v7143
    %v7152 = vadd.f32 %v5034, %v7144
    %v7153 = vadd.f32 %v5035, %v7145
    %v7154 = vadd.f32 %v5036, %v7146
    %v7155 = vadd.f32 %v5037, %v7147
    %v7156 = vadd.f32 %v5038, %v7148
    %v7157 = vadd.f32 %v5039, %v7149
    %v7158 = vadd.f32 %v5040, %v7150
    %s7159 = scalar_lea.vmem %s7, 1
    %v7160 = vld [vmem:[%s7159] sm:$0x1]
    %s7161 = scalar_lea.vmem %s8, 1
    %v7162 = vld [vmem:[%s7161] sm:$0x1]
    %v7163 = vsel %vm141, %v7151, 0.0
    %7164 = vadd.xlane.f32.xlu0 %v7163
    %v7165 = vpop.xlane.xlu0 %7164
    %v7166 = vsel %vm141, %v7152, 0.0
    %7167 = vadd.xlane.f32.xlu0 %v7166
    %v7168 = vpop.xlane.xlu0 %7167
    %v7169 = vsel %vm141, %v7153, 0.0
    %7170 = vadd.xlane.f32.xlu0 %v7169
    %v7171 = vpop.xlane.xlu0 %7170
    %v7172 = vsel %vm141, %v7154, 0.0
    %7173 = vadd.xlane.f32.xlu0 %v7172
    %v7174 = vpop.xlane.xlu0 %7173
    %v7175 = vsel %vm141, %v7155, 0.0
    %7176 = vadd.xlane.f32.xlu0 %v7175
    %v7177 = vpop.xlane.xlu0 %7176
    %v7178 = vsel %vm141, %v7156, 0.0
    %7179 = vadd.xlane.f32.xlu0 %v7178
    %v7180 = vpop.xlane.xlu0 %7179
    %v7181 = vsel %vm141, %v7157, 0.0
    %7182 = vadd.xlane.f32.xlu0 %v7181
    %v7183 = vpop.xlane.xlu0 %7182
    %v7184 = vsel %vm141, %v7158, 0.0
    %7185 = vadd.xlane.f32.xlu0 %v7184
    %v7186 = vpop.xlane.xlu0 %7185
    %v7187 = vmul.f32 %v7165, %v2266
    %v7188 = vmul.f32 %v7168, %v2266
    %v7189 = vmul.f32 %v7171, %v2266
    %v7190 = vmul.f32 %v7174, %v2266
    %v7191 = vmul.f32 %v7177, %v2266
    %v7192 = vmul.f32 %v7180, %v2266
    %v7193 = vmul.f32 %v7183, %v2266
    %v7194 = vmul.f32 %v7186, %v2266
    %v7195 = vsub.f32 %v7151, %v7187
    %v7196 = vsub.f32 %v7152, %v7188
    %v7197 = vsub.f32 %v7153, %v7189
    %v7198 = vsub.f32 %v7154, %v7190
    %v7199 = vsub.f32 %v7155, %v7191
    %v7200 = vsub.f32 %v7156, %v7192
    %v7201 = vsub.f32 %v7157, %v7193
    %v7202 = vsub.f32 %v7158, %v7194
    %v7203 = vmul.f32 %v7195, %v7195
    %v7204 = vmul.f32 %v7196, %v7196
    %v7205 = vmul.f32 %v7197, %v7197
    %v7206 = vmul.f32 %v7198, %v7198
    %v7207 = vmul.f32 %v7199, %v7199
    %v7208 = vmul.f32 %v7200, %v7200
    %v7209 = vmul.f32 %v7201, %v7201
    %v7210 = vmul.f32 %v7202, %v7202
    %v7211 = vsel %vm141, %v7203, 0.0
    %7212 = vadd.xlane.f32.xlu0 %v7211
    %v7213 = vpop.xlane.xlu0 %7212
    %v7214 = vsel %vm141, %v7204, 0.0
    %7215 = vadd.xlane.f32.xlu0 %v7214
    %v7216 = vpop.xlane.xlu0 %7215
    %v7217 = vsel %vm141, %v7205, 0.0
    %7218 = vadd.xlane.f32.xlu0 %v7217
    %v7219 = vpop.xlane.xlu0 %7218
    %v7220 = vsel %vm141, %v7206, 0.0
    %7221 = vadd.xlane.f32.xlu0 %v7220
    %v7222 = vpop.xlane.xlu0 %7221
    %v7223 = vsel %vm141, %v7207, 0.0
    %7224 = vadd.xlane.f32.xlu0 %v7223
    %v7225 = vpop.xlane.xlu0 %7224
    %v7226 = vsel %vm141, %v7208, 0.0
    %7227 = vadd.xlane.f32.xlu0 %v7226
    %v7228 = vpop.xlane.xlu0 %7227
    %v7229 = vsel %vm141, %v7209, 0.0
    %7230 = vadd.xlane.f32.xlu0 %v7229
    %v7231 = vpop.xlane.xlu0 %7230
    %v7232 = vsel %vm141, %v7210, 0.0
    %7233 = vadd.xlane.f32.xlu0 %v7232
    %v7234 = vpop.xlane.xlu0 %7233
    %v7235 = vmul.f32 %v7213, %v2266
    %v7236 = vmul.f32 %v7216, %v2266
    %v7237 = vmul.f32 %v7219, %v2266
    %v7238 = vmul.f32 %v7222, %v2266
    %v7239 = vmul.f32 %v7225, %v2266
    %v7240 = vmul.f32 %v7228, %v2266
    %v7241 = vmul.f32 %v7231, %v2266
    %v7242 = vmul.f32 %v7234, %v2266
    %v7243 = vadd.f32 %v7235, 1e-05
    %v7244 = vadd.f32 %v7236, 1e-05
    %v7245 = vadd.f32 %v7237, 1e-05
    %v7246 = vadd.f32 %v7238, 1e-05
    %v7247 = vadd.f32 %v7239, 1e-05
    %v7248 = vadd.f32 %v7240, 1e-05
    %v7249 = vadd.f32 %v7241, 1e-05
    %v7250 = vadd.f32 %v7242, 1e-05
    %v7251 = vrsqrt.pop %v7243
    %v7252 = vmul.f32 %v7251, %v7243
    %v7253 = vmul.f32 %v7252, %v7251
    %v7254 = vmul.f32 0.5, %v7253
    %v7255 = vsub.f32 1.5, %v7254
    %v7256 = vmul.f32 %v7251, %v7255
    %vm7257 = vweird.f32 %v7243
    %vm7258 = vweird.f32 %v7251
    %vm7259 = vmor %vm7257, %vm7258
    %v7260 = vsel %vm7259, %v7251, %v7256
    %v7261 = vrsqrt.pop %v7244
    %v7262 = vmul.f32 %v7261, %v7244
    %v7263 = vmul.f32 %v7262, %v7261
    %v7264 = vmul.f32 0.5, %v7263
    %v7265 = vsub.f32 1.5, %v7264
    %v7266 = vmul.f32 %v7261, %v7265
    %vm7267 = vweird.f32 %v7244
    %vm7268 = vweird.f32 %v7261
    %vm7269 = vmor %vm7267, %vm7268
    %v7270 = vsel %vm7269, %v7261, %v7266
    %v7271 = vrsqrt.pop %v7245
    %v7272 = vmul.f32 %v7271, %v7245
    %v7273 = vmul.f32 %v7272, %v7271
    %v7274 = vmul.f32 0.5, %v7273
    %v7275 = vsub.f32 1.5, %v7274
    %v7276 = vmul.f32 %v7271, %v7275
    %vm7277 = vweird.f32 %v7245
    %vm7278 = vweird.f32 %v7271
    %vm7279 = vmor %vm7277, %vm7278
    %v7280 = vsel %vm7279, %v7271, %v7276
    %v7281 = vrsqrt.pop %v7246
    %v7282 = vmul.f32 %v7281, %v7246
    %v7283 = vmul.f32 %v7282, %v7281
    %v7284 = vmul.f32 0.5, %v7283
    %v7285 = vsub.f32 1.5, %v7284
    %v7286 = vmul.f32 %v7281, %v7285
    %vm7287 = vweird.f32 %v7246
    %vm7288 = vweird.f32 %v7281
    %vm7289 = vmor %vm7287, %vm7288
    %v7290 = vsel %vm7289, %v7281, %v7286
    %v7291 = vrsqrt.pop %v7247
    %v7292 = vmul.f32 %v7291, %v7247
    %v7293 = vmul.f32 %v7292, %v7291
    %v7294 = vmul.f32 0.5, %v7293
    %v7295 = vsub.f32 1.5, %v7294
    %v7296 = vmul.f32 %v7291, %v7295
    %vm7297 = vweird.f32 %v7247
    %vm7298 = vweird.f32 %v7291
    %vm7299 = vmor %vm7297, %vm7298
    %v7300 = vsel %vm7299, %v7291, %v7296
    %v7301 = vrsqrt.pop %v7248
    %v7302 = vmul.f32 %v7301, %v7248
    %v7303 = vmul.f32 %v7302, %v7301
    %v7304 = vmul.f32 0.5, %v7303
    %v7305 = vsub.f32 1.5, %v7304
    %v7306 = vmul.f32 %v7301, %v7305
    %vm7307 = vweird.f32 %v7248
    %vm7308 = vweird.f32 %v7301
    %vm7309 = vmor %vm7307, %vm7308
    %v7310 = vsel %vm7309, %v7301, %v7306
    %v7311 = vrsqrt.pop %v7249
    %v7312 = vmul.f32 %v7311, %v7249
    %v7313 = vmul.f32 %v7312, %v7311
    %v7314 = vmul.f32 0.5, %v7313
    %v7315 = vsub.f32 1.5, %v7314
    %v7316 = vmul.f32 %v7311, %v7315
    %vm7317 = vweird.f32 %v7249
    %vm7318 = vweird.f32 %v7311
    %vm7319 = vmor %vm7317, %vm7318
    %v7320 = vsel %vm7319, %v7311, %v7316
    %v7321 = vrsqrt.pop %v7250
    %v7322 = vmul.f32 %v7321, %v7250
    %v7323 = vmul.f32 %v7322, %v7321
    %v7324 = vmul.f32 0.5, %v7323
    %v7325 = vsub.f32 1.5, %v7324
    %v7326 = vmul.f32 %v7321, %v7325
    %vm7327 = vweird.f32 %v7250
    %vm7328 = vweird.f32 %v7321
    %vm7329 = vmor %vm7327, %vm7328
    %v7330 = vsel %vm7329, %v7321, %v7326
    %v7331 = vmul.f32 %v7195, %v7260
    %v7332 = vmul.f32 %v7196, %v7270
    %v7333 = vmul.f32 %v7197, %v7280
    %v7334 = vmul.f32 %v7198, %v7290
    %v7335 = vmul.f32 %v7199, %v7300
    %v7336 = vmul.f32 %v7200, %v7310
    %v7337 = vmul.f32 %v7201, %v7320
    %v7338 = vmul.f32 %v7202, %v7330
    %v7340 = vperm.slane %v7160, 0
    %v7342 = vmul.f32 %v7331, %v7340
    %v7343 = vmul.f32 %v7332, %v7340
    %v7344 = vmul.f32 %v7333, %v7340
    %v7345 = vmul.f32 %v7334, %v7340
    %v7346 = vmul.f32 %v7335, %v7340
    %v7347 = vmul.f32 %v7336, %v7340
    %v7348 = vmul.f32 %v7337, %v7340
    %v7349 = vmul.f32 %v7338, %v7340
    %v7351 = vperm.slane %v7162, 0
    %v7353 = vadd.f32 %v7342, %v7351
    %v7354 = vadd.f32 %v7343, %v7351
    %v7355 = vadd.f32 %v7344, %v7351
    %v7356 = vadd.f32 %v7345, %v7351
    %v7357 = vadd.f32 %v7346, %v7351
    %v7358 = vadd.f32 %v7347, %v7351
    %v7359 = vadd.f32 %v7348, %v7351
    %v7360 = vadd.f32 %v7349, %v7351
    %v7361 = vpack.c.bf16 %v7354, %v7353
    %v7362 = vpack.c.bf16 %v7356, %v7355
    %v7363 = vpack.c.bf16 %v7358, %v7357
    %v7364 = vpack.c.bf16 %v7360, %v7359
    %s7365 = scalar_lea.vmem %s11, 256
    %v7366 = vld [vmem:[%s7365] sm:$0xff]
    %v7367 = vld [vmem:[%s7365 + $0x8] sm:$0xff]
    %v7368 = vld [vmem:[%s7365 + $0x10] sm:$0xff]
    %v7369 = vld [vmem:[%s7365 + $0x18] sm:$0xff]
    %v7370 = vld [vmem:[%s7365 + $0x20] sm:$0xff]
    %v7371 = vld [vmem:[%s7365 + $0x28] sm:$0xff]
    %v7372 = vld [vmem:[%s7365 + $0x30] sm:$0xff]
    %v7373 = vld [vmem:[%s7365 + $0x38] sm:$0xff]
    %v7374 = vld [vmem:[%s7365 + $0x40] sm:$0xff]
    %v7375 = vld [vmem:[%s7365 + $0x48] sm:$0xff]
    %v7376 = vld [vmem:[%s7365 + $0x50] sm:$0xff]
    %v7377 = vld [vmem:[%s7365 + $0x58] sm:$0xff]
    %v7378 = vld [vmem:[%s7365 + $0x60] sm:$0xff]
    %v7379 = vld [vmem:[%s7365 + $0x68] sm:$0xff]
    %v7380 = vld [vmem:[%s7365 + $0x70] sm:$0xff]
    %v7381 = vld [vmem:[%s7365 + $0x78] sm:$0xff]
    %v7382 = vld [vmem:[%s7365 + $0x80] sm:$0xff]
    %v7383 = vld [vmem:[%s7365 + $0x88] sm:$0xff]
    %v7384 = vld [vmem:[%s7365 + $0x90] sm:$0xff]
    %v7385 = vld [vmem:[%s7365 + $0x98] sm:$0xff]
    %v7386 = vld [vmem:[%s7365 + $0xa0] sm:$0xff]
    %v7387 = vld [vmem:[%s7365 + $0xa8] sm:$0xff]
    %v7388 = vld [vmem:[%s7365 + $0xb0] sm:$0xff]
    %v7389 = vld [vmem:[%s7365 + $0xb8] sm:$0xff]
    %v7390 = vld [vmem:[%s7365 + $0xc0] sm:$0xff]
    %v7391 = vld [vmem:[%s7365 + $0xc8] sm:$0xff]
    %v7392 = vld [vmem:[%s7365 + $0xd0] sm:$0xff]
    %v7393 = vld [vmem:[%s7365 + $0xd8] sm:$0xff]
    %v7394 = vld [vmem:[%s7365 + $0xe0] sm:$0xff]
    %v7395 = vld [vmem:[%s7365 + $0xe8] sm:$0xff]
    %v7396 = vld [vmem:[%s7365 + $0xf0] sm:$0xff]
    %v7397 = vld [vmem:[%s7365 + $0xf8] sm:$0xff]
    %s7398 = scalar_lea.vmem %s12, 16
    %v7399 = vld [vmem:[%s7398] sm:$0xff]
    %v7400 = vld [vmem:[%s7398 + $0x8] sm:$0xff]
    %v7403 = vperm.slane %v7399, 0
    %v7404 = vperm.slane %v7399, 1
    %v7405 = vperm.slane %v7399, 2
    %v7406 = vperm.slane %v7399, 3
    %v7407 = vperm.slane %v7399, 4
    %v7408 = vperm.slane %v7399, 5
    %v7409 = vperm.slane %v7399, 6
    %v7410 = vperm.slane %v7399, 7
    %v7411 = vperm.slane %v7400, 0
    %v7412 = vperm.slane %v7400, 1
    %v7413 = vperm.slane %v7400, 2
    %v7414 = vperm.slane %v7400, 3
    %v7415 = vperm.slane %v7400, 4
    %v7416 = vperm.slane %v7400, 5
    %v7417 = vperm.slane %v7400, 6
    %v7418 = vperm.slane %v7400, 7
    %v7467 = vunpack.c.l.b16 %v7366
    %v7468 = vunpack.c.h.b16 %v7366
    %v7469 = vunpack.c.l.b16 %v7367
    %v7470 = vunpack.c.h.b16 %v7367
    %v7471 = vunpack.c.l.b16 %v7368
    %v7472 = vunpack.c.h.b16 %v7368
    %v7473 = vunpack.c.l.b16 %v7369
    %v7474 = vunpack.c.h.b16 %v7369
    %v7475 = vunpack.c.l.b16 %v7370
    %v7476 = vunpack.c.h.b16 %v7370
    %v7477 = vunpack.c.l.b16 %v7371
    %v7478 = vunpack.c.h.b16 %v7371
    %v7479 = vunpack.c.l.b16 %v7372
    %v7480 = vunpack.c.h.b16 %v7372
    %v7481 = vunpack.c.l.b16 %v7373
    %v7482 = vunpack.c.h.b16 %v7373
    %v7483 = vunpack.c.l.b16 %v7374
    %v7484 = vunpack.c.h.b16 %v7374
    %v7485 = vunpack.c.l.b16 %v7375
    %v7486 = vunpack.c.h.b16 %v7375
    %v7487 = vunpack.c.l.b16 %v7376
    %v7488 = vunpack.c.h.b16 %v7376
    %v7489 = vunpack.c.l.b16 %v7377
    %v7490 = vunpack.c.h.b16 %v7377
    %v7491 = vunpack.c.l.b16 %v7378
    %v7492 = vunpack.c.h.b16 %v7378
    %v7493 = vunpack.c.l.b16 %v7379
    %v7494 = vunpack.c.h.b16 %v7379
    %v7495 = vunpack.c.l.b16 %v7380
    %v7496 = vunpack.c.h.b16 %v7380
    %v7497 = vunpack.c.l.b16 %v7381
    %v7498 = vunpack.c.h.b16 %v7381
    %v7499 = vunpack.c.l.b16 %v7382
    %v7500 = vunpack.c.h.b16 %v7382
    %v7501 = vunpack.c.l.b16 %v7383
    %v7502 = vunpack.c.h.b16 %v7383
    %v7503 = vunpack.c.l.b16 %v7384
    %v7504 = vunpack.c.h.b16 %v7384
    %v7505 = vunpack.c.l.b16 %v7385
    %v7506 = vunpack.c.h.b16 %v7385
    %v7507 = vunpack.c.l.b16 %v7386
    %v7508 = vunpack.c.h.b16 %v7386
    %v7509 = vunpack.c.l.b16 %v7387
    %v7510 = vunpack.c.h.b16 %v7387
    %v7511 = vunpack.c.l.b16 %v7388
    %v7512 = vunpack.c.h.b16 %v7388
    %v7513 = vunpack.c.l.b16 %v7389
    %v7514 = vunpack.c.h.b16 %v7389
    %v7515 = vunpack.c.l.b16 %v7390
    %v7516 = vunpack.c.h.b16 %v7390
    %v7517 = vunpack.c.l.b16 %v7391
    %v7518 = vunpack.c.h.b16 %v7391
    %v7519 = vunpack.c.l.b16 %v7392
    %v7520 = vunpack.c.h.b16 %v7392
    %v7521 = vunpack.c.l.b16 %v7393
    %v7522 = vunpack.c.h.b16 %v7393
    %v7523 = vunpack.c.l.b16 %v7394
    %v7524 = vunpack.c.h.b16 %v7394
    %v7525 = vunpack.c.l.b16 %v7395
    %v7526 = vunpack.c.h.b16 %v7395
    %v7527 = vunpack.c.l.b16 %v7396
    %v7528 = vunpack.c.h.b16 %v7396
    %v7529 = vunpack.c.l.b16 %v7397
    %v7530 = vunpack.c.h.b16 %v7397
    %v7531 = vpack.c.b16 %v7483, %v7467
    %v7532 = vpack.c.b16 %v7484, %v7468
    %v7533 = vpack.c.b16 %v7485, %v7469
    %v7534 = vpack.c.b16 %v7486, %v7470
    %v7535 = vpack.c.b16 %v7487, %v7471
    %v7536 = vpack.c.b16 %v7488, %v7472
    %v7537 = vpack.c.b16 %v7489, %v7473
    %v7538 = vpack.c.b16 %v7490, %v7474
    %v7539 = vpack.c.b16 %v7491, %v7475
    %v7540 = vpack.c.b16 %v7492, %v7476
    %v7541 = vpack.c.b16 %v7493, %v7477
    %v7542 = vpack.c.b16 %v7494, %v7478
    %v7543 = vpack.c.b16 %v7495, %v7479
    %v7544 = vpack.c.b16 %v7496, %v7480
    %v7545 = vpack.c.b16 %v7497, %v7481
    %v7546 = vpack.c.b16 %v7498, %v7482
    %v7547 = vpack.c.b16 %v7515, %v7499
    %v7548 = vpack.c.b16 %v7516, %v7500
    %v7549 = vpack.c.b16 %v7517, %v7501
    %v7550 = vpack.c.b16 %v7518, %v7502
    %v7551 = vpack.c.b16 %v7519, %v7503
    %v7552 = vpack.c.b16 %v7520, %v7504
    %v7553 = vpack.c.b16 %v7521, %v7505
    %v7554 = vpack.c.b16 %v7522, %v7506
    %v7555 = vpack.c.b16 %v7523, %v7507
    %v7556 = vpack.c.b16 %v7524, %v7508
    %v7557 = vpack.c.b16 %v7525, %v7509
    %v7558 = vpack.c.b16 %v7526, %v7510
    %v7559 = vpack.c.b16 %v7527, %v7511
    %v7560 = vpack.c.b16 %v7528, %v7512
    %v7561 = vpack.c.b16 %v7529, %v7513
    %v7562 = vpack.c.b16 %v7530, %v7514
    %v7596 = vsel %vm141, %v7361, 0
    %v7599 = vsel %vm141, %v7362, 0
    %v7602 = vsel %vm141, %v7363, 0
    %v7605 = vsel %vm141, %v7364, 0
    %7607 = vmatpush.bf16.msra.mxu0 0
    %7608 = vmatpush.bf16.msra.mxu0 0
    %7609 = vmatpush.bf16.msra.mxu0 0
    %7610 = vmatpush.bf16.msra.mxu0 0
    %7611 = vmatpush.bf16.msra.mxu0 0
    %7612 = vmatpush.bf16.msra.mxu0 0
    %7613 = vmatpush.bf16.msra.mxu0 %v7547
    %7614 = vmatpush.bf16.msra.mxu0 %v7531
    %7615 = vmatmul.bf16.gmra.mxu0 %v7596
    %v7616 = vpop.f32.mrf.mxu0
    %v7617 = vadd.f32 %v7403, %v7616
    %v7618 = vpop.f32.mrf.mxu0
    %v7619 = vadd.f32 %v7403, %v7618
    %7620 = vmatmul.bf16.gmra.mxu0 %v7599
    %v7621 = vpop.f32.mrf.mxu0
    %v7622 = vadd.f32 %v7403, %v7621
    %v7623 = vpop.f32.mrf.mxu0
    %v7624 = vadd.f32 %v7403, %v7623
    %7625 = vmatmul.bf16.gmra.mxu0 %v7602
    %v7626 = vpop.f32.mrf.mxu0
    %v7627 = vadd.f32 %v7403, %v7626
    %v7628 = vpop.f32.mrf.mxu0
    %v7629 = vadd.f32 %v7403, %v7628
    %7630 = vmatmul.bf16.gmra.mxu0 %v7605
    %v7631 = vpop.f32.mrf.mxu0
    %v7632 = vadd.f32 %v7403, %v7631
    %v7633 = vpop.f32.mrf.mxu0
    %v7634 = vadd.f32 %v7403, %v7633
    %7635 = vdwg.mxu0
    %7636 = vmatpush.bf16.msra.mxu0 0
    %7637 = vmatpush.bf16.msra.mxu0 0
    %7638 = vmatpush.bf16.msra.mxu0 0
    %7639 = vmatpush.bf16.msra.mxu0 0
    %7640 = vmatpush.bf16.msra.mxu0 0
    %7641 = vmatpush.bf16.msra.mxu0 0
    %7642 = vmatpush.bf16.msra.mxu0 %v7548
    %7643 = vmatpush.bf16.msra.mxu0 %v7532
    %7644 = vmatmul.bf16.gmra.mxu0 %v7596
    %v7645 = vpop.f32.mrf.mxu0
    %v7646 = vadd.f32 %v7404, %v7645
    %v7647 = vpop.f32.mrf.mxu0
    %v7648 = vadd.f32 %v7404, %v7647
    %7649 = vmatmul.bf16.gmra.mxu0 %v7599
    %v7650 = vpop.f32.mrf.mxu0
    %v7651 = vadd.f32 %v7404, %v7650
    %v7652 = vpop.f32.mrf.mxu0
    %v7653 = vadd.f32 %v7404, %v7652
    %7654 = vmatmul.bf16.gmra.mxu0 %v7602
    %v7655 = vpop.f32.mrf.mxu0
    %v7656 = vadd.f32 %v7404, %v7655
    %v7657 = vpop.f32.mrf.mxu0
    %v7658 = vadd.f32 %v7404, %v7657
    %7659 = vmatmul.bf16.gmra.mxu0 %v7605
    %v7660 = vpop.f32.mrf.mxu0
    %v7661 = vadd.f32 %v7404, %v7660
    %v7662 = vpop.f32.mrf.mxu0
    %v7663 = vadd.f32 %v7404, %v7662
    %7664 = vdwg.mxu0
    %7665 = vmatpush.bf16.msra.mxu0 0
    %7666 = vmatpush.bf16.msra.mxu0 0
    %7667 = vmatpush.bf16.msra.mxu0 0
    %7668 = vmatpush.bf16.msra.mxu0 0
    %7669 = vmatpush.bf16.msra.mxu0 0
    %7670 = vmatpush.bf16.msra.mxu0 0
    %7671 = vmatpush.bf16.msra.mxu0 %v7549
    %7672 = vmatpush.bf16.msra.mxu0 %v7533
    %7673 = vmatmul.bf16.gmra.mxu0 %v7596
    %v7674 = vpop.f32.mrf.mxu0
    %v7675 = vadd.f32 %v7405, %v7674
    %v7676 = vpop.f32.mrf.mxu0
    %v7677 = vadd.f32 %v7405, %v7676
    %7678 = vmatmul.bf16.gmra.mxu0 %v7599
    %v7679 = vpop.f32.mrf.mxu0
    %v7680 = vadd.f32 %v7405, %v7679
    %v7681 = vpop.f32.mrf.mxu0
    %v7682 = vadd.f32 %v7405, %v7681
    %7683 = vmatmul.bf16.gmra.mxu0 %v7602
    %v7684 = vpop.f32.mrf.mxu0
    %v7685 = vadd.f32 %v7405, %v7684
    %v7686 = vpop.f32.mrf.mxu0
    %v7687 = vadd.f32 %v7405, %v7686
    %7688 = vmatmul.bf16.gmra.mxu0 %v7605
    %v7689 = vpop.f32.mrf.mxu0
    %v7690 = vadd.f32 %v7405, %v7689
    %v7691 = vpop.f32.mrf.mxu0
    %v7692 = vadd.f32 %v7405, %v7691
    %7693 = vdwg.mxu0
    %7694 = vmatpush.bf16.msra.mxu0 0
    %7695 = vmatpush.bf16.msra.mxu0 0
    %7696 = vmatpush.bf16.msra.mxu0 0
    %7697 = vmatpush.bf16.msra.mxu0 0
    %7698 = vmatpush.bf16.msra.mxu0 0
    %7699 = vmatpush.bf16.msra.mxu0 0
    %7700 = vmatpush.bf16.msra.mxu0 %v7550
    %7701 = vmatpush.bf16.msra.mxu0 %v7534
    %7702 = vmatmul.bf16.gmra.mxu0 %v7596
    %v7703 = vpop.f32.mrf.mxu0
    %v7704 = vadd.f32 %v7406, %v7703
    %v7705 = vpop.f32.mrf.mxu0
    %v7706 = vadd.f32 %v7406, %v7705
    %7707 = vmatmul.bf16.gmra.mxu0 %v7599
    %v7708 = vpop.f32.mrf.mxu0
    %v7709 = vadd.f32 %v7406, %v7708
    %v7710 = vpop.f32.mrf.mxu0
    %v7711 = vadd.f32 %v7406, %v7710
    %7712 = vmatmul.bf16.gmra.mxu0 %v7602
    %v7713 = vpop.f32.mrf.mxu0
    %v7714 = vadd.f32 %v7406, %v7713
    %v7715 = vpop.f32.mrf.mxu0
    %v7716 = vadd.f32 %v7406, %v7715
    %7717 = vmatmul.bf16.gmra.mxu0 %v7605
    %v7718 = vpop.f32.mrf.mxu0
    %v7719 = vadd.f32 %v7406, %v7718
    %v7720 = vpop.f32.mrf.mxu0
    %v7721 = vadd.f32 %v7406, %v7720
    %7722 = vdwg.mxu0
    %7723 = vmatpush.bf16.msra.mxu0 0
    %7724 = vmatpush.bf16.msra.mxu0 0
    %7725 = vmatpush.bf16.msra.mxu0 0
    %7726 = vmatpush.bf16.msra.mxu0 0
    %7727 = vmatpush.bf16.msra.mxu0 0
    %7728 = vmatpush.bf16.msra.mxu0 0
    %7729 = vmatpush.bf16.msra.mxu0 %v7551
    %7730 = vmatpush.bf16.msra.mxu0 %v7535
    %7731 = vmatmul.bf16.gmra.mxu0 %v7596
    %v7732 = vpop.f32.mrf.mxu0
    %v7733 = vadd.f32 %v7407, %v7732
    %v7734 = vpop.f32.mrf.mxu0
    %v7735 = vadd.f32 %v7407, %v7734
    %7736 = vmatmul.bf16.gmra.mxu0 %v7599
    %v7737 = vpop.f32.mrf.mxu0
    %v7738 = vadd.f32 %v7407, %v7737
    %v7739 = vpop.f32.mrf.mxu0
    %v7740 = vadd.f32 %v7407, %v7739
    %7741 = vmatmul.bf16.gmra.mxu0 %v7602
    %v7742 = vpop.f32.mrf.mxu0
    %v7743 = vadd.f32 %v7407, %v7742
    %v7744 = vpop.f32.mrf.mxu0
    %v7745 = vadd.f32 %v7407, %v7744
    %7746 = vmatmul.bf16.gmra.mxu0 %v7605
    %v7747 = vpop.f32.mrf.mxu0
    %v7748 = vadd.f32 %v7407, %v7747
    %v7749 = vpop.f32.mrf.mxu0
    %v7750 = vadd.f32 %v7407, %v7749
    %7751 = vdwg.mxu0
    %7752 = vmatpush.bf16.msra.mxu0 0
    %7753 = vmatpush.bf16.msra.mxu0 0
    %7754 = vmatpush.bf16.msra.mxu0 0
    %7755 = vmatpush.bf16.msra.mxu0 0
    %7756 = vmatpush.bf16.msra.mxu0 0
    %7757 = vmatpush.bf16.msra.mxu0 0
    %7758 = vmatpush.bf16.msra.mxu0 %v7552
    %7759 = vmatpush.bf16.msra.mxu0 %v7536
    %7760 = vmatmul.bf16.gmra.mxu0 %v7596
    %v7761 = vpop.f32.mrf.mxu0
    %v7762 = vadd.f32 %v7408, %v7761
    %v7763 = vpop.f32.mrf.mxu0
    %v7764 = vadd.f32 %v7408, %v7763
    %7765 = vmatmul.bf16.gmra.mxu0 %v7599
    %v7766 = vpop.f32.mrf.mxu0
    %v7767 = vadd.f32 %v7408, %v7766
    %v7768 = vpop.f32.mrf.mxu0
    %v7769 = vadd.f32 %v7408, %v7768
    %7770 = vmatmul.bf16.gmra.mxu0 %v7602
    %v7771 = vpop.f32.mrf.mxu0
    %v7772 = vadd.f32 %v7408, %v7771
    %v7773 = vpop.f32.mrf.mxu0
    %v7774 = vadd.f32 %v7408, %v7773
    %7775 = vmatmul.bf16.gmra.mxu0 %v7605
    %v7776 = vpop.f32.mrf.mxu0
    %v7777 = vadd.f32 %v7408, %v7776
    %v7778 = vpop.f32.mrf.mxu0
    %v7779 = vadd.f32 %v7408, %v7778
    %7780 = vdwg.mxu0
    %7781 = vmatpush.bf16.msra.mxu0 0
    %7782 = vmatpush.bf16.msra.mxu0 0
    %7783 = vmatpush.bf16.msra.mxu0 0
    %7784 = vmatpush.bf16.msra.mxu0 0
    %7785 = vmatpush.bf16.msra.mxu0 0
    %7786 = vmatpush.bf16.msra.mxu0 0
    %7787 = vmatpush.bf16.msra.mxu0 %v7553
    %7788 = vmatpush.bf16.msra.mxu0 %v7537
    %7789 = vmatmul.bf16.gmra.mxu0 %v7596
    %v7790 = vpop.f32.mrf.mxu0
    %v7791 = vadd.f32 %v7409, %v7790
    %v7792 = vpop.f32.mrf.mxu0
    %v7793 = vadd.f32 %v7409, %v7792
    %7794 = vmatmul.bf16.gmra.mxu0 %v7599
    %v7795 = vpop.f32.mrf.mxu0
    %v7796 = vadd.f32 %v7409, %v7795
    %v7797 = vpop.f32.mrf.mxu0
    %v7798 = vadd.f32 %v7409, %v7797
    %7799 = vmatmul.bf16.gmra.mxu0 %v7602
    %v7800 = vpop.f32.mrf.mxu0
    %v7801 = vadd.f32 %v7409, %v7800
    %v7802 = vpop.f32.mrf.mxu0
    %v7803 = vadd.f32 %v7409, %v7802
    %7804 = vmatmul.bf16.gmra.mxu0 %v7605
    %v7805 = vpop.f32.mrf.mxu0
    %v7806 = vadd.f32 %v7409, %v7805
    %v7807 = vpop.f32.mrf.mxu0
    %v7808 = vadd.f32 %v7409, %v7807
    %7809 = vdwg.mxu0
    %7810 = vmatpush.bf16.msra.mxu0 0
    %7811 = vmatpush.bf16.msra.mxu0 0
    %7812 = vmatpush.bf16.msra.mxu0 0
    %7813 = vmatpush.bf16.msra.mxu0 0
    %7814 = vmatpush.bf16.msra.mxu0 0
    %7815 = vmatpush.bf16.msra.mxu0 0
    %7816 = vmatpush.bf16.msra.mxu0 %v7554
    %7817 = vmatpush.bf16.msra.mxu0 %v7538
    %7818 = vmatmul.bf16.gmra.mxu0 %v7596
    %v7819 = vpop.f32.mrf.mxu0
    %v7820 = vadd.f32 %v7410, %v7819
    %v7821 = vpop.f32.mrf.mxu0
    %v7822 = vadd.f32 %v7410, %v7821
    %7823 = vmatmul.bf16.gmra.mxu0 %v7599
    %v7824 = vpop.f32.mrf.mxu0
    %v7825 = vadd.f32 %v7410, %v7824
    %v7826 = vpop.f32.mrf.mxu0
    %v7827 = vadd.f32 %v7410, %v7826
    %7828 = vmatmul.bf16.gmra.mxu0 %v7602
    %v7829 = vpop.f32.mrf.mxu0
    %v7830 = vadd.f32 %v7410, %v7829
    %v7831 = vpop.f32.mrf.mxu0
    %v7832 = vadd.f32 %v7410, %v7831
    %7833 = vmatmul.bf16.gmra.mxu0 %v7605
    %v7834 = vpop.f32.mrf.mxu0
    %v7835 = vadd.f32 %v7410, %v7834
    %v7836 = vpop.f32.mrf.mxu0
    %v7837 = vadd.f32 %v7410, %v7836
    %7838 = vdwg.mxu0
    %7839 = vmatpush.bf16.msra.mxu0 0
    %7840 = vmatpush.bf16.msra.mxu0 0
    %7841 = vmatpush.bf16.msra.mxu0 0
    %7842 = vmatpush.bf16.msra.mxu0 0
    %7843 = vmatpush.bf16.msra.mxu0 0
    %7844 = vmatpush.bf16.msra.mxu0 0
    %7845 = vmatpush.bf16.msra.mxu0 %v7555
    %7846 = vmatpush.bf16.msra.mxu0 %v7539
    %7847 = vmatmul.bf16.gmra.mxu0 %v7596
    %v7848 = vpop.f32.mrf.mxu0
    %v7849 = vadd.f32 %v7411, %v7848
    %v7850 = vpop.f32.mrf.mxu0
    %v7851 = vadd.f32 %v7411, %v7850
    %7852 = vmatmul.bf16.gmra.mxu0 %v7599
    %v7853 = vpop.f32.mrf.mxu0
    %v7854 = vadd.f32 %v7411, %v7853
    %v7855 = vpop.f32.mrf.mxu0
    %v7856 = vadd.f32 %v7411, %v7855
    %7857 = vmatmul.bf16.gmra.mxu0 %v7602
    %v7858 = vpop.f32.mrf.mxu0
    %v7859 = vadd.f32 %v7411, %v7858
    %v7860 = vpop.f32.mrf.mxu0
    %v7861 = vadd.f32 %v7411, %v7860
    %7862 = vmatmul.bf16.gmra.mxu0 %v7605
    %v7863 = vpop.f32.mrf.mxu0
    %v7864 = vadd.f32 %v7411, %v7863
    %v7865 = vpop.f32.mrf.mxu0
    %v7866 = vadd.f32 %v7411, %v7865
    %7867 = vdwg.mxu0
    %7868 = vmatpush.bf16.msra.mxu0 0
    %7869 = vmatpush.bf16.msra.mxu0 0
    %7870 = vmatpush.bf16.msra.mxu0 0
    %7871 = vmatpush.bf16.msra.mxu0 0
    %7872 = vmatpush.bf16.msra.mxu0 0
    %7873 = vmatpush.bf16.msra.mxu0 0
    %7874 = vmatpush.bf16.msra.mxu0 %v7556
    %7875 = vmatpush.bf16.msra.mxu0 %v7540
    %7876 = vmatmul.bf16.gmra.mxu0 %v7596
    %v7877 = vpop.f32.mrf.mxu0
    %v7878 = vadd.f32 %v7412, %v7877
    %v7879 = vpop.f32.mrf.mxu0
    %v7880 = vadd.f32 %v7412, %v7879
    %7881 = vmatmul.bf16.gmra.mxu0 %v7599
    %v7882 = vpop.f32.mrf.mxu0
    %v7883 = vadd.f32 %v7412, %v7882
    %v7884 = vpop.f32.mrf.mxu0
    %v7885 = vadd.f32 %v7412, %v7884
    %7886 = vmatmul.bf16.gmra.mxu0 %v7602
    %v7887 = vpop.f32.mrf.mxu0
    %v7888 = vadd.f32 %v7412, %v7887
    %v7889 = vpop.f32.mrf.mxu0
    %v7890 = vadd.f32 %v7412, %v7889
    %7891 = vmatmul.bf16.gmra.mxu0 %v7605
    %v7892 = vpop.f32.mrf.mxu0
    %v7893 = vadd.f32 %v7412, %v7892
    %v7894 = vpop.f32.mrf.mxu0
    %v7895 = vadd.f32 %v7412, %v7894
    %7896 = vdwg.mxu0
    %7897 = vmatpush.bf16.msra.mxu0 0
    %7898 = vmatpush.bf16.msra.mxu0 0
    %7899 = vmatpush.bf16.msra.mxu0 0
    %7900 = vmatpush.bf16.msra.mxu0 0
    %7901 = vmatpush.bf16.msra.mxu0 0
    %7902 = vmatpush.bf16.msra.mxu0 0
    %7903 = vmatpush.bf16.msra.mxu0 %v7557
    %7904 = vmatpush.bf16.msra.mxu0 %v7541
    %7905 = vmatmul.bf16.gmra.mxu0 %v7596
    %v7906 = vpop.f32.mrf.mxu0
    %v7907 = vadd.f32 %v7413, %v7906
    %v7908 = vpop.f32.mrf.mxu0
    %v7909 = vadd.f32 %v7413, %v7908
    %7910 = vmatmul.bf16.gmra.mxu0 %v7599
    %v7911 = vpop.f32.mrf.mxu0
    %v7912 = vadd.f32 %v7413, %v7911
    %v7913 = vpop.f32.mrf.mxu0
    %v7914 = vadd.f32 %v7413, %v7913
    %7915 = vmatmul.bf16.gmra.mxu0 %v7602
    %v7916 = vpop.f32.mrf.mxu0
    %v7917 = vadd.f32 %v7413, %v7916
    %v7918 = vpop.f32.mrf.mxu0
    %v7919 = vadd.f32 %v7413, %v7918
    %7920 = vmatmul.bf16.gmra.mxu0 %v7605
    %v7921 = vpop.f32.mrf.mxu0
    %v7922 = vadd.f32 %v7413, %v7921
    %v7923 = vpop.f32.mrf.mxu0
    %v7924 = vadd.f32 %v7413, %v7923
    %7925 = vdwg.mxu0
    %7926 = vmatpush.bf16.msra.mxu0 0
    %7927 = vmatpush.bf16.msra.mxu0 0
    %7928 = vmatpush.bf16.msra.mxu0 0
    %7929 = vmatpush.bf16.msra.mxu0 0
    %7930 = vmatpush.bf16.msra.mxu0 0
    %7931 = vmatpush.bf16.msra.mxu0 0
    %7932 = vmatpush.bf16.msra.mxu0 %v7558
    %7933 = vmatpush.bf16.msra.mxu0 %v7542
    %7934 = vmatmul.bf16.gmra.mxu0 %v7596
    %v7935 = vpop.f32.mrf.mxu0
    %v7936 = vadd.f32 %v7414, %v7935
    %v7937 = vpop.f32.mrf.mxu0
    %v7938 = vadd.f32 %v7414, %v7937
    %7939 = vmatmul.bf16.gmra.mxu0 %v7599
    %v7940 = vpop.f32.mrf.mxu0
    %v7941 = vadd.f32 %v7414, %v7940
    %v7942 = vpop.f32.mrf.mxu0
    %v7943 = vadd.f32 %v7414, %v7942
    %7944 = vmatmul.bf16.gmra.mxu0 %v7602
    %v7945 = vpop.f32.mrf.mxu0
    %v7946 = vadd.f32 %v7414, %v7945
    %v7947 = vpop.f32.mrf.mxu0
    %v7948 = vadd.f32 %v7414, %v7947
    %7949 = vmatmul.bf16.gmra.mxu0 %v7605
    %v7950 = vpop.f32.mrf.mxu0
    %v7951 = vadd.f32 %v7414, %v7950
    %v7952 = vpop.f32.mrf.mxu0
    %v7953 = vadd.f32 %v7414, %v7952
    %7954 = vdwg.mxu0
    %7955 = vmatpush.bf16.msra.mxu0 0
    %7956 = vmatpush.bf16.msra.mxu0 0
    %7957 = vmatpush.bf16.msra.mxu0 0
    %7958 = vmatpush.bf16.msra.mxu0 0
    %7959 = vmatpush.bf16.msra.mxu0 0
    %7960 = vmatpush.bf16.msra.mxu0 0
    %7961 = vmatpush.bf16.msra.mxu0 %v7559
    %7962 = vmatpush.bf16.msra.mxu0 %v7543
    %7963 = vmatmul.bf16.gmra.mxu0 %v7596
    %v7964 = vpop.f32.mrf.mxu0
    %v7965 = vadd.f32 %v7415, %v7964
    %v7966 = vpop.f32.mrf.mxu0
    %v7967 = vadd.f32 %v7415, %v7966
    %7968 = vmatmul.bf16.gmra.mxu0 %v7599
    %v7969 = vpop.f32.mrf.mxu0
    %v7970 = vadd.f32 %v7415, %v7969
    %v7971 = vpop.f32.mrf.mxu0
    %v7972 = vadd.f32 %v7415, %v7971
    %7973 = vmatmul.bf16.gmra.mxu0 %v7602
    %v7974 = vpop.f32.mrf.mxu0
    %v7975 = vadd.f32 %v7415, %v7974
    %v7976 = vpop.f32.mrf.mxu0
    %v7977 = vadd.f32 %v7415, %v7976
    %7978 = vmatmul.bf16.gmra.mxu0 %v7605
    %v7979 = vpop.f32.mrf.mxu0
    %v7980 = vadd.f32 %v7415, %v7979
    %v7981 = vpop.f32.mrf.mxu0
    %v7982 = vadd.f32 %v7415, %v7981
    %7983 = vdwg.mxu0
    %7984 = vmatpush.bf16.msra.mxu0 0
    %7985 = vmatpush.bf16.msra.mxu0 0
    %7986 = vmatpush.bf16.msra.mxu0 0
    %7987 = vmatpush.bf16.msra.mxu0 0
    %7988 = vmatpush.bf16.msra.mxu0 0
    %7989 = vmatpush.bf16.msra.mxu0 0
    %7990 = vmatpush.bf16.msra.mxu0 %v7560
    %7991 = vmatpush.bf16.msra.mxu0 %v7544
    %7992 = vmatmul.bf16.gmra.mxu0 %v7596
    %v7993 = vpop.f32.mrf.mxu0
    %v7994 = vadd.f32 %v7416, %v7993
    %v7995 = vpop.f32.mrf.mxu0
    %v7996 = vadd.f32 %v7416, %v7995
    %7997 = vmatmul.bf16.gmra.mxu0 %v7599
    %v7998 = vpop.f32.mrf.mxu0
    %v7999 = vadd.f32 %v7416, %v7998
    %v8000 = vpop.f32.mrf.mxu0
    %v8001 = vadd.f32 %v7416, %v8000
    %8002 = vmatmul.bf16.gmra.mxu0 %v7602
    %v8003 = vpop.f32.mrf.mxu0
    %v8004 = vadd.f32 %v7416, %v8003
    %v8005 = vpop.f32.mrf.mxu0
    %v8006 = vadd.f32 %v7416, %v8005
    %8007 = vmatmul.bf16.gmra.mxu0 %v7605
    %v8008 = vpop.f32.mrf.mxu0
    %v8009 = vadd.f32 %v7416, %v8008
    %v8010 = vpop.f32.mrf.mxu0
    %v8011 = vadd.f32 %v7416, %v8010
    %8012 = vdwg.mxu0
    %8013 = vmatpush.bf16.msra.mxu0 0
    %8014 = vmatpush.bf16.msra.mxu0 0
    %8015 = vmatpush.bf16.msra.mxu0 0
    %8016 = vmatpush.bf16.msra.mxu0 0
    %8017 = vmatpush.bf16.msra.mxu0 0
    %8018 = vmatpush.bf16.msra.mxu0 0
    %8019 = vmatpush.bf16.msra.mxu0 %v7561
    %8020 = vmatpush.bf16.msra.mxu0 %v7545
    %8021 = vmatmul.bf16.gmra.mxu0 %v7596
    %v8022 = vpop.f32.mrf.mxu0
    %v8023 = vadd.f32 %v7417, %v8022
    %v8024 = vpop.f32.mrf.mxu0
    %v8025 = vadd.f32 %v7417, %v8024
    %8026 = vmatmul.bf16.gmra.mxu0 %v7599
    %v8027 = vpop.f32.mrf.mxu0
    %v8028 = vadd.f32 %v7417, %v8027
    %v8029 = vpop.f32.mrf.mxu0
    %v8030 = vadd.f32 %v7417, %v8029
    %8031 = vmatmul.bf16.gmra.mxu0 %v7602
    %v8032 = vpop.f32.mrf.mxu0
    %v8033 = vadd.f32 %v7417, %v8032
    %v8034 = vpop.f32.mrf.mxu0
    %v8035 = vadd.f32 %v7417, %v8034
    %8036 = vmatmul.bf16.gmra.mxu0 %v7605
    %v8037 = vpop.f32.mrf.mxu0
    %v8038 = vadd.f32 %v7417, %v8037
    %v8039 = vpop.f32.mrf.mxu0
    %v8040 = vadd.f32 %v7417, %v8039
    %8041 = vdwg.mxu0
    %8042 = vmatpush.bf16.msra.mxu0 0
    %8043 = vmatpush.bf16.msra.mxu0 0
    %8044 = vmatpush.bf16.msra.mxu0 0
    %8045 = vmatpush.bf16.msra.mxu0 0
    %8046 = vmatpush.bf16.msra.mxu0 0
    %8047 = vmatpush.bf16.msra.mxu0 0
    %8048 = vmatpush.bf16.msra.mxu0 %v7562
    %8049 = vmatpush.bf16.msra.mxu0 %v7546
    %8050 = vmatmul.bf16.gmra.mxu0 %v7596
    %v8051 = vpop.f32.mrf.mxu0
    %v8052 = vadd.f32 %v7418, %v8051
    %v8053 = vpop.f32.mrf.mxu0
    %v8054 = vadd.f32 %v7418, %v8053
    %8055 = vmatmul.bf16.gmra.mxu0 %v7599
    %v8056 = vpop.f32.mrf.mxu0
    %v8057 = vadd.f32 %v7418, %v8056
    %v8058 = vpop.f32.mrf.mxu0
    %v8059 = vadd.f32 %v7418, %v8058
    %8060 = vmatmul.bf16.gmra.mxu0 %v7602
    %v8061 = vpop.f32.mrf.mxu0
    %v8062 = vadd.f32 %v7418, %v8061
    %v8063 = vpop.f32.mrf.mxu0
    %v8064 = vadd.f32 %v7418, %v8063
    %8065 = vmatmul.bf16.gmra.mxu0 %v7605
    %v8066 = vpop.f32.mrf.mxu0
    %v8067 = vadd.f32 %v7418, %v8066
    %v8068 = vpop.f32.mrf.mxu0
    %v8069 = vadd.f32 %v7418, %v8068
    %8070 = vdwg.mxu0
    %v8071 = vmax.f32 %v7617, 0.0
    %v8072 = vmax.f32 %v7646, 0.0
    %v8073 = vmax.f32 %v7675, 0.0
    %v8074 = vmax.f32 %v7704, 0.0
    %v8075 = vmax.f32 %v7733, 0.0
    %v8076 = vmax.f32 %v7762, 0.0
    %v8077 = vmax.f32 %v7791, 0.0
    %v8078 = vmax.f32 %v7820, 0.0
    %v8079 = vmax.f32 %v7849, 0.0
    %v8080 = vmax.f32 %v7878, 0.0
    %v8081 = vmax.f32 %v7907, 0.0
    %v8082 = vmax.f32 %v7936, 0.0
    %v8083 = vmax.f32 %v7965, 0.0
    %v8084 = vmax.f32 %v7994, 0.0
    %v8085 = vmax.f32 %v8023, 0.0
    %v8086 = vmax.f32 %v8052, 0.0
    %v8087 = vmax.f32 %v7619, 0.0
    %v8088 = vmax.f32 %v7648, 0.0
    %v8089 = vmax.f32 %v7677, 0.0
    %v8090 = vmax.f32 %v7706, 0.0
    %v8091 = vmax.f32 %v7735, 0.0
    %v8092 = vmax.f32 %v7764, 0.0
    %v8093 = vmax.f32 %v7793, 0.0
    %v8094 = vmax.f32 %v7822, 0.0
    %v8095 = vmax.f32 %v7851, 0.0
    %v8096 = vmax.f32 %v7880, 0.0
    %v8097 = vmax.f32 %v7909, 0.0
    %v8098 = vmax.f32 %v7938, 0.0
    %v8099 = vmax.f32 %v7967, 0.0
    %v8100 = vmax.f32 %v7996, 0.0
    %v8101 = vmax.f32 %v8025, 0.0
    %v8102 = vmax.f32 %v8054, 0.0
    %v8103 = vmax.f32 %v7622, 0.0
    %v8104 = vmax.f32 %v7651, 0.0
    %v8105 = vmax.f32 %v7680, 0.0
    %v8106 = vmax.f32 %v7709, 0.0
    %v8107 = vmax.f32 %v7738, 0.0
    %v8108 = vmax.f32 %v7767, 0.0
    %v8109 = vmax.f32 %v7796, 0.0
    %v8110 = vmax.f32 %v7825, 0.0
    %v8111 = vmax.f32 %v7854, 0.0
    %v8112 = vmax.f32 %v7883, 0.0
    %v8113 = vmax.f32 %v7912, 0.0
    %v8114 = vmax.f32 %v7941, 0.0
    %v8115 = vmax.f32 %v7970, 0.0
    %v8116 = vmax.f32 %v7999, 0.0
    %v8117 = vmax.f32 %v8028, 0.0
    %v8118 = vmax.f32 %v8057, 0.0
    %v8119 = vmax.f32 %v7624, 0.0
    %v8120 = vmax.f32 %v7653, 0.0
    %v8121 = vmax.f32 %v7682, 0.0
    %v8122 = vmax.f32 %v7711, 0.0
    %v8123 = vmax.f32 %v7740, 0.0
    %v8124 = vmax.f32 %v7769, 0.0
    %v8125 = vmax.f32 %v7798, 0.0
    %v8126 = vmax.f32 %v7827, 0.0
    %v8127 = vmax.f32 %v7856, 0.0
    %v8128 = vmax.f32 %v7885, 0.0
    %v8129 = vmax.f32 %v7914, 0.0
    %v8130 = vmax.f32 %v7943, 0.0
    %v8131 = vmax.f32 %v7972, 0.0
    %v8132 = vmax.f32 %v8001, 0.0
    %v8133 = vmax.f32 %v8030, 0.0
    %v8134 = vmax.f32 %v8059, 0.0
    %v8135 = vmax.f32 %v7627, 0.0
    %v8136 = vmax.f32 %v7656, 0.0
    %v8137 = vmax.f32 %v7685, 0.0
    %v8138 = vmax.f32 %v7714, 0.0
    %v8139 = vmax.f32 %v7743, 0.0
    %v8140 = vmax.f32 %v7772, 0.0
    %v8141 = vmax.f32 %v7801, 0.0
    %v8142 = vmax.f32 %v7830, 0.0
    %v8143 = vmax.f32 %v7859, 0.0
    %v8144 = vmax.f32 %v7888, 0.0
    %v8145 = vmax.f32 %v7917, 0.0
    %v8146 = vmax.f32 %v7946, 0.0
    %v8147 = vmax.f32 %v7975, 0.0
    %v8148 = vmax.f32 %v8004, 0.0
    %v8149 = vmax.f32 %v8033, 0.0
    %v8150 = vmax.f32 %v8062, 0.0
    %v8151 = vmax.f32 %v7629, 0.0
    %v8152 = vmax.f32 %v7658, 0.0
    %v8153 = vmax.f32 %v7687, 0.0
    %v8154 = vmax.f32 %v7716, 0.0
    %v8155 = vmax.f32 %v7745, 0.0
    %v8156 = vmax.f32 %v7774, 0.0
    %v8157 = vmax.f32 %v7803, 0.0
    %v8158 = vmax.f32 %v7832, 0.0
    %v8159 = vmax.f32 %v7861, 0.0
    %v8160 = vmax.f32 %v7890, 0.0
    %v8161 = vmax.f32 %v7919, 0.0
    %v8162 = vmax.f32 %v7948, 0.0
    %v8163 = vmax.f32 %v7977, 0.0
    %v8164 = vmax.f32 %v8006, 0.0
    %v8165 = vmax.f32 %v8035, 0.0
    %v8166 = vmax.f32 %v8064, 0.0
    %v8167 = vmax.f32 %v7632, 0.0
    %v8168 = vmax.f32 %v7661, 0.0
    %v8169 = vmax.f32 %v7690, 0.0
    %v8170 = vmax.f32 %v7719, 0.0
    %v8171 = vmax.f32 %v7748, 0.0
    %v8172 = vmax.f32 %v7777, 0.0
    %v8173 = vmax.f32 %v7806, 0.0
    %v8174 = vmax.f32 %v7835, 0.0
    %v8175 = vmax.f32 %v7864, 0.0
    %v8176 = vmax.f32 %v7893, 0.0
    %v8177 = vmax.f32 %v7922, 0.0
    %v8178 = vmax.f32 %v7951, 0.0
    %v8179 = vmax.f32 %v7980, 0.0
    %v8180 = vmax.f32 %v8009, 0.0
    %v8181 = vmax.f32 %v8038, 0.0
    %v8182 = vmax.f32 %v8067, 0.0
    %v8183 = vmax.f32 %v7634, 0.0
    %v8184 = vmax.f32 %v7663, 0.0
    %v8185 = vmax.f32 %v7692, 0.0
    %v8186 = vmax.f32 %v7721, 0.0
    %v8187 = vmax.f32 %v7750, 0.0
    %v8188 = vmax.f32 %v7779, 0.0
    %v8189 = vmax.f32 %v7808, 0.0
    %v8190 = vmax.f32 %v7837, 0.0
    %v8191 = vmax.f32 %v7866, 0.0
    %v8192 = vmax.f32 %v7895, 0.0
    %v8193 = vmax.f32 %v7924, 0.0
    %v8194 = vmax.f32 %v7953, 0.0
    %v8195 = vmax.f32 %v7982, 0.0
    %v8196 = vmax.f32 %v8011, 0.0
    %v8197 = vmax.f32 %v8040, 0.0
    %v8198 = vmax.f32 %v8069, 0.0
    %v8199 = vpack.c.bf16 %v8087, %v8071
    %v8200 = vpack.c.bf16 %v8088, %v8072
    %v8201 = vpack.c.bf16 %v8089, %v8073
    %v8202 = vpack.c.bf16 %v8090, %v8074
    %v8203 = vpack.c.bf16 %v8091, %v8075
    %v8204 = vpack.c.bf16 %v8092, %v8076
    %v8205 = vpack.c.bf16 %v8093, %v8077
    %v8206 = vpack.c.bf16 %v8094, %v8078
    %v8207 = vpack.c.bf16 %v8095, %v8079
    %v8208 = vpack.c.bf16 %v8096, %v8080
    %v8209 = vpack.c.bf16 %v8097, %v8081
    %v8210 = vpack.c.bf16 %v8098, %v8082
    %v8211 = vpack.c.bf16 %v8099, %v8083
    %v8212 = vpack.c.bf16 %v8100, %v8084
    %v8213 = vpack.c.bf16 %v8101, %v8085
    %v8214 = vpack.c.bf16 %v8102, %v8086
    %v8215 = vpack.c.bf16 %v8119, %v8103
    %v8216 = vpack.c.bf16 %v8120, %v8104
    %v8217 = vpack.c.bf16 %v8121, %v8105
    %v8218 = vpack.c.bf16 %v8122, %v8106
    %v8219 = vpack.c.bf16 %v8123, %v8107
    %v8220 = vpack.c.bf16 %v8124, %v8108
    %v8221 = vpack.c.bf16 %v8125, %v8109
    %v8222 = vpack.c.bf16 %v8126, %v8110
    %v8223 = vpack.c.bf16 %v8127, %v8111
    %v8224 = vpack.c.bf16 %v8128, %v8112
    %v8225 = vpack.c.bf16 %v8129, %v8113
    %v8226 = vpack.c.bf16 %v8130, %v8114
    %v8227 = vpack.c.bf16 %v8131, %v8115
    %v8228 = vpack.c.bf16 %v8132, %v8116
    %v8229 = vpack.c.bf16 %v8133, %v8117
    %v8230 = vpack.c.bf16 %v8134, %v8118
    %v8231 = vpack.c.bf16 %v8151, %v8135
    %v8232 = vpack.c.bf16 %v8152, %v8136
    %v8233 = vpack.c.bf16 %v8153, %v8137
    %v8234 = vpack.c.bf16 %v8154, %v8138
    %v8235 = vpack.c.bf16 %v8155, %v8139
    %v8236 = vpack.c.bf16 %v8156, %v8140
    %v8237 = vpack.c.bf16 %v8157, %v8141
    %v8238 = vpack.c.bf16 %v8158, %v8142
    %v8239 = vpack.c.bf16 %v8159, %v8143
    %v8240 = vpack.c.bf16 %v8160, %v8144
    %v8241 = vpack.c.bf16 %v8161, %v8145
    %v8242 = vpack.c.bf16 %v8162, %v8146
    %v8243 = vpack.c.bf16 %v8163, %v8147
    %v8244 = vpack.c.bf16 %v8164, %v8148
    %v8245 = vpack.c.bf16 %v8165, %v8149
    %v8246 = vpack.c.bf16 %v8166, %v8150
    %v8247 = vpack.c.bf16 %v8183, %v8167
    %v8248 = vpack.c.bf16 %v8184, %v8168
    %v8249 = vpack.c.bf16 %v8185, %v8169
    %v8250 = vpack.c.bf16 %v8186, %v8170
    %v8251 = vpack.c.bf16 %v8187, %v8171
    %v8252 = vpack.c.bf16 %v8188, %v8172
    %v8253 = vpack.c.bf16 %v8189, %v8173
    %v8254 = vpack.c.bf16 %v8190, %v8174
    %v8255 = vpack.c.bf16 %v8191, %v8175
    %v8256 = vpack.c.bf16 %v8192, %v8176
    %v8257 = vpack.c.bf16 %v8193, %v8177
    %v8258 = vpack.c.bf16 %v8194, %v8178
    %v8259 = vpack.c.bf16 %v8195, %v8179
    %v8260 = vpack.c.bf16 %v8196, %v8180
    %v8261 = vpack.c.bf16 %v8197, %v8181
    %v8262 = vpack.c.bf16 %v8198, %v8182
    %s8263 = scalar_lea.vmem %s13, 1024
    %v8264 = vld [vmem:[%s8263] sm:$0xf]
    %v8265 = vld [vmem:[%s8263 + $0x4] sm:$0xf]
    %v8266 = vld [vmem:[%s8263 + $0x8] sm:$0xf]
    %v8267 = vld [vmem:[%s8263 + $0xc] sm:$0xf]
    %v8268 = vld [vmem:[%s8263 + $0x10] sm:$0xf]
    %v8269 = vld [vmem:[%s8263 + $0x14] sm:$0xf]
    %v8270 = vld [vmem:[%s8263 + $0x18] sm:$0xf]
    %v8271 = vld [vmem:[%s8263 + $0x1c] sm:$0xf]
    %v8272 = vld [vmem:[%s8263 + $0x20] sm:$0xf]
    %v8273 = vld [vmem:[%s8263 + $0x24] sm:$0xf]
    %v8274 = vld [vmem:[%s8263 + $0x28] sm:$0xf]
    %v8275 = vld [vmem:[%s8263 + $0x2c] sm:$0xf]
    %v8276 = vld [vmem:[%s8263 + $0x30] sm:$0xf]
    %v8277 = vld [vmem:[%s8263 + $0x34] sm:$0xf]
    %v8278 = vld [vmem:[%s8263 + $0x38] sm:$0xf]
    %v8279 = vld [vmem:[%s8263 + $0x3c] sm:$0xf]
    %v8280 = vld [vmem:[%s8263 + $0x40] sm:$0xf]
    %v8281 = vld [vmem:[%s8263 + $0x44] sm:$0xf]
    %v8282 = vld [vmem:[%s8263 + $0x48] sm:$0xf]
    %v8283 = vld [vmem:[%s8263 + $0x4c] sm:$0xf]
    %v8284 = vld [vmem:[%s8263 + $0x50] sm:$0xf]
    %v8285 = vld [vmem:[%s8263 + $0x54] sm:$0xf]
    %v8286 = vld [vmem:[%s8263 + $0x58] sm:$0xf]
    %v8287 = vld [vmem:[%s8263 + $0x5c] sm:$0xf]
    %v8288 = vld [vmem:[%s8263 + $0x60] sm:$0xf]
    %v8289 = vld [vmem:[%s8263 + $0x64] sm:$0xf]
    %v8290 = vld [vmem:[%s8263 + $0x68] sm:$0xf]
    %v8291 = vld [vmem:[%s8263 + $0x6c] sm:$0xf]
    %v8292 = vld [vmem:[%s8263 + $0x70] sm:$0xf]
    %v8293 = vld [vmem:[%s8263 + $0x74] sm:$0xf]
    %v8294 = vld [vmem:[%s8263 + $0x78] sm:$0xf]
    %v8295 = vld [vmem:[%s8263 + $0x7c] sm:$0xf]
    %v8296 = vld [vmem:[%s8263 + $0x80] sm:$0xf]
    %v8297 = vld [vmem:[%s8263 + $0x84] sm:$0xf]
    %v8298 = vld [vmem:[%s8263 + $0x88] sm:$0xf]
    %v8299 = vld [vmem:[%s8263 + $0x8c] sm:$0xf]
    %v8300 = vld [vmem:[%s8263 + $0x90] sm:$0xf]
    %v8301 = vld [vmem:[%s8263 + $0x94] sm:$0xf]
    %v8302 = vld [vmem:[%s8263 + $0x98] sm:$0xf]
    %v8303 = vld [vmem:[%s8263 + $0x9c] sm:$0xf]
    %v8304 = vld [vmem:[%s8263 + $0xa0] sm:$0xf]
    %v8305 = vld [vmem:[%s8263 + $0xa4] sm:$0xf]
    %v8306 = vld [vmem:[%s8263 + $0xa8] sm:$0xf]
    %v8307 = vld [vmem:[%s8263 + $0xac] sm:$0xf]
    %v8308 = vld [vmem:[%s8263 + $0xb0] sm:$0xf]
    %v8309 = vld [vmem:[%s8263 + $0xb4] sm:$0xf]
    %v8310 = vld [vmem:[%s8263 + $0xb8] sm:$0xf]
    %v8311 = vld [vmem:[%s8263 + $0xbc] sm:$0xf]
    %v8312 = vld [vmem:[%s8263 + $0xc0] sm:$0xf]
    %v8313 = vld [vmem:[%s8263 + $0xc4] sm:$0xf]
    %v8314 = vld [vmem:[%s8263 + $0xc8] sm:$0xf]
    %v8315 = vld [vmem:[%s8263 + $0xcc] sm:$0xf]
    %v8316 = vld [vmem:[%s8263 + $0xd0] sm:$0xf]
    %v8317 = vld [vmem:[%s8263 + $0xd4] sm:$0xf]
    %v8318 = vld [vmem:[%s8263 + $0xd8] sm:$0xf]
    %v8319 = vld [vmem:[%s8263 + $0xdc] sm:$0xf]
    %v8320 = vld [vmem:[%s8263 + $0xe0] sm:$0xf]
    %v8321 = vld [vmem:[%s8263 + $0xe4] sm:$0xf]
    %v8322 = vld [vmem:[%s8263 + $0xe8] sm:$0xf]
    %v8323 = vld [vmem:[%s8263 + $0xec] sm:$0xf]
    %v8324 = vld [vmem:[%s8263 + $0xf0] sm:$0xf]
    %v8325 = vld [vmem:[%s8263 + $0xf4] sm:$0xf]
    %v8326 = vld [vmem:[%s8263 + $0xf8] sm:$0xf]
    %v8327 = vld [vmem:[%s8263 + $0xfc] sm:$0xf]
    %v8328 = vld [vmem:[%s8263 + $0x100] sm:$0xf]
    %v8329 = vld [vmem:[%s8263 + $0x104] sm:$0xf]
    %v8330 = vld [vmem:[%s8263 + $0x108] sm:$0xf]
    %v8331 = vld [vmem:[%s8263 + $0x10c] sm:$0xf]
    %v8332 = vld [vmem:[%s8263 + $0x110] sm:$0xf]
    %v8333 = vld [vmem:[%s8263 + $0x114] sm:$0xf]
    %v8334 = vld [vmem:[%s8263 + $0x118] sm:$0xf]
    %v8335 = vld [vmem:[%s8263 + $0x11c] sm:$0xf]
    %v8336 = vld [vmem:[%s8263 + $0x120] sm:$0xf]
    %v8337 = vld [vmem:[%s8263 + $0x124] sm:$0xf]
    %v8338 = vld [vmem:[%s8263 + $0x128] sm:$0xf]
    %v8339 = vld [vmem:[%s8263 + $0x12c] sm:$0xf]
    %v8340 = vld [vmem:[%s8263 + $0x130] sm:$0xf]
    %v8341 = vld [vmem:[%s8263 + $0x134] sm:$0xf]
    %v8342 = vld [vmem:[%s8263 + $0x138] sm:$0xf]
    %v8343 = vld [vmem:[%s8263 + $0x13c] sm:$0xf]
    %v8344 = vld [vmem:[%s8263 + $0x140] sm:$0xf]
    %v8345 = vld [vmem:[%s8263 + $0x144] sm:$0xf]
    %v8346 = vld [vmem:[%s8263 + $0x148] sm:$0xf]
    %v8347 = vld [vmem:[%s8263 + $0x14c] sm:$0xf]
    %v8348 = vld [vmem:[%s8263 + $0x150] sm:$0xf]
    %v8349 = vld [vmem:[%s8263 + $0x154] sm:$0xf]
    %v8350 = vld [vmem:[%s8263 + $0x158] sm:$0xf]
    %v8351 = vld [vmem:[%s8263 + $0x15c] sm:$0xf]
    %v8352 = vld [vmem:[%s8263 + $0x160] sm:$0xf]
    %v8353 = vld [vmem:[%s8263 + $0x164] sm:$0xf]
    %v8354 = vld [vmem:[%s8263 + $0x168] sm:$0xf]
    %v8355 = vld [vmem:[%s8263 + $0x16c] sm:$0xf]
    %v8356 = vld [vmem:[%s8263 + $0x170] sm:$0xf]
    %v8357 = vld [vmem:[%s8263 + $0x174] sm:$0xf]
    %v8358 = vld [vmem:[%s8263 + $0x178] sm:$0xf]
    %v8359 = vld [vmem:[%s8263 + $0x17c] sm:$0xf]
    %v8360 = vld [vmem:[%s8263 + $0x180] sm:$0xf]
    %v8361 = vld [vmem:[%s8263 + $0x184] sm:$0xf]
    %v8362 = vld [vmem:[%s8263 + $0x188] sm:$0xf]
    %v8363 = vld [vmem:[%s8263 + $0x18c] sm:$0xf]
    %v8364 = vld [vmem:[%s8263 + $0x190] sm:$0xf]
    %v8365 = vld [vmem:[%s8263 + $0x194] sm:$0xf]
    %v8366 = vld [vmem:[%s8263 + $0x198] sm:$0xf]
    %v8367 = vld [vmem:[%s8263 + $0x19c] sm:$0xf]
    %v8368 = vld [vmem:[%s8263 + $0x1a0] sm:$0xf]
    %v8369 = vld [vmem:[%s8263 + $0x1a4] sm:$0xf]
    %v8370 = vld [vmem:[%s8263 + $0x1a8] sm:$0xf]
    %v8371 = vld [vmem:[%s8263 + $0x1ac] sm:$0xf]
    %v8372 = vld [vmem:[%s8263 + $0x1b0] sm:$0xf]
    %v8373 = vld [vmem:[%s8263 + $0x1b4] sm:$0xf]
    %v8374 = vld [vmem:[%s8263 + $0x1b8] sm:$0xf]
    %v8375 = vld [vmem:[%s8263 + $0x1bc] sm:$0xf]
    %v8376 = vld [vmem:[%s8263 + $0x1c0] sm:$0xf]
    %v8377 = vld [vmem:[%s8263 + $0x1c4] sm:$0xf]
    %v8378 = vld [vmem:[%s8263 + $0x1c8] sm:$0xf]
    %v8379 = vld [vmem:[%s8263 + $0x1cc] sm:$0xf]
    %v8380 = vld [vmem:[%s8263 + $0x1d0] sm:$0xf]
    %v8381 = vld [vmem:[%s8263 + $0x1d4] sm:$0xf]
    %v8382 = vld [vmem:[%s8263 + $0x1d8] sm:$0xf]
    %v8383 = vld [vmem:[%s8263 + $0x1dc] sm:$0xf]
    %v8384 = vld [vmem:[%s8263 + $0x1e0] sm:$0xf]
    %v8385 = vld [vmem:[%s8263 + $0x1e4] sm:$0xf]
    %v8386 = vld [vmem:[%s8263 + $0x1e8] sm:$0xf]
    %v8387 = vld [vmem:[%s8263 + $0x1ec] sm:$0xf]
    %v8388 = vld [vmem:[%s8263 + $0x1f0] sm:$0xf]
    %v8389 = vld [vmem:[%s8263 + $0x1f4] sm:$0xf]
    %v8390 = vld [vmem:[%s8263 + $0x1f8] sm:$0xf]
    %v8391 = vld [vmem:[%s8263 + $0x1fc] sm:$0xf]
    %v8392 = vld [vmem:[%s8263 + $0x200] sm:$0xf]
    %v8393 = vld [vmem:[%s8263 + $0x204] sm:$0xf]
    %v8394 = vld [vmem:[%s8263 + $0x208] sm:$0xf]
    %v8395 = vld [vmem:[%s8263 + $0x20c] sm:$0xf]
    %v8396 = vld [vmem:[%s8263 + $0x210] sm:$0xf]
    %v8397 = vld [vmem:[%s8263 + $0x214] sm:$0xf]
    %v8398 = vld [vmem:[%s8263 + $0x218] sm:$0xf]
    %v8399 = vld [vmem:[%s8263 + $0x21c] sm:$0xf]
    %v8400 = vld [vmem:[%s8263 + $0x220] sm:$0xf]
    %v8401 = vld [vmem:[%s8263 + $0x224] sm:$0xf]
    %v8402 = vld [vmem:[%s8263 + $0x228] sm:$0xf]
    %v8403 = vld [vmem:[%s8263 + $0x22c] sm:$0xf]
    %v8404 = vld [vmem:[%s8263 + $0x230] sm:$0xf]
    %v8405 = vld [vmem:[%s8263 + $0x234] sm:$0xf]
    %v8406 = vld [vmem:[%s8263 + $0x238] sm:$0xf]
    %v8407 = vld [vmem:[%s8263 + $0x23c] sm:$0xf]
    %v8408 = vld [vmem:[%s8263 + $0x240] sm:$0xf]
    %v8409 = vld [vmem:[%s8263 + $0x244] sm:$0xf]
    %v8410 = vld [vmem:[%s8263 + $0x248] sm:$0xf]
    %v8411 = vld [vmem:[%s8263 + $0x24c] sm:$0xf]
    %v8412 = vld [vmem:[%s8263 + $0x250] sm:$0xf]
    %v8413 = vld [vmem:[%s8263 + $0x254] sm:$0xf]
    %v8414 = vld [vmem:[%s8263 + $0x258] sm:$0xf]
    %v8415 = vld [vmem:[%s8263 + $0x25c] sm:$0xf]
    %v8416 = vld [vmem:[%s8263 + $0x260] sm:$0xf]
    %v8417 = vld [vmem:[%s8263 + $0x264] sm:$0xf]
    %v8418 = vld [vmem:[%s8263 + $0x268] sm:$0xf]
    %v8419 = vld [vmem:[%s8263 + $0x26c] sm:$0xf]
    %v8420 = vld [vmem:[%s8263 + $0x270] sm:$0xf]
    %v8421 = vld [vmem:[%s8263 + $0x274] sm:$0xf]
    %v8422 = vld [vmem:[%s8263 + $0x278] sm:$0xf]
    %v8423 = vld [vmem:[%s8263 + $0x27c] sm:$0xf]
    %v8424 = vld [vmem:[%s8263 + $0x280] sm:$0xf]
    %v8425 = vld [vmem:[%s8263 + $0x284] sm:$0xf]
    %v8426 = vld [vmem:[%s8263 + $0x288] sm:$0xf]
    %v8427 = vld [vmem:[%s8263 + $0x28c] sm:$0xf]
    %v8428 = vld [vmem:[%s8263 + $0x290] sm:$0xf]
    %v8429 = vld [vmem:[%s8263 + $0x294] sm:$0xf]
    %v8430 = vld [vmem:[%s8263 + $0x298] sm:$0xf]
    %v8431 = vld [vmem:[%s8263 + $0x29c] sm:$0xf]
    %v8432 = vld [vmem:[%s8263 + $0x2a0] sm:$0xf]
    %v8433 = vld [vmem:[%s8263 + $0x2a4] sm:$0xf]
    %v8434 = vld [vmem:[%s8263 + $0x2a8] sm:$0xf]
    %v8435 = vld [vmem:[%s8263 + $0x2ac] sm:$0xf]
    %v8436 = vld [vmem:[%s8263 + $0x2b0] sm:$0xf]
    %v8437 = vld [vmem:[%s8263 + $0x2b4] sm:$0xf]
    %v8438 = vld [vmem:[%s8263 + $0x2b8] sm:$0xf]
    %v8439 = vld [vmem:[%s8263 + $0x2bc] sm:$0xf]
    %v8440 = vld [vmem:[%s8263 + $0x2c0] sm:$0xf]
    %v8441 = vld [vmem:[%s8263 + $0x2c4] sm:$0xf]
    %v8442 = vld [vmem:[%s8263 + $0x2c8] sm:$0xf]
    %v8443 = vld [vmem:[%s8263 + $0x2cc] sm:$0xf]
    %v8444 = vld [vmem:[%s8263 + $0x2d0] sm:$0xf]
    %v8445 = vld [vmem:[%s8263 + $0x2d4] sm:$0xf]
    %v8446 = vld [vmem:[%s8263 + $0x2d8] sm:$0xf]
    %v8447 = vld [vmem:[%s8263 + $0x2dc] sm:$0xf]
    %v8448 = vld [vmem:[%s8263 + $0x2e0] sm:$0xf]
    %v8449 = vld [vmem:[%s8263 + $0x2e4] sm:$0xf]
    %v8450 = vld [vmem:[%s8263 + $0x2e8] sm:$0xf]
    %v8451 = vld [vmem:[%s8263 + $0x2ec] sm:$0xf]
    %v8452 = vld [vmem:[%s8263 + $0x2f0] sm:$0xf]
    %v8453 = vld [vmem:[%s8263 + $0x2f4] sm:$0xf]
    %v8454 = vld [vmem:[%s8263 + $0x2f8] sm:$0xf]
    %v8455 = vld [vmem:[%s8263 + $0x2fc] sm:$0xf]
    %v8456 = vld [vmem:[%s8263 + $0x300] sm:$0xf]
    %v8457 = vld [vmem:[%s8263 + $0x304] sm:$0xf]
    %v8458 = vld [vmem:[%s8263 + $0x308] sm:$0xf]
    %v8459 = vld [vmem:[%s8263 + $0x30c] sm:$0xf]
    %v8460 = vld [vmem:[%s8263 + $0x310] sm:$0xf]
    %v8461 = vld [vmem:[%s8263 + $0x314] sm:$0xf]
    %v8462 = vld [vmem:[%s8263 + $0x318] sm:$0xf]
    %v8463 = vld [vmem:[%s8263 + $0x31c] sm:$0xf]
    %v8464 = vld [vmem:[%s8263 + $0x320] sm:$0xf]
    %v8465 = vld [vmem:[%s8263 + $0x324] sm:$0xf]
    %v8466 = vld [vmem:[%s8263 + $0x328] sm:$0xf]
    %v8467 = vld [vmem:[%s8263 + $0x32c] sm:$0xf]
    %v8468 = vld [vmem:[%s8263 + $0x330] sm:$0xf]
    %v8469 = vld [vmem:[%s8263 + $0x334] sm:$0xf]
    %v8470 = vld [vmem:[%s8263 + $0x338] sm:$0xf]
    %v8471 = vld [vmem:[%s8263 + $0x33c] sm:$0xf]
    %v8472 = vld [vmem:[%s8263 + $0x340] sm:$0xf]
    %v8473 = vld [vmem:[%s8263 + $0x344] sm:$0xf]
    %v8474 = vld [vmem:[%s8263 + $0x348] sm:$0xf]
    %v8475 = vld [vmem:[%s8263 + $0x34c] sm:$0xf]
    %v8476 = vld [vmem:[%s8263 + $0x350] sm:$0xf]
    %v8477 = vld [vmem:[%s8263 + $0x354] sm:$0xf]
    %v8478 = vld [vmem:[%s8263 + $0x358] sm:$0xf]
    %v8479 = vld [vmem:[%s8263 + $0x35c] sm:$0xf]
    %v8480 = vld [vmem:[%s8263 + $0x360] sm:$0xf]
    %v8481 = vld [vmem:[%s8263 + $0x364] sm:$0xf]
    %v8482 = vld [vmem:[%s8263 + $0x368] sm:$0xf]
    %v8483 = vld [vmem:[%s8263 + $0x36c] sm:$0xf]
    %v8484 = vld [vmem:[%s8263 + $0x370] sm:$0xf]
    %v8485 = vld [vmem:[%s8263 + $0x374] sm:$0xf]
    %v8486 = vld [vmem:[%s8263 + $0x378] sm:$0xf]
    %v8487 = vld [vmem:[%s8263 + $0x37c] sm:$0xf]
    %v8488 = vld [vmem:[%s8263 + $0x380] sm:$0xf]
    %v8489 = vld [vmem:[%s8263 + $0x384] sm:$0xf]
    %v8490 = vld [vmem:[%s8263 + $0x388] sm:$0xf]
    %v8491 = vld [vmem:[%s8263 + $0x38c] sm:$0xf]
    %v8492 = vld [vmem:[%s8263 + $0x390] sm:$0xf]
    %v8493 = vld [vmem:[%s8263 + $0x394] sm:$0xf]
    %v8494 = vld [vmem:[%s8263 + $0x398] sm:$0xf]
    %v8495 = vld [vmem:[%s8263 + $0x39c] sm:$0xf]
    %v8496 = vld [vmem:[%s8263 + $0x3a0] sm:$0xf]
    %v8497 = vld [vmem:[%s8263 + $0x3a4] sm:$0xf]
    %v8498 = vld [vmem:[%s8263 + $0x3a8] sm:$0xf]
    %v8499 = vld [vmem:[%s8263 + $0x3ac] sm:$0xf]
    %v8500 = vld [vmem:[%s8263 + $0x3b0] sm:$0xf]
    %v8501 = vld [vmem:[%s8263 + $0x3b4] sm:$0xf]
    %v8502 = vld [vmem:[%s8263 + $0x3b8] sm:$0xf]
    %v8503 = vld [vmem:[%s8263 + $0x3bc] sm:$0xf]
    %v8504 = vld [vmem:[%s8263 + $0x3c0] sm:$0xf]
    %v8505 = vld [vmem:[%s8263 + $0x3c4] sm:$0xf]
    %v8506 = vld [vmem:[%s8263 + $0x3c8] sm:$0xf]
    %v8507 = vld [vmem:[%s8263 + $0x3cc] sm:$0xf]
    %v8508 = vld [vmem:[%s8263 + $0x3d0] sm:$0xf]
    %v8509 = vld [vmem:[%s8263 + $0x3d4] sm:$0xf]
    %v8510 = vld [vmem:[%s8263 + $0x3d8] sm:$0xf]
    %v8511 = vld [vmem:[%s8263 + $0x3dc] sm:$0xf]
    %v8512 = vld [vmem:[%s8263 + $0x3e0] sm:$0xf]
    %v8513 = vld [vmem:[%s8263 + $0x3e4] sm:$0xf]
    %v8514 = vld [vmem:[%s8263 + $0x3e8] sm:$0xf]
    %v8515 = vld [vmem:[%s8263 + $0x3ec] sm:$0xf]
    %v8516 = vld [vmem:[%s8263 + $0x3f0] sm:$0xf]
    %v8517 = vld [vmem:[%s8263 + $0x3f4] sm:$0xf]
    %v8518 = vld [vmem:[%s8263 + $0x3f8] sm:$0xf]
    %v8519 = vld [vmem:[%s8263 + $0x3fc] sm:$0xf]
    %s8520 = scalar_lea.vmem %s14, 1
    %v8521 = vld [vmem:[%s8520] sm:$0x1]
    %v8523 = vperm.slane %v8521, 0
    %v8781 = vunpack.c.l.b16 %v8264
    %v8782 = vunpack.c.l.b16 %v8265
    %v8783 = vunpack.c.l.b16 %v8266
    %v8784 = vunpack.c.l.b16 %v8267
    %v8785 = vunpack.c.l.b16 %v8268
    %v8786 = vunpack.c.l.b16 %v8269
    %v8787 = vunpack.c.l.b16 %v8270
    %v8788 = vunpack.c.l.b16 %v8271
    %v8789 = vunpack.c.l.b16 %v8272
    %v8790 = vunpack.c.l.b16 %v8273
    %v8791 = vunpack.c.l.b16 %v8274
    %v8792 = vunpack.c.l.b16 %v8275
    %v8793 = vunpack.c.l.b16 %v8276
    %v8794 = vunpack.c.l.b16 %v8277
    %v8795 = vunpack.c.l.b16 %v8278
    %v8796 = vunpack.c.l.b16 %v8279
    %v8797 = vunpack.c.l.b16 %v8280
    %v8798 = vunpack.c.l.b16 %v8281
    %v8799 = vunpack.c.l.b16 %v8282
    %v8800 = vunpack.c.l.b16 %v8283
    %v8801 = vunpack.c.l.b16 %v8284
    %v8802 = vunpack.c.l.b16 %v8285
    %v8803 = vunpack.c.l.b16 %v8286
    %v8804 = vunpack.c.l.b16 %v8287
    %v8805 = vunpack.c.l.b16 %v8288
    %v8806 = vunpack.c.l.b16 %v8289
    %v8807 = vunpack.c.l.b16 %v8290
    %v8808 = vunpack.c.l.b16 %v8291
    %v8809 = vunpack.c.l.b16 %v8292
    %v8810 = vunpack.c.l.b16 %v8293
    %v8811 = vunpack.c.l.b16 %v8294
    %v8812 = vunpack.c.l.b16 %v8295
    %v8813 = vunpack.c.l.b16 %v8296
    %v8814 = vunpack.c.l.b16 %v8297
    %v8815 = vunpack.c.l.b16 %v8298
    %v8816 = vunpack.c.l.b16 %v8299
    %v8817 = vunpack.c.l.b16 %v8300
    %v8818 = vunpack.c.l.b16 %v8301
    %v8819 = vunpack.c.l.b16 %v8302
    %v8820 = vunpack.c.l.b16 %v8303
    %v8821 = vunpack.c.l.b16 %v8304
    %v8822 = vunpack.c.l.b16 %v8305
    %v8823 = vunpack.c.l.b16 %v8306
    %v8824 = vunpack.c.l.b16 %v8307
    %v8825 = vunpack.c.l.b16 %v8308
    %v8826 = vunpack.c.l.b16 %v8309
    %v8827 = vunpack.c.l.b16 %v8310
    %v8828 = vunpack.c.l.b16 %v8311
    %v8829 = vunpack.c.l.b16 %v8312
    %v8830 = vunpack.c.l.b16 %v8313
    %v8831 = vunpack.c.l.b16 %v8314
    %v8832 = vunpack.c.l.b16 %v8315
    %v8833 = vunpack.c.l.b16 %v8316
    %v8834 = vunpack.c.l.b16 %v8317
    %v8835 = vunpack.c.l.b16 %v8318
    %v8836 = vunpack.c.l.b16 %v8319
    %v8837 = vunpack.c.l.b16 %v8320
    %v8838 = vunpack.c.l.b16 %v8321
    %v8839 = vunpack.c.l.b16 %v8322
    %v8840 = vunpack.c.l.b16 %v8323
    %v8841 = vunpack.c.l.b16 %v8324
    %v8842 = vunpack.c.l.b16 %v8325
    %v8843 = vunpack.c.l.b16 %v8326
    %v8844 = vunpack.c.l.b16 %v8327
    %v8845 = vunpack.c.l.b16 %v8328
    %v8846 = vunpack.c.l.b16 %v8329
    %v8847 = vunpack.c.l.b16 %v8330
    %v8848 = vunpack.c.l.b16 %v8331
    %v8849 = vunpack.c.l.b16 %v8332
    %v8850 = vunpack.c.l.b16 %v8333
    %v8851 = vunpack.c.l.b16 %v8334
    %v8852 = vunpack.c.l.b16 %v8335
    %v8853 = vunpack.c.l.b16 %v8336
    %v8854 = vunpack.c.l.b16 %v8337
    %v8855 = vunpack.c.l.b16 %v8338
    %v8856 = vunpack.c.l.b16 %v8339
    %v8857 = vunpack.c.l.b16 %v8340
    %v8858 = vunpack.c.l.b16 %v8341
    %v8859 = vunpack.c.l.b16 %v8342
    %v8860 = vunpack.c.l.b16 %v8343
    %v8861 = vunpack.c.l.b16 %v8344
    %v8862 = vunpack.c.l.b16 %v8345
    %v8863 = vunpack.c.l.b16 %v8346
    %v8864 = vunpack.c.l.b16 %v8347
    %v8865 = vunpack.c.l.b16 %v8348
    %v8866 = vunpack.c.l.b16 %v8349
    %v8867 = vunpack.c.l.b16 %v8350
    %v8868 = vunpack.c.l.b16 %v8351
    %v8869 = vunpack.c.l.b16 %v8352
    %v8870 = vunpack.c.l.b16 %v8353
    %v8871 = vunpack.c.l.b16 %v8354
    %v8872 = vunpack.c.l.b16 %v8355
    %v8873 = vunpack.c.l.b16 %v8356
    %v8874 = vunpack.c.l.b16 %v8357
    %v8875 = vunpack.c.l.b16 %v8358
    %v8876 = vunpack.c.l.b16 %v8359
    %v8877 = vunpack.c.l.b16 %v8360
    %v8878 = vunpack.c.l.b16 %v8361
    %v8879 = vunpack.c.l.b16 %v8362
    %v8880 = vunpack.c.l.b16 %v8363
    %v8881 = vunpack.c.l.b16 %v8364
    %v8882 = vunpack.c.l.b16 %v8365
    %v8883 = vunpack.c.l.b16 %v8366
    %v8884 = vunpack.c.l.b16 %v8367
    %v8885 = vunpack.c.l.b16 %v8368
    %v8886 = vunpack.c.l.b16 %v8369
    %v8887 = vunpack.c.l.b16 %v8370
    %v8888 = vunpack.c.l.b16 %v8371
    %v8889 = vunpack.c.l.b16 %v8372
    %v8890 = vunpack.c.l.b16 %v8373
    %v8891 = vunpack.c.l.b16 %v8374
    %v8892 = vunpack.c.l.b16 %v8375
    %v8893 = vunpack.c.l.b16 %v8376
    %v8894 = vunpack.c.l.b16 %v8377
    %v8895 = vunpack.c.l.b16 %v8378
    %v8896 = vunpack.c.l.b16 %v8379
    %v8897 = vunpack.c.l.b16 %v8380
    %v8898 = vunpack.c.l.b16 %v8381
    %v8899 = vunpack.c.l.b16 %v8382
    %v8900 = vunpack.c.l.b16 %v8383
    %v8901 = vunpack.c.l.b16 %v8384
    %v8902 = vunpack.c.l.b16 %v8385
    %v8903 = vunpack.c.l.b16 %v8386
    %v8904 = vunpack.c.l.b16 %v8387
    %v8905 = vunpack.c.l.b16 %v8388
    %v8906 = vunpack.c.l.b16 %v8389
    %v8907 = vunpack.c.l.b16 %v8390
    %v8908 = vunpack.c.l.b16 %v8391
    %v8909 = vunpack.c.l.b16 %v8392
    %v8910 = vunpack.c.l.b16 %v8393
    %v8911 = vunpack.c.l.b16 %v8394
    %v8912 = vunpack.c.l.b16 %v8395
    %v8913 = vunpack.c.l.b16 %v8396
    %v8914 = vunpack.c.l.b16 %v8397
    %v8915 = vunpack.c.l.b16 %v8398
    %v8916 = vunpack.c.l.b16 %v8399
    %v8917 = vunpack.c.l.b16 %v8400
    %v8918 = vunpack.c.l.b16 %v8401
    %v8919 = vunpack.c.l.b16 %v8402
    %v8920 = vunpack.c.l.b16 %v8403
    %v8921 = vunpack.c.l.b16 %v8404
    %v8922 = vunpack.c.l.b16 %v8405
    %v8923 = vunpack.c.l.b16 %v8406
    %v8924 = vunpack.c.l.b16 %v8407
    %v8925 = vunpack.c.l.b16 %v8408
    %v8926 = vunpack.c.l.b16 %v8409
    %v8927 = vunpack.c.l.b16 %v8410
    %v8928 = vunpack.c.l.b16 %v8411
    %v8929 = vunpack.c.l.b16 %v8412
    %v8930 = vunpack.c.l.b16 %v8413
    %v8931 = vunpack.c.l.b16 %v8414
    %v8932 = vunpack.c.l.b16 %v8415
    %v8933 = vunpack.c.l.b16 %v8416
    %v8934 = vunpack.c.l.b16 %v8417
    %v8935 = vunpack.c.l.b16 %v8418
    %v8936 = vunpack.c.l.b16 %v8419
    %v8937 = vunpack.c.l.b16 %v8420
    %v8938 = vunpack.c.l.b16 %v8421
    %v8939 = vunpack.c.l.b16 %v8422
    %v8940 = vunpack.c.l.b16 %v8423
    %v8941 = vunpack.c.l.b16 %v8424
    %v8942 = vunpack.c.l.b16 %v8425
    %v8943 = vunpack.c.l.b16 %v8426
    %v8944 = vunpack.c.l.b16 %v8427
    %v8945 = vunpack.c.l.b16 %v8428
    %v8946 = vunpack.c.l.b16 %v8429
    %v8947 = vunpack.c.l.b16 %v8430
    %v8948 = vunpack.c.l.b16 %v8431
    %v8949 = vunpack.c.l.b16 %v8432
    %v8950 = vunpack.c.l.b16 %v8433
    %v8951 = vunpack.c.l.b16 %v8434
    %v8952 = vunpack.c.l.b16 %v8435
    %v8953 = vunpack.c.l.b16 %v8436
    %v8954 = vunpack.c.l.b16 %v8437
    %v8955 = vunpack.c.l.b16 %v8438
    %v8956 = vunpack.c.l.b16 %v8439
    %v8957 = vunpack.c.l.b16 %v8440
    %v8958 = vunpack.c.l.b16 %v8441
    %v8959 = vunpack.c.l.b16 %v8442
    %v8960 = vunpack.c.l.b16 %v8443
    %v8961 = vunpack.c.l.b16 %v8444
    %v8962 = vunpack.c.l.b16 %v8445
    %v8963 = vunpack.c.l.b16 %v8446
    %v8964 = vunpack.c.l.b16 %v8447
    %v8965 = vunpack.c.l.b16 %v8448
    %v8966 = vunpack.c.l.b16 %v8449
    %v8967 = vunpack.c.l.b16 %v8450
    %v8968 = vunpack.c.l.b16 %v8451
    %v8969 = vunpack.c.l.b16 %v8452
    %v8970 = vunpack.c.l.b16 %v8453
    %v8971 = vunpack.c.l.b16 %v8454
    %v8972 = vunpack.c.l.b16 %v8455
    %v8973 = vunpack.c.l.b16 %v8456
    %v8974 = vunpack.c.l.b16 %v8457
    %v8975 = vunpack.c.l.b16 %v8458
    %v8976 = vunpack.c.l.b16 %v8459
    %v8977 = vunpack.c.l.b16 %v8460
    %v8978 = vunpack.c.l.b16 %v8461
    %v8979 = vunpack.c.l.b16 %v8462
    %v8980 = vunpack.c.l.b16 %v8463
    %v8981 = vunpack.c.l.b16 %v8464
    %v8982 = vunpack.c.l.b16 %v8465
    %v8983 = vunpack.c.l.b16 %v8466
    %v8984 = vunpack.c.l.b16 %v8467
    %v8985 = vunpack.c.l.b16 %v8468
    %v8986 = vunpack.c.l.b16 %v8469
    %v8987 = vunpack.c.l.b16 %v8470
    %v8988 = vunpack.c.l.b16 %v8471
    %v8989 = vunpack.c.l.b16 %v8472
    %v8990 = vunpack.c.l.b16 %v8473
    %v8991 = vunpack.c.l.b16 %v8474
    %v8992 = vunpack.c.l.b16 %v8475
    %v8993 = vunpack.c.l.b16 %v8476
    %v8994 = vunpack.c.l.b16 %v8477
    %v8995 = vunpack.c.l.b16 %v8478
    %v8996 = vunpack.c.l.b16 %v8479
    %v8997 = vunpack.c.l.b16 %v8480
    %v8998 = vunpack.c.l.b16 %v8481
    %v8999 = vunpack.c.l.b16 %v8482
    %v9000 = vunpack.c.l.b16 %v8483
    %v9001 = vunpack.c.l.b16 %v8484
    %v9002 = vunpack.c.l.b16 %v8485
    %v9003 = vunpack.c.l.b16 %v8486
    %v9004 = vunpack.c.l.b16 %v8487
    %v9005 = vunpack.c.l.b16 %v8488
    %v9006 = vunpack.c.l.b16 %v8489
    %v9007 = vunpack.c.l.b16 %v8490
    %v9008 = vunpack.c.l.b16 %v8491
    %v9009 = vunpack.c.l.b16 %v8492
    %v9010 = vunpack.c.l.b16 %v8493
    %v9011 = vunpack.c.l.b16 %v8494
    %v9012 = vunpack.c.l.b16 %v8495
    %v9013 = vunpack.c.l.b16 %v8496
    %v9014 = vunpack.c.l.b16 %v8497
    %v9015 = vunpack.c.l.b16 %v8498
    %v9016 = vunpack.c.l.b16 %v8499
    %v9017 = vunpack.c.l.b16 %v8500
    %v9018 = vunpack.c.l.b16 %v8501
    %v9019 = vunpack.c.l.b16 %v8502
    %v9020 = vunpack.c.l.b16 %v8503
    %v9021 = vunpack.c.l.b16 %v8504
    %v9022 = vunpack.c.l.b16 %v8505
    %v9023 = vunpack.c.l.b16 %v8506
    %v9024 = vunpack.c.l.b16 %v8507
    %v9025 = vunpack.c.l.b16 %v8508
    %v9026 = vunpack.c.l.b16 %v8509
    %v9027 = vunpack.c.l.b16 %v8510
    %v9028 = vunpack.c.l.b16 %v8511
    %v9029 = vunpack.c.l.b16 %v8512
    %v9030 = vunpack.c.l.b16 %v8513
    %v9031 = vunpack.c.l.b16 %v8514
    %v9032 = vunpack.c.l.b16 %v8515
    %v9033 = vunpack.c.l.b16 %v8516
    %v9034 = vunpack.c.l.b16 %v8517
    %v9035 = vunpack.c.l.b16 %v8518
    %v9036 = vunpack.c.l.b16 %v8519
    %v9037 = vpack.c.b16 %v8782, %v8781
    %v9038 = vpack.c.b16 %v8784, %v8783
    %v9039 = vpack.c.b16 %v8786, %v8785
    %v9040 = vpack.c.b16 %v8788, %v8787
    %v9041 = vpack.c.b16 %v8790, %v8789
    %v9042 = vpack.c.b16 %v8792, %v8791
    %v9043 = vpack.c.b16 %v8794, %v8793
    %v9044 = vpack.c.b16 %v8796, %v8795
    %v9045 = vpack.c.b16 %v8798, %v8797
    %v9046 = vpack.c.b16 %v8800, %v8799
    %v9047 = vpack.c.b16 %v8802, %v8801
    %v9048 = vpack.c.b16 %v8804, %v8803
    %v9049 = vpack.c.b16 %v8806, %v8805
    %v9050 = vpack.c.b16 %v8808, %v8807
    %v9051 = vpack.c.b16 %v8810, %v8809
    %v9052 = vpack.c.b16 %v8812, %v8811
    %v9053 = vpack.c.b16 %v8814, %v8813
    %v9054 = vpack.c.b16 %v8816, %v8815
    %v9055 = vpack.c.b16 %v8818, %v8817
    %v9056 = vpack.c.b16 %v8820, %v8819
    %v9057 = vpack.c.b16 %v8822, %v8821
    %v9058 = vpack.c.b16 %v8824, %v8823
    %v9059 = vpack.c.b16 %v8826, %v8825
    %v9060 = vpack.c.b16 %v8828, %v8827
    %v9061 = vpack.c.b16 %v8830, %v8829
    %v9062 = vpack.c.b16 %v8832, %v8831
    %v9063 = vpack.c.b16 %v8834, %v8833
    %v9064 = vpack.c.b16 %v8836, %v8835
    %v9065 = vpack.c.b16 %v8838, %v8837
    %v9066 = vpack.c.b16 %v8840, %v8839
    %v9067 = vpack.c.b16 %v8842, %v8841
    %v9068 = vpack.c.b16 %v8844, %v8843
    %v9069 = vpack.c.b16 %v8846, %v8845
    %v9070 = vpack.c.b16 %v8848, %v8847
    %v9071 = vpack.c.b16 %v8850, %v8849
    %v9072 = vpack.c.b16 %v8852, %v8851
    %v9073 = vpack.c.b16 %v8854, %v8853
    %v9074 = vpack.c.b16 %v8856, %v8855
    %v9075 = vpack.c.b16 %v8858, %v8857
    %v9076 = vpack.c.b16 %v8860, %v8859
    %v9077 = vpack.c.b16 %v8862, %v8861
    %v9078 = vpack.c.b16 %v8864, %v8863
    %v9079 = vpack.c.b16 %v8866, %v8865
    %v9080 = vpack.c.b16 %v8868, %v8867
    %v9081 = vpack.c.b16 %v8870, %v8869
    %v9082 = vpack.c.b16 %v8872, %v8871
    %v9083 = vpack.c.b16 %v8874, %v8873
    %v9084 = vpack.c.b16 %v8876, %v8875
    %v9085 = vpack.c.b16 %v8878, %v8877
    %v9086 = vpack.c.b16 %v8880, %v8879
    %v9087 = vpack.c.b16 %v8882, %v8881
    %v9088 = vpack.c.b16 %v8884, %v8883
    %v9089 = vpack.c.b16 %v8886, %v8885
    %v9090 = vpack.c.b16 %v8888, %v8887
    %v9091 = vpack.c.b16 %v8890, %v8889
    %v9092 = vpack.c.b16 %v8892, %v8891
    %v9093 = vpack.c.b16 %v8894, %v8893
    %v9094 = vpack.c.b16 %v8896, %v8895
    %v9095 = vpack.c.b16 %v8898, %v8897
    %v9096 = vpack.c.b16 %v8900, %v8899
    %v9097 = vpack.c.b16 %v8902, %v8901
    %v9098 = vpack.c.b16 %v8904, %v8903
    %v9099 = vpack.c.b16 %v8906, %v8905
    %v9100 = vpack.c.b16 %v8908, %v8907
    %v9101 = vpack.c.b16 %v8910, %v8909
    %v9102 = vpack.c.b16 %v8912, %v8911
    %v9103 = vpack.c.b16 %v8914, %v8913
    %v9104 = vpack.c.b16 %v8916, %v8915
    %v9105 = vpack.c.b16 %v8918, %v8917
    %v9106 = vpack.c.b16 %v8920, %v8919
    %v9107 = vpack.c.b16 %v8922, %v8921
    %v9108 = vpack.c.b16 %v8924, %v8923
    %v9109 = vpack.c.b16 %v8926, %v8925
    %v9110 = vpack.c.b16 %v8928, %v8927
    %v9111 = vpack.c.b16 %v8930, %v8929
    %v9112 = vpack.c.b16 %v8932, %v8931
    %v9113 = vpack.c.b16 %v8934, %v8933
    %v9114 = vpack.c.b16 %v8936, %v8935
    %v9115 = vpack.c.b16 %v8938, %v8937
    %v9116 = vpack.c.b16 %v8940, %v8939
    %v9117 = vpack.c.b16 %v8942, %v8941
    %v9118 = vpack.c.b16 %v8944, %v8943
    %v9119 = vpack.c.b16 %v8946, %v8945
    %v9120 = vpack.c.b16 %v8948, %v8947
    %v9121 = vpack.c.b16 %v8950, %v8949
    %v9122 = vpack.c.b16 %v8952, %v8951
    %v9123 = vpack.c.b16 %v8954, %v8953
    %v9124 = vpack.c.b16 %v8956, %v8955
    %v9125 = vpack.c.b16 %v8958, %v8957
    %v9126 = vpack.c.b16 %v8960, %v8959
    %v9127 = vpack.c.b16 %v8962, %v8961
    %v9128 = vpack.c.b16 %v8964, %v8963
    %v9129 = vpack.c.b16 %v8966, %v8965
    %v9130 = vpack.c.b16 %v8968, %v8967
    %v9131 = vpack.c.b16 %v8970, %v8969
    %v9132 = vpack.c.b16 %v8972, %v8971
    %v9133 = vpack.c.b16 %v8974, %v8973
    %v9134 = vpack.c.b16 %v8976, %v8975
    %v9135 = vpack.c.b16 %v8978, %v8977
    %v9136 = vpack.c.b16 %v8980, %v8979
    %v9137 = vpack.c.b16 %v8982, %v8981
    %v9138 = vpack.c.b16 %v8984, %v8983
    %v9139 = vpack.c.b16 %v8986, %v8985
    %v9140 = vpack.c.b16 %v8988, %v8987
    %v9141 = vpack.c.b16 %v8990, %v8989
    %v9142 = vpack.c.b16 %v8992, %v8991
    %v9143 = vpack.c.b16 %v8994, %v8993
    %v9144 = vpack.c.b16 %v8996, %v8995
    %v9145 = vpack.c.b16 %v8998, %v8997
    %v9146 = vpack.c.b16 %v9000, %v8999
    %v9147 = vpack.c.b16 %v9002, %v9001
    %v9148 = vpack.c.b16 %v9004, %v9003
    %v9149 = vpack.c.b16 %v9006, %v9005
    %v9150 = vpack.c.b16 %v9008, %v9007
    %v9151 = vpack.c.b16 %v9010, %v9009
    %v9152 = vpack.c.b16 %v9012, %v9011
    %v9153 = vpack.c.b16 %v9014, %v9013
    %v9154 = vpack.c.b16 %v9016, %v9015
    %v9155 = vpack.c.b16 %v9018, %v9017
    %v9156 = vpack.c.b16 %v9020, %v9019
    %v9157 = vpack.c.b16 %v9022, %v9021
    %v9158 = vpack.c.b16 %v9024, %v9023
    %v9159 = vpack.c.b16 %v9026, %v9025
    %v9160 = vpack.c.b16 %v9028, %v9027
    %v9161 = vpack.c.b16 %v9030, %v9029
    %v9162 = vpack.c.b16 %v9032, %v9031
    %v9163 = vpack.c.b16 %v9034, %v9033
    %v9164 = vpack.c.b16 %v9036, %v9035
    %9293 = vmatpush.bf16.msra.mxu0 %v9044
    %9294 = vmatpush.bf16.msra.mxu0 %v9043
    %9295 = vmatpush.bf16.msra.mxu0 %v9042
    %9296 = vmatpush.bf16.msra.mxu0 %v9041
    %9297 = vmatpush.bf16.msra.mxu0 %v9040
    %9298 = vmatpush.bf16.msra.mxu0 %v9039
    %9299 = vmatpush.bf16.msra.mxu0 %v9038
    %9300 = vmatpush.bf16.msra.mxu0 %v9037
    %9301 = vmatmul.bf16.gmra.mxu0 %v8199
    %v9302 = vpop.f32.mrf.mxu0
    %v9303 = vadd.f32 %v8523, %v9302
    %v9304 = vpop.f32.mrf.mxu0
    %v9305 = vadd.f32 %v8523, %v9304
    %9306 = vmatmul.bf16.gmra.mxu0 %v8215
    %v9307 = vpop.f32.mrf.mxu0
    %v9308 = vadd.f32 %v8523, %v9307
    %v9309 = vpop.f32.mrf.mxu0
    %v9310 = vadd.f32 %v8523, %v9309
    %9311 = vmatmul.bf16.gmra.mxu0 %v8231
    %v9312 = vpop.f32.mrf.mxu0
    %v9313 = vadd.f32 %v8523, %v9312
    %v9314 = vpop.f32.mrf.mxu0
    %v9315 = vadd.f32 %v8523, %v9314
    %9316 = vmatmul.bf16.gmra.mxu0 %v8247
    %v9317 = vpop.f32.mrf.mxu0
    %v9318 = vadd.f32 %v8523, %v9317
    %v9319 = vpop.f32.mrf.mxu0
    %v9320 = vadd.f32 %v8523, %v9319
    %9321 = vdwg.mxu0
    %9322 = vmatpush.bf16.msra.mxu0 %v9052
    %9323 = vmatpush.bf16.msra.mxu0 %v9051
    %9324 = vmatpush.bf16.msra.mxu0 %v9050
    %9325 = vmatpush.bf16.msra.mxu0 %v9049
    %9326 = vmatpush.bf16.msra.mxu0 %v9048
    %9327 = vmatpush.bf16.msra.mxu0 %v9047
    %9328 = vmatpush.bf16.msra.mxu0 %v9046
    %9329 = vmatpush.bf16.msra.mxu0 %v9045
    %9330 = vmatmul.bf16.gmra.mxu0 %v8200
    %v9331 = vpop.f32.mrf.mxu0
    %v9332 = vadd.f32 %v9303, %v9331
    %v9333 = vpop.f32.mrf.mxu0
    %v9334 = vadd.f32 %v9305, %v9333
    %9335 = vmatmul.bf16.gmra.mxu0 %v8216
    %v9336 = vpop.f32.mrf.mxu0
    %v9337 = vadd.f32 %v9308, %v9336
    %v9338 = vpop.f32.mrf.mxu0
    %v9339 = vadd.f32 %v9310, %v9338
    %9340 = vmatmul.bf16.gmra.mxu0 %v8232
    %v9341 = vpop.f32.mrf.mxu0
    %v9342 = vadd.f32 %v9313, %v9341
    %v9343 = vpop.f32.mrf.mxu0
    %v9344 = vadd.f32 %v9315, %v9343
    %9345 = vmatmul.bf16.gmra.mxu0 %v8248
    %v9346 = vpop.f32.mrf.mxu0
    %v9347 = vadd.f32 %v9318, %v9346
    %v9348 = vpop.f32.mrf.mxu0
    %v9349 = vadd.f32 %v9320, %v9348
    %9350 = vdwg.mxu0
    %9351 = vmatpush.bf16.msra.mxu0 %v9060
    %9352 = vmatpush.bf16.msra.mxu0 %v9059
    %9353 = vmatpush.bf16.msra.mxu0 %v9058
    %9354 = vmatpush.bf16.msra.mxu0 %v9057
    %9355 = vmatpush.bf16.msra.mxu0 %v9056
    %9356 = vmatpush.bf16.msra.mxu0 %v9055
    %9357 = vmatpush.bf16.msra.mxu0 %v9054
    %9358 = vmatpush.bf16.msra.mxu0 %v9053
    %9359 = vmatmul.bf16.gmra.mxu0 %v8201
    %v9360 = vpop.f32.mrf.mxu0
    %v9361 = vadd.f32 %v9332, %v9360
    %v9362 = vpop.f32.mrf.mxu0
    %v9363 = vadd.f32 %v9334, %v9362
    %9364 = vmatmul.bf16.gmra.mxu0 %v8217
    %v9365 = vpop.f32.mrf.mxu0
    %v9366 = vadd.f32 %v9337, %v9365
    %v9367 = vpop.f32.mrf.mxu0
    %v9368 = vadd.f32 %v9339, %v9367
    %9369 = vmatmul.bf16.gmra.mxu0 %v8233
    %v9370 = vpop.f32.mrf.mxu0
    %v9371 = vadd.f32 %v9342, %v9370
    %v9372 = vpop.f32.mrf.mxu0
    %v9373 = vadd.f32 %v9344, %v9372
    %9374 = vmatmul.bf16.gmra.mxu0 %v8249
    %v9375 = vpop.f32.mrf.mxu0
    %v9376 = vadd.f32 %v9347, %v9375
    %v9377 = vpop.f32.mrf.mxu0
    %v9378 = vadd.f32 %v9349, %v9377
    %9379 = vdwg.mxu0
    %9380 = vmatpush.bf16.msra.mxu0 %v9068
    %9381 = vmatpush.bf16.msra.mxu0 %v9067
    %9382 = vmatpush.bf16.msra.mxu0 %v9066
    %9383 = vmatpush.bf16.msra.mxu0 %v9065
    %9384 = vmatpush.bf16.msra.mxu0 %v9064
    %9385 = vmatpush.bf16.msra.mxu0 %v9063
    %9386 = vmatpush.bf16.msra.mxu0 %v9062
    %9387 = vmatpush.bf16.msra.mxu0 %v9061
    %9388 = vmatmul.bf16.gmra.mxu0 %v8202
    %v9389 = vpop.f32.mrf.mxu0
    %v9390 = vadd.f32 %v9361, %v9389
    %v9391 = vpop.f32.mrf.mxu0
    %v9392 = vadd.f32 %v9363, %v9391
    %9393 = vmatmul.bf16.gmra.mxu0 %v8218
    %v9394 = vpop.f32.mrf.mxu0
    %v9395 = vadd.f32 %v9366, %v9394
    %v9396 = vpop.f32.mrf.mxu0
    %v9397 = vadd.f32 %v9368, %v9396
    %9398 = vmatmul.bf16.gmra.mxu0 %v8234
    %v9399 = vpop.f32.mrf.mxu0
    %v9400 = vadd.f32 %v9371, %v9399
    %v9401 = vpop.f32.mrf.mxu0
    %v9402 = vadd.f32 %v9373, %v9401
    %9403 = vmatmul.bf16.gmra.mxu0 %v8250
    %v9404 = vpop.f32.mrf.mxu0
    %v9405 = vadd.f32 %v9376, %v9404
    %v9406 = vpop.f32.mrf.mxu0
    %v9407 = vadd.f32 %v9378, %v9406
    %9408 = vdwg.mxu0
    %9409 = vmatpush.bf16.msra.mxu0 %v9076
    %9410 = vmatpush.bf16.msra.mxu0 %v9075
    %9411 = vmatpush.bf16.msra.mxu0 %v9074
    %9412 = vmatpush.bf16.msra.mxu0 %v9073
    %9413 = vmatpush.bf16.msra.mxu0 %v9072
    %9414 = vmatpush.bf16.msra.mxu0 %v9071
    %9415 = vmatpush.bf16.msra.mxu0 %v9070
    %9416 = vmatpush.bf16.msra.mxu0 %v9069
    %9417 = vmatmul.bf16.gmra.mxu0 %v8203
    %v9418 = vpop.f32.mrf.mxu0
    %v9419 = vadd.f32 %v9390, %v9418
    %v9420 = vpop.f32.mrf.mxu0
    %v9421 = vadd.f32 %v9392, %v9420
    %9422 = vmatmul.bf16.gmra.mxu0 %v8219
    %v9423 = vpop.f32.mrf.mxu0
    %v9424 = vadd.f32 %v9395, %v9423
    %v9425 = vpop.f32.mrf.mxu0
    %v9426 = vadd.f32 %v9397, %v9425
    %9427 = vmatmul.bf16.gmra.mxu0 %v8235
    %v9428 = vpop.f32.mrf.mxu0
    %v9429 = vadd.f32 %v9400, %v9428
    %v9430 = vpop.f32.mrf.mxu0
    %v9431 = vadd.f32 %v9402, %v9430
    %9432 = vmatmul.bf16.gmra.mxu0 %v8251
    %v9433 = vpop.f32.mrf.mxu0
    %v9434 = vadd.f32 %v9405, %v9433
    %v9435 = vpop.f32.mrf.mxu0
    %v9436 = vadd.f32 %v9407, %v9435
    %9437 = vdwg.mxu0
    %9438 = vmatpush.bf16.msra.mxu0 %v9084
    %9439 = vmatpush.bf16.msra.mxu0 %v9083
    %9440 = vmatpush.bf16.msra.mxu0 %v9082
    %9441 = vmatpush.bf16.msra.mxu0 %v9081
    %9442 = vmatpush.bf16.msra.mxu0 %v9080
    %9443 = vmatpush.bf16.msra.mxu0 %v9079
    %9444 = vmatpush.bf16.msra.mxu0 %v9078
    %9445 = vmatpush.bf16.msra.mxu0 %v9077
    %9446 = vmatmul.bf16.gmra.mxu0 %v8204
    %v9447 = vpop.f32.mrf.mxu0
    %v9448 = vadd.f32 %v9419, %v9447
    %v9449 = vpop.f32.mrf.mxu0
    %v9450 = vadd.f32 %v9421, %v9449
    %9451 = vmatmul.bf16.gmra.mxu0 %v8220
    %v9452 = vpop.f32.mrf.mxu0
    %v9453 = vadd.f32 %v9424, %v9452
    %v9454 = vpop.f32.mrf.mxu0
    %v9455 = vadd.f32 %v9426, %v9454
    %9456 = vmatmul.bf16.gmra.mxu0 %v8236
    %v9457 = vpop.f32.mrf.mxu0
    %v9458 = vadd.f32 %v9429, %v9457
    %v9459 = vpop.f32.mrf.mxu0
    %v9460 = vadd.f32 %v9431, %v9459
    %9461 = vmatmul.bf16.gmra.mxu0 %v8252
    %v9462 = vpop.f32.mrf.mxu0
    %v9463 = vadd.f32 %v9434, %v9462
    %v9464 = vpop.f32.mrf.mxu0
    %v9465 = vadd.f32 %v9436, %v9464
    %9466 = vdwg.mxu0
    %9467 = vmatpush.bf16.msra.mxu0 %v9092
    %9468 = vmatpush.bf16.msra.mxu0 %v9091
    %9469 = vmatpush.bf16.msra.mxu0 %v9090
    %9470 = vmatpush.bf16.msra.mxu0 %v9089
    %9471 = vmatpush.bf16.msra.mxu0 %v9088
    %9472 = vmatpush.bf16.msra.mxu0 %v9087
    %9473 = vmatpush.bf16.msra.mxu0 %v9086
    %9474 = vmatpush.bf16.msra.mxu0 %v9085
    %9475 = vmatmul.bf16.gmra.mxu0 %v8205
    %v9476 = vpop.f32.mrf.mxu0
    %v9477 = vadd.f32 %v9448, %v9476
    %v9478 = vpop.f32.mrf.mxu0
    %v9479 = vadd.f32 %v9450, %v9478
    %9480 = vmatmul.bf16.gmra.mxu0 %v8221
    %v9481 = vpop.f32.mrf.mxu0
    %v9482 = vadd.f32 %v9453, %v9481
    %v9483 = vpop.f32.mrf.mxu0
    %v9484 = vadd.f32 %v9455, %v9483
    %9485 = vmatmul.bf16.gmra.mxu0 %v8237
    %v9486 = vpop.f32.mrf.mxu0
    %v9487 = vadd.f32 %v9458, %v9486
    %v9488 = vpop.f32.mrf.mxu0
    %v9489 = vadd.f32 %v9460, %v9488
    %9490 = vmatmul.bf16.gmra.mxu0 %v8253
    %v9491 = vpop.f32.mrf.mxu0
    %v9492 = vadd.f32 %v9463, %v9491
    %v9493 = vpop.f32.mrf.mxu0
    %v9494 = vadd.f32 %v9465, %v9493
    %9495 = vdwg.mxu0
    %9496 = vmatpush.bf16.msra.mxu0 %v9100
    %9497 = vmatpush.bf16.msra.mxu0 %v9099
    %9498 = vmatpush.bf16.msra.mxu0 %v9098
    %9499 = vmatpush.bf16.msra.mxu0 %v9097
    %9500 = vmatpush.bf16.msra.mxu0 %v9096
    %9501 = vmatpush.bf16.msra.mxu0 %v9095
    %9502 = vmatpush.bf16.msra.mxu0 %v9094
    %9503 = vmatpush.bf16.msra.mxu0 %v9093
    %9504 = vmatmul.bf16.gmra.mxu0 %v8206
    %v9505 = vpop.f32.mrf.mxu0
    %v9506 = vadd.f32 %v9477, %v9505
    %v9507 = vpop.f32.mrf.mxu0
    %v9508 = vadd.f32 %v9479, %v9507
    %9509 = vmatmul.bf16.gmra.mxu0 %v8222
    %v9510 = vpop.f32.mrf.mxu0
    %v9511 = vadd.f32 %v9482, %v9510
    %v9512 = vpop.f32.mrf.mxu0
    %v9513 = vadd.f32 %v9484, %v9512
    %9514 = vmatmul.bf16.gmra.mxu0 %v8238
    %v9515 = vpop.f32.mrf.mxu0
    %v9516 = vadd.f32 %v9487, %v9515
    %v9517 = vpop.f32.mrf.mxu0
    %v9518 = vadd.f32 %v9489, %v9517
    %9519 = vmatmul.bf16.gmra.mxu0 %v8254
    %v9520 = vpop.f32.mrf.mxu0
    %v9521 = vadd.f32 %v9492, %v9520
    %v9522 = vpop.f32.mrf.mxu0
    %v9523 = vadd.f32 %v9494, %v9522
    %9524 = vdwg.mxu0
    %9525 = vmatpush.bf16.msra.mxu0 %v9108
    %9526 = vmatpush.bf16.msra.mxu0 %v9107
    %9527 = vmatpush.bf16.msra.mxu0 %v9106
    %9528 = vmatpush.bf16.msra.mxu0 %v9105
    %9529 = vmatpush.bf16.msra.mxu0 %v9104
    %9530 = vmatpush.bf16.msra.mxu0 %v9103
    %9531 = vmatpush.bf16.msra.mxu0 %v9102
    %9532 = vmatpush.bf16.msra.mxu0 %v9101
    %9533 = vmatmul.bf16.gmra.mxu0 %v8207
    %v9534 = vpop.f32.mrf.mxu0
    %v9535 = vadd.f32 %v9506, %v9534
    %v9536 = vpop.f32.mrf.mxu0
    %v9537 = vadd.f32 %v9508, %v9536
    %9538 = vmatmul.bf16.gmra.mxu0 %v8223
    %v9539 = vpop.f32.mrf.mxu0
    %v9540 = vadd.f32 %v9511, %v9539
    %v9541 = vpop.f32.mrf.mxu0
    %v9542 = vadd.f32 %v9513, %v9541
    %9543 = vmatmul.bf16.gmra.mxu0 %v8239
    %v9544 = vpop.f32.mrf.mxu0
    %v9545 = vadd.f32 %v9516, %v9544
    %v9546 = vpop.f32.mrf.mxu0
    %v9547 = vadd.f32 %v9518, %v9546
    %9548 = vmatmul.bf16.gmra.mxu0 %v8255
    %v9549 = vpop.f32.mrf.mxu0
    %v9550 = vadd.f32 %v9521, %v9549
    %v9551 = vpop.f32.mrf.mxu0
    %v9552 = vadd.f32 %v9523, %v9551
    %9553 = vdwg.mxu0
    %9554 = vmatpush.bf16.msra.mxu0 %v9116
    %9555 = vmatpush.bf16.msra.mxu0 %v9115
    %9556 = vmatpush.bf16.msra.mxu0 %v9114
    %9557 = vmatpush.bf16.msra.mxu0 %v9113
    %9558 = vmatpush.bf16.msra.mxu0 %v9112
    %9559 = vmatpush.bf16.msra.mxu0 %v9111
    %9560 = vmatpush.bf16.msra.mxu0 %v9110
    %9561 = vmatpush.bf16.msra.mxu0 %v9109
    %9562 = vmatmul.bf16.gmra.mxu0 %v8208
    %v9563 = vpop.f32.mrf.mxu0
    %v9564 = vadd.f32 %v9535, %v9563
    %v9565 = vpop.f32.mrf.mxu0
    %v9566 = vadd.f32 %v9537, %v9565
    %9567 = vmatmul.bf16.gmra.mxu0 %v8224
    %v9568 = vpop.f32.mrf.mxu0
    %v9569 = vadd.f32 %v9540, %v9568
    %v9570 = vpop.f32.mrf.mxu0
    %v9571 = vadd.f32 %v9542, %v9570
    %9572 = vmatmul.bf16.gmra.mxu0 %v8240
    %v9573 = vpop.f32.mrf.mxu0
    %v9574 = vadd.f32 %v9545, %v9573
    %v9575 = vpop.f32.mrf.mxu0
    %v9576 = vadd.f32 %v9547, %v9575
    %9577 = vmatmul.bf16.gmra.mxu0 %v8256
    %v9578 = vpop.f32.mrf.mxu0
    %v9579 = vadd.f32 %v9550, %v9578
    %v9580 = vpop.f32.mrf.mxu0
    %v9581 = vadd.f32 %v9552, %v9580
    %9582 = vdwg.mxu0
    %9583 = vmatpush.bf16.msra.mxu0 %v9124
    %9584 = vmatpush.bf16.msra.mxu0 %v9123
    %9585 = vmatpush.bf16.msra.mxu0 %v9122
    %9586 = vmatpush.bf16.msra.mxu0 %v9121
    %9587 = vmatpush.bf16.msra.mxu0 %v9120
    %9588 = vmatpush.bf16.msra.mxu0 %v9119
    %9589 = vmatpush.bf16.msra.mxu0 %v9118
    %9590 = vmatpush.bf16.msra.mxu0 %v9117
    %9591 = vmatmul.bf16.gmra.mxu0 %v8209
    %v9592 = vpop.f32.mrf.mxu0
    %v9593 = vadd.f32 %v9564, %v9592
    %v9594 = vpop.f32.mrf.mxu0
    %v9595 = vadd.f32 %v9566, %v9594
    %9596 = vmatmul.bf16.gmra.mxu0 %v8225
    %v9597 = vpop.f32.mrf.mxu0
    %v9598 = vadd.f32 %v9569, %v9597
    %v9599 = vpop.f32.mrf.mxu0
    %v9600 = vadd.f32 %v9571, %v9599
    %9601 = vmatmul.bf16.gmra.mxu0 %v8241
    %v9602 = vpop.f32.mrf.mxu0
    %v9603 = vadd.f32 %v9574, %v9602
    %v9604 = vpop.f32.mrf.mxu0
    %v9605 = vadd.f32 %v9576, %v9604
    %9606 = vmatmul.bf16.gmra.mxu0 %v8257
    %v9607 = vpop.f32.mrf.mxu0
    %v9608 = vadd.f32 %v9579, %v9607
    %v9609 = vpop.f32.mrf.mxu0
    %v9610 = vadd.f32 %v9581, %v9609
    %9611 = vdwg.mxu0
    %9612 = vmatpush.bf16.msra.mxu0 %v9132
    %9613 = vmatpush.bf16.msra.mxu0 %v9131
    %9614 = vmatpush.bf16.msra.mxu0 %v9130
    %9615 = vmatpush.bf16.msra.mxu0 %v9129
    %9616 = vmatpush.bf16.msra.mxu0 %v9128
    %9617 = vmatpush.bf16.msra.mxu0 %v9127
    %9618 = vmatpush.bf16.msra.mxu0 %v9126
    %9619 = vmatpush.bf16.msra.mxu0 %v9125
    %9620 = vmatmul.bf16.gmra.mxu0 %v8210
    %v9621 = vpop.f32.mrf.mxu0
    %v9622 = vadd.f32 %v9593, %v9621
    %v9623 = vpop.f32.mrf.mxu0
    %v9624 = vadd.f32 %v9595, %v9623
    %9625 = vmatmul.bf16.gmra.mxu0 %v8226
    %v9626 = vpop.f32.mrf.mxu0
    %v9627 = vadd.f32 %v9598, %v9626
    %v9628 = vpop.f32.mrf.mxu0
    %v9629 = vadd.f32 %v9600, %v9628
    %9630 = vmatmul.bf16.gmra.mxu0 %v8242
    %v9631 = vpop.f32.mrf.mxu0
    %v9632 = vadd.f32 %v9603, %v9631
    %v9633 = vpop.f32.mrf.mxu0
    %v9634 = vadd.f32 %v9605, %v9633
    %9635 = vmatmul.bf16.gmra.mxu0 %v8258
    %v9636 = vpop.f32.mrf.mxu0
    %v9637 = vadd.f32 %v9608, %v9636
    %v9638 = vpop.f32.mrf.mxu0
    %v9639 = vadd.f32 %v9610, %v9638
    %9640 = vdwg.mxu0
    %9641 = vmatpush.bf16.msra.mxu0 %v9140
    %9642 = vmatpush.bf16.msra.mxu0 %v9139
    %9643 = vmatpush.bf16.msra.mxu0 %v9138
    %9644 = vmatpush.bf16.msra.mxu0 %v9137
    %9645 = vmatpush.bf16.msra.mxu0 %v9136
    %9646 = vmatpush.bf16.msra.mxu0 %v9135
    %9647 = vmatpush.bf16.msra.mxu0 %v9134
    %9648 = vmatpush.bf16.msra.mxu0 %v9133
    %9649 = vmatmul.bf16.gmra.mxu0 %v8211
    %v9650 = vpop.f32.mrf.mxu0
    %v9651 = vadd.f32 %v9622, %v9650
    %v9652 = vpop.f32.mrf.mxu0
    %v9653 = vadd.f32 %v9624, %v9652
    %9654 = vmatmul.bf16.gmra.mxu0 %v8227
    %v9655 = vpop.f32.mrf.mxu0
    %v9656 = vadd.f32 %v9627, %v9655
    %v9657 = vpop.f32.mrf.mxu0
    %v9658 = vadd.f32 %v9629, %v9657
    %9659 = vmatmul.bf16.gmra.mxu0 %v8243
    %v9660 = vpop.f32.mrf.mxu0
    %v9661 = vadd.f32 %v9632, %v9660
    %v9662 = vpop.f32.mrf.mxu0
    %v9663 = vadd.f32 %v9634, %v9662
    %9664 = vmatmul.bf16.gmra.mxu0 %v8259
    %v9665 = vpop.f32.mrf.mxu0
    %v9666 = vadd.f32 %v9637, %v9665
    %v9667 = vpop.f32.mrf.mxu0
    %v9668 = vadd.f32 %v9639, %v9667
    %9669 = vdwg.mxu0
    %9670 = vmatpush.bf16.msra.mxu0 %v9148
    %9671 = vmatpush.bf16.msra.mxu0 %v9147
    %9672 = vmatpush.bf16.msra.mxu0 %v9146
    %9673 = vmatpush.bf16.msra.mxu0 %v9145
    %9674 = vmatpush.bf16.msra.mxu0 %v9144
    %9675 = vmatpush.bf16.msra.mxu0 %v9143
    %9676 = vmatpush.bf16.msra.mxu0 %v9142
    %9677 = vmatpush.bf16.msra.mxu0 %v9141
    %9678 = vmatmul.bf16.gmra.mxu0 %v8212
    %v9679 = vpop.f32.mrf.mxu0
    %v9680 = vadd.f32 %v9651, %v9679
    %v9681 = vpop.f32.mrf.mxu0
    %v9682 = vadd.f32 %v9653, %v9681
    %9683 = vmatmul.bf16.gmra.mxu0 %v8228
    %v9684 = vpop.f32.mrf.mxu0
    %v9685 = vadd.f32 %v9656, %v9684
    %v9686 = vpop.f32.mrf.mxu0
    %v9687 = vadd.f32 %v9658, %v9686
    %9688 = vmatmul.bf16.gmra.mxu0 %v8244
    %v9689 = vpop.f32.mrf.mxu0
    %v9690 = vadd.f32 %v9661, %v9689
    %v9691 = vpop.f32.mrf.mxu0
    %v9692 = vadd.f32 %v9663, %v9691
    %9693 = vmatmul.bf16.gmra.mxu0 %v8260
    %v9694 = vpop.f32.mrf.mxu0
    %v9695 = vadd.f32 %v9666, %v9694
    %v9696 = vpop.f32.mrf.mxu0
    %v9697 = vadd.f32 %v9668, %v9696
    %9698 = vdwg.mxu0
    %9699 = vmatpush.bf16.msra.mxu0 %v9156
    %9700 = vmatpush.bf16.msra.mxu0 %v9155
    %9701 = vmatpush.bf16.msra.mxu0 %v9154
    %9702 = vmatpush.bf16.msra.mxu0 %v9153
    %9703 = vmatpush.bf16.msra.mxu0 %v9152
    %9704 = vmatpush.bf16.msra.mxu0 %v9151
    %9705 = vmatpush.bf16.msra.mxu0 %v9150
    %9706 = vmatpush.bf16.msra.mxu0 %v9149
    %9707 = vmatmul.bf16.gmra.mxu0 %v8213
    %v9708 = vpop.f32.mrf.mxu0
    %v9709 = vadd.f32 %v9680, %v9708
    %v9710 = vpop.f32.mrf.mxu0
    %v9711 = vadd.f32 %v9682, %v9710
    %9712 = vmatmul.bf16.gmra.mxu0 %v8229
    %v9713 = vpop.f32.mrf.mxu0
    %v9714 = vadd.f32 %v9685, %v9713
    %v9715 = vpop.f32.mrf.mxu0
    %v9716 = vadd.f32 %v9687, %v9715
    %9717 = vmatmul.bf16.gmra.mxu0 %v8245
    %v9718 = vpop.f32.mrf.mxu0
    %v9719 = vadd.f32 %v9690, %v9718
    %v9720 = vpop.f32.mrf.mxu0
    %v9721 = vadd.f32 %v9692, %v9720
    %9722 = vmatmul.bf16.gmra.mxu0 %v8261
    %v9723 = vpop.f32.mrf.mxu0
    %v9724 = vadd.f32 %v9695, %v9723
    %v9725 = vpop.f32.mrf.mxu0
    %v9726 = vadd.f32 %v9697, %v9725
    %9727 = vdwg.mxu0
    %9728 = vmatpush.bf16.msra.mxu0 %v9164
    %9729 = vmatpush.bf16.msra.mxu0 %v9163
    %9730 = vmatpush.bf16.msra.mxu0 %v9162
    %9731 = vmatpush.bf16.msra.mxu0 %v9161
    %9732 = vmatpush.bf16.msra.mxu0 %v9160
    %9733 = vmatpush.bf16.msra.mxu0 %v9159
    %9734 = vmatpush.bf16.msra.mxu0 %v9158
    %9735 = vmatpush.bf16.msra.mxu0 %v9157
    %9736 = vmatmul.bf16.gmra.mxu0 %v8214
    %v9737 = vpop.f32.mrf.mxu0
    %v9738 = vadd.f32 %v9709, %v9737
    %v9739 = vpop.f32.mrf.mxu0
    %v9740 = vadd.f32 %v9711, %v9739
    %9741 = vmatmul.bf16.gmra.mxu0 %v8230
    %v9742 = vpop.f32.mrf.mxu0
    %v9743 = vadd.f32 %v9714, %v9742
    %v9744 = vpop.f32.mrf.mxu0
    %v9745 = vadd.f32 %v9716, %v9744
    %9746 = vmatmul.bf16.gmra.mxu0 %v8246
    %v9747 = vpop.f32.mrf.mxu0
    %v9748 = vadd.f32 %v9719, %v9747
    %v9749 = vpop.f32.mrf.mxu0
    %v9750 = vadd.f32 %v9721, %v9749
    %9751 = vmatmul.bf16.gmra.mxu0 %v8262
    %v9752 = vpop.f32.mrf.mxu0
    %v9753 = vadd.f32 %v9724, %v9752
    %v9754 = vpop.f32.mrf.mxu0
    %v9755 = vadd.f32 %v9726, %v9754
    %9756 = vdwg.mxu0
    %v9757 = vadd.f32 %v7353, %v9738
    %v9758 = vadd.f32 %v7354, %v9740
    %v9759 = vadd.f32 %v7355, %v9743
    %v9760 = vadd.f32 %v7356, %v9745
    %v9761 = vadd.f32 %v7357, %v9748
    %v9762 = vadd.f32 %v7358, %v9750
    %v9763 = vadd.f32 %v7359, %v9753
    %v9764 = vadd.f32 %v7360, %v9755
    %s9765 = scalar_lea.vmem %s9, 1
    %v9766 = vld [vmem:[%s9765] sm:$0x1]
    %s9767 = scalar_lea.vmem %s10, 1
    %v9768 = vld [vmem:[%s9767] sm:$0x1]
    %v9769 = vsel %vm141, %v9757, 0.0
    %9770 = vadd.xlane.f32.xlu0 %v9769
    %v9771 = vpop.xlane.xlu0 %9770
    %v9772 = vsel %vm141, %v9758, 0.0
    %9773 = vadd.xlane.f32.xlu0 %v9772
    %v9774 = vpop.xlane.xlu0 %9773
    %v9775 = vsel %vm141, %v9759, 0.0
    %9776 = vadd.xlane.f32.xlu0 %v9775
    %v9777 = vpop.xlane.xlu0 %9776
    %v9778 = vsel %vm141, %v9760, 0.0
    %9779 = vadd.xlane.f32.xlu0 %v9778
    %v9780 = vpop.xlane.xlu0 %9779
    %v9781 = vsel %vm141, %v9761, 0.0
    %9782 = vadd.xlane.f32.xlu0 %v9781
    %v9783 = vpop.xlane.xlu0 %9782
    %v9784 = vsel %vm141, %v9762, 0.0
    %9785 = vadd.xlane.f32.xlu0 %v9784
    %v9786 = vpop.xlane.xlu0 %9785
    %v9787 = vsel %vm141, %v9763, 0.0
    %9788 = vadd.xlane.f32.xlu0 %v9787
    %v9789 = vpop.xlane.xlu0 %9788
    %v9790 = vsel %vm141, %v9764, 0.0
    %9791 = vadd.xlane.f32.xlu0 %v9790
    %v9792 = vpop.xlane.xlu0 %9791
    %v9793 = vmul.f32 %v9771, %v2266
    %v9794 = vmul.f32 %v9774, %v2266
    %v9795 = vmul.f32 %v9777, %v2266
    %v9796 = vmul.f32 %v9780, %v2266
    %v9797 = vmul.f32 %v9783, %v2266
    %v9798 = vmul.f32 %v9786, %v2266
    %v9799 = vmul.f32 %v9789, %v2266
    %v9800 = vmul.f32 %v9792, %v2266
    %v9801 = vsub.f32 %v9757, %v9793
    %v9802 = vsub.f32 %v9758, %v9794
    %v9803 = vsub.f32 %v9759, %v9795
    %v9804 = vsub.f32 %v9760, %v9796
    %v9805 = vsub.f32 %v9761, %v9797
    %v9806 = vsub.f32 %v9762, %v9798
    %v9807 = vsub.f32 %v9763, %v9799
    %v9808 = vsub.f32 %v9764, %v9800
    %v9809 = vmul.f32 %v9801, %v9801
    %v9810 = vmul.f32 %v9802, %v9802
    %v9811 = vmul.f32 %v9803, %v9803
    %v9812 = vmul.f32 %v9804, %v9804
    %v9813 = vmul.f32 %v9805, %v9805
    %v9814 = vmul.f32 %v9806, %v9806
    %v9815 = vmul.f32 %v9807, %v9807
    %v9816 = vmul.f32 %v9808, %v9808
    %v9817 = vsel %vm141, %v9809, 0.0
    %9818 = vadd.xlane.f32.xlu0 %v9817
    %v9819 = vpop.xlane.xlu0 %9818
    %v9820 = vsel %vm141, %v9810, 0.0
    %9821 = vadd.xlane.f32.xlu0 %v9820
    %v9822 = vpop.xlane.xlu0 %9821
    %v9823 = vsel %vm141, %v9811, 0.0
    %9824 = vadd.xlane.f32.xlu0 %v9823
    %v9825 = vpop.xlane.xlu0 %9824
    %v9826 = vsel %vm141, %v9812, 0.0
    %9827 = vadd.xlane.f32.xlu0 %v9826
    %v9828 = vpop.xlane.xlu0 %9827
    %v9829 = vsel %vm141, %v9813, 0.0
    %9830 = vadd.xlane.f32.xlu0 %v9829
    %v9831 = vpop.xlane.xlu0 %9830
    %v9832 = vsel %vm141, %v9814, 0.0
    %9833 = vadd.xlane.f32.xlu0 %v9832
    %v9834 = vpop.xlane.xlu0 %9833
    %v9835 = vsel %vm141, %v9815, 0.0
    %9836 = vadd.xlane.f32.xlu0 %v9835
    %v9837 = vpop.xlane.xlu0 %9836
    %v9838 = vsel %vm141, %v9816, 0.0
    %9839 = vadd.xlane.f32.xlu0 %v9838
    %v9840 = vpop.xlane.xlu0 %9839
    %v9841 = vmul.f32 %v9819, %v2266
    %v9842 = vmul.f32 %v9822, %v2266
    %v9843 = vmul.f32 %v9825, %v2266
    %v9844 = vmul.f32 %v9828, %v2266
    %v9845 = vmul.f32 %v9831, %v2266
    %v9846 = vmul.f32 %v9834, %v2266
    %v9847 = vmul.f32 %v9837, %v2266
    %v9848 = vmul.f32 %v9840, %v2266
    %v9849 = vadd.f32 %v9841, 1e-05
    %v9850 = vadd.f32 %v9842, 1e-05
    %v9851 = vadd.f32 %v9843, 1e-05
    %v9852 = vadd.f32 %v9844, 1e-05
    %v9853 = vadd.f32 %v9845, 1e-05
    %v9854 = vadd.f32 %v9846, 1e-05
    %v9855 = vadd.f32 %v9847, 1e-05
    %v9856 = vadd.f32 %v9848, 1e-05
    %v9857 = vrsqrt.pop %v9849
    %v9858 = vmul.f32 %v9857, %v9849
    %v9859 = vmul.f32 %v9858, %v9857
    %v9860 = vmul.f32 0.5, %v9859
    %v9861 = vsub.f32 1.5, %v9860
    %v9862 = vmul.f32 %v9857, %v9861
    %vm9863 = vweird.f32 %v9849
    %vm9864 = vweird.f32 %v9857
    %vm9865 = vmor %vm9863, %vm9864
    %v9866 = vsel %vm9865, %v9857, %v9862
    %v9867 = vrsqrt.pop %v9850
    %v9868 = vmul.f32 %v9867, %v9850
    %v9869 = vmul.f32 %v9868, %v9867
    %v9870 = vmul.f32 0.5, %v9869
    %v9871 = vsub.f32 1.5, %v9870
    %v9872 = vmul.f32 %v9867, %v9871
    %vm9873 = vweird.f32 %v9850
    %vm9874 = vweird.f32 %v9867
    %vm9875 = vmor %vm9873, %vm9874
    %v9876 = vsel %vm9875, %v9867, %v9872
    %v9877 = vrsqrt.pop %v9851
    %v9878 = vmul.f32 %v9877, %v9851
    %v9879 = vmul.f32 %v9878, %v9877
    %v9880 = vmul.f32 0.5, %v9879
    %v9881 = vsub.f32 1.5, %v9880
    %v9882 = vmul.f32 %v9877, %v9881
    %vm9883 = vweird.f32 %v9851
    %vm9884 = vweird.f32 %v9877
    %vm9885 = vmor %vm9883, %vm9884
    %v9886 = vsel %vm9885, %v9877, %v9882
    %v9887 = vrsqrt.pop %v9852
    %v9888 = vmul.f32 %v9887, %v9852
    %v9889 = vmul.f32 %v9888, %v9887
    %v9890 = vmul.f32 0.5, %v9889
    %v9891 = vsub.f32 1.5, %v9890
    %v9892 = vmul.f32 %v9887, %v9891
    %vm9893 = vweird.f32 %v9852
    %vm9894 = vweird.f32 %v9887
    %vm9895 = vmor %vm9893, %vm9894
    %v9896 = vsel %vm9895, %v9887, %v9892
    %v9897 = vrsqrt.pop %v9853
    %v9898 = vmul.f32 %v9897, %v9853
    %v9899 = vmul.f32 %v9898, %v9897
    %v9900 = vmul.f32 0.5, %v9899
    %v9901 = vsub.f32 1.5, %v9900
    %v9902 = vmul.f32 %v9897, %v9901
    %vm9903 = vweird.f32 %v9853
    %vm9904 = vweird.f32 %v9897
    %vm9905 = vmor %vm9903, %vm9904
    %v9906 = vsel %vm9905, %v9897, %v9902
    %v9907 = vrsqrt.pop %v9854
    %v9908 = vmul.f32 %v9907, %v9854
    %v9909 = vmul.f32 %v9908, %v9907
    %v9910 = vmul.f32 0.5, %v9909
    %v9911 = vsub.f32 1.5, %v9910
    %v9912 = vmul.f32 %v9907, %v9911
    %vm9913 = vweird.f32 %v9854
    %vm9914 = vweird.f32 %v9907
    %vm9915 = vmor %vm9913, %vm9914
    %v9916 = vsel %vm9915, %v9907, %v9912
    %v9917 = vrsqrt.pop %v9855
    %v9918 = vmul.f32 %v9917, %v9855
    %v9919 = vmul.f32 %v9918, %v9917
    %v9920 = vmul.f32 0.5, %v9919
    %v9921 = vsub.f32 1.5, %v9920
    %v9922 = vmul.f32 %v9917, %v9921
    %vm9923 = vweird.f32 %v9855
    %vm9924 = vweird.f32 %v9917
    %vm9925 = vmor %vm9923, %vm9924
    %v9926 = vsel %vm9925, %v9917, %v9922
    %v9927 = vrsqrt.pop %v9856
    %v9928 = vmul.f32 %v9927, %v9856
    %v9929 = vmul.f32 %v9928, %v9927
    %v9930 = vmul.f32 0.5, %v9929
    %v9931 = vsub.f32 1.5, %v9930
    %v9932 = vmul.f32 %v9927, %v9931
    %vm9933 = vweird.f32 %v9856
    %vm9934 = vweird.f32 %v9927
    %vm9935 = vmor %vm9933, %vm9934
    %v9936 = vsel %vm9935, %v9927, %v9932
    %v9937 = vmul.f32 %v9801, %v9866
    %v9938 = vmul.f32 %v9802, %v9876
    %v9939 = vmul.f32 %v9803, %v9886
    %v9940 = vmul.f32 %v9804, %v9896
    %v9941 = vmul.f32 %v9805, %v9906
    %v9942 = vmul.f32 %v9806, %v9916
    %v9943 = vmul.f32 %v9807, %v9926
    %v9944 = vmul.f32 %v9808, %v9936
    %v9946 = vperm.slane %v9766, 0
    %v9948 = vmul.f32 %v9937, %v9946
    %v9949 = vmul.f32 %v9938, %v9946
    %v9950 = vmul.f32 %v9939, %v9946
    %v9951 = vmul.f32 %v9940, %v9946
    %v9952 = vmul.f32 %v9941, %v9946
    %v9953 = vmul.f32 %v9942, %v9946
    %v9954 = vmul.f32 %v9943, %v9946
    %v9955 = vmul.f32 %v9944, %v9946
    %v9957 = vperm.slane %v9768, 0
    %v9959 = vadd.f32 %v9948, %v9957
    %v9960 = vadd.f32 %v9949, %v9957
    %v9961 = vadd.f32 %v9950, %v9957
    %v9962 = vadd.f32 %v9951, %v9957
    %v9963 = vadd.f32 %v9952, %v9957
    %v9964 = vadd.f32 %v9953, %v9957
    %v9965 = vadd.f32 %v9954, %v9957
    %v9966 = vadd.f32 %v9955, %v9957
    %vm9967 = vcmask 57344
    %v9968 = vsel %vm9967, %v69, 0.0
    %9969 = vadd.xlane.f32.xlu0 %v9968
    %v9970 = vpop.xlane.xlu0 %9969
    %v9971 = vsel %vm9967, %v70, 0.0
    %9972 = vadd.xlane.f32.xlu0 %v9971
    %v9973 = vpop.xlane.xlu0 %9972
    %v9974 = vsel %vm9967, %v71, 0.0
    %9975 = vadd.xlane.f32.xlu0 %v9974
    %v9976 = vpop.xlane.xlu0 %9975
    %v9977 = vsel %vm9967, %v72, 0.0
    %9978 = vadd.xlane.f32.xlu0 %v9977
    %v9979 = vpop.xlane.xlu0 %9978
    %v9980 = vsel %vm9967, %v73, 0.0
    %9981 = vadd.xlane.f32.xlu0 %v9980
    %v9982 = vpop.xlane.xlu0 %9981
    %v9983 = vsel %vm9967, %v74, 0.0
    %9984 = vadd.xlane.f32.xlu0 %v9983
    %v9985 = vpop.xlane.xlu0 %9984
    %v9986 = vsel %vm9967, %v75, 0.0
    %9987 = vadd.xlane.f32.xlu0 %v9986
    %v9988 = vpop.xlane.xlu0 %9987
    %v9989 = vsel %vm9967, %v76, 0.0
    %9990 = vadd.xlane.f32.xlu0 %v9989
    %v9991 = vpop.xlane.xlu0 %9990
    %v9992 = vadd.f32 %v9970, 1e-12
    %v9993 = vadd.f32 %v9973, 1e-12
    %v9994 = vadd.f32 %v9976, 1e-12
    %v9995 = vadd.f32 %v9979, 1e-12
    %v9996 = vadd.f32 %v9982, 1e-12
    %v9997 = vadd.f32 %v9985, 1e-12
    %v9998 = vadd.f32 %v9988, 1e-12
    %v9999 = vadd.f32 %v9991, 1e-12
    %v10000 = vrcp.pop %v9992
    %v10001 = vrcp.pop %v9993
    %v10002 = vrcp.pop %v9994
    %v10003 = vrcp.pop %v9995
    %v10004 = vrcp.pop %v9996
    %v10005 = vrcp.pop %v9997
    %v10006 = vrcp.pop %v9998
    %v10007 = vrcp.pop %v9999
    %v10008 = vmul.f32 %v69, %v10000
    %v10009 = vmul.f32 %v70, %v10001
    %v10010 = vmul.f32 %v71, %v10002
    %v10011 = vmul.f32 %v72, %v10003
    %v10012 = vmul.f32 %v73, %v10004
    %v10013 = vmul.f32 %v74, %v10005
    %v10014 = vmul.f32 %v75, %v10006
    %v10015 = vmul.f32 %v76, %v10007
    %v10017 = vsel %vm205, %v10008, 0
    %10019 = vmatpush.msra.mxu0 0.0
    %10020 = vmatpush.msra.mxu0 0.0
    %10021 = vmatpush.msra.mxu0 0.0
    %10022 = vmatpush.msra.mxu0 0.0
    %10023 = vmatpush.msra.mxu0 0.0
    %10024 = vmatpush.msra.mxu0 0.0
    %10025 = vmatpush.msra.mxu0 0.0
    %10026 = vmatpush.msra.mxu0 0.0
    %10027 = vmatpush.msra.mxu0 0.0
    %10028 = vmatpush.msra.mxu0 0.0
    %10029 = vmatpush.msra.mxu0 0.0
    %10030 = vmatpush.msra.mxu0 0.0
    %10031 = vmatpush.msra.mxu0 0.0
    %10032 = vmatpush.msra.mxu0 0.0
    %10033 = vmatpush.msra.mxu0 0.0
    %10034 = vmatpush.msra.mxu0 %v9959
    %10035 = vmatmul.f32.gmra.mxu0 %v10017
    %v10036 = vpop.f32.mrf.mxu0
    %v10037 = vadd.f32 0.0, %v10036
    %10038 = vdwg.mxu0
    %v10040 = vsel %vm205, %v10009, 0
    %10042 = vmatpush.msra.mxu0 0.0
    %10043 = vmatpush.msra.mxu0 0.0
    %10044 = vmatpush.msra.mxu0 0.0
    %10045 = vmatpush.msra.mxu0 0.0
    %10046 = vmatpush.msra.mxu0 0.0
    %10047 = vmatpush.msra.mxu0 0.0
    %10048 = vmatpush.msra.mxu0 0.0
    %10049 = vmatpush.msra.mxu0 0.0
    %10050 = vmatpush.msra.mxu0 0.0
    %10051 = vmatpush.msra.mxu0 0.0
    %10052 = vmatpush.msra.mxu0 0.0
    %10053 = vmatpush.msra.mxu0 0.0
    %10054 = vmatpush.msra.mxu0 0.0
    %10055 = vmatpush.msra.mxu0 0.0
    %10056 = vmatpush.msra.mxu0 0.0
    %10057 = vmatpush.msra.mxu0 %v9960
    %10058 = vmatmul.f32.gmra.mxu0 %v10040
    %v10059 = vpop.f32.mrf.mxu0
    %v10060 = vadd.f32 0.0, %v10059
    %10061 = vdwg.mxu0
    %v10063 = vsel %vm205, %v10010, 0
    %10065 = vmatpush.msra.mxu0 0.0
    %10066 = vmatpush.msra.mxu0 0.0
    %10067 = vmatpush.msra.mxu0 0.0
    %10068 = vmatpush.msra.mxu0 0.0
    %10069 = vmatpush.msra.mxu0 0.0
    %10070 = vmatpush.msra.mxu0 0.0
    %10071 = vmatpush.msra.mxu0 0.0
    %10072 = vmatpush.msra.mxu0 0.0
    %10073 = vmatpush.msra.mxu0 0.0
    %10074 = vmatpush.msra.mxu0 0.0
    %10075 = vmatpush.msra.mxu0 0.0
    %10076 = vmatpush.msra.mxu0 0.0
    %10077 = vmatpush.msra.mxu0 0.0
    %10078 = vmatpush.msra.mxu0 0.0
    %10079 = vmatpush.msra.mxu0 0.0
    %10080 = vmatpush.msra.mxu0 %v9961
    %10081 = vmatmul.f32.gmra.mxu0 %v10063
    %v10082 = vpop.f32.mrf.mxu0
    %v10083 = vadd.f32 0.0, %v10082
    %10084 = vdwg.mxu0
    %v10086 = vsel %vm205, %v10011, 0
    %10088 = vmatpush.msra.mxu0 0.0
    %10089 = vmatpush.msra.mxu0 0.0
    %10090 = vmatpush.msra.mxu0 0.0
    %10091 = vmatpush.msra.mxu0 0.0
    %10092 = vmatpush.msra.mxu0 0.0
    %10093 = vmatpush.msra.mxu0 0.0
    %10094 = vmatpush.msra.mxu0 0.0
    %10095 = vmatpush.msra.mxu0 0.0
    %10096 = vmatpush.msra.mxu0 0.0
    %10097 = vmatpush.msra.mxu0 0.0
    %10098 = vmatpush.msra.mxu0 0.0
    %10099 = vmatpush.msra.mxu0 0.0
    %10100 = vmatpush.msra.mxu0 0.0
    %10101 = vmatpush.msra.mxu0 0.0
    %10102 = vmatpush.msra.mxu0 0.0
    %10103 = vmatpush.msra.mxu0 %v9962
    %10104 = vmatmul.f32.gmra.mxu0 %v10086
    %v10105 = vpop.f32.mrf.mxu0
    %v10106 = vadd.f32 0.0, %v10105
    %10107 = vdwg.mxu0
    %v10109 = vsel %vm205, %v10012, 0
    %10111 = vmatpush.msra.mxu0 0.0
    %10112 = vmatpush.msra.mxu0 0.0
    %10113 = vmatpush.msra.mxu0 0.0
    %10114 = vmatpush.msra.mxu0 0.0
    %10115 = vmatpush.msra.mxu0 0.0
    %10116 = vmatpush.msra.mxu0 0.0
    %10117 = vmatpush.msra.mxu0 0.0
    %10118 = vmatpush.msra.mxu0 0.0
    %10119 = vmatpush.msra.mxu0 0.0
    %10120 = vmatpush.msra.mxu0 0.0
    %10121 = vmatpush.msra.mxu0 0.0
    %10122 = vmatpush.msra.mxu0 0.0
    %10123 = vmatpush.msra.mxu0 0.0
    %10124 = vmatpush.msra.mxu0 0.0
    %10125 = vmatpush.msra.mxu0 0.0
    %10126 = vmatpush.msra.mxu0 %v9963
    %10127 = vmatmul.f32.gmra.mxu0 %v10109
    %v10128 = vpop.f32.mrf.mxu0
    %v10129 = vadd.f32 0.0, %v10128
    %10130 = vdwg.mxu0
    %v10132 = vsel %vm205, %v10013, 0
    %10134 = vmatpush.msra.mxu0 0.0
    %10135 = vmatpush.msra.mxu0 0.0
    %10136 = vmatpush.msra.mxu0 0.0
    %10137 = vmatpush.msra.mxu0 0.0
    %10138 = vmatpush.msra.mxu0 0.0
    %10139 = vmatpush.msra.mxu0 0.0
    %10140 = vmatpush.msra.mxu0 0.0
    %10141 = vmatpush.msra.mxu0 0.0
    %10142 = vmatpush.msra.mxu0 0.0
    %10143 = vmatpush.msra.mxu0 0.0
    %10144 = vmatpush.msra.mxu0 0.0
    %10145 = vmatpush.msra.mxu0 0.0
    %10146 = vmatpush.msra.mxu0 0.0
    %10147 = vmatpush.msra.mxu0 0.0
    %10148 = vmatpush.msra.mxu0 0.0
    %10149 = vmatpush.msra.mxu0 %v9964
    %10150 = vmatmul.f32.gmra.mxu0 %v10132
    %v10151 = vpop.f32.mrf.mxu0
    %v10152 = vadd.f32 0.0, %v10151
    %10153 = vdwg.mxu0
    %v10155 = vsel %vm205, %v10014, 0
    %10157 = vmatpush.msra.mxu0 0.0
    %10158 = vmatpush.msra.mxu0 0.0
    %10159 = vmatpush.msra.mxu0 0.0
    %10160 = vmatpush.msra.mxu0 0.0
    %10161 = vmatpush.msra.mxu0 0.0
    %10162 = vmatpush.msra.mxu0 0.0
    %10163 = vmatpush.msra.mxu0 0.0
    %10164 = vmatpush.msra.mxu0 0.0
    %10165 = vmatpush.msra.mxu0 0.0
    %10166 = vmatpush.msra.mxu0 0.0
    %10167 = vmatpush.msra.mxu0 0.0
    %10168 = vmatpush.msra.mxu0 0.0
    %10169 = vmatpush.msra.mxu0 0.0
    %10170 = vmatpush.msra.mxu0 0.0
    %10171 = vmatpush.msra.mxu0 0.0
    %10172 = vmatpush.msra.mxu0 %v9965
    %10173 = vmatmul.f32.gmra.mxu0 %v10155
    %v10174 = vpop.f32.mrf.mxu0
    %v10175 = vadd.f32 0.0, %v10174
    %10176 = vdwg.mxu0
    %v10178 = vsel %vm205, %v10015, 0
    %10180 = vmatpush.msra.mxu0 0.0
    %10181 = vmatpush.msra.mxu0 0.0
    %10182 = vmatpush.msra.mxu0 0.0
    %10183 = vmatpush.msra.mxu0 0.0
    %10184 = vmatpush.msra.mxu0 0.0
    %10185 = vmatpush.msra.mxu0 0.0
    %10186 = vmatpush.msra.mxu0 0.0
    %10187 = vmatpush.msra.mxu0 0.0
    %10188 = vmatpush.msra.mxu0 0.0
    %10189 = vmatpush.msra.mxu0 0.0
    %10190 = vmatpush.msra.mxu0 0.0
    %10191 = vmatpush.msra.mxu0 0.0
    %10192 = vmatpush.msra.mxu0 0.0
    %10193 = vmatpush.msra.mxu0 0.0
    %10194 = vmatpush.msra.mxu0 0.0
    %10195 = vmatpush.msra.mxu0 %v9966
    %10196 = vmatmul.f32.gmra.mxu0 %v10178
    %v10197 = vpop.f32.mrf.mxu0
    %v10198 = vadd.f32 0.0, %v10197
    %10199 = vdwg.mxu0
    %v10208 = vrot.slane %v10060, 7
    %vm10209 = vcmask 1041409
    %v10210 = vsel %vm10209, %v10208, %v10037
    %v10211 = vrot.slane %v10083, 6
    %vm10212 = vcmask 1042434
    %v10213 = vsel %vm10212, %v10211, %v10210
    %v10214 = vrot.slane %v10106, 5
    %vm10215 = vcmask 1043459
    %v10216 = vsel %vm10215, %v10214, %v10213
    %v10217 = vrot.slane %v10129, 4
    %vm10218 = vcmask 1044484
    %v10219 = vsel %vm10218, %v10217, %v10216
    %v10220 = vrot.slane %v10152, 3
    %vm10221 = vcmask 1045509
    %v10222 = vsel %vm10221, %v10220, %v10219
    %v10223 = vrot.slane %v10175, 2
    %vm10224 = vcmask 1046534
    %v10225 = vsel %vm10224, %v10223, %v10222
    %v10226 = vrot.slane %v10198, 1
    %vm10227 = vcmask 1047559
    %v10228 = vsel %vm10227, %v10226, %v10225
    %10230 = vst.msk [vmem:[#allocation2] sm:$0xff] %vm141, %v10228
    // Predicated region
    $region62: #{tpu_custom_call.1} parent=1 // pred_check
      _
    $region63: #{tpu_custom_call.1} parent=1 // pred_check_branch
      %10232 = sbr.rel (0) target = $region65
    $region64: #{tpu_custom_call.1} parent=1 // pred_region
      %10234 = vsyncadd [#allocation3], 0
      %s10236 = sshll.u32 [#allocation2], 4
      %s10237 = int_to_ptr.vmem [resolvable:$true] %s10236
      %s10238 = sshll.u32 %s15, 4
      %s10239 = int_to_ptr.hbm [resolvable:$true] %s10238
      %10241 = dma.vmem_to_hbm [thread:$0]  %s10237, 128, %s10239, [#allocation3]
    $region65: #{tpu_custom_call.1} parent=1 // pred_fallthru
      _
    // Predicated region
    $region66: #{tpu_custom_call.1} parent=1 // pred_check
      _
    $region67: #{tpu_custom_call.1} parent=1 // pred_check_branch
      %10243 = sbr.rel (0) target = $region69
    $region68: #{tpu_custom_call.1} parent=1 // pred_region
      %10245 = dma.done [#allocation3], 128
    $region69: #{tpu_custom_call.1} parent=1 // pred_fallthru
      _
    %10246 = vsyncpa [#allocation3], 1

</llo_original>
